<compile_context>
chip_gen: v6e
topology: v6e:2x2x1
jax: 0.10.0
libtpu: 0.0.40
codegen_flags: <defaults>
</compile_context>

<pallas_src>
import jax
import jax.numpy as jnp
from jax.experimental import pallas as pl
from jax.experimental.pallas import tpu as pltpu

EPS = 1e-5        # nn.BatchNorm2d default eps
COUT = 64         # every conv layer outputs 64 channels
K9 = 9 * COUT     # merged-tap contraction depth for the 64->64 layers


def _pow2_at_least(v, lo=1):
    p = lo
    while p < v:
        p *= 2
    return p


def _round_up(v, m):
    return ((v + m - 1) // m) * m


def cnnencoder_forward(x_nchw, params):
    """Fused forward pass.

    x_nchw : (N, 3, H, W) float32
    params : 4 tuples (conv_w[OIHW], conv_b, bn_gamma, bn_beta).  conv_b is
             accepted but unused: a per-channel bias added before
             training-mode BatchNorm cancels exactly in (y - mean).
    """
    N, CIN, H, W = x_nchw.shape

    # ---- static geometry (frame widths / image strides are powers of two) ---
    OH1, OW1 = H - 2, W - 2                       # layer1 conv (valid): 14x14
    OW1P = _pow2_at_least(OW1, 8)                 # 16
    IMG1 = OH1 * OW1P                             # 224 rows / image in c1
    SPAN1 = N * IMG1                              # 448

    P1, Q1 = OH1 // 2, OW1 // 2                   # pool1: 7x7
    W2P = _pow2_at_least(Q1, 8)                   # 8
    H2P = _pow2_at_least(P1, 1)                   # 8
    IMG2 = H2P * W2P                              # 64 rows / image in a2
    SPAN2 = N * IMG2                              # 128
    A2_ROWS = SPAN2 + _round_up(2 * W2P + 2, 8)   # + tap-read tail -> 152
    OH2, OW2 = P1 - 2, Q1 - 2                     # layer2 conv (valid): 5x5

    P2, Q2 = OH2 // 2, OW2 // 2                   # pool2: 2x2
    W3P = _pow2_at_least(Q2 + 2, 8)               # 8 (padded width, pad=1)
    H3P = _pow2_at_least(P2 + 2, 1)               # 4 (padded height)
    IMG3 = H3P * W3P                              # 32 rows / image
    SPAN3 = N * IMG3                              # 64
    A3_ROWS = SPAN3 + _round_up(2 * W3P + 2, 8)   # 88

    K1 = 9 * CIN                                  # 27
    K1P = _round_up(K1, 8)                        # 32 (zero-padded K)

    NV1 = float(N * OH1 * OW1)
    NV2 = float(N * OH2 * OW2)
    NV34 = float(N * P2 * Q2)

    SH_W2 = W2P.bit_length() - 1                  # log2(W2P)
    SH_W3 = W3P.bit_length() - 1

    # ---- parameter packing (one-time XLA glue, a few hundred KB) ------------
    (w1, _b1, g1, be1), (w2, _b2, g2, be2), \
        (w3, _b3, g3, be3), (w4, _b4, g4, be4) = params
    # (Cout,Cin,kh,kw) -> (kh,kw,Cin,Cout) -> (9*Cin, Cout); K zero-padded
    w1r = jnp.transpose(w1, (2, 3, 1, 0)).reshape(K1, COUT)
    w1r = jnp.pad(w1r, ((0, K1P - K1), (0, 0)))
    w2r = jnp.transpose(w2, (2, 3, 1, 0)).reshape(K9, COUT)
    w3r = jnp.transpose(w3, (2, 3, 1, 0)).reshape(K9, COUT)
    w4r = jnp.transpose(w4, (2, 3, 1, 0)).reshape(K9, COUT)
    bn = jnp.stack([g1, be1, g2, be2, g3, be3, g4, be4])       # (8, 64)

    # layer-1 im2col LHS built in XLA: rows = n*IMG1 + h*OW1P + w
    x_nhwc = jnp.transpose(x_nchw, (0, 2, 3, 1))               # (N,H,W,Cin)
    patches = jnp.concatenate(
        [x_nhwc[:, kh:kh + OH1, kw:kw + OW1, :]
         for kh in range(3) for kw in range(3)], axis=-1)      # (N,14,14,27)
    lhs1 = jnp.pad(patches,
                   ((0, 0), (0, 0), (0, OW1P - OW1), (0, K1P - K1)))
    lhs1 = lhs1.reshape(SPAN1, K1P)                            # (448, 32)

    # ---- the single fused kernel --------------------------------------------
    def kernel(lhs1_ref, w1_ref, w2_ref, w3_ref, w4_ref, bn_ref,   # inputs
               out_ref,                                            # out = c4
               c1_ref, a2_ref, lhs2_ref, c2_ref, a3_ref,
               lhs34_ref, c3_ref, a4_ref):                         # scratch

        def conv_bn_relu(lhs_ref, w_ref, dst_ref, li, valid_fn, n_valid):
            # one merged-tap MXU matmul for the whole batch
            dst_ref[...] = jnp.dot(lhs_ref[...], w_ref[...],
                                   preferred_element_type=jnp.float32)
            a = dst_ref[...]
            rows = jax.lax.broadcasted_iota(jnp.int32, a.shape, 0)
            am = jnp.where(valid_fn(rows), a, 0.0)     # exclude garbage rows
            s1 = jnp.sum(am, axis=0, keepdims=True)    # (1, 64)
            s2 = jnp.sum(am * a, axis=0, keepdims=True)
            inv_n = 1.0 / n_valid
            mean = s1 * inv_n                          # training-mode BN stats
            var = s2 * inv_n - mean * mean
            gamma = bn_ref[2 * li:2 * li + 1, :]
            beta = bn_ref[2 * li + 1:2 * li + 2, :]
            scale = gamma * jax.lax.rsqrt(var + EPS)
            dst_ref[...] = jnp.maximum((a - mean) * scale + beta, 0.0)

        def build_lhs(src_ref, lhs_ref, w_in, span):
            # merged-tap im2col: 9 contiguous slab copies, taps along lanes
            for kh in range(3):
                for kw in range(3):
                    t = kh * 3 + kw
                    off = kh * w_in + kw
                    lhs_ref[:, t * COUT:(t + 1) * COUT] = \
                        src_ref[off:off + span, :]

        def pool_row(src_ref, base, w_in, ncols):
            # one pooled output row: 4 stride-2 sublane loads + 3 vmax
            e1 = src_ref[pl.ds(base, ncols, stride=2), :]
            o1 = src_ref[pl.ds(base + 1, ncols, stride=2), :]
            e2 = src_ref[pl.ds(base + w_in, ncols, stride=2), :]
            o2 = src_ref[pl.ds(base + w_in + 1, ncols, stride=2), :]
            return jnp.maximum(jnp.maximum(e1, o1), jnp.maximum(e2, o2))

        # zero-fill padded / partially written input slabs once
        a2_ref[...] = jnp.zeros(a2_ref.shape, jnp.float32)
        a3_ref[...] = jnp.zeros(a3_ref.shape, jnp.float32)
        a4_ref[...] = jnp.zeros(a4_ref.shape, jnp.float32)

        # ---- layer 1: conv(3->64, valid) + BN + ReLU + pool -----------------
        conv_bn_relu(lhs1_ref, w1_ref, c1_ref, 0,
                     lambda r: (r & (OW1P - 1)) < OW1, NV1)
        for n in range(N):
            for p in range(P1):
                base = n * IMG1 + 2 * p * OW1P
                a2_ref[n * IMG2 + p * W2P:n * IMG2 + (p + 1) * W2P, :] = \
                    pool_row(c1_ref, base, OW1P, W2P)

        # ---- layer 2: conv(64->64, valid) + BN + ReLU + pool ----------------
        build_lhs(a2_ref, lhs2_ref, W2P, SPAN2)
        conv_bn_relu(lhs2_ref, w2_ref, c2_ref, 1,
                     lambda r: ((r & (W2P - 1)) < OW2)
                     & (((r >> SH_W2) & (H2P - 1)) < OH2), NV2)
        for n in range(N):
            for p in range(P2):
                base = n * IMG2 + 2 * p * W2P
                dst = n * IMG3 + (p + 1) * W3P + 1
                a3_ref[dst:dst + Q2, :] = pool_row(c2_ref, base, W2P, Q2)

        # ---- layer 3: conv(64->64, pad=1) + BN + ReLU -----------------------
        build_lhs(a3_ref, lhs34_ref, W3P, SPAN3)
        conv_bn_relu(lhs34_ref, w3_ref, c3_ref, 2,
                     lambda r: ((r & (W3P - 1)) < Q2)
                     & (((r >> SH_W3) & (H3P - 1)) < P2), NV34)
        # repack layer3's valid rows into layer4's zero-padded input frame
        for n in range(N):
            for h in range(P2):
                src = n * IMG3 + h * W3P
                dst = n * IMG3 + (h + 1) * W3P + 1
                a4_ref[dst:dst + Q2, :] = c3_ref[src:src + Q2, :]

        # ---- layer 4: conv(64->64, pad=1) + BN + ReLU -----------------------
        build_lhs(a4_ref, lhs34_ref, W3P, SPAN3)
        conv_bn_relu(lhs34_ref, w4_ref, out_ref, 3,
                     lambda r: ((r & (W3P - 1)) < Q2)
                     & (((r >> SH_W3) & (H3P - 1)) < P2), NV34)

    vmem = pltpu.MemorySpace.VMEM
    out_flat = pl.pallas_call(
        kernel,
        out_shape=jax.ShapeDtypeStruct((SPAN3, COUT), jnp.float32),
        in_specs=[pl.BlockSpec(memory_space=vmem)] * 6,
        out_specs=pl.BlockSpec(memory_space=vmem),
        scratch_shapes=[
            pltpu.VMEM((SPAN1, COUT), jnp.float32),    # c1: layer1 conv frame
            pltpu.VMEM((A2_ROWS, COUT), jnp.float32),  # a2: pooled1 (+tail)
            pltpu.VMEM((SPAN2, K9), jnp.float32),      # lhs2: merged-tap LHS
            pltpu.VMEM((SPAN2, COUT), jnp.float32),    # c2: layer2 conv frame
            pltpu.VMEM((A3_ROWS, COUT), jnp.float32),  # a3: padded layer3 in
            pltpu.VMEM((SPAN3, K9), jnp.float32),      # lhs34: layers 3 & 4
            pltpu.VMEM((SPAN3, COUT), jnp.float32),    # c3: layer3 conv frame
            pltpu.VMEM((A3_ROWS, COUT), jnp.float32),  # a4: padded layer4 in
        ],
    )(lhs1, w1r, w2r, w3r, w4r, bn)

    out = out_flat.reshape(N, H3P, W3P, COUT)[:, :P2, :Q2, :]
    return jnp.transpose(out, (0, 3, 1, 2))            # back to NCHW


def cnnencoder_reference(x, params):
    """Pure-JAX/XLA reference (training-mode BN, bias included)."""
    out = x
    for (w, b, g, be), pad, pool in zip(params, (0, 0, 1, 1),
                                        (True, True, False, False)):
        out = jax.lax.conv_general_dilated(
            out, w, window_strides=(1, 1),
            padding=((pad, pad), (pad, pad)),
            dimension_numbers=('NCHW', 'OIHW', 'NCHW'))
        out = out + b.reshape(1, -1, 1, 1)
        mean = jnp.mean(out, axis=(0, 2, 3), keepdims=True)
        var = jnp.var(out, axis=(0, 2, 3), keepdims=True)       # biased
        out = (out - mean) * jax.lax.rsqrt(var + EPS) * g.reshape(1, -1, 1, 1) \
            + be.reshape(1, -1, 1, 1)
        out = jnp.maximum(out, 0.0)
        if pool:
            out = jax.lax.reduce_window(out, -jnp.inf, jax.lax.max,
                                        (1, 1, 2, 2), (1, 1, 2, 2), 'VALID')
    return out


def make_layer_params(key, cin, cout):
    kw, kb, kg, kbt = jax.random.split(key, 4)
    w = 0.05 * jax.random.normal(kw, (cout, cin, 3, 3), jnp.float32)   # Conv2d.weight
    b = 0.05 * jax.random.normal(kb, (cout,), jnp.float32)             # Conv2d.bias
    gamma = 1.0 + 0.1 * jax.random.normal(kg, (cout,), jnp.float32)    # BN.weight
    beta = 0.1 * jax.random.normal(kbt, (cout,), jnp.float32)          # BN.bias
    return w, b, gamma, beta


if __name__ == "__main__":
    root = jax.random.PRNGKey(0)
    k1, k2, k3, k4, kx = jax.random.split(root, 5)
    params = (make_layer_params(k1, 3, 64),
              make_layer_params(k2, 64, 64),
              make_layer_params(k3, 64, 64),
              make_layer_params(k4, 64, 64))

    # Input: NCHW, batch=2, 3 channels, 16x16 spatial.
    x = jax.random.normal(kx, (2, 3, 16, 16), jnp.float32)

    fwd = jax.jit(cnnencoder_forward)
    out = jax.block_until_ready(fwd(x, params))

    # 16 -conv-> 14 -pool-> 7 -conv-> 5 -pool-> 2 -conv(pad1)-> 2 -conv(pad1)-> 2
    assert out.shape == (2, 64, 2, 2), out.shape
    assert out.dtype == jnp.float32

    # Loose tolerance: both the kernel and the XLA reference run f32 matmuls
    # at the TPU default matmul precision with different accumulation orders;
    # structural bugs would show errors O(0.1-1).
    ref = jax.block_until_ready(cnnencoder_reference(x, params))
    max_diff = float(jnp.max(jnp.abs(out - ref)))
    assert jnp.allclose(out, ref, atol=5e-2, rtol=5e-2), max_diff

    print("KERNEL_OK")
</pallas_src>

<mosaic_0001>
module attributes {stable_mosaic.version = 11 : i64} {
  func.func @kernel(%arg0: memref<448x32xf32, #tpu.memory_space<vmem>>, %arg1: memref<32x64xf32, #tpu.memory_space<vmem>>, %arg2: memref<576x64xf32, #tpu.memory_space<vmem>>, %arg3: memref<576x64xf32, #tpu.memory_space<vmem>>, %arg4: memref<576x64xf32, #tpu.memory_space<vmem>>, %arg5: memref<8x64xf32, #tpu.memory_space<vmem>>, %arg6: memref<64x64xf32, #tpu.memory_space<vmem>>, %arg7: memref<448x64xf32, #tpu.memory_space<vmem>>, %arg8: memref<152x64xf32, #tpu.memory_space<vmem>>, %arg9: memref<128x576xf32, #tpu.memory_space<vmem>>, %arg10: memref<128x64xf32, #tpu.memory_space<vmem>>, %arg11: memref<88x64xf32, #tpu.memory_space<vmem>>, %arg12: memref<64x576xf32, #tpu.memory_space<vmem>>, %arg13: memref<64x64xf32, #tpu.memory_space<vmem>>, %arg14: memref<88x64xf32, #tpu.memory_space<vmem>>) attributes {dimension_semantics = [], scalar_prefetch = 0 : i64, scratch_operands = 8 : i64, tpu.core_type = #tpu.core_type<tc>} {
    %cst = arith.constant 0.000000e+00 : f32
    %0 = vector.broadcast %cst : f32 to vector<152x64xf32>
    %c0 = arith.constant 0 : index
    %c0_0 = arith.constant 0 : index
    %1 = vector.load %arg8[%c0, %c0_0] : memref<152x64xf32, #tpu.memory_space<vmem>>, vector<152x64xf32>
    tpu.vector_store %arg8[%c0, %c0_0], %0 {strides = array<i32>} : memref<152x64xf32, #tpu.memory_space<vmem>>, vector<152x64xf32>,
    %cst_1 = arith.constant 0.000000e+00 : f32
    %2 = vector.broadcast %cst_1 : f32 to vector<88x64xf32>
    %c0_2 = arith.constant 0 : index
    %c0_3 = arith.constant 0 : index
    %3 = vector.load %arg11[%c0_2, %c0_3] : memref<88x64xf32, #tpu.memory_space<vmem>>, vector<88x64xf32>
    tpu.vector_store %arg11[%c0_2, %c0_3], %2 {strides = array<i32>} : memref<88x64xf32, #tpu.memory_space<vmem>>, vector<88x64xf32>,
    %cst_4 = arith.constant 0.000000e+00 : f32
    %4 = vector.broadcast %cst_4 : f32 to vector<88x64xf32>
    %c0_5 = arith.constant 0 : index
    %c0_6 = arith.constant 0 : index
    %5 = vector.load %arg14[%c0_5, %c0_6] : memref<88x64xf32, #tpu.memory_space<vmem>>, vector<88x64xf32>
    tpu.vector_store %arg14[%c0_5, %c0_6], %4 {strides = array<i32>} : memref<88x64xf32, #tpu.memory_space<vmem>>, vector<88x64xf32>,
    %c0_7 = arith.constant 0 : index
    %c0_8 = arith.constant 0 : index
    %6 = vector.load %arg0[%c0_7, %c0_8] : memref<448x32xf32, #tpu.memory_space<vmem>>, vector<448x32xf32>
    %c0_9 = arith.constant 0 : index
    %c0_10 = arith.constant 0 : index
    %7 = vector.load %arg1[%c0_9, %c0_10] : memref<32x64xf32, #tpu.memory_space<vmem>>, vector<32x64xf32>
    %cst_11 = arith.constant dense<0.000000e+00> : vector<448x64xf32>
    %8 = tpu.matmul %6, %7, %cst_11 {dimension_numbers = #tpu.dot_dimension_numbers<[1], [0], [0], [1], [0, 0, 1, 1], [], []>} : vector<448x32xf32>, vector<32x64xf32>, vector<448x64xf32> -> vector<448x64xf32>
    %c0_12 = arith.constant 0 : index
    %c0_13 = arith.constant 0 : index
    %9 = vector.load %arg7[%c0_12, %c0_13] : memref<448x64xf32, #tpu.memory_space<vmem>>, vector<448x64xf32>
    tpu.vector_store %arg7[%c0_12, %c0_13], %8 {strides = array<i32>} : memref<448x64xf32, #tpu.memory_space<vmem>>, vector<448x64xf32>,
    %c0_14 = arith.constant 0 : index
    %c0_15 = arith.constant 0 : index
    %10 = vector.load %arg7[%c0_14, %c0_15] : memref<448x64xf32, #tpu.memory_space<vmem>>, vector<448x64xf32>
    %11 = tpu.iota {dimensions = array<i32: 0>} : vector<448x64xi32>
    %c15_i32 = arith.constant 15 : i32
    %12 = vector.broadcast %c15_i32 : i32 to vector<448x64xi32>
    %13 = arith.andi %11, %12 : vector<448x64xi32>
    %c14_i32 = arith.constant 14 : i32
    %14 = vector.broadcast %c14_i32 : i32 to vector<448x64xi32>
    %15 = arith.cmpi slt, %13, %14 : vector<448x64xi32>
    %cst_16 = arith.constant 0.000000e+00 : f32
    %16 = vector.broadcast %cst_16 : f32 to vector<448x64xf32>
    %17 = arith.select %15, %10, %16 : vector<448x64xi1>, vector<448x64xf32>
    %cst_17 = arith.constant dense<0.000000e+00> : vector<64xf32>
    %18 = vector.multi_reduction <add>, %17, %cst_17 [0] : vector<448x64xf32> to vector<64xf32>
    %19 = vector.shape_cast %18 : vector<64xf32> to vector<1x64xf32>
    %20 = arith.mulf %17, %10 : vector<448x64xf32>
    %cst_18 = arith.constant dense<0.000000e+00> : vector<64xf32>
    %21 = vector.multi_reduction <add>, %20, %cst_18 [0] : vector<448x64xf32> to vector<64xf32>
    %22 = vector.shape_cast %21 : vector<64xf32> to vector<1x64xf32>
    %cst_19 = arith.constant 0.00255102036 : f32
    %23 = vector.broadcast %cst_19 : f32 to vector<1x64xf32>
    %24 = arith.mulf %19, %23 : vector<1x64xf32>
    %cst_20 = arith.constant 0.00255102036 : f32
    %25 = vector.broadcast %cst_20 : f32 to vector<1x64xf32>
    %26 = arith.mulf %22, %25 : vector<1x64xf32>
    %27 = arith.mulf %24, %24 : vector<1x64xf32>
    %28 = arith.subf %26, %27 : vector<1x64xf32>
    %c0_21 = arith.constant 0 : index
    %c0_22 = arith.constant 0 : index
    %29 = vector.load %arg5[%c0_21, %c0_22] : memref<8x64xf32, #tpu.memory_space<vmem>>, vector<1x64xf32>
    %c1 = arith.constant 1 : index
    %c0_23 = arith.constant 0 : index
    %30 = vector.load %arg5[%c1, %c0_23] : memref<8x64xf32, #tpu.memory_space<vmem>>, vector<1x64xf32>
    %cst_24 = arith.constant 9.99999974E-6 : f32
    %31 = vector.broadcast %cst_24 : f32 to vector<1x64xf32>
    %32 = arith.addf %28, %31 : vector<1x64xf32>
    %33 = math.rsqrt %32 : vector<1x64xf32>
    %34 = arith.mulf %29, %33 : vector<1x64xf32>
    %35 = vector.broadcast %24 : vector<1x64xf32> to vector<448x64xf32>
    %36 = arith.subf %10, %35 : vector<448x64xf32>
    %37 = vector.broadcast %34 : vector<1x64xf32> to vector<448x64xf32>
    %38 = arith.mulf %36, %37 : vector<448x64xf32>
    %39 = vector.broadcast %30 : vector<1x64xf32> to vector<448x64xf32>
    %40 = arith.addf %38, %39 : vector<448x64xf32>
    %cst_25 = arith.constant 0.000000e+00 : f32
    %41 = vector.broadcast %cst_25 : f32 to vector<448x64xf32>
    %42 = arith.maximumf %40, %41 : vector<448x64xf32>
    %c0_26 = arith.constant 0 : index
    %c0_27 = arith.constant 0 : index
    %43 = vector.load %arg7[%c0_26, %c0_27] : memref<448x64xf32, #tpu.memory_space<vmem>>, vector<448x64xf32>
    tpu.vector_store %arg7[%c0_26, %c0_27], %42 {strides = array<i32>} : memref<448x64xf32, #tpu.memory_space<vmem>>, vector<448x64xf32>,
    %c0_28 = arith.constant 0 : index
    %c0_29 = arith.constant 0 : index
    %44 = tpu.strided_load %arg7[%c0_28, %c0_29] {strides = array<i32: 2, 1>} : memref<448x64xf32, #tpu.memory_space<vmem>>, vector<8x64xf32>
    %c1_30 = arith.constant 1 : index
    %c0_31 = arith.constant 0 : index
    %45 = tpu.strided_load %arg7[%c1_30, %c0_31] {strides = array<i32: 2, 1>} : memref<448x64xf32, #tpu.memory_space<vmem>>, vector<8x64xf32>
    %c16 = arith.constant 16 : index
    %c0_32 = arith.constant 0 : index
    %46 = tpu.strided_load %arg7[%c16, %c0_32] {strides = array<i32: 2, 1>} : memref<448x64xf32, #tpu.memory_space<vmem>>, vector<8x64xf32>
    %c17 = arith.constant 17 : index
    %c0_33 = arith.constant 0 : index
    %47 = tpu.strided_load %arg7[%c17, %c0_33] {strides = array<i32: 2, 1>} : memref<448x64xf32, #tpu.memory_space<vmem>>, vector<8x64xf32>
    %48 = arith.maximumf %44, %45 : vector<8x64xf32>
    %49 = arith.maximumf %46, %47 : vector<8x64xf32>
    %50 = arith.maximumf %48, %49 : vector<8x64xf32>
    %c0_34 = arith.constant 0 : index
    %c0_35 = arith.constant 0 : index
    %51 = vector.load %arg8[%c0_34, %c0_35] : memref<152x64xf32, #tpu.memory_space<vmem>>, vector<8x64xf32>
    tpu.vector_store %arg8[%c0_34, %c0_35], %50 {strides = array<i32>} : memref<152x64xf32, #tpu.memory_space<vmem>>, vector<8x64xf32>,
    %c32 = arith.constant 32 : index
    %c0_36 = arith.constant 0 : index
    %52 = tpu.strided_load %arg7[%c32, %c0_36] {strides = array<i32: 2, 1>} : memref<448x64xf32, #tpu.memory_space<vmem>>, vector<8x64xf32>
    %c33 = arith.constant 33 : index
    %c0_37 = arith.constant 0 : index
    %53 = tpu.strided_load %arg7[%c33, %c0_37] {strides = array<i32: 2, 1>} : memref<448x64xf32, #tpu.memory_space<vmem>>, vector<8x64xf32>
    %c48 = arith.constant 48 : index
    %c0_38 = arith.constant 0 : index
    %54 = tpu.strided_load %arg7[%c48, %c0_38] {strides = array<i32: 2, 1>} : memref<448x64xf32, #tpu.memory_space<vmem>>, vector<8x64xf32>
    %c49 = arith.constant 49 : index
    %c0_39 = arith.constant 0 : index
    %55 = tpu.strided_load %arg7[%c49, %c0_39] {strides = array<i32: 2, 1>} : memref<448x64xf32, #tpu.memory_space<vmem>>, vector<8x64xf32>
    %56 = arith.maximumf %52, %53 : vector<8x64xf32>
    %57 = arith.maximumf %54, %55 : vector<8x64xf32>
    %58 = arith.maximumf %56, %57 : vector<8x64xf32>
    %c8 = arith.constant 8 : index
    %c0_40 = arith.constant 0 : index
    %59 = vector.load %arg8[%c8, %c0_40] : memref<152x64xf32, #tpu.memory_space<vmem>>, vector<8x64xf32>
    tpu.vector_store %arg8[%c8, %c0_40], %58 {strides = array<i32>} : memref<152x64xf32, #tpu.memory_space<vmem>>, vector<8x64xf32>,
    %c64 = arith.constant 64 : index
    %c0_41 = arith.constant 0 : index
    %60 = tpu.strided_load %arg7[%c64, %c0_41] {strides = array<i32: 2, 1>} : memref<448x64xf32, #tpu.memory_space<vmem>>, vector<8x64xf32>
    %c65 = arith.constant 65 : index
    %c0_42 = arith.constant 0 : index
    %61 = tpu.strided_load %arg7[%c65, %c0_42] {strides = array<i32: 2, 1>} : memref<448x64xf32, #tpu.memory_space<vmem>>, vector<8x64xf32>
    %c80 = arith.constant 80 : index
    %c0_43 = arith.constant 0 : index
    %62 = tpu.strided_load %arg7[%c80, %c0_43] {strides = array<i32: 2, 1>} : memref<448x64xf32, #tpu.memory_space<vmem>>, vector<8x64xf32>
    %c81 = arith.constant 81 : index
    %c0_44 = arith.constant 0 : index
    %63 = tpu.strided_load %arg7[%c81, %c0_44] {strides = array<i32: 2, 1>} : memref<448x64xf32, #tpu.memory_space<vmem>>, vector<8x64xf32>
    %64 = arith.maximumf %60, %61 : vector<8x64xf32>
    %65 = arith.maximumf %62, %63 : vector<8x64xf32>
    %66 = arith.maximumf %64, %65 : vector<8x64xf32>
    %c16_45 = arith.constant 16 : index
    %c0_46 = arith.constant 0 : index
    %67 = vector.load %arg8[%c16_45, %c0_46] : memref<152x64xf32, #tpu.memory_space<vmem>>, vector<8x64xf32>
    tpu.vector_store %arg8[%c16_45, %c0_46], %66 {strides = array<i32>} : memref<152x64xf32, #tpu.memory_space<vmem>>, vector<8x64xf32>,
    %c96 = arith.constant 96 : index
    %c0_47 = arith.constant 0 : index
    %68 = tpu.strided_load %arg7[%c96, %c0_47] {strides = array<i32: 2, 1>} : memref<448x64xf32, #tpu.memory_space<vmem>>, vector<8x64xf32>
    %c97 = arith.constant 97 : index
    %c0_48 = arith.constant 0 : index
    %69 = tpu.strided_load %arg7[%c97, %c0_48] {strides = array<i32: 2, 1>} : memref<448x64xf32, #tpu.memory_space<vmem>>, vector<8x64xf32>
    %c112 = arith.constant 112 : index
    %c0_49 = arith.constant 0 : index
    %70 = tpu.strided_load %arg7[%c112, %c0_49] {strides = array<i32: 2, 1>} : memref<448x64xf32, #tpu.memory_space<vmem>>, vector<8x64xf32>
    %c113 = arith.constant 113 : index
    %c0_50 = arith.constant 0 : index
    %71 = tpu.strided_load %arg7[%c113, %c0_50] {strides = array<i32: 2, 1>} : memref<448x64xf32, #tpu.memory_space<vmem>>, vector<8x64xf32>
    %72 = arith.maximumf %68, %69 : vector<8x64xf32>
    %73 = arith.maximumf %70, %71 : vector<8x64xf32>
    %74 = arith.maximumf %72, %73 : vector<8x64xf32>
    %c24 = arith.constant 24 : index
    %c0_51 = arith.constant 0 : index
    %75 = vector.load %arg8[%c24, %c0_51] : memref<152x64xf32, #tpu.memory_space<vmem>>, vector<8x64xf32>
    tpu.vector_store %arg8[%c24, %c0_51], %74 {strides = array<i32>} : memref<152x64xf32, #tpu.memory_space<vmem>>, vector<8x64xf32>,
    %c128 = arith.constant 128 : index
    %c0_52 = arith.constant 0 : index
    %76 = tpu.strided_load %arg7[%c128, %c0_52] {strides = array<i32: 2, 1>} : memref<448x64xf32, #tpu.memory_space<vmem>>, vector<8x64xf32>
    %c129 = arith.constant 129 : index
    %c0_53 = arith.constant 0 : index
    %77 = tpu.strided_load %arg7[%c129, %c0_53] {strides = array<i32: 2, 1>} : memref<448x64xf32, #tpu.memory_space<vmem>>, vector<8x64xf32>
    %c144 = arith.constant 144 : index
    %c0_54 = arith.constant 0 : index
    %78 = tpu.strided_load %arg7[%c144, %c0_54] {strides = array<i32: 2, 1>} : memref<448x64xf32, #tpu.memory_space<vmem>>, vector<8x64xf32>
    %c145 = arith.constant 145 : index
    %c0_55 = arith.constant 0 : index
    %79 = tpu.strided_load %arg7[%c145, %c0_55] {strides = array<i32: 2, 1>} : memref<448x64xf32, #tpu.memory_space<vmem>>, vector<8x64xf32>
    %80 = arith.maximumf %76, %77 : vector<8x64xf32>
    %81 = arith.maximumf %78, %79 : vector<8x64xf32>
    %82 = arith.maximumf %80, %81 : vector<8x64xf32>
    %c32_56 = arith.constant 32 : index
    %c0_57 = arith.constant 0 : index
    %83 = vector.load %arg8[%c32_56, %c0_57] : memref<152x64xf32, #tpu.memory_space<vmem>>, vector<8x64xf32>
    tpu.vector_store %arg8[%c32_56, %c0_57], %82 {strides = array<i32>} : memref<152x64xf32, #tpu.memory_space<vmem>>, vector<8x64xf32>,
    %c160 = arith.constant 160 : index
    %c0_58 = arith.constant 0 : index
    %84 = tpu.strided_load %arg7[%c160, %c0_58] {strides = array<i32: 2, 1>} : memref<448x64xf32, #tpu.memory_space<vmem>>, vector<8x64xf32>
    %c161 = arith.constant 161 : index
    %c0_59 = arith.constant 0 : index
    %85 = tpu.strided_load %arg7[%c161, %c0_59] {strides = array<i32: 2, 1>} : memref<448x64xf32, #tpu.memory_space<vmem>>, vector<8x64xf32>
    %c176 = arith.constant 176 : index
    %c0_60 = arith.constant 0 : index
    %86 = tpu.strided_load %arg7[%c176, %c0_60] {strides = array<i32: 2, 1>} : memref<448x64xf32, #tpu.memory_space<vmem>>, vector<8x64xf32>
    %c177 = arith.constant 177 : index
    %c0_61 = arith.constant 0 : index
    %87 = tpu.strided_load %arg7[%c177, %c0_61] {strides = array<i32: 2, 1>} : memref<448x64xf32, #tpu.memory_space<vmem>>, vector<8x64xf32>
    %88 = arith.maximumf %84, %85 : vector<8x64xf32>
    %89 = arith.maximumf %86, %87 : vector<8x64xf32>
    %90 = arith.maximumf %88, %89 : vector<8x64xf32>
    %c40 = arith.constant 40 : index
    %c0_62 = arith.constant 0 : index
    %91 = vector.load %arg8[%c40, %c0_62] : memref<152x64xf32, #tpu.memory_space<vmem>>, vector<8x64xf32>
    tpu.vector_store %arg8[%c40, %c0_62], %90 {strides = array<i32>} : memref<152x64xf32, #tpu.memory_space<vmem>>, vector<8x64xf32>,
    %c192 = arith.constant 192 : index
    %c0_63 = arith.constant 0 : index
    %92 = tpu.strided_load %arg7[%c192, %c0_63] {strides = array<i32: 2, 1>} : memref<448x64xf32, #tpu.memory_space<vmem>>, vector<8x64xf32>
    %c193 = arith.constant 193 : index
    %c0_64 = arith.constant 0 : index
    %93 = tpu.strided_load %arg7[%c193, %c0_64] {strides = array<i32: 2, 1>} : memref<448x64xf32, #tpu.memory_space<vmem>>, vector<8x64xf32>
    %c208 = arith.constant 208 : index
    %c0_65 = arith.constant 0 : index
    %94 = tpu.strided_load %arg7[%c208, %c0_65] {strides = array<i32: 2, 1>} : memref<448x64xf32, #tpu.memory_space<vmem>>, vector<8x64xf32>
    %c209 = arith.constant 209 : index
    %c0_66 = arith.constant 0 : index
    %95 = tpu.strided_load %arg7[%c209, %c0_66] {strides = array<i32: 2, 1>} : memref<448x64xf32, #tpu.memory_space<vmem>>, vector<8x64xf32>
    %96 = arith.maximumf %92, %93 : vector<8x64xf32>
    %97 = arith.maximumf %94, %95 : vector<8x64xf32>
    %98 = arith.maximumf %96, %97 : vector<8x64xf32>
    %c48_67 = arith.constant 48 : index
    %c0_68 = arith.constant 0 : index
    %99 = vector.load %arg8[%c48_67, %c0_68] : memref<152x64xf32, #tpu.memory_space<vmem>>, vector<8x64xf32>
    tpu.vector_store %arg8[%c48_67, %c0_68], %98 {strides = array<i32>} : memref<152x64xf32, #tpu.memory_space<vmem>>, vector<8x64xf32>,
    %c224 = arith.constant 224 : index
    %c0_69 = arith.constant 0 : index
    %100 = tpu.strided_load %arg7[%c224, %c0_69] {strides = array<i32: 2, 1>} : memref<448x64xf32, #tpu.memory_space<vmem>>, vector<8x64xf32>
    %c225 = arith.constant 225 : index
    %c0_70 = arith.constant 0 : index
    %101 = tpu.strided_load %arg7[%c225, %c0_70] {strides = array<i32: 2, 1>} : memref<448x64xf32, #tpu.memory_space<vmem>>, vector<8x64xf32>
    %c240 = arith.constant 240 : index
    %c0_71 = arith.constant 0 : index
    %102 = tpu.strided_load %arg7[%c240, %c0_71] {strides = array<i32: 2, 1>} : memref<448x64xf32, #tpu.memory_space<vmem>>, vector<8x64xf32>
    %c241 = arith.constant 241 : index
    %c0_72 = arith.constant 0 : index
    %103 = tpu.strided_load %arg7[%c241, %c0_72] {strides = array<i32: 2, 1>} : memref<448x64xf32, #tpu.memory_space<vmem>>, vector<8x64xf32>
    %104 = arith.maximumf %100, %101 : vector<8x64xf32>
    %105 = arith.maximumf %102, %103 : vector<8x64xf32>
    %106 = arith.maximumf %104, %105 : vector<8x64xf32>
    %c64_73 = arith.constant 64 : index
    %c0_74 = arith.constant 0 : index
    %107 = vector.load %arg8[%c64_73, %c0_74] : memref<152x64xf32, #tpu.memory_space<vmem>>, vector<8x64xf32>
    tpu.vector_store %arg8[%c64_73, %c0_74], %106 {strides = array<i32>} : memref<152x64xf32, #tpu.memory_space<vmem>>, vector<8x64xf32>,
    %c256 = arith.constant 256 : index
    %c0_75 = arith.constant 0 : index
    %108 = tpu.strided_load %arg7[%c256, %c0_75] {strides = array<i32: 2, 1>} : memref<448x64xf32, #tpu.memory_space<vmem>>, vector<8x64xf32>
    %c257 = arith.constant 257 : index
    %c0_76 = arith.constant 0 : index
    %109 = tpu.strided_load %arg7[%c257, %c0_76] {strides = array<i32: 2, 1>} : memref<448x64xf32, #tpu.memory_space<vmem>>, vector<8x64xf32>
    %c272 = arith.constant 272 : index
    %c0_77 = arith.constant 0 : index
    %110 = tpu.strided_load %arg7[%c272, %c0_77] {strides = array<i32: 2, 1>} : memref<448x64xf32, #tpu.memory_space<vmem>>, vector<8x64xf32>
    %c273 = arith.constant 273 : index
    %c0_78 = arith.constant 0 : index
    %111 = tpu.strided_load %arg7[%c273, %c0_78] {strides = array<i32: 2, 1>} : memref<448x64xf32, #tpu.memory_space<vmem>>, vector<8x64xf32>
    %112 = arith.maximumf %108, %109 : vector<8x64xf32>
    %113 = arith.maximumf %110, %111 : vector<8x64xf32>
    %114 = arith.maximumf %112, %113 : vector<8x64xf32>
    %c72 = arith.constant 72 : index
    %c0_79 = arith.constant 0 : index
    %115 = vector.load %arg8[%c72, %c0_79] : memref<152x64xf32, #tpu.memory_space<vmem>>, vector<8x64xf32>
    tpu.vector_store %arg8[%c72, %c0_79], %114 {strides = array<i32>} : memref<152x64xf32, #tpu.memory_space<vmem>>, vector<8x64xf32>,
    %c288 = arith.constant 288 : index
    %c0_80 = arith.constant 0 : index
    %116 = tpu.strided_load %arg7[%c288, %c0_80] {strides = array<i32: 2, 1>} : memref<448x64xf32, #tpu.memory_space<vmem>>, vector<8x64xf32>
    %c289 = arith.constant 289 : index
    %c0_81 = arith.constant 0 : index
    %117 = tpu.strided_load %arg7[%c289, %c0_81] {strides = array<i32: 2, 1>} : memref<448x64xf32, #tpu.memory_space<vmem>>, vector<8x64xf32>
    %c304 = arith.constant 304 : index
    %c0_82 = arith.constant 0 : index
    %118 = tpu.strided_load %arg7[%c304, %c0_82] {strides = array<i32: 2, 1>} : memref<448x64xf32, #tpu.memory_space<vmem>>, vector<8x64xf32>
    %c305 = arith.constant 305 : index
    %c0_83 = arith.constant 0 : index
    %119 = tpu.strided_load %arg7[%c305, %c0_83] {strides = array<i32: 2, 1>} : memref<448x64xf32, #tpu.memory_space<vmem>>, vector<8x64xf32>
    %120 = arith.maximumf %116, %117 : vector<8x64xf32>
    %121 = arith.maximumf %118, %119 : vector<8x64xf32>
    %122 = arith.maximumf %120, %121 : vector<8x64xf32>
    %c80_84 = arith.constant 80 : index
    %c0_85 = arith.constant 0 : index
    %123 = vector.load %arg8[%c80_84, %c0_85] : memref<152x64xf32, #tpu.memory_space<vmem>>, vector<8x64xf32>
    tpu.vector_store %arg8[%c80_84, %c0_85], %122 {strides = array<i32>} : memref<152x64xf32, #tpu.memory_space<vmem>>, vector<8x64xf32>,
    %c320 = arith.constant 320 : index
    %c0_86 = arith.constant 0 : index
    %124 = tpu.strided_load %arg7[%c320, %c0_86] {strides = array<i32: 2, 1>} : memref<448x64xf32, #tpu.memory_space<vmem>>, vector<8x64xf32>
    %c321 = arith.constant 321 : index
    %c0_87 = arith.constant 0 : index
    %125 = tpu.strided_load %arg7[%c321, %c0_87] {strides = array<i32: 2, 1>} : memref<448x64xf32, #tpu.memory_space<vmem>>, vector<8x64xf32>
    %c336 = arith.constant 336 : index
    %c0_88 = arith.constant 0 : index
    %126 = tpu.strided_load %arg7[%c336, %c0_88] {strides = array<i32: 2, 1>} : memref<448x64xf32, #tpu.memory_space<vmem>>, vector<8x64xf32>
    %c337 = arith.constant 337 : index
    %c0_89 = arith.constant 0 : index
    %127 = tpu.strided_load %arg7[%c337, %c0_89] {strides = array<i32: 2, 1>} : memref<448x64xf32, #tpu.memory_space<vmem>>, vector<8x64xf32>
    %128 = arith.maximumf %124, %125 : vector<8x64xf32>
    %129 = arith.maximumf %126, %127 : vector<8x64xf32>
    %130 = arith.maximumf %128, %129 : vector<8x64xf32>
    %c88 = arith.constant 88 : index
    %c0_90 = arith.constant 0 : index
    %131 = vector.load %arg8[%c88, %c0_90] : memref<152x64xf32, #tpu.memory_space<vmem>>, vector<8x64xf32>
    tpu.vector_store %arg8[%c88, %c0_90], %130 {strides = array<i32>} : memref<152x64xf32, #tpu.memory_space<vmem>>, vector<8x64xf32>,
    %c352 = arith.constant 352 : index
    %c0_91 = arith.constant 0 : index
    %132 = tpu.strided_load %arg7[%c352, %c0_91] {strides = array<i32: 2, 1>} : memref<448x64xf32, #tpu.memory_space<vmem>>, vector<8x64xf32>
    %c353 = arith.constant 353 : index
    %c0_92 = arith.constant 0 : index
    %133 = tpu.strided_load %arg7[%c353, %c0_92] {strides = array<i32: 2, 1>} : memref<448x64xf32, #tpu.memory_space<vmem>>, vector<8x64xf32>
    %c368 = arith.constant 368 : index
    %c0_93 = arith.constant 0 : index
    %134 = tpu.strided_load %arg7[%c368, %c0_93] {strides = array<i32: 2, 1>} : memref<448x64xf32, #tpu.memory_space<vmem>>, vector<8x64xf32>
    %c369 = arith.constant 369 : index
    %c0_94 = arith.constant 0 : index
    %135 = tpu.strided_load %arg7[%c369, %c0_94] {strides = array<i32: 2, 1>} : memref<448x64xf32, #tpu.memory_space<vmem>>, vector<8x64xf32>
    %136 = arith.maximumf %132, %133 : vector<8x64xf32>
    %137 = arith.maximumf %134, %135 : vector<8x64xf32>
    %138 = arith.maximumf %136, %137 : vector<8x64xf32>
    %c96_95 = arith.constant 96 : index
    %c0_96 = arith.constant 0 : index
    %139 = vector.load %arg8[%c96_95, %c0_96] : memref<152x64xf32, #tpu.memory_space<vmem>>, vector<8x64xf32>
    tpu.vector_store %arg8[%c96_95, %c0_96], %138 {strides = array<i32>} : memref<152x64xf32, #tpu.memory_space<vmem>>, vector<8x64xf32>,
    %c384 = arith.constant 384 : index
    %c0_97 = arith.constant 0 : index
    %140 = tpu.strided_load %arg7[%c384, %c0_97] {strides = array<i32: 2, 1>} : memref<448x64xf32, #tpu.memory_space<vmem>>, vector<8x64xf32>
    %c385 = arith.constant 385 : index
    %c0_98 = arith.constant 0 : index
    %141 = tpu.strided_load %arg7[%c385, %c0_98] {strides = array<i32: 2, 1>} : memref<448x64xf32, #tpu.memory_space<vmem>>, vector<8x64xf32>
    %c400 = arith.constant 400 : index
    %c0_99 = arith.constant 0 : index
    %142 = tpu.strided_load %arg7[%c400, %c0_99] {strides = array<i32: 2, 1>} : memref<448x64xf32, #tpu.memory_space<vmem>>, vector<8x64xf32>
    %c401 = arith.constant 401 : index
    %c0_100 = arith.constant 0 : index
    %143 = tpu.strided_load %arg7[%c401, %c0_100] {strides = array<i32: 2, 1>} : memref<448x64xf32, #tpu.memory_space<vmem>>, vector<8x64xf32>
    %144 = arith.maximumf %140, %141 : vector<8x64xf32>
    %145 = arith.maximumf %142, %143 : vector<8x64xf32>
    %146 = arith.maximumf %144, %145 : vector<8x64xf32>
    %c104 = arith.constant 104 : index
    %c0_101 = arith.constant 0 : index
    %147 = vector.load %arg8[%c104, %c0_101] : memref<152x64xf32, #tpu.memory_space<vmem>>, vector<8x64xf32>
    tpu.vector_store %arg8[%c104, %c0_101], %146 {strides = array<i32>} : memref<152x64xf32, #tpu.memory_space<vmem>>, vector<8x64xf32>,
    %c416 = arith.constant 416 : index
    %c0_102 = arith.constant 0 : index
    %148 = tpu.strided_load %arg7[%c416, %c0_102] {strides = array<i32: 2, 1>} : memref<448x64xf32, #tpu.memory_space<vmem>>, vector<8x64xf32>
    %c417 = arith.constant 417 : index
    %c0_103 = arith.constant 0 : index
    %149 = tpu.strided_load %arg7[%c417, %c0_103] {strides = array<i32: 2, 1>} : memref<448x64xf32, #tpu.memory_space<vmem>>, vector<8x64xf32>
    %c432 = arith.constant 432 : index
    %c0_104 = arith.constant 0 : index
    %150 = tpu.strided_load %arg7[%c432, %c0_104] {strides = array<i32: 2, 1>} : memref<448x64xf32, #tpu.memory_space<vmem>>, vector<8x64xf32>
    %c433 = arith.constant 433 : index
    %c0_105 = arith.constant 0 : index
    %151 = tpu.strided_load %arg7[%c433, %c0_105] {strides = array<i32: 2, 1>} : memref<448x64xf32, #tpu.memory_space<vmem>>, vector<8x64xf32>
    %152 = arith.maximumf %148, %149 : vector<8x64xf32>
    %153 = arith.maximumf %150, %151 : vector<8x64xf32>
    %154 = arith.maximumf %152, %153 : vector<8x64xf32>
    %c112_106 = arith.constant 112 : index
    %c0_107 = arith.constant 0 : index
    %155 = vector.load %arg8[%c112_106, %c0_107] : memref<152x64xf32, #tpu.memory_space<vmem>>, vector<8x64xf32>
    tpu.vector_store %arg8[%c112_106, %c0_107], %154 {strides = array<i32>} : memref<152x64xf32, #tpu.memory_space<vmem>>, vector<8x64xf32>,
    %c0_108 = arith.constant 0 : index
    %c0_109 = arith.constant 0 : index
    %156 = vector.load %arg8[%c0_108, %c0_109] : memref<152x64xf32, #tpu.memory_space<vmem>>, vector<128x64xf32>
    %c0_110 = arith.constant 0 : index
    %c0_111 = arith.constant 0 : index
    %157 = vector.load %arg9[%c0_110, %c0_111] : memref<128x576xf32, #tpu.memory_space<vmem>>, vector<128x64xf32>
    tpu.vector_store %arg9[%c0_110, %c0_111], %156 {strides = array<i32>} : memref<128x576xf32, #tpu.memory_space<vmem>>, vector<128x64xf32>,
    %c1_112 = arith.constant 1 : index
    %c0_113 = arith.constant 0 : index
    %158 = vector.load %arg8[%c1_112, %c0_113] : memref<152x64xf32, #tpu.memory_space<vmem>>, vector<128x64xf32>
    %c0_114 = arith.constant 0 : index
    %c64_115 = arith.constant 64 : index
    %159 = vector.load %arg9[%c0_114, %c64_115] : memref<128x576xf32, #tpu.memory_space<vmem>>, vector<128x64xf32>
    tpu.vector_store %arg9[%c0_114, %c64_115], %158 {strides = array<i32>} : memref<128x576xf32, #tpu.memory_space<vmem>>, vector<128x64xf32>,
    %c2 = arith.constant 2 : index
    %c0_116 = arith.constant 0 : index
    %160 = vector.load %arg8[%c2, %c0_116] : memref<152x64xf32, #tpu.memory_space<vmem>>, vector<128x64xf32>
    %c0_117 = arith.constant 0 : index
    %c128_118 = arith.constant 128 : index
    %161 = vector.load %arg9[%c0_117, %c128_118] : memref<128x576xf32, #tpu.memory_space<vmem>>, vector<128x64xf32>
    tpu.vector_store %arg9[%c0_117, %c128_118], %160 {strides = array<i32>} : memref<128x576xf32, #tpu.memory_space<vmem>>, vector<128x64xf32>,
    %c8_119 = arith.constant 8 : index
    %c0_120 = arith.constant 0 : index
    %162 = vector.load %arg8[%c8_119, %c0_120] : memref<152x64xf32, #tpu.memory_space<vmem>>, vector<128x64xf32>
    %c0_121 = arith.constant 0 : index
    %c192_122 = arith.constant 192 : index
    %163 = vector.load %arg9[%c0_121, %c192_122] : memref<128x576xf32, #tpu.memory_space<vmem>>, vector<128x64xf32>
    tpu.vector_store %arg9[%c0_121, %c192_122], %162 {strides = array<i32>} : memref<128x576xf32, #tpu.memory_space<vmem>>, vector<128x64xf32>,
    %c9 = arith.constant 9 : index
    %c0_123 = arith.constant 0 : index
    %164 = vector.load %arg8[%c9, %c0_123] : memref<152x64xf32, #tpu.memory_space<vmem>>, vector<128x64xf32>
    %c0_124 = arith.constant 0 : index
    %c256_125 = arith.constant 256 : index
    %165 = vector.load %arg9[%c0_124, %c256_125] : memref<128x576xf32, #tpu.memory_space<vmem>>, vector<128x64xf32>
    tpu.vector_store %arg9[%c0_124, %c256_125], %164 {strides = array<i32>} : memref<128x576xf32, #tpu.memory_space<vmem>>, vector<128x64xf32>,
    %c10 = arith.constant 10 : index
    %c0_126 = arith.constant 0 : index
    %166 = vector.load %arg8[%c10, %c0_126] : memref<152x64xf32, #tpu.memory_space<vmem>>, vector<128x64xf32>
    %c0_127 = arith.constant 0 : index
    %c320_128 = arith.constant 320 : index
    %167 = vector.load %arg9[%c0_127, %c320_128] : memref<128x576xf32, #tpu.memory_space<vmem>>, vector<128x64xf32>
    tpu.vector_store %arg9[%c0_127, %c320_128], %166 {strides = array<i32>} : memref<128x576xf32, #tpu.memory_space<vmem>>, vector<128x64xf32>,
    %c16_129 = arith.constant 16 : index
    %c0_130 = arith.constant 0 : index
    %168 = vector.load %arg8[%c16_129, %c0_130] : memref<152x64xf32, #tpu.memory_space<vmem>>, vector<128x64xf32>
    %c0_131 = arith.constant 0 : index
    %c384_132 = arith.constant 384 : index
    %169 = vector.load %arg9[%c0_131, %c384_132] : memref<128x576xf32, #tpu.memory_space<vmem>>, vector<128x64xf32>
    tpu.vector_store %arg9[%c0_131, %c384_132], %168 {strides = array<i32>} : memref<128x576xf32, #tpu.memory_space<vmem>>, vector<128x64xf32>,
    %c17_133 = arith.constant 17 : index
    %c0_134 = arith.constant 0 : index
    %170 = vector.load %arg8[%c17_133, %c0_134] : memref<152x64xf32, #tpu.memory_space<vmem>>, vector<128x64xf32>
    %c0_135 = arith.constant 0 : index
    %c448 = arith.constant 448 : index
    %171 = vector.load %arg9[%c0_135, %c448] : memref<128x576xf32, #tpu.memory_space<vmem>>, vector<128x64xf32>
    tpu.vector_store %arg9[%c0_135, %c448], %170 {strides = array<i32>} : memref<128x576xf32, #tpu.memory_space<vmem>>, vector<128x64xf32>,
    %c18 = arith.constant 18 : index
    %c0_136 = arith.constant 0 : index
    %172 = vector.load %arg8[%c18, %c0_136] : memref<152x64xf32, #tpu.memory_space<vmem>>, vector<128x64xf32>
    %c0_137 = arith.constant 0 : index
    %c512 = arith.constant 512 : index
    %173 = vector.load %arg9[%c0_137, %c512] : memref<128x576xf32, #tpu.memory_space<vmem>>, vector<128x64xf32>
    tpu.vector_store %arg9[%c0_137, %c512], %172 {strides = array<i32>} : memref<128x576xf32, #tpu.memory_space<vmem>>, vector<128x64xf32>,
    %c0_138 = arith.constant 0 : index
    %c0_139 = arith.constant 0 : index
    %174 = vector.load %arg9[%c0_138, %c0_139] : memref<128x576xf32, #tpu.memory_space<vmem>>, vector<128x576xf32>
    %c0_140 = arith.constant 0 : index
    %c0_141 = arith.constant 0 : index
    %175 = vector.load %arg2[%c0_140, %c0_141] : memref<576x64xf32, #tpu.memory_space<vmem>>, vector<576x64xf32>
    %cst_142 = arith.constant dense<0.000000e+00> : vector<128x64xf32>
    %176 = tpu.matmul %174, %175, %cst_142 {dimension_numbers = #tpu.dot_dimension_numbers<[1], [0], [0], [1], [0, 0, 1, 1], [], []>} : vector<128x576xf32>, vector<576x64xf32>, vector<128x64xf32> -> vector<128x64xf32>
    %c0_143 = arith.constant 0 : index
    %c0_144 = arith.constant 0 : index
    %177 = vector.load %arg10[%c0_143, %c0_144] : memref<128x64xf32, #tpu.memory_space<vmem>>, vector<128x64xf32>
    tpu.vector_store %arg10[%c0_143, %c0_144], %176 {strides = array<i32>} : memref<128x64xf32, #tpu.memory_space<vmem>>, vector<128x64xf32>,
    %c0_145 = arith.constant 0 : index
    %c0_146 = arith.constant 0 : index
    %178 = vector.load %arg10[%c0_145, %c0_146] : memref<128x64xf32, #tpu.memory_space<vmem>>, vector<128x64xf32>
    %179 = tpu.iota {dimensions = array<i32: 0>} : vector<128x64xi32>
    %c7_i32 = arith.constant 7 : i32
    %180 = vector.broadcast %c7_i32 : i32 to vector<128x64xi32>
    %181 = arith.andi %179, %180 : vector<128x64xi32>
    %c5_i32 = arith.constant 5 : i32
    %182 = vector.broadcast %c5_i32 : i32 to vector<128x64xi32>
    %183 = arith.cmpi slt, %181, %182 : vector<128x64xi32>
    %c3_i32 = arith.constant 3 : i32
    %184 = vector.broadcast %c3_i32 : i32 to vector<128x64xi32>
    %185 = arith.shrsi %179, %184 : vector<128x64xi32>
    %c7_i32_147 = arith.constant 7 : i32
    %186 = vector.broadcast %c7_i32_147 : i32 to vector<128x64xi32>
    %187 = arith.andi %185, %186 : vector<128x64xi32>
    %c5_i32_148 = arith.constant 5 : i32
    %188 = vector.broadcast %c5_i32_148 : i32 to vector<128x64xi32>
    %189 = arith.cmpi slt, %187, %188 : vector<128x64xi32>
    %190 = arith.andi %183, %189 : vector<128x64xi1>
    %cst_149 = arith.constant 0.000000e+00 : f32
    %191 = vector.broadcast %cst_149 : f32 to vector<128x64xf32>
    %192 = arith.select %190, %178, %191 : vector<128x64xi1>, vector<128x64xf32>
    %cst_150 = arith.constant dense<0.000000e+00> : vector<64xf32>
    %193 = vector.multi_reduction <add>, %192, %cst_150 [0] : vector<128x64xf32> to vector<64xf32>
    %194 = vector.shape_cast %193 : vector<64xf32> to vector<1x64xf32>
    %195 = arith.mulf %192, %178 : vector<128x64xf32>
    %cst_151 = arith.constant dense<0.000000e+00> : vector<64xf32>
    %196 = vector.multi_reduction <add>, %195, %cst_151 [0] : vector<128x64xf32> to vector<64xf32>
    %197 = vector.shape_cast %196 : vector<64xf32> to vector<1x64xf32>
    %cst_152 = arith.constant 2.000000e-02 : f32
    %198 = vector.broadcast %cst_152 : f32 to vector<1x64xf32>
    %199 = arith.mulf %194, %198 : vector<1x64xf32>
    %cst_153 = arith.constant 2.000000e-02 : f32
    %200 = vector.broadcast %cst_153 : f32 to vector<1x64xf32>
    %201 = arith.mulf %197, %200 : vector<1x64xf32>
    %202 = arith.mulf %199, %199 : vector<1x64xf32>
    %203 = arith.subf %201, %202 : vector<1x64xf32>
    %c2_154 = arith.constant 2 : index
    %c0_155 = arith.constant 0 : index
    %204 = vector.load %arg5[%c2_154, %c0_155] : memref<8x64xf32, #tpu.memory_space<vmem>>, vector<1x64xf32>
    %c3 = arith.constant 3 : index
    %c0_156 = arith.constant 0 : index
    %205 = vector.load %arg5[%c3, %c0_156] : memref<8x64xf32, #tpu.memory_space<vmem>>, vector<1x64xf32>
    %cst_157 = arith.constant 9.99999974E-6 : f32
    %206 = vector.broadcast %cst_157 : f32 to vector<1x64xf32>
    %207 = arith.addf %203, %206 : vector<1x64xf32>
    %208 = math.rsqrt %207 : vector<1x64xf32>
    %209 = arith.mulf %204, %208 : vector<1x64xf32>
    %210 = vector.broadcast %199 : vector<1x64xf32> to vector<128x64xf32>
    %211 = arith.subf %178, %210 : vector<128x64xf32>
    %212 = vector.broadcast %209 : vector<1x64xf32> to vector<128x64xf32>
    %213 = arith.mulf %211, %212 : vector<128x64xf32>
    %214 = vector.broadcast %205 : vector<1x64xf32> to vector<128x64xf32>
    %215 = arith.addf %213, %214 : vector<128x64xf32>
    %cst_158 = arith.constant 0.000000e+00 : f32
    %216 = vector.broadcast %cst_158 : f32 to vector<128x64xf32>
    %217 = arith.maximumf %215, %216 : vector<128x64xf32>
    %c0_159 = arith.constant 0 : index
    %c0_160 = arith.constant 0 : index
    %218 = vector.load %arg10[%c0_159, %c0_160] : memref<128x64xf32, #tpu.memory_space<vmem>>, vector<128x64xf32>
    tpu.vector_store %arg10[%c0_159, %c0_160], %217 {strides = array<i32>} : memref<128x64xf32, #tpu.memory_space<vmem>>, vector<128x64xf32>,
    %c0_161 = arith.constant 0 : index
    %c0_162 = arith.constant 0 : index
    %219 = tpu.strided_load %arg10[%c0_161, %c0_162] {strides = array<i32: 2, 1>} : memref<128x64xf32, #tpu.memory_space<vmem>>, vector<2x64xf32>
    %c1_163 = arith.constant 1 : index
    %c0_164 = arith.constant 0 : index
    %220 = tpu.strided_load %arg10[%c1_163, %c0_164] {strides = array<i32: 2, 1>} : memref<128x64xf32, #tpu.memory_space<vmem>>, vector<2x64xf32>
    %c8_165 = arith.constant 8 : index
    %c0_166 = arith.constant 0 : index
    %221 = tpu.strided_load %arg10[%c8_165, %c0_166] {strides = array<i32: 2, 1>} : memref<128x64xf32, #tpu.memory_space<vmem>>, vector<2x64xf32>
    %c9_167 = arith.constant 9 : index
    %c0_168 = arith.constant 0 : index
    %222 = tpu.strided_load %arg10[%c9_167, %c0_168] {strides = array<i32: 2, 1>} : memref<128x64xf32, #tpu.memory_space<vmem>>, vector<2x64xf32>
    %223 = arith.maximumf %219, %220 : vector<2x64xf32>
    %224 = arith.maximumf %221, %222 : vector<2x64xf32>
    %225 = arith.maximumf %223, %224 : vector<2x64xf32>
    %c9_169 = arith.constant 9 : index
    %c0_170 = arith.constant 0 : index
    %226 = vector.load %arg11[%c9_169, %c0_170] : memref<88x64xf32, #tpu.memory_space<vmem>>, vector<2x64xf32>
    tpu.vector_store %arg11[%c9_169, %c0_170], %225 {strides = array<i32>} : memref<88x64xf32, #tpu.memory_space<vmem>>, vector<2x64xf32>,
    %c16_171 = arith.constant 16 : index
    %c0_172 = arith.constant 0 : index
    %227 = tpu.strided_load %arg10[%c16_171, %c0_172] {strides = array<i32: 2, 1>} : memref<128x64xf32, #tpu.memory_space<vmem>>, vector<2x64xf32>
    %c17_173 = arith.constant 17 : index
    %c0_174 = arith.constant 0 : index
    %228 = tpu.strided_load %arg10[%c17_173, %c0_174] {strides = array<i32: 2, 1>} : memref<128x64xf32, #tpu.memory_space<vmem>>, vector<2x64xf32>
    %c24_175 = arith.constant 24 : index
    %c0_176 = arith.constant 0 : index
    %229 = tpu.strided_load %arg10[%c24_175, %c0_176] {strides = array<i32: 2, 1>} : memref<128x64xf32, #tpu.memory_space<vmem>>, vector<2x64xf32>
    %c25 = arith.constant 25 : index
    %c0_177 = arith.constant 0 : index
    %230 = tpu.strided_load %arg10[%c25, %c0_177] {strides = array<i32: 2, 1>} : memref<128x64xf32, #tpu.memory_space<vmem>>, vector<2x64xf32>
    %231 = arith.maximumf %227, %228 : vector<2x64xf32>
    %232 = arith.maximumf %229, %230 : vector<2x64xf32>
    %233 = arith.maximumf %231, %232 : vector<2x64xf32>
    %c17_178 = arith.constant 17 : index
    %c0_179 = arith.constant 0 : index
    %234 = vector.load %arg11[%c17_178, %c0_179] : memref<88x64xf32, #tpu.memory_space<vmem>>, vector<2x64xf32>
    tpu.vector_store %arg11[%c17_178, %c0_179], %233 {strides = array<i32>} : memref<88x64xf32, #tpu.memory_space<vmem>>, vector<2x64xf32>,
    %c64_180 = arith.constant 64 : index
    %c0_181 = arith.constant 0 : index
    %235 = tpu.strided_load %arg10[%c64_180, %c0_181] {strides = array<i32: 2, 1>} : memref<128x64xf32, #tpu.memory_space<vmem>>, vector<2x64xf32>
    %c65_182 = arith.constant 65 : index
    %c0_183 = arith.constant 0 : index
    %236 = tpu.strided_load %arg10[%c65_182, %c0_183] {strides = array<i32: 2, 1>} : memref<128x64xf32, #tpu.memory_space<vmem>>, vector<2x64xf32>
    %c72_184 = arith.constant 72 : index
    %c0_185 = arith.constant 0 : index
    %237 = tpu.strided_load %arg10[%c72_184, %c0_185] {strides = array<i32: 2, 1>} : memref<128x64xf32, #tpu.memory_space<vmem>>, vector<2x64xf32>
    %c73 = arith.constant 73 : index
    %c0_186 = arith.constant 0 : index
    %238 = tpu.strided_load %arg10[%c73, %c0_186] {strides = array<i32: 2, 1>} : memref<128x64xf32, #tpu.memory_space<vmem>>, vector<2x64xf32>
    %239 = arith.maximumf %235, %236 : vector<2x64xf32>
    %240 = arith.maximumf %237, %238 : vector<2x64xf32>
    %241 = arith.maximumf %239, %240 : vector<2x64xf32>
    %c41 = arith.constant 41 : index
    %c0_187 = arith.constant 0 : index
    %242 = vector.load %arg11[%c41, %c0_187] : memref<88x64xf32, #tpu.memory_space<vmem>>, vector<2x64xf32>
    tpu.vector_store %arg11[%c41, %c0_187], %241 {strides = array<i32>} : memref<88x64xf32, #tpu.memory_space<vmem>>, vector<2x64xf32>,
    %c80_188 = arith.constant 80 : index
    %c0_189 = arith.constant 0 : index
    %243 = tpu.strided_load %arg10[%c80_188, %c0_189] {strides = array<i32: 2, 1>} : memref<128x64xf32, #tpu.memory_space<vmem>>, vector<2x64xf32>
    %c81_190 = arith.constant 81 : index
    %c0_191 = arith.constant 0 : index
    %244 = tpu.strided_load %arg10[%c81_190, %c0_191] {strides = array<i32: 2, 1>} : memref<128x64xf32, #tpu.memory_space<vmem>>, vector<2x64xf32>
    %c88_192 = arith.constant 88 : index
    %c0_193 = arith.constant 0 : index
    %245 = tpu.strided_load %arg10[%c88_192, %c0_193] {strides = array<i32: 2, 1>} : memref<128x64xf32, #tpu.memory_space<vmem>>, vector<2x64xf32>
    %c89 = arith.constant 89 : index
    %c0_194 = arith.constant 0 : index
    %246 = tpu.strided_load %arg10[%c89, %c0_194] {strides = array<i32: 2, 1>} : memref<128x64xf32, #tpu.memory_space<vmem>>, vector<2x64xf32>
    %247 = arith.maximumf %243, %244 : vector<2x64xf32>
    %248 = arith.maximumf %245, %246 : vector<2x64xf32>
    %249 = arith.maximumf %247, %248 : vector<2x64xf32>
    %c49_195 = arith.constant 49 : index
    %c0_196 = arith.constant 0 : index
    %250 = vector.load %arg11[%c49_195, %c0_196] : memref<88x64xf32, #tpu.memory_space<vmem>>, vector<2x64xf32>
    tpu.vector_store %arg11[%c49_195, %c0_196], %249 {strides = array<i32>} : memref<88x64xf32, #tpu.memory_space<vmem>>, vector<2x64xf32>,
    %c0_197 = arith.constant 0 : index
    %c0_198 = arith.constant 0 : index
    %251 = vector.load %arg11[%c0_197, %c0_198] : memref<88x64xf32, #tpu.memory_space<vmem>>, vector<64x64xf32>
    %c0_199 = arith.constant 0 : index
    %c0_200 = arith.constant 0 : index
    %252 = vector.load %arg12[%c0_199, %c0_200] : memref<64x576xf32, #tpu.memory_space<vmem>>, vector<64x64xf32>
    tpu.vector_store %arg12[%c0_199, %c0_200], %251 {strides = array<i32>} : memref<64x576xf32, #tpu.memory_space<vmem>>, vector<64x64xf32>,
    %c1_201 = arith.constant 1 : index
    %c0_202 = arith.constant 0 : index
    %253 = vector.load %arg11[%c1_201, %c0_202] : memref<88x64xf32, #tpu.memory_space<vmem>>, vector<64x64xf32>
    %c0_203 = arith.constant 0 : index
    %c64_204 = arith.constant 64 : index
    %254 = vector.load %arg12[%c0_203, %c64_204] : memref<64x576xf32, #tpu.memory_space<vmem>>, vector<64x64xf32>
    tpu.vector_store %arg12[%c0_203, %c64_204], %253 {strides = array<i32>} : memref<64x576xf32, #tpu.memory_space<vmem>>, vector<64x64xf32>,
    %c2_205 = arith.constant 2 : index
    %c0_206 = arith.constant 0 : index
    %255 = vector.load %arg11[%c2_205, %c0_206] : memref<88x64xf32, #tpu.memory_space<vmem>>, vector<64x64xf32>
    %c0_207 = arith.constant 0 : index
    %c128_208 = arith.constant 128 : index
    %256 = vector.load %arg12[%c0_207, %c128_208] : memref<64x576xf32, #tpu.memory_space<vmem>>, vector<64x64xf32>
    tpu.vector_store %arg12[%c0_207, %c128_208], %255 {strides = array<i32>} : memref<64x576xf32, #tpu.memory_space<vmem>>, vector<64x64xf32>,
    %c8_209 = arith.constant 8 : index
    %c0_210 = arith.constant 0 : index
    %257 = vector.load %arg11[%c8_209, %c0_210] : memref<88x64xf32, #tpu.memory_space<vmem>>, vector<64x64xf32>
    %c0_211 = arith.constant 0 : index
    %c192_212 = arith.constant 192 : index
    %258 = vector.load %arg12[%c0_211, %c192_212] : memref<64x576xf32, #tpu.memory_space<vmem>>, vector<64x64xf32>
    tpu.vector_store %arg12[%c0_211, %c192_212], %257 {strides = array<i32>} : memref<64x576xf32, #tpu.memory_space<vmem>>, vector<64x64xf32>,
    %c9_213 = arith.constant 9 : index
    %c0_214 = arith.constant 0 : index
    %259 = vector.load %arg11[%c9_213, %c0_214] : memref<88x64xf32, #tpu.memory_space<vmem>>, vector<64x64xf32>
    %c0_215 = arith.constant 0 : index
    %c256_216 = arith.constant 256 : index
    %260 = vector.load %arg12[%c0_215, %c256_216] : memref<64x576xf32, #tpu.memory_space<vmem>>, vector<64x64xf32>
    tpu.vector_store %arg12[%c0_215, %c256_216], %259 {strides = array<i32>} : memref<64x576xf32, #tpu.memory_space<vmem>>, vector<64x64xf32>,
    %c10_217 = arith.constant 10 : index
    %c0_218 = arith.constant 0 : index
    %261 = vector.load %arg11[%c10_217, %c0_218] : memref<88x64xf32, #tpu.memory_space<vmem>>, vector<64x64xf32>
    %c0_219 = arith.constant 0 : index
    %c320_220 = arith.constant 320 : index
    %262 = vector.load %arg12[%c0_219, %c320_220] : memref<64x576xf32, #tpu.memory_space<vmem>>, vector<64x64xf32>
    tpu.vector_store %arg12[%c0_219, %c320_220], %261 {strides = array<i32>} : memref<64x576xf32, #tpu.memory_space<vmem>>, vector<64x64xf32>,
    %c16_221 = arith.constant 16 : index
    %c0_222 = arith.constant 0 : index
    %263 = vector.load %arg11[%c16_221, %c0_222] : memref<88x64xf32, #tpu.memory_space<vmem>>, vector<64x64xf32>
    %c0_223 = arith.constant 0 : index
    %c384_224 = arith.constant 384 : index
    %264 = vector.load %arg12[%c0_223, %c384_224] : memref<64x576xf32, #tpu.memory_space<vmem>>, vector<64x64xf32>
    tpu.vector_store %arg12[%c0_223, %c384_224], %263 {strides = array<i32>} : memref<64x576xf32, #tpu.memory_space<vmem>>, vector<64x64xf32>,
    %c17_225 = arith.constant 17 : index
    %c0_226 = arith.constant 0 : index
    %265 = vector.load %arg11[%c17_225, %c0_226] : memref<88x64xf32, #tpu.memory_space<vmem>>, vector<64x64xf32>
    %c0_227 = arith.constant 0 : index
    %c448_228 = arith.constant 448 : index
    %266 = vector.load %arg12[%c0_227, %c448_228] : memref<64x576xf32, #tpu.memory_space<vmem>>, vector<64x64xf32>
    tpu.vector_store %arg12[%c0_227, %c448_228], %265 {strides = array<i32>} : memref<64x576xf32, #tpu.memory_space<vmem>>, vector<64x64xf32>,
    %c18_229 = arith.constant 18 : index
    %c0_230 = arith.constant 0 : index
    %267 = vector.load %arg11[%c18_229, %c0_230] : memref<88x64xf32, #tpu.memory_space<vmem>>, vector<64x64xf32>
    %c0_231 = arith.constant 0 : index
    %c512_232 = arith.constant 512 : index
    %268 = vector.load %arg12[%c0_231, %c512_232] : memref<64x576xf32, #tpu.memory_space<vmem>>, vector<64x64xf32>
    tpu.vector_store %arg12[%c0_231, %c512_232], %267 {strides = array<i32>} : memref<64x576xf32, #tpu.memory_space<vmem>>, vector<64x64xf32>,
    %c0_233 = arith.constant 0 : index
    %c0_234 = arith.constant 0 : index
    %269 = vector.load %arg12[%c0_233, %c0_234] : memref<64x576xf32, #tpu.memory_space<vmem>>, vector<64x576xf32>
    %c0_235 = arith.constant 0 : index
    %c0_236 = arith.constant 0 : index
    %270 = vector.load %arg3[%c0_235, %c0_236] : memref<576x64xf32, #tpu.memory_space<vmem>>, vector<576x64xf32>
    %cst_237 = arith.constant dense<0.000000e+00> : vector<64x64xf32>
    %271 = tpu.matmul %269, %270, %cst_237 {dimension_numbers = #tpu.dot_dimension_numbers<[1], [0], [0], [1], [0, 0, 1, 1], [], []>} : vector<64x576xf32>, vector<576x64xf32>, vector<64x64xf32> -> vector<64x64xf32>
    %c0_238 = arith.constant 0 : index
    %c0_239 = arith.constant 0 : index
    %272 = vector.load %arg13[%c0_238, %c0_239] : memref<64x64xf32, #tpu.memory_space<vmem>>, vector<64x64xf32>
    tpu.vector_store %arg13[%c0_238, %c0_239], %271 {strides = array<i32>} : memref<64x64xf32, #tpu.memory_space<vmem>>, vector<64x64xf32>,
    %c0_240 = arith.constant 0 : index
    %c0_241 = arith.constant 0 : index
    %273 = vector.load %arg13[%c0_240, %c0_241] : memref<64x64xf32, #tpu.memory_space<vmem>>, vector<64x64xf32>
    %274 = tpu.iota {dimensions = array<i32: 0>} : vector<64x64xi32>
    %c7_i32_242 = arith.constant 7 : i32
    %275 = vector.broadcast %c7_i32_242 : i32 to vector<64x64xi32>
    %276 = arith.andi %274, %275 : vector<64x64xi32>
    %c2_i32 = arith.constant 2 : i32
    %277 = vector.broadcast %c2_i32 : i32 to vector<64x64xi32>
    %278 = arith.cmpi slt, %276, %277 : vector<64x64xi32>
    %c3_i32_243 = arith.constant 3 : i32
    %279 = vector.broadcast %c3_i32_243 : i32 to vector<64x64xi32>
    %280 = arith.shrsi %274, %279 : vector<64x64xi32>
    %c3_i32_244 = arith.constant 3 : i32
    %281 = vector.broadcast %c3_i32_244 : i32 to vector<64x64xi32>
    %282 = arith.andi %280, %281 : vector<64x64xi32>
    %c2_i32_245 = arith.constant 2 : i32
    %283 = vector.broadcast %c2_i32_245 : i32 to vector<64x64xi32>
    %284 = arith.cmpi slt, %282, %283 : vector<64x64xi32>
    %285 = arith.andi %278, %284 : vector<64x64xi1>
    %cst_246 = arith.constant 0.000000e+00 : f32
    %286 = vector.broadcast %cst_246 : f32 to vector<64x64xf32>
    %287 = arith.select %285, %273, %286 : vector<64x64xi1>, vector<64x64xf32>
    %cst_247 = arith.constant dense<0.000000e+00> : vector<64xf32>
    %288 = vector.multi_reduction <add>, %287, %cst_247 [0] : vector<64x64xf32> to vector<64xf32>
    %289 = vector.shape_cast %288 : vector<64xf32> to vector<1x64xf32>
    %290 = arith.mulf %287, %273 : vector<64x64xf32>
    %cst_248 = arith.constant dense<0.000000e+00> : vector<64xf32>
    %291 = vector.multi_reduction <add>, %290, %cst_248 [0] : vector<64x64xf32> to vector<64xf32>
    %292 = vector.shape_cast %291 : vector<64xf32> to vector<1x64xf32>
    %cst_249 = arith.constant 1.250000e-01 : f32
    %293 = vector.broadcast %cst_249 : f32 to vector<1x64xf32>
    %294 = arith.mulf %289, %293 : vector<1x64xf32>
    %cst_250 = arith.constant 1.250000e-01 : f32
    %295 = vector.broadcast %cst_250 : f32 to vector<1x64xf32>
    %296 = arith.mulf %292, %295 : vector<1x64xf32>
    %297 = arith.mulf %294, %294 : vector<1x64xf32>
    %298 = arith.subf %296, %297 : vector<1x64xf32>
    %c4 = arith.constant 4 : index
    %c0_251 = arith.constant 0 : index
    %299 = vector.load %arg5[%c4, %c0_251] : memref<8x64xf32, #tpu.memory_space<vmem>>, vector<1x64xf32>
    %c5 = arith.constant 5 : index
    %c0_252 = arith.constant 0 : index
    %300 = vector.load %arg5[%c5, %c0_252] : memref<8x64xf32, #tpu.memory_space<vmem>>, vector<1x64xf32>
    %cst_253 = arith.constant 9.99999974E-6 : f32
    %301 = vector.broadcast %cst_253 : f32 to vector<1x64xf32>
    %302 = arith.addf %298, %301 : vector<1x64xf32>
    %303 = math.rsqrt %302 : vector<1x64xf32>
    %304 = arith.mulf %299, %303 : vector<1x64xf32>
    %305 = vector.broadcast %294 : vector<1x64xf32> to vector<64x64xf32>
    %306 = arith.subf %273, %305 : vector<64x64xf32>
    %307 = vector.broadcast %304 : vector<1x64xf32> to vector<64x64xf32>
    %308 = arith.mulf %306, %307 : vector<64x64xf32>
    %309 = vector.broadcast %300 : vector<1x64xf32> to vector<64x64xf32>
    %310 = arith.addf %308, %309 : vector<64x64xf32>
    %cst_254 = arith.constant 0.000000e+00 : f32
    %311 = vector.broadcast %cst_254 : f32 to vector<64x64xf32>
    %312 = arith.maximumf %310, %311 : vector<64x64xf32>
    %c0_255 = arith.constant 0 : index
    %c0_256 = arith.constant 0 : index
    %313 = vector.load %arg13[%c0_255, %c0_256] : memref<64x64xf32, #tpu.memory_space<vmem>>, vector<64x64xf32>
    tpu.vector_store %arg13[%c0_255, %c0_256], %312 {strides = array<i32>} : memref<64x64xf32, #tpu.memory_space<vmem>>, vector<64x64xf32>,
    %c0_257 = arith.constant 0 : index
    %c0_258 = arith.constant 0 : index
    %314 = vector.load %arg13[%c0_257, %c0_258] : memref<64x64xf32, #tpu.memory_space<vmem>>, vector<2x64xf32>
    %c9_259 = arith.constant 9 : index
    %c0_260 = arith.constant 0 : index
    %315 = vector.load %arg14[%c9_259, %c0_260] : memref<88x64xf32, #tpu.memory_space<vmem>>, vector<2x64xf32>
    tpu.vector_store %arg14[%c9_259, %c0_260], %314 {strides = array<i32>} : memref<88x64xf32, #tpu.memory_space<vmem>>, vector<2x64xf32>,
    %c8_261 = arith.constant 8 : index
    %c0_262 = arith.constant 0 : index
    %316 = vector.load %arg13[%c8_261, %c0_262] : memref<64x64xf32, #tpu.memory_space<vmem>>, vector<2x64xf32>
    %c17_263 = arith.constant 17 : index
    %c0_264 = arith.constant 0 : index
    %317 = vector.load %arg14[%c17_263, %c0_264] : memref<88x64xf32, #tpu.memory_space<vmem>>, vector<2x64xf32>
    tpu.vector_store %arg14[%c17_263, %c0_264], %316 {strides = array<i32>} : memref<88x64xf32, #tpu.memory_space<vmem>>, vector<2x64xf32>,
    %c32_265 = arith.constant 32 : index
    %c0_266 = arith.constant 0 : index
    %318 = vector.load %arg13[%c32_265, %c0_266] : memref<64x64xf32, #tpu.memory_space<vmem>>, vector<2x64xf32>
    %c41_267 = arith.constant 41 : index
    %c0_268 = arith.constant 0 : index
    %319 = vector.load %arg14[%c41_267, %c0_268] : memref<88x64xf32, #tpu.memory_space<vmem>>, vector<2x64xf32>
    tpu.vector_store %arg14[%c41_267, %c0_268], %318 {strides = array<i32>} : memref<88x64xf32, #tpu.memory_space<vmem>>, vector<2x64xf32>,
    %c40_269 = arith.constant 40 : index
    %c0_270 = arith.constant 0 : index
    %320 = vector.load %arg13[%c40_269, %c0_270] : memref<64x64xf32, #tpu.memory_space<vmem>>, vector<2x64xf32>
    %c49_271 = arith.constant 49 : index
    %c0_272 = arith.constant 0 : index
    %321 = vector.load %arg14[%c49_271, %c0_272] : memref<88x64xf32, #tpu.memory_space<vmem>>, vector<2x64xf32>
    tpu.vector_store %arg14[%c49_271, %c0_272], %320 {strides = array<i32>} : memref<88x64xf32, #tpu.memory_space<vmem>>, vector<2x64xf32>,
    %c0_273 = arith.constant 0 : index
    %c0_274 = arith.constant 0 : index
    %322 = vector.load %arg14[%c0_273, %c0_274] : memref<88x64xf32, #tpu.memory_space<vmem>>, vector<64x64xf32>
    %c0_275 = arith.constant 0 : index
    %c0_276 = arith.constant 0 : index
    %323 = vector.load %arg12[%c0_275, %c0_276] : memref<64x576xf32, #tpu.memory_space<vmem>>, vector<64x64xf32>
    tpu.vector_store %arg12[%c0_275, %c0_276], %322 {strides = array<i32>} : memref<64x576xf32, #tpu.memory_space<vmem>>, vector<64x64xf32>,
    %c1_277 = arith.constant 1 : index
    %c0_278 = arith.constant 0 : index
    %324 = vector.load %arg14[%c1_277, %c0_278] : memref<88x64xf32, #tpu.memory_space<vmem>>, vector<64x64xf32>
    %c0_279 = arith.constant 0 : index
    %c64_280 = arith.constant 64 : index
    %325 = vector.load %arg12[%c0_279, %c64_280] : memref<64x576xf32, #tpu.memory_space<vmem>>, vector<64x64xf32>
    tpu.vector_store %arg12[%c0_279, %c64_280], %324 {strides = array<i32>} : memref<64x576xf32, #tpu.memory_space<vmem>>, vector<64x64xf32>,
    %c2_281 = arith.constant 2 : index
    %c0_282 = arith.constant 0 : index
    %326 = vector.load %arg14[%c2_281, %c0_282] : memref<88x64xf32, #tpu.memory_space<vmem>>, vector<64x64xf32>
    %c0_283 = arith.constant 0 : index
    %c128_284 = arith.constant 128 : index
    %327 = vector.load %arg12[%c0_283, %c128_284] : memref<64x576xf32, #tpu.memory_space<vmem>>, vector<64x64xf32>
    tpu.vector_store %arg12[%c0_283, %c128_284], %326 {strides = array<i32>} : memref<64x576xf32, #tpu.memory_space<vmem>>, vector<64x64xf32>,
    %c8_285 = arith.constant 8 : index
    %c0_286 = arith.constant 0 : index
    %328 = vector.load %arg14[%c8_285, %c0_286] : memref<88x64xf32, #tpu.memory_space<vmem>>, vector<64x64xf32>
    %c0_287 = arith.constant 0 : index
    %c192_288 = arith.constant 192 : index
    %329 = vector.load %arg12[%c0_287, %c192_288] : memref<64x576xf32, #tpu.memory_space<vmem>>, vector<64x64xf32>
    tpu.vector_store %arg12[%c0_287, %c192_288], %328 {strides = array<i32>} : memref<64x576xf32, #tpu.memory_space<vmem>>, vector<64x64xf32>,
    %c9_289 = arith.constant 9 : index
    %c0_290 = arith.constant 0 : index
    %330 = vector.load %arg14[%c9_289, %c0_290] : memref<88x64xf32, #tpu.memory_space<vmem>>, vector<64x64xf32>
    %c0_291 = arith.constant 0 : index
    %c256_292 = arith.constant 256 : index
    %331 = vector.load %arg12[%c0_291, %c256_292] : memref<64x576xf32, #tpu.memory_space<vmem>>, vector<64x64xf32>
    tpu.vector_store %arg12[%c0_291, %c256_292], %330 {strides = array<i32>} : memref<64x576xf32, #tpu.memory_space<vmem>>, vector<64x64xf32>,
    %c10_293 = arith.constant 10 : index
    %c0_294 = arith.constant 0 : index
    %332 = vector.load %arg14[%c10_293, %c0_294] : memref<88x64xf32, #tpu.memory_space<vmem>>, vector<64x64xf32>
    %c0_295 = arith.constant 0 : index
    %c320_296 = arith.constant 320 : index
    %333 = vector.load %arg12[%c0_295, %c320_296] : memref<64x576xf32, #tpu.memory_space<vmem>>, vector<64x64xf32>
    tpu.vector_store %arg12[%c0_295, %c320_296], %332 {strides = array<i32>} : memref<64x576xf32, #tpu.memory_space<vmem>>, vector<64x64xf32>,
    %c16_297 = arith.constant 16 : index
    %c0_298 = arith.constant 0 : index
    %334 = vector.load %arg14[%c16_297, %c0_298] : memref<88x64xf32, #tpu.memory_space<vmem>>, vector<64x64xf32>
    %c0_299 = arith.constant 0 : index
    %c384_300 = arith.constant 384 : index
    %335 = vector.load %arg12[%c0_299, %c384_300] : memref<64x576xf32, #tpu.memory_space<vmem>>, vector<64x64xf32>
    tpu.vector_store %arg12[%c0_299, %c384_300], %334 {strides = array<i32>} : memref<64x576xf32, #tpu.memory_space<vmem>>, vector<64x64xf32>,
    %c17_301 = arith.constant 17 : index
    %c0_302 = arith.constant 0 : index
    %336 = vector.load %arg14[%c17_301, %c0_302] : memref<88x64xf32, #tpu.memory_space<vmem>>, vector<64x64xf32>
    %c0_303 = arith.constant 0 : index
    %c448_304 = arith.constant 448 : index
    %337 = vector.load %arg12[%c0_303, %c448_304] : memref<64x576xf32, #tpu.memory_space<vmem>>, vector<64x64xf32>
    tpu.vector_store %arg12[%c0_303, %c448_304], %336 {strides = array<i32>} : memref<64x576xf32, #tpu.memory_space<vmem>>, vector<64x64xf32>,
    %c18_305 = arith.constant 18 : index
    %c0_306 = arith.constant 0 : index
    %338 = vector.load %arg14[%c18_305, %c0_306] : memref<88x64xf32, #tpu.memory_space<vmem>>, vector<64x64xf32>
    %c0_307 = arith.constant 0 : index
    %c512_308 = arith.constant 512 : index
    %339 = vector.load %arg12[%c0_307, %c512_308] : memref<64x576xf32, #tpu.memory_space<vmem>>, vector<64x64xf32>
    tpu.vector_store %arg12[%c0_307, %c512_308], %338 {strides = array<i32>} : memref<64x576xf32, #tpu.memory_space<vmem>>, vector<64x64xf32>,
    %c0_309 = arith.constant 0 : index
    %c0_310 = arith.constant 0 : index
    %340 = vector.load %arg12[%c0_309, %c0_310] : memref<64x576xf32, #tpu.memory_space<vmem>>, vector<64x576xf32>
    %c0_311 = arith.constant 0 : index
    %c0_312 = arith.constant 0 : index
    %341 = vector.load %arg4[%c0_311, %c0_312] : memref<576x64xf32, #tpu.memory_space<vmem>>, vector<576x64xf32>
    %cst_313 = arith.constant dense<0.000000e+00> : vector<64x64xf32>
    %342 = tpu.matmul %340, %341, %cst_313 {dimension_numbers = #tpu.dot_dimension_numbers<[1], [0], [0], [1], [0, 0, 1, 1], [], []>} : vector<64x576xf32>, vector<576x64xf32>, vector<64x64xf32> -> vector<64x64xf32>
    %c0_314 = arith.constant 0 : index
    %c0_315 = arith.constant 0 : index
    %343 = vector.load %arg6[%c0_314, %c0_315] : memref<64x64xf32, #tpu.memory_space<vmem>>, vector<64x64xf32>
    tpu.vector_store %arg6[%c0_314, %c0_315], %342 {strides = array<i32>} : memref<64x64xf32, #tpu.memory_space<vmem>>, vector<64x64xf32>,
    %c0_316 = arith.constant 0 : index
    %c0_317 = arith.constant 0 : index
    %344 = vector.load %arg6[%c0_316, %c0_317] : memref<64x64xf32, #tpu.memory_space<vmem>>, vector<64x64xf32>
    %345 = tpu.iota {dimensions = array<i32: 0>} : vector<64x64xi32>
    %c7_i32_318 = arith.constant 7 : i32
    %346 = vector.broadcast %c7_i32_318 : i32 to vector<64x64xi32>
    %347 = arith.andi %345, %346 : vector<64x64xi32>
    %c2_i32_319 = arith.constant 2 : i32
    %348 = vector.broadcast %c2_i32_319 : i32 to vector<64x64xi32>
    %349 = arith.cmpi slt, %347, %348 : vector<64x64xi32>
    %c3_i32_320 = arith.constant 3 : i32
    %350 = vector.broadcast %c3_i32_320 : i32 to vector<64x64xi32>
    %351 = arith.shrsi %345, %350 : vector<64x64xi32>
    %c3_i32_321 = arith.constant 3 : i32
    %352 = vector.broadcast %c3_i32_321 : i32 to vector<64x64xi32>
    %353 = arith.andi %351, %352 : vector<64x64xi32>
    %c2_i32_322 = arith.constant 2 : i32
    %354 = vector.broadcast %c2_i32_322 : i32 to vector<64x64xi32>
    %355 = arith.cmpi slt, %353, %354 : vector<64x64xi32>
    %356 = arith.andi %349, %355 : vector<64x64xi1>
    %cst_323 = arith.constant 0.000000e+00 : f32
    %357 = vector.broadcast %cst_323 : f32 to vector<64x64xf32>
    %358 = arith.select %356, %344, %357 : vector<64x64xi1>, vector<64x64xf32>
    %cst_324 = arith.constant dense<0.000000e+00> : vector<64xf32>
    %359 = vector.multi_reduction <add>, %358, %cst_324 [0] : vector<64x64xf32> to vector<64xf32>
    %360 = vector.shape_cast %359 : vector<64xf32> to vector<1x64xf32>
    %361 = arith.mulf %358, %344 : vector<64x64xf32>
    %cst_325 = arith.constant dense<0.000000e+00> : vector<64xf32>
    %362 = vector.multi_reduction <add>, %361, %cst_325 [0] : vector<64x64xf32> to vector<64xf32>
    %363 = vector.shape_cast %362 : vector<64xf32> to vector<1x64xf32>
    %cst_326 = arith.constant 1.250000e-01 : f32
    %364 = vector.broadcast %cst_326 : f32 to vector<1x64xf32>
    %365 = arith.mulf %360, %364 : vector<1x64xf32>
    %cst_327 = arith.constant 1.250000e-01 : f32
    %366 = vector.broadcast %cst_327 : f32 to vector<1x64xf32>
    %367 = arith.mulf %363, %366 : vector<1x64xf32>
    %368 = arith.mulf %365, %365 : vector<1x64xf32>
    %369 = arith.subf %367, %368 : vector<1x64xf32>
    %c6 = arith.constant 6 : index
    %c0_328 = arith.constant 0 : index
    %370 = vector.load %arg5[%c6, %c0_328] : memref<8x64xf32, #tpu.memory_space<vmem>>, vector<1x64xf32>
    %c7 = arith.constant 7 : index
    %c0_329 = arith.constant 0 : index
    %371 = vector.load %arg5[%c7, %c0_329] : memref<8x64xf32, #tpu.memory_space<vmem>>, vector<1x64xf32>
    %cst_330 = arith.constant 9.99999974E-6 : f32
    %372 = vector.broadcast %cst_330 : f32 to vector<1x64xf32>
    %373 = arith.addf %369, %372 : vector<1x64xf32>
    %374 = math.rsqrt %373 : vector<1x64xf32>
    %375 = arith.mulf %370, %374 : vector<1x64xf32>
    %376 = vector.broadcast %365 : vector<1x64xf32> to vector<64x64xf32>
    %377 = arith.subf %344, %376 : vector<64x64xf32>
    %378 = vector.broadcast %375 : vector<1x64xf32> to vector<64x64xf32>
    %379 = arith.mulf %377, %378 : vector<64x64xf32>
    %380 = vector.broadcast %371 : vector<1x64xf32> to vector<64x64xf32>
    %381 = arith.addf %379, %380 : vector<64x64xf32>
    %cst_331 = arith.constant 0.000000e+00 : f32
    %382 = vector.broadcast %cst_331 : f32 to vector<64x64xf32>
    %383 = arith.maximumf %381, %382 : vector<64x64xf32>
    %c0_332 = arith.constant 0 : index
    %c0_333 = arith.constant 0 : index
    %384 = vector.load %arg6[%c0_332, %c0_333] : memref<64x64xf32, #tpu.memory_space<vmem>>, vector<64x64xf32>
    tpu.vector_store %arg6[%c0_332, %c0_333], %383 {strides = array<i32>} : memref<64x64xf32, #tpu.memory_space<vmem>>, vector<64x64xf32>,
    return
  }
}

</mosaic_0001>

<llo_original>
// kernel: cnnencoder_forward.1
$region0: #{cnnencoder_forward.1}
  #allocation0 [shape = 'u32[]', space=smem, size = 0x4, offset = 0x4, fixed_abs, tag = 'smem constant byte address 0x4 - core index']
  #allocation1 [shape = 'u32[144,128]{1,0:T(1,128)}', space=vmem, size = 0x12000, scoped, tag = 'internal scratch']
  #allocation2 [shape = 'f32[448,64]{1,0:T(8,128)}', space=vmem, size = 0x38000, scoped, tag = 'scratch operand']
  #allocation3 [shape = 'f32[152,64]{1,0:T(8,128)}', space=vmem, size = 0x13000, scoped, tag = 'scratch operand']
  #allocation4 [shape = 'f32[128,576]{1,0:T(8,128)}', space=vmem, size = 0x50000, scoped, tag = 'scratch operand']
  #allocation5 [shape = 'f32[128,64]{1,0:T(8,128)}', space=vmem, size = 0x10000, scoped, tag = 'scratch operand']
  #allocation6 [shape = 'f32[88,64]{1,0:T(8,128)}', space=vmem, size = 0xb000, scoped, tag = 'scratch operand']
  #allocation7 [shape = 'f32[64,576]{1,0:T(8,128)}', space=vmem, size = 0x28000, scoped, tag = 'scratch operand']
  #allocation8 [shape = 'f32[64,64]{1,0:T(8,128)}', space=vmem, size = 0x8000, scoped, tag = 'scratch operand']
  #allocation9 [shape = 'f32[88,64]{1,0:T(8,128)}', space=vmem, size = 0xb000, scoped, tag = 'scratch operand']
  %s0 = inlined_call_operand.vmem [shape: f32[448,32], index: 0, kind: input, shape index: {}]
  %s1 = inlined_call_operand.vmem [shape: f32[32,64], index: 1, kind: input, shape index: {}]
  %s2 = inlined_call_operand.vmem [shape: f32[576,64], index: 2, kind: input, shape index: {}]
  %s3 = inlined_call_operand.vmem [shape: f32[576,64], index: 3, kind: input, shape index: {}]
  %s4 = inlined_call_operand.vmem [shape: f32[576,64], index: 4, kind: input, shape index: {}]
  %s5 = inlined_call_operand.vmem [shape: f32[8,64], index: 5, kind: input, shape index: {}]
  %s6 = inlined_call_operand.vmem [shape: f32[64,64], index: 6, kind: output, shape index: {}]
  %s7 = sld [smem:[#allocation0]]
  $region34: #{cnnencoder_forward.1} parent=0
    _
  %s9 = ssub.s32 1, %s7
  %s10 = scalar_select 0, %s9, %s7
  // Predicated region
  $region2: #{cnnencoder_forward.1} parent=0 // pred_check
    _
  $region3: #{cnnencoder_forward.1} parent=0 // pred_check_branch
    %12 = sbr.rel (0) target = $region5
  $region4: #{cnnencoder_forward.1} parent=0 // pred_region
    _
  $region5: #{cnnencoder_forward.1} parent=0 // pred_fallthru
    _
  // Predicated region
  $region6: #{cnnencoder_forward.1} parent=0 // pred_check
    _
  $region7: #{cnnencoder_forward.1} parent=0 // pred_check_branch
    %14 = sbr.rel (0) target = $region9
  $region8: #{cnnencoder_forward.1} parent=0 // pred_region
    _
  $region9: #{cnnencoder_forward.1} parent=0 // pred_fallthru
    _
  // Predicated region
  $region10: #{cnnencoder_forward.1} parent=0 // pred_check
    _
  $region11: #{cnnencoder_forward.1} parent=0 // pred_check_branch
    %16 = sbr.rel (0) target = $region13
  $region12: #{cnnencoder_forward.1} parent=0 // pred_region
    _
  $region13: #{cnnencoder_forward.1} parent=0 // pred_fallthru
    _
  // Predicated region
  $region14: #{cnnencoder_forward.1} parent=0 // pred_check
    _
  $region15: #{cnnencoder_forward.1} parent=0 // pred_check_branch
    %18 = sbr.rel (0) target = $region17
  $region16: #{cnnencoder_forward.1} parent=0 // pred_region
    _
  $region17: #{cnnencoder_forward.1} parent=0 // pred_fallthru
    _
  // Predicated region
  $region18: #{cnnencoder_forward.1} parent=0 // pred_check
    _
  $region19: #{cnnencoder_forward.1} parent=0 // pred_check_branch
    %20 = sbr.rel (0) target = $region21
  $region20: #{cnnencoder_forward.1} parent=0 // pred_region
    _
  $region21: #{cnnencoder_forward.1} parent=0 // pred_fallthru
    _
  // Predicated region
  $region22: #{cnnencoder_forward.1} parent=0 // pred_check
    _
  $region23: #{cnnencoder_forward.1} parent=0 // pred_check_branch
    %22 = sbr.rel (0) target = $region25
  $region24: #{cnnencoder_forward.1} parent=0 // pred_region
    _
  $region25: #{cnnencoder_forward.1} parent=0 // pred_fallthru
    _
  %vm23 = vcmask 523264
  %24 = vst.msk [vmem:[#allocation3] sm:$0xff] %vm23, 0.0
  %25 = vst.msk [vmem:[#allocation3 + $0x8] sm:$0xff] %vm23, 0.0
  %26 = vst.msk [vmem:[#allocation3 + $0x10] sm:$0xff] %vm23, 0.0
  %27 = vst.msk [vmem:[#allocation3 + $0x18] sm:$0xff] %vm23, 0.0
  %28 = vst.msk [vmem:[#allocation3 + $0x20] sm:$0xff] %vm23, 0.0
  %29 = vst.msk [vmem:[#allocation3 + $0x28] sm:$0xff] %vm23, 0.0
  %30 = vst.msk [vmem:[#allocation3 + $0x30] sm:$0xff] %vm23, 0.0
  %31 = vst.msk [vmem:[#allocation3 + $0x38] sm:$0xff] %vm23, 0.0
  %32 = vst.msk [vmem:[#allocation3 + $0x40] sm:$0xff] %vm23, 0.0
  %33 = vst.msk [vmem:[#allocation3 + $0x48] sm:$0xff] %vm23, 0.0
  %34 = vst.msk [vmem:[#allocation3 + $0x50] sm:$0xff] %vm23, 0.0
  %35 = vst.msk [vmem:[#allocation3 + $0x58] sm:$0xff] %vm23, 0.0
  %36 = vst.msk [vmem:[#allocation3 + $0x60] sm:$0xff] %vm23, 0.0
  %37 = vst.msk [vmem:[#allocation3 + $0x68] sm:$0xff] %vm23, 0.0
  %38 = vst.msk [vmem:[#allocation3 + $0x70] sm:$0xff] %vm23, 0.0
  %39 = vst.msk [vmem:[#allocation3 + $0x78] sm:$0xff] %vm23, 0.0
  %40 = vst.msk [vmem:[#allocation3 + $0x80] sm:$0xff] %vm23, 0.0
  %41 = vst.msk [vmem:[#allocation3 + $0x88] sm:$0xff] %vm23, 0.0
  %42 = vst.msk [vmem:[#allocation3 + $0x90] sm:$0xff] %vm23, 0.0
  %43 = vst.msk [vmem:[#allocation6] sm:$0xff] %vm23, 0.0
  %44 = vst.msk [vmem:[#allocation6 + $0x8] sm:$0xff] %vm23, 0.0
  %45 = vst.msk [vmem:[#allocation6 + $0x10] sm:$0xff] %vm23, 0.0
  %46 = vst.msk [vmem:[#allocation6 + $0x18] sm:$0xff] %vm23, 0.0
  %47 = vst.msk [vmem:[#allocation6 + $0x20] sm:$0xff] %vm23, 0.0
  %48 = vst.msk [vmem:[#allocation6 + $0x28] sm:$0xff] %vm23, 0.0
  %49 = vst.msk [vmem:[#allocation6 + $0x30] sm:$0xff] %vm23, 0.0
  %50 = vst.msk [vmem:[#allocation6 + $0x38] sm:$0xff] %vm23, 0.0
  %51 = vst.msk [vmem:[#allocation6 + $0x40] sm:$0xff] %vm23, 0.0
  %52 = vst.msk [vmem:[#allocation6 + $0x48] sm:$0xff] %vm23, 0.0
  %53 = vst.msk [vmem:[#allocation6 + $0x50] sm:$0xff] %vm23, 0.0
  %54 = vst.msk [vmem:[#allocation9] sm:$0xff] %vm23, 0.0
  %55 = vst.msk [vmem:[#allocation9 + $0x8] sm:$0xff] %vm23, 0.0
  %56 = vst.msk [vmem:[#allocation9 + $0x10] sm:$0xff] %vm23, 0.0
  %57 = vst.msk [vmem:[#allocation9 + $0x18] sm:$0xff] %vm23, 0.0
  %58 = vst.msk [vmem:[#allocation9 + $0x20] sm:$0xff] %vm23, 0.0
  %59 = vst.msk [vmem:[#allocation9 + $0x28] sm:$0xff] %vm23, 0.0
  %60 = vst.msk [vmem:[#allocation9 + $0x30] sm:$0xff] %vm23, 0.0
  %61 = vst.msk [vmem:[#allocation9 + $0x38] sm:$0xff] %vm23, 0.0
  %62 = vst.msk [vmem:[#allocation9 + $0x40] sm:$0xff] %vm23, 0.0
  %63 = vst.msk [vmem:[#allocation9 + $0x48] sm:$0xff] %vm23, 0.0
  %64 = vst.msk [vmem:[#allocation9 + $0x50] sm:$0xff] %vm23, 0.0
  %v65 = vld [vmem:[%s0] sm:$0xff]
  %v66 = vld [vmem:[%s0 + $0x8] sm:$0xff]
  %v67 = vld [vmem:[%s0 + $0x10] sm:$0xff]
  %v68 = vld [vmem:[%s0 + $0x18] sm:$0xff]
  %v69 = vld [vmem:[%s0 + $0x20] sm:$0xff]
  %v70 = vld [vmem:[%s0 + $0x28] sm:$0xff]
  %v71 = vld [vmem:[%s0 + $0x30] sm:$0xff]
  %v72 = vld [vmem:[%s0 + $0x38] sm:$0xff]
  %v73 = vld [vmem:[%s0 + $0x40] sm:$0xff]
  %v74 = vld [vmem:[%s0 + $0x48] sm:$0xff]
  %v75 = vld [vmem:[%s0 + $0x50] sm:$0xff]
  %v76 = vld [vmem:[%s0 + $0x58] sm:$0xff]
  %v77 = vld [vmem:[%s0 + $0x60] sm:$0xff]
  %v78 = vld [vmem:[%s0 + $0x68] sm:$0xff]
  %v79 = vld [vmem:[%s0 + $0x70] sm:$0xff]
  %v80 = vld [vmem:[%s0 + $0x78] sm:$0xff]
  %v81 = vld [vmem:[%s0 + $0x80] sm:$0xff]
  %v82 = vld [vmem:[%s0 + $0x88] sm:$0xff]
  %v83 = vld [vmem:[%s0 + $0x90] sm:$0xff]
  %v84 = vld [vmem:[%s0 + $0x98] sm:$0xff]
  %v85 = vld [vmem:[%s0 + $0xa0] sm:$0xff]
  %v86 = vld [vmem:[%s0 + $0xa8] sm:$0xff]
  %v87 = vld [vmem:[%s0 + $0xb0] sm:$0xff]
  %v88 = vld [vmem:[%s0 + $0xb8] sm:$0xff]
  %v89 = vld [vmem:[%s0 + $0xc0] sm:$0xff]
  %v90 = vld [vmem:[%s0 + $0xc8] sm:$0xff]
  %v91 = vld [vmem:[%s0 + $0xd0] sm:$0xff]
  %v92 = vld [vmem:[%s0 + $0xd8] sm:$0xff]
  %v93 = vld [vmem:[%s0 + $0xe0] sm:$0xff]
  %v94 = vld [vmem:[%s0 + $0xe8] sm:$0xff]
  %v95 = vld [vmem:[%s0 + $0xf0] sm:$0xff]
  %v96 = vld [vmem:[%s0 + $0xf8] sm:$0xff]
  %v97 = vld [vmem:[%s0 + $0x100] sm:$0xff]
  %v98 = vld [vmem:[%s0 + $0x108] sm:$0xff]
  %v99 = vld [vmem:[%s0 + $0x110] sm:$0xff]
  %v100 = vld [vmem:[%s0 + $0x118] sm:$0xff]
  %v101 = vld [vmem:[%s0 + $0x120] sm:$0xff]
  %v102 = vld [vmem:[%s0 + $0x128] sm:$0xff]
  %v103 = vld [vmem:[%s0 + $0x130] sm:$0xff]
  %v104 = vld [vmem:[%s0 + $0x138] sm:$0xff]
  %v105 = vld [vmem:[%s0 + $0x140] sm:$0xff]
  %v106 = vld [vmem:[%s0 + $0x148] sm:$0xff]
  %v107 = vld [vmem:[%s0 + $0x150] sm:$0xff]
  %v108 = vld [vmem:[%s0 + $0x158] sm:$0xff]
  %v109 = vld [vmem:[%s0 + $0x160] sm:$0xff]
  %v110 = vld [vmem:[%s0 + $0x168] sm:$0xff]
  %v111 = vld [vmem:[%s0 + $0x170] sm:$0xff]
  %v112 = vld [vmem:[%s0 + $0x178] sm:$0xff]
  %v113 = vld [vmem:[%s0 + $0x180] sm:$0xff]
  %v114 = vld [vmem:[%s0 + $0x188] sm:$0xff]
  %v115 = vld [vmem:[%s0 + $0x190] sm:$0xff]
  %v116 = vld [vmem:[%s0 + $0x198] sm:$0xff]
  %v117 = vld [vmem:[%s0 + $0x1a0] sm:$0xff]
  %v118 = vld [vmem:[%s0 + $0x1a8] sm:$0xff]
  %v119 = vld [vmem:[%s0 + $0x1b0] sm:$0xff]
  %v120 = vld [vmem:[%s0 + $0x1b8] sm:$0xff]
  %v121 = vld [vmem:[%s1] sm:$0xff]
  %v122 = vld [vmem:[%s1 + $0x8] sm:$0xff]
  %v123 = vld [vmem:[%s1 + $0x10] sm:$0xff]
  %v124 = vld [vmem:[%s1 + $0x18] sm:$0xff]
  %vm125 = vcmask 261120
  %v127 = vsel %vm125, %v65, 0
  %v130 = vsel %vm125, %v66, 0
  %v133 = vsel %vm125, %v67, 0
  %v136 = vsel %vm125, %v68, 0
  %v139 = vsel %vm125, %v69, 0
  %v142 = vsel %vm125, %v70, 0
  %v145 = vsel %vm125, %v71, 0
  %v148 = vsel %vm125, %v72, 0
  %v151 = vsel %vm125, %v73, 0
  %v154 = vsel %vm125, %v74, 0
  %v157 = vsel %vm125, %v75, 0
  %v160 = vsel %vm125, %v76, 0
  %v163 = vsel %vm125, %v77, 0
  %v166 = vsel %vm125, %v78, 0
  %v169 = vsel %vm125, %v79, 0
  %v172 = vsel %vm125, %v80, 0
  %v175 = vsel %vm125, %v81, 0
  %v178 = vsel %vm125, %v82, 0
  %v181 = vsel %vm125, %v83, 0
  %v184 = vsel %vm125, %v84, 0
  %v187 = vsel %vm125, %v85, 0
  %v190 = vsel %vm125, %v86, 0
  %v193 = vsel %vm125, %v87, 0
  %v196 = vsel %vm125, %v88, 0
  %v199 = vsel %vm125, %v89, 0
  %v202 = vsel %vm125, %v90, 0
  %v205 = vsel %vm125, %v91, 0
  %v208 = vsel %vm125, %v92, 0
  %v211 = vsel %vm125, %v93, 0
  %v214 = vsel %vm125, %v94, 0
  %v217 = vsel %vm125, %v95, 0
  %v220 = vsel %vm125, %v96, 0
  %v223 = vsel %vm125, %v97, 0
  %v226 = vsel %vm125, %v98, 0
  %v229 = vsel %vm125, %v99, 0
  %v232 = vsel %vm125, %v100, 0
  %v235 = vsel %vm125, %v101, 0
  %v238 = vsel %vm125, %v102, 0
  %v241 = vsel %vm125, %v103, 0
  %v244 = vsel %vm125, %v104, 0
  %v247 = vsel %vm125, %v105, 0
  %v250 = vsel %vm125, %v106, 0
  %v253 = vsel %vm125, %v107, 0
  %v256 = vsel %vm125, %v108, 0
  %v259 = vsel %vm125, %v109, 0
  %v262 = vsel %vm125, %v110, 0
  %v265 = vsel %vm125, %v111, 0
  %v268 = vsel %vm125, %v112, 0
  %v271 = vsel %vm125, %v113, 0
  %v274 = vsel %vm125, %v114, 0
  %v277 = vsel %vm125, %v115, 0
  %v280 = vsel %vm125, %v116, 0
  %v283 = vsel %vm125, %v117, 0
  %v286 = vsel %vm125, %v118, 0
  %v289 = vsel %vm125, %v119, 0
  %v292 = vsel %vm125, %v120, 0
  %294 = vmatprep.subr.mxu0 0.0
  %295 = vmatpush1.msra.mxu0 0.0
  %296 = vmatprep.subr.mxu0 0.0
  %297 = vmatpush1.msra.mxu0 0.0
  %298 = vmatprep.subr.mxu0 0.0
  %299 = vmatpush1.msra.mxu0 0.0
  %300 = vmatprep.subr.mxu0 0.0
  %301 = vmatpush1.msra.mxu0 0.0
  %302 = vmatprep.subr.mxu0 0.0
  %303 = vmatpush1.msra.mxu0 0.0
  %304 = vmatprep.subr.mxu0 0.0
  %305 = vmatpush1.msra.mxu0 0.0
  %306 = vmatprep.subr.mxu0 0.0
  %307 = vmatpush1.msra.mxu0 0.0
  %308 = vmatprep.subr.mxu0 0.0
  %309 = vmatpush1.msra.mxu0 0.0
  %310 = vmatprep.subr.mxu0 0.0
  %311 = vmatpush1.msra.mxu0 0.0
  %312 = vmatprep.subr.mxu0 0.0
  %313 = vmatpush1.msra.mxu0 0.0
  %314 = vmatprep.subr.mxu0 0.0
  %315 = vmatpush1.msra.mxu0 0.0
  %316 = vmatprep.subr.mxu0 0.0
  %317 = vmatpush1.msra.mxu0 0.0
  %318 = vmatprep.subr.mxu0 0.0
  %319 = vmatpush1.msra.mxu0 %v124
  %320 = vmatprep.subr.mxu0 0.0
  %321 = vmatpush1.msra.mxu0 %v123
  %322 = vmatprep.subr.mxu0 0.0
  %323 = vmatpush1.msra.mxu0 %v122
  %324 = vmatprep.subr.mxu0 0.0
  %325 = vmatpush1.msra.mxu0 %v121
  %326 = vmatprep.subr.mxu0 0.0
  %327 = vmatpush2.msra.mxu0 0.0
  %328 = vmatprep.subr.mxu0 0.0
  %329 = vmatpush2.msra.mxu0 0.0
  %330 = vmatprep.subr.mxu0 0.0
  %331 = vmatpush2.msra.mxu0 0.0
  %332 = vmatprep.subr.mxu0 0.0
  %333 = vmatpush2.msra.mxu0 0.0
  %334 = vmatprep.subr.mxu0 0.0
  %335 = vmatpush2.msra.mxu0 0.0
  %336 = vmatprep.subr.mxu0 0.0
  %337 = vmatpush2.msra.mxu0 0.0
  %338 = vmatprep.subr.mxu0 0.0
  %339 = vmatpush2.msra.mxu0 0.0
  %340 = vmatprep.subr.mxu0 0.0
  %341 = vmatpush2.msra.mxu0 0.0
  %342 = vmatprep.subr.mxu0 0.0
  %343 = vmatpush2.msra.mxu0 0.0
  %344 = vmatprep.subr.mxu0 0.0
  %345 = vmatpush2.msra.mxu0 0.0
  %346 = vmatprep.subr.mxu0 0.0
  %347 = vmatpush2.msra.mxu0 0.0
  %348 = vmatprep.subr.mxu0 0.0
  %349 = vmatpush2.msra.mxu0 0.0
  %350 = vmatprep.subr.mxu0 0.0
  %351 = vmatpush2.msra.mxu0 0.0
  %352 = vmatprep.subr.mxu0 0.0
  %353 = vmatpush2.msra.mxu0 0.0
  %354 = vmatprep.subr.mxu0 0.0
  %355 = vmatpush2.msra.mxu0 0.0
  %356 = vmatprep.subr.mxu0 0.0
  %357 = vmatpush2.msra.mxu0 0.0
  %358 = vmatprep.mubr.f32.mxu0 0.0
  %359 = vmatmul.mubr.f32.gmra.mxu0 %v127
  %v360 = vpop.f32.mrf.mxu0
  %v361 = vadd.f32 0.0, %v360
  %v362 = vpop.f32.mrf.mxu0
  %363 = vmatprep.mubr.f32.mxu0 0.0
  %364 = vmatmul.mubr.f32.gmra.mxu0 %v130
  %v365 = vpop.f32.mrf.mxu0
  %v366 = vadd.f32 0.0, %v365
  %v367 = vpop.f32.mrf.mxu0
  %368 = vmatprep.mubr.f32.mxu0 0.0
  %369 = vmatmul.mubr.f32.gmra.mxu0 %v133
  %v370 = vpop.f32.mrf.mxu0
  %v371 = vadd.f32 0.0, %v370
  %v372 = vpop.f32.mrf.mxu0
  %373 = vmatprep.mubr.f32.mxu0 0.0
  %374 = vmatmul.mubr.f32.gmra.mxu0 %v136
  %v375 = vpop.f32.mrf.mxu0
  %v376 = vadd.f32 0.0, %v375
  %v377 = vpop.f32.mrf.mxu0
  %378 = vmatprep.mubr.f32.mxu0 0.0
  %379 = vmatmul.mubr.f32.gmra.mxu0 %v139
  %v380 = vpop.f32.mrf.mxu0
  %v381 = vadd.f32 0.0, %v380
  %v382 = vpop.f32.mrf.mxu0
  %383 = vmatprep.mubr.f32.mxu0 0.0
  %384 = vmatmul.mubr.f32.gmra.mxu0 %v142
  %v385 = vpop.f32.mrf.mxu0
  %v386 = vadd.f32 0.0, %v385
  %v387 = vpop.f32.mrf.mxu0
  %388 = vmatprep.mubr.f32.mxu0 0.0
  %389 = vmatmul.mubr.f32.gmra.mxu0 %v145
  %v390 = vpop.f32.mrf.mxu0
  %v391 = vadd.f32 0.0, %v390
  %v392 = vpop.f32.mrf.mxu0
  %393 = vmatprep.mubr.f32.mxu0 0.0
  %394 = vmatmul.mubr.f32.gmra.mxu0 %v148
  %v395 = vpop.f32.mrf.mxu0
  %v396 = vadd.f32 0.0, %v395
  %v397 = vpop.f32.mrf.mxu0
  %398 = vmatprep.mubr.f32.mxu0 0.0
  %399 = vmatmul.mubr.f32.gmra.mxu0 %v151
  %v400 = vpop.f32.mrf.mxu0
  %v401 = vadd.f32 0.0, %v400
  %v402 = vpop.f32.mrf.mxu0
  %403 = vmatprep.mubr.f32.mxu0 0.0
  %404 = vmatmul.mubr.f32.gmra.mxu0 %v154
  %v405 = vpop.f32.mrf.mxu0
  %v406 = vadd.f32 0.0, %v405
  %v407 = vpop.f32.mrf.mxu0
  %408 = vmatprep.mubr.f32.mxu0 0.0
  %409 = vmatmul.mubr.f32.gmra.mxu0 %v157
  %v410 = vpop.f32.mrf.mxu0
  %v411 = vadd.f32 0.0, %v410
  %v412 = vpop.f32.mrf.mxu0
  %413 = vmatprep.mubr.f32.mxu0 0.0
  %414 = vmatmul.mubr.f32.gmra.mxu0 %v160
  %v415 = vpop.f32.mrf.mxu0
  %v416 = vadd.f32 0.0, %v415
  %v417 = vpop.f32.mrf.mxu0
  %418 = vmatprep.mubr.f32.mxu0 0.0
  %419 = vmatmul.mubr.f32.gmra.mxu0 %v163
  %v420 = vpop.f32.mrf.mxu0
  %v421 = vadd.f32 0.0, %v420
  %v422 = vpop.f32.mrf.mxu0
  %423 = vmatprep.mubr.f32.mxu0 0.0
  %424 = vmatmul.mubr.f32.gmra.mxu0 %v166
  %v425 = vpop.f32.mrf.mxu0
  %v426 = vadd.f32 0.0, %v425
  %v427 = vpop.f32.mrf.mxu0
  %428 = vmatprep.mubr.f32.mxu0 0.0
  %429 = vmatmul.mubr.f32.gmra.mxu0 %v169
  %v430 = vpop.f32.mrf.mxu0
  %v431 = vadd.f32 0.0, %v430
  %v432 = vpop.f32.mrf.mxu0
  %433 = vmatprep.mubr.f32.mxu0 0.0
  %434 = vmatmul.mubr.f32.gmra.mxu0 %v172
  %v435 = vpop.f32.mrf.mxu0
  %v436 = vadd.f32 0.0, %v435
  %v437 = vpop.f32.mrf.mxu0
  %438 = vmatprep.mubr.f32.mxu0 0.0
  %439 = vmatmul.mubr.f32.gmra.mxu0 %v175
  %v440 = vpop.f32.mrf.mxu0
  %v441 = vadd.f32 0.0, %v440
  %v442 = vpop.f32.mrf.mxu0
  %443 = vmatprep.mubr.f32.mxu0 0.0
  %444 = vmatmul.mubr.f32.gmra.mxu0 %v178
  %v445 = vpop.f32.mrf.mxu0
  %v446 = vadd.f32 0.0, %v445
  %v447 = vpop.f32.mrf.mxu0
  %448 = vmatprep.mubr.f32.mxu0 0.0
  %449 = vmatmul.mubr.f32.gmra.mxu0 %v181
  %v450 = vpop.f32.mrf.mxu0
  %v451 = vadd.f32 0.0, %v450
  %v452 = vpop.f32.mrf.mxu0
  %453 = vmatprep.mubr.f32.mxu0 0.0
  %454 = vmatmul.mubr.f32.gmra.mxu0 %v184
  %v455 = vpop.f32.mrf.mxu0
  %v456 = vadd.f32 0.0, %v455
  %v457 = vpop.f32.mrf.mxu0
  %458 = vmatprep.mubr.f32.mxu0 0.0
  %459 = vmatmul.mubr.f32.gmra.mxu0 %v187
  %v460 = vpop.f32.mrf.mxu0
  %v461 = vadd.f32 0.0, %v460
  %v462 = vpop.f32.mrf.mxu0
  %463 = vmatprep.mubr.f32.mxu0 0.0
  %464 = vmatmul.mubr.f32.gmra.mxu0 %v190
  %v465 = vpop.f32.mrf.mxu0
  %v466 = vadd.f32 0.0, %v465
  %v467 = vpop.f32.mrf.mxu0
  %468 = vmatprep.mubr.f32.mxu0 0.0
  %469 = vmatmul.mubr.f32.gmra.mxu0 %v193
  %v470 = vpop.f32.mrf.mxu0
  %v471 = vadd.f32 0.0, %v470
  %v472 = vpop.f32.mrf.mxu0
  %473 = vmatprep.mubr.f32.mxu0 0.0
  %474 = vmatmul.mubr.f32.gmra.mxu0 %v196
  %v475 = vpop.f32.mrf.mxu0
  %v476 = vadd.f32 0.0, %v475
  %v477 = vpop.f32.mrf.mxu0
  %478 = vmatprep.mubr.f32.mxu0 0.0
  %479 = vmatmul.mubr.f32.gmra.mxu0 %v199
  %v480 = vpop.f32.mrf.mxu0
  %v481 = vadd.f32 0.0, %v480
  %v482 = vpop.f32.mrf.mxu0
  %483 = vmatprep.mubr.f32.mxu0 0.0
  %484 = vmatmul.mubr.f32.gmra.mxu0 %v202
  %v485 = vpop.f32.mrf.mxu0
  %v486 = vadd.f32 0.0, %v485
  %v487 = vpop.f32.mrf.mxu0
  %488 = vmatprep.mubr.f32.mxu0 0.0
  %489 = vmatmul.mubr.f32.gmra.mxu0 %v205
  %v490 = vpop.f32.mrf.mxu0
  %v491 = vadd.f32 0.0, %v490
  %v492 = vpop.f32.mrf.mxu0
  %493 = vmatprep.mubr.f32.mxu0 0.0
  %494 = vmatmul.mubr.f32.gmra.mxu0 %v208
  %v495 = vpop.f32.mrf.mxu0
  %v496 = vadd.f32 0.0, %v495
  %v497 = vpop.f32.mrf.mxu0
  %498 = vmatprep.mubr.f32.mxu0 0.0
  %499 = vmatmul.mubr.f32.gmra.mxu0 %v211
  %v500 = vpop.f32.mrf.mxu0
  %v501 = vadd.f32 0.0, %v500
  %v502 = vpop.f32.mrf.mxu0
  %503 = vmatprep.mubr.f32.mxu0 0.0
  %504 = vmatmul.mubr.f32.gmra.mxu0 %v214
  %v505 = vpop.f32.mrf.mxu0
  %v506 = vadd.f32 0.0, %v505
  %v507 = vpop.f32.mrf.mxu0
  %508 = vmatprep.mubr.f32.mxu0 0.0
  %509 = vmatmul.mubr.f32.gmra.mxu0 %v217
  %v510 = vpop.f32.mrf.mxu0
  %v511 = vadd.f32 0.0, %v510
  %v512 = vpop.f32.mrf.mxu0
  %513 = vmatprep.mubr.f32.mxu0 0.0
  %514 = vmatmul.mubr.f32.gmra.mxu0 %v220
  %v515 = vpop.f32.mrf.mxu0
  %v516 = vadd.f32 0.0, %v515
  %v517 = vpop.f32.mrf.mxu0
  %518 = vmatprep.mubr.f32.mxu0 0.0
  %519 = vmatmul.mubr.f32.gmra.mxu0 %v223
  %v520 = vpop.f32.mrf.mxu0
  %v521 = vadd.f32 0.0, %v520
  %v522 = vpop.f32.mrf.mxu0
  %523 = vmatprep.mubr.f32.mxu0 0.0
  %524 = vmatmul.mubr.f32.gmra.mxu0 %v226
  %v525 = vpop.f32.mrf.mxu0
  %v526 = vadd.f32 0.0, %v525
  %v527 = vpop.f32.mrf.mxu0
  %528 = vmatprep.mubr.f32.mxu0 0.0
  %529 = vmatmul.mubr.f32.gmra.mxu0 %v229
  %v530 = vpop.f32.mrf.mxu0
  %v531 = vadd.f32 0.0, %v530
  %v532 = vpop.f32.mrf.mxu0
  %533 = vmatprep.mubr.f32.mxu0 0.0
  %534 = vmatmul.mubr.f32.gmra.mxu0 %v232
  %v535 = vpop.f32.mrf.mxu0
  %v536 = vadd.f32 0.0, %v535
  %v537 = vpop.f32.mrf.mxu0
  %538 = vmatprep.mubr.f32.mxu0 0.0
  %539 = vmatmul.mubr.f32.gmra.mxu0 %v235
  %v540 = vpop.f32.mrf.mxu0
  %v541 = vadd.f32 0.0, %v540
  %v542 = vpop.f32.mrf.mxu0
  %543 = vmatprep.mubr.f32.mxu0 0.0
  %544 = vmatmul.mubr.f32.gmra.mxu0 %v238
  %v545 = vpop.f32.mrf.mxu0
  %v546 = vadd.f32 0.0, %v545
  %v547 = vpop.f32.mrf.mxu0
  %548 = vmatprep.mubr.f32.mxu0 0.0
  %549 = vmatmul.mubr.f32.gmra.mxu0 %v241
  %v550 = vpop.f32.mrf.mxu0
  %v551 = vadd.f32 0.0, %v550
  %v552 = vpop.f32.mrf.mxu0
  %553 = vmatprep.mubr.f32.mxu0 0.0
  %554 = vmatmul.mubr.f32.gmra.mxu0 %v244
  %v555 = vpop.f32.mrf.mxu0
  %v556 = vadd.f32 0.0, %v555
  %v557 = vpop.f32.mrf.mxu0
  %558 = vmatprep.mubr.f32.mxu0 0.0
  %559 = vmatmul.mubr.f32.gmra.mxu0 %v247
  %v560 = vpop.f32.mrf.mxu0
  %v561 = vadd.f32 0.0, %v560
  %v562 = vpop.f32.mrf.mxu0
  %563 = vmatprep.mubr.f32.mxu0 0.0
  %564 = vmatmul.mubr.f32.gmra.mxu0 %v250
  %v565 = vpop.f32.mrf.mxu0
  %v566 = vadd.f32 0.0, %v565
  %v567 = vpop.f32.mrf.mxu0
  %568 = vmatprep.mubr.f32.mxu0 0.0
  %569 = vmatmul.mubr.f32.gmra.mxu0 %v253
  %v570 = vpop.f32.mrf.mxu0
  %v571 = vadd.f32 0.0, %v570
  %v572 = vpop.f32.mrf.mxu0
  %573 = vmatprep.mubr.f32.mxu0 0.0
  %574 = vmatmul.mubr.f32.gmra.mxu0 %v256
  %v575 = vpop.f32.mrf.mxu0
  %v576 = vadd.f32 0.0, %v575
  %v577 = vpop.f32.mrf.mxu0
  %578 = vmatprep.mubr.f32.mxu0 0.0
  %579 = vmatmul.mubr.f32.gmra.mxu0 %v259
  %v580 = vpop.f32.mrf.mxu0
  %v581 = vadd.f32 0.0, %v580
  %v582 = vpop.f32.mrf.mxu0
  %583 = vmatprep.mubr.f32.mxu0 0.0
  %584 = vmatmul.mubr.f32.gmra.mxu0 %v262
  %v585 = vpop.f32.mrf.mxu0
  %v586 = vadd.f32 0.0, %v585
  %v587 = vpop.f32.mrf.mxu0
  %588 = vmatprep.mubr.f32.mxu0 0.0
  %589 = vmatmul.mubr.f32.gmra.mxu0 %v265
  %v590 = vpop.f32.mrf.mxu0
  %v591 = vadd.f32 0.0, %v590
  %v592 = vpop.f32.mrf.mxu0
  %593 = vmatprep.mubr.f32.mxu0 0.0
  %594 = vmatmul.mubr.f32.gmra.mxu0 %v268
  %v595 = vpop.f32.mrf.mxu0
  %v596 = vadd.f32 0.0, %v595
  %v597 = vpop.f32.mrf.mxu0
  %598 = vmatprep.mubr.f32.mxu0 0.0
  %599 = vmatmul.mubr.f32.gmra.mxu0 %v271
  %v600 = vpop.f32.mrf.mxu0
  %v601 = vadd.f32 0.0, %v600
  %v602 = vpop.f32.mrf.mxu0
  %603 = vmatprep.mubr.f32.mxu0 0.0
  %604 = vmatmul.mubr.f32.gmra.mxu0 %v274
  %v605 = vpop.f32.mrf.mxu0
  %v606 = vadd.f32 0.0, %v605
  %v607 = vpop.f32.mrf.mxu0
  %608 = vmatprep.mubr.f32.mxu0 0.0
  %609 = vmatmul.mubr.f32.gmra.mxu0 %v277
  %v610 = vpop.f32.mrf.mxu0
  %v611 = vadd.f32 0.0, %v610
  %v612 = vpop.f32.mrf.mxu0
  %613 = vmatprep.mubr.f32.mxu0 0.0
  %614 = vmatmul.mubr.f32.gmra.mxu0 %v280
  %v615 = vpop.f32.mrf.mxu0
  %v616 = vadd.f32 0.0, %v615
  %v617 = vpop.f32.mrf.mxu0
  %618 = vmatprep.mubr.f32.mxu0 0.0
  %619 = vmatmul.mubr.f32.gmra.mxu0 %v283
  %v620 = vpop.f32.mrf.mxu0
  %v621 = vadd.f32 0.0, %v620
  %v622 = vpop.f32.mrf.mxu0
  %623 = vmatprep.mubr.f32.mxu0 0.0
  %624 = vmatmul.mubr.f32.gmra.mxu0 %v286
  %v625 = vpop.f32.mrf.mxu0
  %v626 = vadd.f32 0.0, %v625
  %v627 = vpop.f32.mrf.mxu0
  %628 = vmatprep.mubr.f32.mxu0 0.0
  %629 = vmatmul.mubr.f32.gmra.mxu0 %v289
  %v630 = vpop.f32.mrf.mxu0
  %v631 = vadd.f32 0.0, %v630
  %v632 = vpop.f32.mrf.mxu0
  %633 = vmatprep.mubr.f32.mxu0 0.0
  %634 = vmatmul.mubr.f32.gmra.mxu0 %v292
  %v635 = vpop.f32.mrf.mxu0
  %v636 = vadd.f32 0.0, %v635
  %v637 = vpop.f32.mrf.mxu0
  %638 = vdwg.mxu0
  %639 = vst.msk [vmem:[#allocation2] sm:$0xff] %vm23, %v361
  %640 = vst.msk [vmem:[#allocation2 + $0x8] sm:$0xff] %vm23, %v366
  %641 = vst.msk [vmem:[#allocation2 + $0x10] sm:$0xff] %vm23, %v371
  %642 = vst.msk [vmem:[#allocation2 + $0x18] sm:$0xff] %vm23, %v376
  %643 = vst.msk [vmem:[#allocation2 + $0x20] sm:$0xff] %vm23, %v381
  %644 = vst.msk [vmem:[#allocation2 + $0x28] sm:$0xff] %vm23, %v386
  %645 = vst.msk [vmem:[#allocation2 + $0x30] sm:$0xff] %vm23, %v391
  %646 = vst.msk [vmem:[#allocation2 + $0x38] sm:$0xff] %vm23, %v396
  %647 = vst.msk [vmem:[#allocation2 + $0x40] sm:$0xff] %vm23, %v401
  %648 = vst.msk [vmem:[#allocation2 + $0x48] sm:$0xff] %vm23, %v406
  %649 = vst.msk [vmem:[#allocation2 + $0x50] sm:$0xff] %vm23, %v411
  %650 = vst.msk [vmem:[#allocation2 + $0x58] sm:$0xff] %vm23, %v416
  %651 = vst.msk [vmem:[#allocation2 + $0x60] sm:$0xff] %vm23, %v421
  %652 = vst.msk [vmem:[#allocation2 + $0x68] sm:$0xff] %vm23, %v426
  %653 = vst.msk [vmem:[#allocation2 + $0x70] sm:$0xff] %vm23, %v431
  %654 = vst.msk [vmem:[#allocation2 + $0x78] sm:$0xff] %vm23, %v436
  %655 = vst.msk [vmem:[#allocation2 + $0x80] sm:$0xff] %vm23, %v441
  %656 = vst.msk [vmem:[#allocation2 + $0x88] sm:$0xff] %vm23, %v446
  %657 = vst.msk [vmem:[#allocation2 + $0x90] sm:$0xff] %vm23, %v451
  %658 = vst.msk [vmem:[#allocation2 + $0x98] sm:$0xff] %vm23, %v456
  %659 = vst.msk [vmem:[#allocation2 + $0xa0] sm:$0xff] %vm23, %v461
  %660 = vst.msk [vmem:[#allocation2 + $0xa8] sm:$0xff] %vm23, %v466
  %661 = vst.msk [vmem:[#allocation2 + $0xb0] sm:$0xff] %vm23, %v471
  %662 = vst.msk [vmem:[#allocation2 + $0xb8] sm:$0xff] %vm23, %v476
  %663 = vst.msk [vmem:[#allocation2 + $0xc0] sm:$0xff] %vm23, %v481
  %664 = vst.msk [vmem:[#allocation2 + $0xc8] sm:$0xff] %vm23, %v486
  %665 = vst.msk [vmem:[#allocation2 + $0xd0] sm:$0xff] %vm23, %v491
  %666 = vst.msk [vmem:[#allocation2 + $0xd8] sm:$0xff] %vm23, %v496
  %667 = vst.msk [vmem:[#allocation2 + $0xe0] sm:$0xff] %vm23, %v501
  %668 = vst.msk [vmem:[#allocation2 + $0xe8] sm:$0xff] %vm23, %v506
  %669 = vst.msk [vmem:[#allocation2 + $0xf0] sm:$0xff] %vm23, %v511
  %670 = vst.msk [vmem:[#allocation2 + $0xf8] sm:$0xff] %vm23, %v516
  %671 = vst.msk [vmem:[#allocation2 + $0x100] sm:$0xff] %vm23, %v521
  %672 = vst.msk [vmem:[#allocation2 + $0x108] sm:$0xff] %vm23, %v526
  %673 = vst.msk [vmem:[#allocation2 + $0x110] sm:$0xff] %vm23, %v531
  %674 = vst.msk [vmem:[#allocation2 + $0x118] sm:$0xff] %vm23, %v536
  %675 = vst.msk [vmem:[#allocation2 + $0x120] sm:$0xff] %vm23, %v541
  %676 = vst.msk [vmem:[#allocation2 + $0x128] sm:$0xff] %vm23, %v546
  %677 = vst.msk [vmem:[#allocation2 + $0x130] sm:$0xff] %vm23, %v551
  %678 = vst.msk [vmem:[#allocation2 + $0x138] sm:$0xff] %vm23, %v556
  %679 = vst.msk [vmem:[#allocation2 + $0x140] sm:$0xff] %vm23, %v561
  %680 = vst.msk [vmem:[#allocation2 + $0x148] sm:$0xff] %vm23, %v566
  %681 = vst.msk [vmem:[#allocation2 + $0x150] sm:$0xff] %vm23, %v571
  %682 = vst.msk [vmem:[#allocation2 + $0x158] sm:$0xff] %vm23, %v576
  %683 = vst.msk [vmem:[#allocation2 + $0x160] sm:$0xff] %vm23, %v581
  %684 = vst.msk [vmem:[#allocation2 + $0x168] sm:$0xff] %vm23, %v586
  %685 = vst.msk [vmem:[#allocation2 + $0x170] sm:$0xff] %vm23, %v591
  %686 = vst.msk [vmem:[#allocation2 + $0x178] sm:$0xff] %vm23, %v596
  %687 = vst.msk [vmem:[#allocation2 + $0x180] sm:$0xff] %vm23, %v601
  %688 = vst.msk [vmem:[#allocation2 + $0x188] sm:$0xff] %vm23, %v606
  %689 = vst.msk [vmem:[#allocation2 + $0x190] sm:$0xff] %vm23, %v611
  %690 = vst.msk [vmem:[#allocation2 + $0x198] sm:$0xff] %vm23, %v616
  %691 = vst.msk [vmem:[#allocation2 + $0x1a0] sm:$0xff] %vm23, %v621
  %692 = vst.msk [vmem:[#allocation2 + $0x1a8] sm:$0xff] %vm23, %v626
  %693 = vst.msk [vmem:[#allocation2 + $0x1b0] sm:$0xff] %vm23, %v631
  %694 = vst.msk [vmem:[#allocation2 + $0x1b8] sm:$0xff] %vm23, %v636
  %v695 = vld [vmem:[#allocation2] sm:$0xff]
  %v696 = vld [vmem:[#allocation2 + $0x8] sm:$0xff]
  %v697 = vld [vmem:[#allocation2 + $0x10] sm:$0xff]
  %v698 = vld [vmem:[#allocation2 + $0x18] sm:$0xff]
  %v699 = vld [vmem:[#allocation2 + $0x20] sm:$0xff]
  %v700 = vld [vmem:[#allocation2 + $0x28] sm:$0xff]
  %v701 = vld [vmem:[#allocation2 + $0x30] sm:$0xff]
  %v702 = vld [vmem:[#allocation2 + $0x38] sm:$0xff]
  %v703 = vld [vmem:[#allocation2 + $0x40] sm:$0xff]
  %v704 = vld [vmem:[#allocation2 + $0x48] sm:$0xff]
  %v705 = vld [vmem:[#allocation2 + $0x50] sm:$0xff]
  %v706 = vld [vmem:[#allocation2 + $0x58] sm:$0xff]
  %v707 = vld [vmem:[#allocation2 + $0x60] sm:$0xff]
  %v708 = vld [vmem:[#allocation2 + $0x68] sm:$0xff]
  %v709 = vld [vmem:[#allocation2 + $0x70] sm:$0xff]
  %v710 = vld [vmem:[#allocation2 + $0x78] sm:$0xff]
  %v711 = vld [vmem:[#allocation2 + $0x80] sm:$0xff]
  %v712 = vld [vmem:[#allocation2 + $0x88] sm:$0xff]
  %v713 = vld [vmem:[#allocation2 + $0x90] sm:$0xff]
  %v714 = vld [vmem:[#allocation2 + $0x98] sm:$0xff]
  %v715 = vld [vmem:[#allocation2 + $0xa0] sm:$0xff]
  %v716 = vld [vmem:[#allocation2 + $0xa8] sm:$0xff]
  %v717 = vld [vmem:[#allocation2 + $0xb0] sm:$0xff]
  %v718 = vld [vmem:[#allocation2 + $0xb8] sm:$0xff]
  %v719 = vld [vmem:[#allocation2 + $0xc0] sm:$0xff]
  %v720 = vld [vmem:[#allocation2 + $0xc8] sm:$0xff]
  %v721 = vld [vmem:[#allocation2 + $0xd0] sm:$0xff]
  %v722 = vld [vmem:[#allocation2 + $0xd8] sm:$0xff]
  %v723 = vld [vmem:[#allocation2 + $0xe0] sm:$0xff]
  %v724 = vld [vmem:[#allocation2 + $0xe8] sm:$0xff]
  %v725 = vld [vmem:[#allocation2 + $0xf0] sm:$0xff]
  %v726 = vld [vmem:[#allocation2 + $0xf8] sm:$0xff]
  %v727 = vld [vmem:[#allocation2 + $0x100] sm:$0xff]
  %v728 = vld [vmem:[#allocation2 + $0x108] sm:$0xff]
  %v729 = vld [vmem:[#allocation2 + $0x110] sm:$0xff]
  %v730 = vld [vmem:[#allocation2 + $0x118] sm:$0xff]
  %v731 = vld [vmem:[#allocation2 + $0x120] sm:$0xff]
  %v732 = vld [vmem:[#allocation2 + $0x128] sm:$0xff]
  %v733 = vld [vmem:[#allocation2 + $0x130] sm:$0xff]
  %v734 = vld [vmem:[#allocation2 + $0x138] sm:$0xff]
  %v735 = vld [vmem:[#allocation2 + $0x140] sm:$0xff]
  %v736 = vld [vmem:[#allocation2 + $0x148] sm:$0xff]
  %v737 = vld [vmem:[#allocation2 + $0x150] sm:$0xff]
  %v738 = vld [vmem:[#allocation2 + $0x158] sm:$0xff]
  %v739 = vld [vmem:[#allocation2 + $0x160] sm:$0xff]
  %v740 = vld [vmem:[#allocation2 + $0x168] sm:$0xff]
  %v741 = vld [vmem:[#allocation2 + $0x170] sm:$0xff]
  %v742 = vld [vmem:[#allocation2 + $0x178] sm:$0xff]
  %v743 = vld [vmem:[#allocation2 + $0x180] sm:$0xff]
  %v744 = vld [vmem:[#allocation2 + $0x188] sm:$0xff]
  %v745 = vld [vmem:[#allocation2 + $0x190] sm:$0xff]
  %v746 = vld [vmem:[#allocation2 + $0x198] sm:$0xff]
  %v747 = vld [vmem:[#allocation2 + $0x1a0] sm:$0xff]
  %v748 = vld [vmem:[#allocation2 + $0x1a8] sm:$0xff]
  %v749 = vld [vmem:[#allocation2 + $0x1b0] sm:$0xff]
  %v750 = vld [vmem:[#allocation2 + $0x1b8] sm:$0xff]
  %v751 = vlaneseq
  %v752 = vshrl.u32 %v751, 7
  %v753 = vadd.s32 %v752, 8
  %v754 = vadd.s32 %v752, 16
  %v755 = vadd.s32 %v752, 24
  %v756 = vadd.s32 %v752, 32
  %v757 = vadd.s32 %v752, 40
  %v758 = vadd.s32 %v752, 48
  %v759 = vadd.s32 %v752, 56
  %v760 = vadd.s32 %v752, 64
  %v761 = vadd.s32 %v752, 72
  %v762 = vadd.s32 %v752, 80
  %v763 = vadd.s32 %v752, 88
  %v764 = vadd.s32 %v752, 96
  %v765 = vadd.s32 %v752, 104
  %v766 = vadd.s32 %v752, 112
  %v767 = vadd.s32 %v752, 120
  %v768 = vadd.s32 %v752, 128
  %v769 = vadd.s32 %v752, 136
  %v770 = vadd.s32 %v752, 144
  %v771 = vadd.s32 %v752, 152
  %v772 = vadd.s32 %v752, 160
  %v773 = vadd.s32 %v752, 168
  %v774 = vadd.s32 %v752, 176
  %v775 = vadd.s32 %v752, 184
  %v776 = vadd.s32 %v752, 192
  %v777 = vadd.s32 %v752, 200
  %v778 = vadd.s32 %v752, 208
  %v779 = vadd.s32 %v752, 216
  %v780 = vadd.s32 %v752, 224
  %v781 = vadd.s32 %v752, 232
  %v782 = vadd.s32 %v752, 240
  %v783 = vadd.s32 %v752, 248
  %v784 = vadd.s32 %v752, 256
  %v785 = vadd.s32 %v752, 264
  %v786 = vadd.s32 %v752, 272
  %v787 = vadd.s32 %v752, 280
  %v788 = vadd.s32 %v752, 288
  %v789 = vadd.s32 %v752, 296
  %v790 = vadd.s32 %v752, 304
  %v791 = vadd.s32 %v752, 312
  %v792 = vadd.s32 %v752, 320
  %v793 = vadd.s32 %v752, 328
  %v794 = vadd.s32 %v752, 336
  %v795 = vadd.s32 %v752, 344
  %v796 = vadd.s32 %v752, 352
  %v797 = vadd.s32 %v752, 360
  %v798 = vadd.s32 %v752, 368
  %v799 = vadd.s32 %v752, 376
  %v800 = vadd.s32 %v752, 384
  %v801 = vadd.s32 %v752, 392
  %v802 = vadd.s32 %v752, 400
  %v803 = vadd.s32 %v752, 408
  %v804 = vadd.s32 %v752, 416
  %v805 = vadd.s32 %v752, 424
  %v806 = vadd.s32 %v752, 432
  %v807 = vadd.s32 %v752, 440
  %v808 = vand.u32 %v752, 15
  %v809 = vand.u32 %v753, 15
  %v810 = vand.u32 %v754, 15
  %v811 = vand.u32 %v755, 15
  %v812 = vand.u32 %v756, 15
  %v813 = vand.u32 %v757, 15
  %v814 = vand.u32 %v758, 15
  %v815 = vand.u32 %v759, 15
  %v816 = vand.u32 %v760, 15
  %v817 = vand.u32 %v761, 15
  %v818 = vand.u32 %v762, 15
  %v819 = vand.u32 %v763, 15
  %v820 = vand.u32 %v764, 15
  %v821 = vand.u32 %v765, 15
  %v822 = vand.u32 %v766, 15
  %v823 = vand.u32 %v767, 15
  %v824 = vand.u32 %v768, 15
  %v825 = vand.u32 %v769, 15
  %v826 = vand.u32 %v770, 15
  %v827 = vand.u32 %v771, 15
  %v828 = vand.u32 %v772, 15
  %v829 = vand.u32 %v773, 15
  %v830 = vand.u32 %v774, 15
  %v831 = vand.u32 %v775, 15
  %v832 = vand.u32 %v776, 15
  %v833 = vand.u32 %v777, 15
  %v834 = vand.u32 %v778, 15
  %v835 = vand.u32 %v779, 15
  %v836 = vand.u32 %v780, 15
  %v837 = vand.u32 %v781, 15
  %v838 = vand.u32 %v782, 15
  %v839 = vand.u32 %v783, 15
  %v840 = vand.u32 %v784, 15
  %v841 = vand.u32 %v785, 15
  %v842 = vand.u32 %v786, 15
  %v843 = vand.u32 %v787, 15
  %v844 = vand.u32 %v788, 15
  %v845 = vand.u32 %v789, 15
  %v846 = vand.u32 %v790, 15
  %v847 = vand.u32 %v791, 15
  %v848 = vand.u32 %v792, 15
  %v849 = vand.u32 %v793, 15
  %v850 = vand.u32 %v794, 15
  %v851 = vand.u32 %v795, 15
  %v852 = vand.u32 %v796, 15
  %v853 = vand.u32 %v797, 15
  %v854 = vand.u32 %v798, 15
  %v855 = vand.u32 %v799, 15
  %v856 = vand.u32 %v800, 15
  %v857 = vand.u32 %v801, 15
  %v858 = vand.u32 %v802, 15
  %v859 = vand.u32 %v803, 15
  %v860 = vand.u32 %v804, 15
  %v861 = vand.u32 %v805, 15
  %v862 = vand.u32 %v806, 15
  %v863 = vand.u32 %v807, 15
  %vm864 = vcmp.lt.s32.totalorder %v808, 14
  %vm865 = vcmp.lt.s32.totalorder %v809, 14
  %vm866 = vcmp.lt.s32.totalorder %v810, 14
  %vm867 = vcmp.lt.s32.totalorder %v811, 14
  %vm868 = vcmp.lt.s32.totalorder %v812, 14
  %vm869 = vcmp.lt.s32.totalorder %v813, 14
  %vm870 = vcmp.lt.s32.totalorder %v814, 14
  %vm871 = vcmp.lt.s32.totalorder %v815, 14
  %vm872 = vcmp.lt.s32.totalorder %v816, 14
  %vm873 = vcmp.lt.s32.totalorder %v817, 14
  %vm874 = vcmp.lt.s32.totalorder %v818, 14
  %vm875 = vcmp.lt.s32.totalorder %v819, 14
  %vm876 = vcmp.lt.s32.totalorder %v820, 14
  %vm877 = vcmp.lt.s32.totalorder %v821, 14
  %vm878 = vcmp.lt.s32.totalorder %v822, 14
  %vm879 = vcmp.lt.s32.totalorder %v823, 14
  %vm880 = vcmp.lt.s32.totalorder %v824, 14
  %vm881 = vcmp.lt.s32.totalorder %v825, 14
  %vm882 = vcmp.lt.s32.totalorder %v826, 14
  %vm883 = vcmp.lt.s32.totalorder %v827, 14
  %vm884 = vcmp.lt.s32.totalorder %v828, 14
  %vm885 = vcmp.lt.s32.totalorder %v829, 14
  %vm886 = vcmp.lt.s32.totalorder %v830, 14
  %vm887 = vcmp.lt.s32.totalorder %v831, 14
  %vm888 = vcmp.lt.s32.totalorder %v832, 14
  %vm889 = vcmp.lt.s32.totalorder %v833, 14
  %vm890 = vcmp.lt.s32.totalorder %v834, 14
  %vm891 = vcmp.lt.s32.totalorder %v835, 14
  %vm892 = vcmp.lt.s32.totalorder %v836, 14
  %vm893 = vcmp.lt.s32.totalorder %v837, 14
  %vm894 = vcmp.lt.s32.totalorder %v838, 14
  %vm895 = vcmp.lt.s32.totalorder %v839, 14
  %vm896 = vcmp.lt.s32.totalorder %v840, 14
  %vm897 = vcmp.lt.s32.totalorder %v841, 14
  %vm898 = vcmp.lt.s32.totalorder %v842, 14
  %vm899 = vcmp.lt.s32.totalorder %v843, 14
  %vm900 = vcmp.lt.s32.totalorder %v844, 14
  %vm901 = vcmp.lt.s32.totalorder %v845, 14
  %vm902 = vcmp.lt.s32.totalorder %v846, 14
  %vm903 = vcmp.lt.s32.totalorder %v847, 14
  %vm904 = vcmp.lt.s32.totalorder %v848, 14
  %vm905 = vcmp.lt.s32.totalorder %v849, 14
  %vm906 = vcmp.lt.s32.totalorder %v850, 14
  %vm907 = vcmp.lt.s32.totalorder %v851, 14
  %vm908 = vcmp.lt.s32.totalorder %v852, 14
  %vm909 = vcmp.lt.s32.totalorder %v853, 14
  %vm910 = vcmp.lt.s32.totalorder %v854, 14
  %vm911 = vcmp.lt.s32.totalorder %v855, 14
  %vm912 = vcmp.lt.s32.totalorder %v856, 14
  %vm913 = vcmp.lt.s32.totalorder %v857, 14
  %vm914 = vcmp.lt.s32.totalorder %v858, 14
  %vm915 = vcmp.lt.s32.totalorder %v859, 14
  %vm916 = vcmp.lt.s32.totalorder %v860, 14
  %vm917 = vcmp.lt.s32.totalorder %v861, 14
  %vm918 = vcmp.lt.s32.totalorder %v862, 14
  %vm919 = vcmp.lt.s32.totalorder %v863, 14
  %v920 = vsel %vm864, %v695, 0.0
  %v921 = vsel %vm865, %v696, 0.0
  %v922 = vsel %vm866, %v697, 0.0
  %v923 = vsel %vm867, %v698, 0.0
  %v924 = vsel %vm868, %v699, 0.0
  %v925 = vsel %vm869, %v700, 0.0
  %v926 = vsel %vm870, %v701, 0.0
  %v927 = vsel %vm871, %v702, 0.0
  %v928 = vsel %vm872, %v703, 0.0
  %v929 = vsel %vm873, %v704, 0.0
  %v930 = vsel %vm874, %v705, 0.0
  %v931 = vsel %vm875, %v706, 0.0
  %v932 = vsel %vm876, %v707, 0.0
  %v933 = vsel %vm877, %v708, 0.0
  %v934 = vsel %vm878, %v709, 0.0
  %v935 = vsel %vm879, %v710, 0.0
  %v936 = vsel %vm880, %v711, 0.0
  %v937 = vsel %vm881, %v712, 0.0
  %v938 = vsel %vm882, %v713, 0.0
  %v939 = vsel %vm883, %v714, 0.0
  %v940 = vsel %vm884, %v715, 0.0
  %v941 = vsel %vm885, %v716, 0.0
  %v942 = vsel %vm886, %v717, 0.0
  %v943 = vsel %vm887, %v718, 0.0
  %v944 = vsel %vm888, %v719, 0.0
  %v945 = vsel %vm889, %v720, 0.0
  %v946 = vsel %vm890, %v721, 0.0
  %v947 = vsel %vm891, %v722, 0.0
  %v948 = vsel %vm892, %v723, 0.0
  %v949 = vsel %vm893, %v724, 0.0
  %v950 = vsel %vm894, %v725, 0.0
  %v951 = vsel %vm895, %v726, 0.0
  %v952 = vsel %vm896, %v727, 0.0
  %v953 = vsel %vm897, %v728, 0.0
  %v954 = vsel %vm898, %v729, 0.0
  %v955 = vsel %vm899, %v730, 0.0
  %v956 = vsel %vm900, %v731, 0.0
  %v957 = vsel %vm901, %v732, 0.0
  %v958 = vsel %vm902, %v733, 0.0
  %v959 = vsel %vm903, %v734, 0.0
  %v960 = vsel %vm904, %v735, 0.0
  %v961 = vsel %vm905, %v736, 0.0
  %v962 = vsel %vm906, %v737, 0.0
  %v963 = vsel %vm907, %v738, 0.0
  %v964 = vsel %vm908, %v739, 0.0
  %v965 = vsel %vm909, %v740, 0.0
  %v966 = vsel %vm910, %v741, 0.0
  %v967 = vsel %vm911, %v742, 0.0
  %v968 = vsel %vm912, %v743, 0.0
  %v969 = vsel %vm913, %v744, 0.0
  %v970 = vsel %vm914, %v745, 0.0
  %v971 = vsel %vm915, %v746, 0.0
  %v972 = vsel %vm916, %v747, 0.0
  %v973 = vsel %vm917, %v748, 0.0
  %v974 = vsel %vm918, %v749, 0.0
  %v975 = vsel %vm919, %v750, 0.0
  %v976 = vsel %vm23, %v920, 0.0
  %v977 = vsel %vm23, %v921, 0.0
  %v978 = vadd.f32 %v976, %v977
  %v979 = vsel %vm23, %v922, 0.0
  %v980 = vadd.f32 %v978, %v979
  %v981 = vsel %vm23, %v923, 0.0
  %v982 = vadd.f32 %v980, %v981
  %v983 = vsel %vm23, %v924, 0.0
  %v984 = vadd.f32 %v982, %v983
  %v985 = vsel %vm23, %v925, 0.0
  %v986 = vadd.f32 %v984, %v985
  %v987 = vsel %vm23, %v926, 0.0
  %v988 = vadd.f32 %v986, %v987
  %v989 = vsel %vm23, %v927, 0.0
  %v990 = vadd.f32 %v988, %v989
  %v991 = vsel %vm23, %v928, 0.0
  %v992 = vadd.f32 %v990, %v991
  %v993 = vsel %vm23, %v929, 0.0
  %v994 = vadd.f32 %v992, %v993
  %v995 = vsel %vm23, %v930, 0.0
  %v996 = vadd.f32 %v994, %v995
  %v997 = vsel %vm23, %v931, 0.0
  %v998 = vadd.f32 %v996, %v997
  %v999 = vsel %vm23, %v932, 0.0
  %v1000 = vadd.f32 %v998, %v999
  %v1001 = vsel %vm23, %v933, 0.0
  %v1002 = vadd.f32 %v1000, %v1001
  %v1003 = vsel %vm23, %v934, 0.0
  %v1004 = vadd.f32 %v1002, %v1003
  %v1005 = vsel %vm23, %v935, 0.0
  %v1006 = vadd.f32 %v1004, %v1005
  %v1007 = vsel %vm23, %v936, 0.0
  %v1008 = vadd.f32 %v1006, %v1007
  %v1009 = vsel %vm23, %v937, 0.0
  %v1010 = vadd.f32 %v1008, %v1009
  %v1011 = vsel %vm23, %v938, 0.0
  %v1012 = vadd.f32 %v1010, %v1011
  %v1013 = vsel %vm23, %v939, 0.0
  %v1014 = vadd.f32 %v1012, %v1013
  %v1015 = vsel %vm23, %v940, 0.0
  %v1016 = vadd.f32 %v1014, %v1015
  %v1017 = vsel %vm23, %v941, 0.0
  %v1018 = vadd.f32 %v1016, %v1017
  %v1019 = vsel %vm23, %v942, 0.0
  %v1020 = vadd.f32 %v1018, %v1019
  %v1021 = vsel %vm23, %v943, 0.0
  %v1022 = vadd.f32 %v1020, %v1021
  %v1023 = vsel %vm23, %v944, 0.0
  %v1024 = vadd.f32 %v1022, %v1023
  %v1025 = vsel %vm23, %v945, 0.0
  %v1026 = vadd.f32 %v1024, %v1025
  %v1027 = vsel %vm23, %v946, 0.0
  %v1028 = vadd.f32 %v1026, %v1027
  %v1029 = vsel %vm23, %v947, 0.0
  %v1030 = vadd.f32 %v1028, %v1029
  %v1031 = vsel %vm23, %v948, 0.0
  %v1032 = vadd.f32 %v1030, %v1031
  %v1033 = vsel %vm23, %v949, 0.0
  %v1034 = vadd.f32 %v1032, %v1033
  %v1035 = vsel %vm23, %v950, 0.0
  %v1036 = vadd.f32 %v1034, %v1035
  %v1037 = vsel %vm23, %v951, 0.0
  %v1038 = vadd.f32 %v1036, %v1037
  %v1039 = vsel %vm23, %v952, 0.0
  %v1040 = vadd.f32 %v1038, %v1039
  %v1041 = vsel %vm23, %v953, 0.0
  %v1042 = vadd.f32 %v1040, %v1041
  %v1043 = vsel %vm23, %v954, 0.0
  %v1044 = vadd.f32 %v1042, %v1043
  %v1045 = vsel %vm23, %v955, 0.0
  %v1046 = vadd.f32 %v1044, %v1045
  %v1047 = vsel %vm23, %v956, 0.0
  %v1048 = vadd.f32 %v1046, %v1047
  %v1049 = vsel %vm23, %v957, 0.0
  %v1050 = vadd.f32 %v1048, %v1049
  %v1051 = vsel %vm23, %v958, 0.0
  %v1052 = vadd.f32 %v1050, %v1051
  %v1053 = vsel %vm23, %v959, 0.0
  %v1054 = vadd.f32 %v1052, %v1053
  %v1055 = vsel %vm23, %v960, 0.0
  %v1056 = vadd.f32 %v1054, %v1055
  %v1057 = vsel %vm23, %v961, 0.0
  %v1058 = vadd.f32 %v1056, %v1057
  %v1059 = vsel %vm23, %v962, 0.0
  %v1060 = vadd.f32 %v1058, %v1059
  %v1061 = vsel %vm23, %v963, 0.0
  %v1062 = vadd.f32 %v1060, %v1061
  %v1063 = vsel %vm23, %v964, 0.0
  %v1064 = vadd.f32 %v1062, %v1063
  %v1065 = vsel %vm23, %v965, 0.0
  %v1066 = vadd.f32 %v1064, %v1065
  %v1067 = vsel %vm23, %v966, 0.0
  %v1068 = vadd.f32 %v1066, %v1067
  %v1069 = vsel %vm23, %v967, 0.0
  %v1070 = vadd.f32 %v1068, %v1069
  %v1071 = vsel %vm23, %v968, 0.0
  %v1072 = vadd.f32 %v1070, %v1071
  %v1073 = vsel %vm23, %v969, 0.0
  %v1074 = vadd.f32 %v1072, %v1073
  %v1075 = vsel %vm23, %v970, 0.0
  %v1076 = vadd.f32 %v1074, %v1075
  %v1077 = vsel %vm23, %v971, 0.0
  %v1078 = vadd.f32 %v1076, %v1077
  %v1079 = vsel %vm23, %v972, 0.0
  %v1080 = vadd.f32 %v1078, %v1079
  %v1081 = vsel %vm23, %v973, 0.0
  %v1082 = vadd.f32 %v1080, %v1081
  %v1083 = vsel %vm23, %v974, 0.0
  %v1084 = vadd.f32 %v1082, %v1083
  %v1085 = vsel %vm23, %v975, 0.0
  %v1086 = vadd.f32 %v1084, %v1085
  %v1087 = vrot.slane %v1086, 4
  %v1088 = vadd.f32 %v1086, %v1087
  %v1089 = vrot.slane %v1088, 2
  %v1090 = vadd.f32 %v1088, %v1089
  %v1091 = vrot.slane %v1090, 1
  %v1092 = vadd.f32 %v1090, %v1091
  %v1093 = vmul.f32 %v920, %v695
  %v1094 = vmul.f32 %v921, %v696
  %v1095 = vmul.f32 %v922, %v697
  %v1096 = vmul.f32 %v923, %v698
  %v1097 = vmul.f32 %v924, %v699
  %v1098 = vmul.f32 %v925, %v700
  %v1099 = vmul.f32 %v926, %v701
  %v1100 = vmul.f32 %v927, %v702
  %v1101 = vmul.f32 %v928, %v703
  %v1102 = vmul.f32 %v929, %v704
  %v1103 = vmul.f32 %v930, %v705
  %v1104 = vmul.f32 %v931, %v706
  %v1105 = vmul.f32 %v932, %v707
  %v1106 = vmul.f32 %v933, %v708
  %v1107 = vmul.f32 %v934, %v709
  %v1108 = vmul.f32 %v935, %v710
  %v1109 = vmul.f32 %v936, %v711
  %v1110 = vmul.f32 %v937, %v712
  %v1111 = vmul.f32 %v938, %v713
  %v1112 = vmul.f32 %v939, %v714
  %v1113 = vmul.f32 %v940, %v715
  %v1114 = vmul.f32 %v941, %v716
  %v1115 = vmul.f32 %v942, %v717
  %v1116 = vmul.f32 %v943, %v718
  %v1117 = vmul.f32 %v944, %v719
  %v1118 = vmul.f32 %v945, %v720
  %v1119 = vmul.f32 %v946, %v721
  %v1120 = vmul.f32 %v947, %v722
  %v1121 = vmul.f32 %v948, %v723
  %v1122 = vmul.f32 %v949, %v724
  %v1123 = vmul.f32 %v950, %v725
  %v1124 = vmul.f32 %v951, %v726
  %v1125 = vmul.f32 %v952, %v727
  %v1126 = vmul.f32 %v953, %v728
  %v1127 = vmul.f32 %v954, %v729
  %v1128 = vmul.f32 %v955, %v730
  %v1129 = vmul.f32 %v956, %v731
  %v1130 = vmul.f32 %v957, %v732
  %v1131 = vmul.f32 %v958, %v733
  %v1132 = vmul.f32 %v959, %v734
  %v1133 = vmul.f32 %v960, %v735
  %v1134 = vmul.f32 %v961, %v736
  %v1135 = vmul.f32 %v962, %v737
  %v1136 = vmul.f32 %v963, %v738
  %v1137 = vmul.f32 %v964, %v739
  %v1138 = vmul.f32 %v965, %v740
  %v1139 = vmul.f32 %v966, %v741
  %v1140 = vmul.f32 %v967, %v742
  %v1141 = vmul.f32 %v968, %v743
  %v1142 = vmul.f32 %v969, %v744
  %v1143 = vmul.f32 %v970, %v745
  %v1144 = vmul.f32 %v971, %v746
  %v1145 = vmul.f32 %v972, %v747
  %v1146 = vmul.f32 %v973, %v748
  %v1147 = vmul.f32 %v974, %v749
  %v1148 = vmul.f32 %v975, %v750
  %v1149 = vsel %vm23, %v1093, 0.0
  %v1150 = vsel %vm23, %v1094, 0.0
  %v1151 = vadd.f32 %v1149, %v1150
  %v1152 = vsel %vm23, %v1095, 0.0
  %v1153 = vadd.f32 %v1151, %v1152
  %v1154 = vsel %vm23, %v1096, 0.0
  %v1155 = vadd.f32 %v1153, %v1154
  %v1156 = vsel %vm23, %v1097, 0.0
  %v1157 = vadd.f32 %v1155, %v1156
  %v1158 = vsel %vm23, %v1098, 0.0
  %v1159 = vadd.f32 %v1157, %v1158
  %v1160 = vsel %vm23, %v1099, 0.0
  %v1161 = vadd.f32 %v1159, %v1160
  %v1162 = vsel %vm23, %v1100, 0.0
  %v1163 = vadd.f32 %v1161, %v1162
  %v1164 = vsel %vm23, %v1101, 0.0
  %v1165 = vadd.f32 %v1163, %v1164
  %v1166 = vsel %vm23, %v1102, 0.0
  %v1167 = vadd.f32 %v1165, %v1166
  %v1168 = vsel %vm23, %v1103, 0.0
  %v1169 = vadd.f32 %v1167, %v1168
  %v1170 = vsel %vm23, %v1104, 0.0
  %v1171 = vadd.f32 %v1169, %v1170
  %v1172 = vsel %vm23, %v1105, 0.0
  %v1173 = vadd.f32 %v1171, %v1172
  %v1174 = vsel %vm23, %v1106, 0.0
  %v1175 = vadd.f32 %v1173, %v1174
  %v1176 = vsel %vm23, %v1107, 0.0
  %v1177 = vadd.f32 %v1175, %v1176
  %v1178 = vsel %vm23, %v1108, 0.0
  %v1179 = vadd.f32 %v1177, %v1178
  %v1180 = vsel %vm23, %v1109, 0.0
  %v1181 = vadd.f32 %v1179, %v1180
  %v1182 = vsel %vm23, %v1110, 0.0
  %v1183 = vadd.f32 %v1181, %v1182
  %v1184 = vsel %vm23, %v1111, 0.0
  %v1185 = vadd.f32 %v1183, %v1184
  %v1186 = vsel %vm23, %v1112, 0.0
  %v1187 = vadd.f32 %v1185, %v1186
  %v1188 = vsel %vm23, %v1113, 0.0
  %v1189 = vadd.f32 %v1187, %v1188
  %v1190 = vsel %vm23, %v1114, 0.0
  %v1191 = vadd.f32 %v1189, %v1190
  %v1192 = vsel %vm23, %v1115, 0.0
  %v1193 = vadd.f32 %v1191, %v1192
  %v1194 = vsel %vm23, %v1116, 0.0
  %v1195 = vadd.f32 %v1193, %v1194
  %v1196 = vsel %vm23, %v1117, 0.0
  %v1197 = vadd.f32 %v1195, %v1196
  %v1198 = vsel %vm23, %v1118, 0.0
  %v1199 = vadd.f32 %v1197, %v1198
  %v1200 = vsel %vm23, %v1119, 0.0
  %v1201 = vadd.f32 %v1199, %v1200
  %v1202 = vsel %vm23, %v1120, 0.0
  %v1203 = vadd.f32 %v1201, %v1202
  %v1204 = vsel %vm23, %v1121, 0.0
  %v1205 = vadd.f32 %v1203, %v1204
  %v1206 = vsel %vm23, %v1122, 0.0
  %v1207 = vadd.f32 %v1205, %v1206
  %v1208 = vsel %vm23, %v1123, 0.0
  %v1209 = vadd.f32 %v1207, %v1208
  %v1210 = vsel %vm23, %v1124, 0.0
  %v1211 = vadd.f32 %v1209, %v1210
  %v1212 = vsel %vm23, %v1125, 0.0
  %v1213 = vadd.f32 %v1211, %v1212
  %v1214 = vsel %vm23, %v1126, 0.0
  %v1215 = vadd.f32 %v1213, %v1214
  %v1216 = vsel %vm23, %v1127, 0.0
  %v1217 = vadd.f32 %v1215, %v1216
  %v1218 = vsel %vm23, %v1128, 0.0
  %v1219 = vadd.f32 %v1217, %v1218
  %v1220 = vsel %vm23, %v1129, 0.0
  %v1221 = vadd.f32 %v1219, %v1220
  %v1222 = vsel %vm23, %v1130, 0.0
  %v1223 = vadd.f32 %v1221, %v1222
  %v1224 = vsel %vm23, %v1131, 0.0
  %v1225 = vadd.f32 %v1223, %v1224
  %v1226 = vsel %vm23, %v1132, 0.0
  %v1227 = vadd.f32 %v1225, %v1226
  %v1228 = vsel %vm23, %v1133, 0.0
  %v1229 = vadd.f32 %v1227, %v1228
  %v1230 = vsel %vm23, %v1134, 0.0
  %v1231 = vadd.f32 %v1229, %v1230
  %v1232 = vsel %vm23, %v1135, 0.0
  %v1233 = vadd.f32 %v1231, %v1232
  %v1234 = vsel %vm23, %v1136, 0.0
  %v1235 = vadd.f32 %v1233, %v1234
  %v1236 = vsel %vm23, %v1137, 0.0
  %v1237 = vadd.f32 %v1235, %v1236
  %v1238 = vsel %vm23, %v1138, 0.0
  %v1239 = vadd.f32 %v1237, %v1238
  %v1240 = vsel %vm23, %v1139, 0.0
  %v1241 = vadd.f32 %v1239, %v1240
  %v1242 = vsel %vm23, %v1140, 0.0
  %v1243 = vadd.f32 %v1241, %v1242
  %v1244 = vsel %vm23, %v1141, 0.0
  %v1245 = vadd.f32 %v1243, %v1244
  %v1246 = vsel %vm23, %v1142, 0.0
  %v1247 = vadd.f32 %v1245, %v1246
  %v1248 = vsel %vm23, %v1143, 0.0
  %v1249 = vadd.f32 %v1247, %v1248
  %v1250 = vsel %vm23, %v1144, 0.0
  %v1251 = vadd.f32 %v1249, %v1250
  %v1252 = vsel %vm23, %v1145, 0.0
  %v1253 = vadd.f32 %v1251, %v1252
  %v1254 = vsel %vm23, %v1146, 0.0
  %v1255 = vadd.f32 %v1253, %v1254
  %v1256 = vsel %vm23, %v1147, 0.0
  %v1257 = vadd.f32 %v1255, %v1256
  %v1258 = vsel %vm23, %v1148, 0.0
  %v1259 = vadd.f32 %v1257, %v1258
  %v1260 = vrot.slane %v1259, 4
  %v1261 = vadd.f32 %v1259, %v1260
  %v1262 = vrot.slane %v1261, 2
  %v1263 = vadd.f32 %v1261, %v1262
  %v1264 = vrot.slane %v1263, 1
  %v1265 = vadd.f32 %v1263, %v1264
  %v1266 = vmul.f32 %v1092, 0.0025510204
  %v1267 = vmul.f32 %v1265, 0.0025510204
  %v1268 = vmul.f32 %v1266, %v1266
  %v1269 = vsub.f32 %v1267, %v1268
  %v1270 = vld [vmem:[%s5] sm:$0x1]
  %v1271 = vld [vmem:[%s5 + $0x1] sm:$0x1]
  %v1272 = vadd.f32 %v1269, 1e-05
  %v1273 = vrsqrt.pop %v1272
  %v1274 = vmul.f32 %v1270, %v1273
  %v1275 = vsub.f32 %v695, %v1266
  %v1276 = vsub.f32 %v696, %v1266
  %v1277 = vsub.f32 %v697, %v1266
  %v1278 = vsub.f32 %v698, %v1266
  %v1279 = vsub.f32 %v699, %v1266
  %v1280 = vsub.f32 %v700, %v1266
  %v1281 = vsub.f32 %v701, %v1266
  %v1282 = vsub.f32 %v702, %v1266
  %v1283 = vsub.f32 %v703, %v1266
  %v1284 = vsub.f32 %v704, %v1266
  %v1285 = vsub.f32 %v705, %v1266
  %v1286 = vsub.f32 %v706, %v1266
  %v1287 = vsub.f32 %v707, %v1266
  %v1288 = vsub.f32 %v708, %v1266
  %v1289 = vsub.f32 %v709, %v1266
  %v1290 = vsub.f32 %v710, %v1266
  %v1291 = vsub.f32 %v711, %v1266
  %v1292 = vsub.f32 %v712, %v1266
  %v1293 = vsub.f32 %v713, %v1266
  %v1294 = vsub.f32 %v714, %v1266
  %v1295 = vsub.f32 %v715, %v1266
  %v1296 = vsub.f32 %v716, %v1266
  %v1297 = vsub.f32 %v717, %v1266
  %v1298 = vsub.f32 %v718, %v1266
  %v1299 = vsub.f32 %v719, %v1266
  %v1300 = vsub.f32 %v720, %v1266
  %v1301 = vsub.f32 %v721, %v1266
  %v1302 = vsub.f32 %v722, %v1266
  %v1303 = vsub.f32 %v723, %v1266
  %v1304 = vsub.f32 %v724, %v1266
  %v1305 = vsub.f32 %v725, %v1266
  %v1306 = vsub.f32 %v726, %v1266
  %v1307 = vsub.f32 %v727, %v1266
  %v1308 = vsub.f32 %v728, %v1266
  %v1309 = vsub.f32 %v729, %v1266
  %v1310 = vsub.f32 %v730, %v1266
  %v1311 = vsub.f32 %v731, %v1266
  %v1312 = vsub.f32 %v732, %v1266
  %v1313 = vsub.f32 %v733, %v1266
  %v1314 = vsub.f32 %v734, %v1266
  %v1315 = vsub.f32 %v735, %v1266
  %v1316 = vsub.f32 %v736, %v1266
  %v1317 = vsub.f32 %v737, %v1266
  %v1318 = vsub.f32 %v738, %v1266
  %v1319 = vsub.f32 %v739, %v1266
  %v1320 = vsub.f32 %v740, %v1266
  %v1321 = vsub.f32 %v741, %v1266
  %v1322 = vsub.f32 %v742, %v1266
  %v1323 = vsub.f32 %v743, %v1266
  %v1324 = vsub.f32 %v744, %v1266
  %v1325 = vsub.f32 %v745, %v1266
  %v1326 = vsub.f32 %v746, %v1266
  %v1327 = vsub.f32 %v747, %v1266
  %v1328 = vsub.f32 %v748, %v1266
  %v1329 = vsub.f32 %v749, %v1266
  %v1330 = vsub.f32 %v750, %v1266
  %v1331 = vlaneseq
  %v1332 = vshrl.u32 %v1331, 7
  %v1333 = vsub.s32 0, %v1332
  %v1334 = vrot.slane %v1274, %v1333
  %v1335 = vmul.f32 %v1275, %v1334
  %v1336 = vmul.f32 %v1276, %v1334
  %v1337 = vmul.f32 %v1277, %v1334
  %v1338 = vmul.f32 %v1278, %v1334
  %v1339 = vmul.f32 %v1279, %v1334
  %v1340 = vmul.f32 %v1280, %v1334
  %v1341 = vmul.f32 %v1281, %v1334
  %v1342 = vmul.f32 %v1282, %v1334
  %v1343 = vmul.f32 %v1283, %v1334
  %v1344 = vmul.f32 %v1284, %v1334
  %v1345 = vmul.f32 %v1285, %v1334
  %v1346 = vmul.f32 %v1286, %v1334
  %v1347 = vmul.f32 %v1287, %v1334
  %v1348 = vmul.f32 %v1288, %v1334
  %v1349 = vmul.f32 %v1289, %v1334
  %v1350 = vmul.f32 %v1290, %v1334
  %v1351 = vmul.f32 %v1291, %v1334
  %v1352 = vmul.f32 %v1292, %v1334
  %v1353 = vmul.f32 %v1293, %v1334
  %v1354 = vmul.f32 %v1294, %v1334
  %v1355 = vmul.f32 %v1295, %v1334
  %v1356 = vmul.f32 %v1296, %v1334
  %v1357 = vmul.f32 %v1297, %v1334
  %v1358 = vmul.f32 %v1298, %v1334
  %v1359 = vmul.f32 %v1299, %v1334
  %v1360 = vmul.f32 %v1300, %v1334
  %v1361 = vmul.f32 %v1301, %v1334
  %v1362 = vmul.f32 %v1302, %v1334
  %v1363 = vmul.f32 %v1303, %v1334
  %v1364 = vmul.f32 %v1304, %v1334
  %v1365 = vmul.f32 %v1305, %v1334
  %v1366 = vmul.f32 %v1306, %v1334
  %v1367 = vmul.f32 %v1307, %v1334
  %v1368 = vmul.f32 %v1308, %v1334
  %v1369 = vmul.f32 %v1309, %v1334
  %v1370 = vmul.f32 %v1310, %v1334
  %v1371 = vmul.f32 %v1311, %v1334
  %v1372 = vmul.f32 %v1312, %v1334
  %v1373 = vmul.f32 %v1313, %v1334
  %v1374 = vmul.f32 %v1314, %v1334
  %v1375 = vmul.f32 %v1315, %v1334
  %v1376 = vmul.f32 %v1316, %v1334
  %v1377 = vmul.f32 %v1317, %v1334
  %v1378 = vmul.f32 %v1318, %v1334
  %v1379 = vmul.f32 %v1319, %v1334
  %v1380 = vmul.f32 %v1320, %v1334
  %v1381 = vmul.f32 %v1321, %v1334
  %v1382 = vmul.f32 %v1322, %v1334
  %v1383 = vmul.f32 %v1323, %v1334
  %v1384 = vmul.f32 %v1324, %v1334
  %v1385 = vmul.f32 %v1325, %v1334
  %v1386 = vmul.f32 %v1326, %v1334
  %v1387 = vmul.f32 %v1327, %v1334
  %v1388 = vmul.f32 %v1328, %v1334
  %v1389 = vmul.f32 %v1329, %v1334
  %v1390 = vmul.f32 %v1330, %v1334
  %v1391 = vlaneseq
  %v1392 = vshrl.u32 %v1391, 7
  %v1393 = vsub.s32 0, %v1392
  %v1394 = vrot.slane %v1271, %v1393
  %v1395 = vadd.f32 %v1335, %v1394
  %v1396 = vadd.f32 %v1336, %v1394
  %v1397 = vadd.f32 %v1337, %v1394
  %v1398 = vadd.f32 %v1338, %v1394
  %v1399 = vadd.f32 %v1339, %v1394
  %v1400 = vadd.f32 %v1340, %v1394
  %v1401 = vadd.f32 %v1341, %v1394
  %v1402 = vadd.f32 %v1342, %v1394
  %v1403 = vadd.f32 %v1343, %v1394
  %v1404 = vadd.f32 %v1344, %v1394
  %v1405 = vadd.f32 %v1345, %v1394
  %v1406 = vadd.f32 %v1346, %v1394
  %v1407 = vadd.f32 %v1347, %v1394
  %v1408 = vadd.f32 %v1348, %v1394
  %v1409 = vadd.f32 %v1349, %v1394
  %v1410 = vadd.f32 %v1350, %v1394
  %v1411 = vadd.f32 %v1351, %v1394
  %v1412 = vadd.f32 %v1352, %v1394
  %v1413 = vadd.f32 %v1353, %v1394
  %v1414 = vadd.f32 %v1354, %v1394
  %v1415 = vadd.f32 %v1355, %v1394
  %v1416 = vadd.f32 %v1356, %v1394
  %v1417 = vadd.f32 %v1357, %v1394
  %v1418 = vadd.f32 %v1358, %v1394
  %v1419 = vadd.f32 %v1359, %v1394
  %v1420 = vadd.f32 %v1360, %v1394
  %v1421 = vadd.f32 %v1361, %v1394
  %v1422 = vadd.f32 %v1362, %v1394
  %v1423 = vadd.f32 %v1363, %v1394
  %v1424 = vadd.f32 %v1364, %v1394
  %v1425 = vadd.f32 %v1365, %v1394
  %v1426 = vadd.f32 %v1366, %v1394
  %v1427 = vadd.f32 %v1367, %v1394
  %v1428 = vadd.f32 %v1368, %v1394
  %v1429 = vadd.f32 %v1369, %v1394
  %v1430 = vadd.f32 %v1370, %v1394
  %v1431 = vadd.f32 %v1371, %v1394
  %v1432 = vadd.f32 %v1372, %v1394
  %v1433 = vadd.f32 %v1373, %v1394
  %v1434 = vadd.f32 %v1374, %v1394
  %v1435 = vadd.f32 %v1375, %v1394
  %v1436 = vadd.f32 %v1376, %v1394
  %v1437 = vadd.f32 %v1377, %v1394
  %v1438 = vadd.f32 %v1378, %v1394
  %v1439 = vadd.f32 %v1379, %v1394
  %v1440 = vadd.f32 %v1380, %v1394
  %v1441 = vadd.f32 %v1381, %v1394
  %v1442 = vadd.f32 %v1382, %v1394
  %v1443 = vadd.f32 %v1383, %v1394
  %v1444 = vadd.f32 %v1384, %v1394
  %v1445 = vadd.f32 %v1385, %v1394
  %v1446 = vadd.f32 %v1386, %v1394
  %v1447 = vadd.f32 %v1387, %v1394
  %v1448 = vadd.f32 %v1388, %v1394
  %v1449 = vadd.f32 %v1389, %v1394
  %v1450 = vadd.f32 %v1390, %v1394
  %v1451 = vmax.f32 %v1395, 0.0
  %v1452 = vmax.f32 %v1396, 0.0
  %v1453 = vmax.f32 %v1397, 0.0
  %v1454 = vmax.f32 %v1398, 0.0
  %v1455 = vmax.f32 %v1399, 0.0
  %v1456 = vmax.f32 %v1400, 0.0
  %v1457 = vmax.f32 %v1401, 0.0
  %v1458 = vmax.f32 %v1402, 0.0
  %v1459 = vmax.f32 %v1403, 0.0
  %v1460 = vmax.f32 %v1404, 0.0
  %v1461 = vmax.f32 %v1405, 0.0
  %v1462 = vmax.f32 %v1406, 0.0
  %v1463 = vmax.f32 %v1407, 0.0
  %v1464 = vmax.f32 %v1408, 0.0
  %v1465 = vmax.f32 %v1409, 0.0
  %v1466 = vmax.f32 %v1410, 0.0
  %v1467 = vmax.f32 %v1411, 0.0
  %v1468 = vmax.f32 %v1412, 0.0
  %v1469 = vmax.f32 %v1413, 0.0
  %v1470 = vmax.f32 %v1414, 0.0
  %v1471 = vmax.f32 %v1415, 0.0
  %v1472 = vmax.f32 %v1416, 0.0
  %v1473 = vmax.f32 %v1417, 0.0
  %v1474 = vmax.f32 %v1418, 0.0
  %v1475 = vmax.f32 %v1419, 0.0
  %v1476 = vmax.f32 %v1420, 0.0
  %v1477 = vmax.f32 %v1421, 0.0
  %v1478 = vmax.f32 %v1422, 0.0
  %v1479 = vmax.f32 %v1423, 0.0
  %v1480 = vmax.f32 %v1424, 0.0
  %v1481 = vmax.f32 %v1425, 0.0
  %v1482 = vmax.f32 %v1426, 0.0
  %v1483 = vmax.f32 %v1427, 0.0
  %v1484 = vmax.f32 %v1428, 0.0
  %v1485 = vmax.f32 %v1429, 0.0
  %v1486 = vmax.f32 %v1430, 0.0
  %v1487 = vmax.f32 %v1431, 0.0
  %v1488 = vmax.f32 %v1432, 0.0
  %v1489 = vmax.f32 %v1433, 0.0
  %v1490 = vmax.f32 %v1434, 0.0
  %v1491 = vmax.f32 %v1435, 0.0
  %v1492 = vmax.f32 %v1436, 0.0
  %v1493 = vmax.f32 %v1437, 0.0
  %v1494 = vmax.f32 %v1438, 0.0
  %v1495 = vmax.f32 %v1439, 0.0
  %v1496 = vmax.f32 %v1440, 0.0
  %v1497 = vmax.f32 %v1441, 0.0
  %v1498 = vmax.f32 %v1442, 0.0
  %v1499 = vmax.f32 %v1443, 0.0
  %v1500 = vmax.f32 %v1444, 0.0
  %v1501 = vmax.f32 %v1445, 0.0
  %v1502 = vmax.f32 %v1446, 0.0
  %v1503 = vmax.f32 %v1447, 0.0
  %v1504 = vmax.f32 %v1448, 0.0
  %v1505 = vmax.f32 %v1449, 0.0
  %v1506 = vmax.f32 %v1450, 0.0
  %1507 = vst.msk [vmem:[#allocation2] sm:$0xff] %vm23, %v1451
  %1508 = vst.msk [vmem:[#allocation2 + $0x8] sm:$0xff] %vm23, %v1452
  %1509 = vst.msk [vmem:[#allocation2 + $0x10] sm:$0xff] %vm23, %v1453
  %1510 = vst.msk [vmem:[#allocation2 + $0x18] sm:$0xff] %vm23, %v1454
  %1511 = vst.msk [vmem:[#allocation2 + $0x20] sm:$0xff] %vm23, %v1455
  %1512 = vst.msk [vmem:[#allocation2 + $0x28] sm:$0xff] %vm23, %v1456
  %1513 = vst.msk [vmem:[#allocation2 + $0x30] sm:$0xff] %vm23, %v1457
  %1514 = vst.msk [vmem:[#allocation2 + $0x38] sm:$0xff] %vm23, %v1458
  %1515 = vst.msk [vmem:[#allocation2 + $0x40] sm:$0xff] %vm23, %v1459
  %1516 = vst.msk [vmem:[#allocation2 + $0x48] sm:$0xff] %vm23, %v1460
  %1517 = vst.msk [vmem:[#allocation2 + $0x50] sm:$0xff] %vm23, %v1461
  %1518 = vst.msk [vmem:[#allocation2 + $0x58] sm:$0xff] %vm23, %v1462
  %1519 = vst.msk [vmem:[#allocation2 + $0x60] sm:$0xff] %vm23, %v1463
  %1520 = vst.msk [vmem:[#allocation2 + $0x68] sm:$0xff] %vm23, %v1464
  %1521 = vst.msk [vmem:[#allocation2 + $0x70] sm:$0xff] %vm23, %v1465
  %1522 = vst.msk [vmem:[#allocation2 + $0x78] sm:$0xff] %vm23, %v1466
  %1523 = vst.msk [vmem:[#allocation2 + $0x80] sm:$0xff] %vm23, %v1467
  %1524 = vst.msk [vmem:[#allocation2 + $0x88] sm:$0xff] %vm23, %v1468
  %1525 = vst.msk [vmem:[#allocation2 + $0x90] sm:$0xff] %vm23, %v1469
  %1526 = vst.msk [vmem:[#allocation2 + $0x98] sm:$0xff] %vm23, %v1470
  %1527 = vst.msk [vmem:[#allocation2 + $0xa0] sm:$0xff] %vm23, %v1471
  %1528 = vst.msk [vmem:[#allocation2 + $0xa8] sm:$0xff] %vm23, %v1472
  %1529 = vst.msk [vmem:[#allocation2 + $0xb0] sm:$0xff] %vm23, %v1473
  %1530 = vst.msk [vmem:[#allocation2 + $0xb8] sm:$0xff] %vm23, %v1474
  %1531 = vst.msk [vmem:[#allocation2 + $0xc0] sm:$0xff] %vm23, %v1475
  %1532 = vst.msk [vmem:[#allocation2 + $0xc8] sm:$0xff] %vm23, %v1476
  %1533 = vst.msk [vmem:[#allocation2 + $0xd0] sm:$0xff] %vm23, %v1477
  %1534 = vst.msk [vmem:[#allocation2 + $0xd8] sm:$0xff] %vm23, %v1478
  %1535 = vst.msk [vmem:[#allocation2 + $0xe0] sm:$0xff] %vm23, %v1479
  %1536 = vst.msk [vmem:[#allocation2 + $0xe8] sm:$0xff] %vm23, %v1480
  %1537 = vst.msk [vmem:[#allocation2 + $0xf0] sm:$0xff] %vm23, %v1481
  %1538 = vst.msk [vmem:[#allocation2 + $0xf8] sm:$0xff] %vm23, %v1482
  %1539 = vst.msk [vmem:[#allocation2 + $0x100] sm:$0xff] %vm23, %v1483
  %1540 = vst.msk [vmem:[#allocation2 + $0x108] sm:$0xff] %vm23, %v1484
  %1541 = vst.msk [vmem:[#allocation2 + $0x110] sm:$0xff] %vm23, %v1485
  %1542 = vst.msk [vmem:[#allocation2 + $0x118] sm:$0xff] %vm23, %v1486
  %1543 = vst.msk [vmem:[#allocation2 + $0x120] sm:$0xff] %vm23, %v1487
  %1544 = vst.msk [vmem:[#allocation2 + $0x128] sm:$0xff] %vm23, %v1488
  %1545 = vst.msk [vmem:[#allocation2 + $0x130] sm:$0xff] %vm23, %v1489
  %1546 = vst.msk [vmem:[#allocation2 + $0x138] sm:$0xff] %vm23, %v1490
  %1547 = vst.msk [vmem:[#allocation2 + $0x140] sm:$0xff] %vm23, %v1491
  %1548 = vst.msk [vmem:[#allocation2 + $0x148] sm:$0xff] %vm23, %v1492
  %1549 = vst.msk [vmem:[#allocation2 + $0x150] sm:$0xff] %vm23, %v1493
  %1550 = vst.msk [vmem:[#allocation2 + $0x158] sm:$0xff] %vm23, %v1494
  %1551 = vst.msk [vmem:[#allocation2 + $0x160] sm:$0xff] %vm23, %v1495
  %1552 = vst.msk [vmem:[#allocation2 + $0x168] sm:$0xff] %vm23, %v1496
  %1553 = vst.msk [vmem:[#allocation2 + $0x170] sm:$0xff] %vm23, %v1497
  %1554 = vst.msk [vmem:[#allocation2 + $0x178] sm:$0xff] %vm23, %v1498
  %1555 = vst.msk [vmem:[#allocation2 + $0x180] sm:$0xff] %vm23, %v1499
  %1556 = vst.msk [vmem:[#allocation2 + $0x188] sm:$0xff] %vm23, %v1500
  %1557 = vst.msk [vmem:[#allocation2 + $0x190] sm:$0xff] %vm23, %v1501
  %1558 = vst.msk [vmem:[#allocation2 + $0x198] sm:$0xff] %vm23, %v1502
  %1559 = vst.msk [vmem:[#allocation2 + $0x1a0] sm:$0xff] %vm23, %v1503
  %1560 = vst.msk [vmem:[#allocation2 + $0x1a8] sm:$0xff] %vm23, %v1504
  %1561 = vst.msk [vmem:[#allocation2 + $0x1b0] sm:$0xff] %vm23, %v1505
  %1562 = vst.msk [vmem:[#allocation2 + $0x1b8] sm:$0xff] %vm23, %v1506
  %v1563 = vld [vmem:[#allocation2] ss:$2 sm:$0xff]
  %s1564 = scalar_lea.vmem [#allocation2], 1
  %v1565 = vld [vmem:[%s1564] ss:$2 sm:$0xff]
  %s1566 = scalar_lea.vmem [#allocation2], 16
  %v1567 = vld [vmem:[%s1566] ss:$2 sm:$0xff]
  %s1568 = scalar_lea.vmem [#allocation2], 17
  %v1569 = vld [vmem:[%s1568] ss:$2 sm:$0xff]
  %v1570 = vmax.f32 %v1563, %v1565
  %v1571 = vmax.f32 %v1567, %v1569
  %v1572 = vmax.f32 %v1570, %v1571
  %1573 = vst.msk [vmem:[#allocation3] sm:$0xff] %vm23, %v1572
  %s1574 = scalar_lea.vmem [#allocation2], 32
  %v1575 = vld [vmem:[%s1574] ss:$2 sm:$0xff]
  %s1576 = scalar_lea.vmem [#allocation2], 33
  %v1577 = vld [vmem:[%s1576] ss:$2 sm:$0xff]
  %s1578 = scalar_lea.vmem [#allocation2], 48
  %v1579 = vld [vmem:[%s1578] ss:$2 sm:$0xff]
  %s1580 = scalar_lea.vmem [#allocation2], 49
  %v1581 = vld [vmem:[%s1580] ss:$2 sm:$0xff]
  %v1582 = vmax.f32 %v1575, %v1577
  %v1583 = vmax.f32 %v1579, %v1581
  %v1584 = vmax.f32 %v1582, %v1583
  %1585 = vst.msk [vmem:[#allocation3 + $0x8] sm:$0xff] %vm23, %v1584
  %s1586 = scalar_lea.vmem [#allocation2], 64
  %v1587 = vld [vmem:[%s1586] ss:$2 sm:$0xff]
  %s1588 = scalar_lea.vmem [#allocation2], 65
  %v1589 = vld [vmem:[%s1588] ss:$2 sm:$0xff]
  %s1590 = scalar_lea.vmem [#allocation2], 80
  %v1591 = vld [vmem:[%s1590] ss:$2 sm:$0xff]
  %s1592 = scalar_lea.vmem [#allocation2], 81
  %v1593 = vld [vmem:[%s1592] ss:$2 sm:$0xff]
  %v1594 = vmax.f32 %v1587, %v1589
  %v1595 = vmax.f32 %v1591, %v1593
  %v1596 = vmax.f32 %v1594, %v1595
  %1597 = vst.msk [vmem:[#allocation3 + $0x10] sm:$0xff] %vm23, %v1596
  %s1598 = scalar_lea.vmem [#allocation2], 96
  %v1599 = vld [vmem:[%s1598] ss:$2 sm:$0xff]
  %s1600 = scalar_lea.vmem [#allocation2], 97
  %v1601 = vld [vmem:[%s1600] ss:$2 sm:$0xff]
  %s1602 = scalar_lea.vmem [#allocation2], 112
  %v1603 = vld [vmem:[%s1602] ss:$2 sm:$0xff]
  %s1604 = scalar_lea.vmem [#allocation2], 113
  %v1605 = vld [vmem:[%s1604] ss:$2 sm:$0xff]
  %v1606 = vmax.f32 %v1599, %v1601
  %v1607 = vmax.f32 %v1603, %v1605
  %v1608 = vmax.f32 %v1606, %v1607
  %1609 = vst.msk [vmem:[#allocation3 + $0x18] sm:$0xff] %vm23, %v1608
  %s1610 = scalar_lea.vmem [#allocation2], 128
  %v1611 = vld [vmem:[%s1610] ss:$2 sm:$0xff]
  %s1612 = scalar_lea.vmem [#allocation2], 129
  %v1613 = vld [vmem:[%s1612] ss:$2 sm:$0xff]
  %s1614 = scalar_lea.vmem [#allocation2], 144
  %v1615 = vld [vmem:[%s1614] ss:$2 sm:$0xff]
  %s1616 = scalar_lea.vmem [#allocation2], 145
  %v1617 = vld [vmem:[%s1616] ss:$2 sm:$0xff]
  %v1618 = vmax.f32 %v1611, %v1613
  %v1619 = vmax.f32 %v1615, %v1617
  %v1620 = vmax.f32 %v1618, %v1619
  %1621 = vst.msk [vmem:[#allocation3 + $0x20] sm:$0xff] %vm23, %v1620
  %s1622 = scalar_lea.vmem [#allocation2], 160
  %v1623 = vld [vmem:[%s1622] ss:$2 sm:$0xff]
  %s1624 = scalar_lea.vmem [#allocation2], 161
  %v1625 = vld [vmem:[%s1624] ss:$2 sm:$0xff]
  %s1626 = scalar_lea.vmem [#allocation2], 176
  %v1627 = vld [vmem:[%s1626] ss:$2 sm:$0xff]
  %s1628 = scalar_lea.vmem [#allocation2], 177
  %v1629 = vld [vmem:[%s1628] ss:$2 sm:$0xff]
  %v1630 = vmax.f32 %v1623, %v1625
  %v1631 = vmax.f32 %v1627, %v1629
  %v1632 = vmax.f32 %v1630, %v1631
  %1633 = vst.msk [vmem:[#allocation3 + $0x28] sm:$0xff] %vm23, %v1632
  %s1634 = scalar_lea.vmem [#allocation2], 192
  %v1635 = vld [vmem:[%s1634] ss:$2 sm:$0xff]
  %s1636 = scalar_lea.vmem [#allocation2], 193
  %v1637 = vld [vmem:[%s1636] ss:$2 sm:$0xff]
  %s1638 = scalar_lea.vmem [#allocation2], 208
  %v1639 = vld [vmem:[%s1638] ss:$2 sm:$0xff]
  %s1640 = scalar_lea.vmem [#allocation2], 209
  %v1641 = vld [vmem:[%s1640] ss:$2 sm:$0xff]
  %v1642 = vmax.f32 %v1635, %v1637
  %v1643 = vmax.f32 %v1639, %v1641
  %v1644 = vmax.f32 %v1642, %v1643
  %1645 = vst.msk [vmem:[#allocation3 + $0x30] sm:$0xff] %vm23, %v1644
  %s1646 = scalar_lea.vmem [#allocation2], 224
  %v1647 = vld [vmem:[%s1646] ss:$2 sm:$0xff]
  %s1648 = scalar_lea.vmem [#allocation2], 225
  %v1649 = vld [vmem:[%s1648] ss:$2 sm:$0xff]
  %s1650 = scalar_lea.vmem [#allocation2], 240
  %v1651 = vld [vmem:[%s1650] ss:$2 sm:$0xff]
  %s1652 = scalar_lea.vmem [#allocation2], 241
  %v1653 = vld [vmem:[%s1652] ss:$2 sm:$0xff]
  %v1654 = vmax.f32 %v1647, %v1649
  %v1655 = vmax.f32 %v1651, %v1653
  %v1656 = vmax.f32 %v1654, %v1655
  %1657 = vst.msk [vmem:[#allocation3 + $0x40] sm:$0xff] %vm23, %v1656
  %s1658 = scalar_lea.vmem [#allocation2], 256
  %v1659 = vld [vmem:[%s1658] ss:$2 sm:$0xff]
  %s1660 = scalar_lea.vmem [#allocation2], 257
  %v1661 = vld [vmem:[%s1660] ss:$2 sm:$0xff]
  %s1662 = scalar_lea.vmem [#allocation2], 272
  %v1663 = vld [vmem:[%s1662] ss:$2 sm:$0xff]
  %s1664 = scalar_lea.vmem [#allocation2], 273
  %v1665 = vld [vmem:[%s1664] ss:$2 sm:$0xff]
  %v1666 = vmax.f32 %v1659, %v1661
  %v1667 = vmax.f32 %v1663, %v1665
  %v1668 = vmax.f32 %v1666, %v1667
  %1669 = vst.msk [vmem:[#allocation3 + $0x48] sm:$0xff] %vm23, %v1668
  %s1670 = scalar_lea.vmem [#allocation2], 288
  %v1671 = vld [vmem:[%s1670] ss:$2 sm:$0xff]
  %s1672 = scalar_lea.vmem [#allocation2], 289
  %v1673 = vld [vmem:[%s1672] ss:$2 sm:$0xff]
  %s1674 = scalar_lea.vmem [#allocation2], 304
  %v1675 = vld [vmem:[%s1674] ss:$2 sm:$0xff]
  %s1676 = scalar_lea.vmem [#allocation2], 305
  %v1677 = vld [vmem:[%s1676] ss:$2 sm:$0xff]
  %v1678 = vmax.f32 %v1671, %v1673
  %v1679 = vmax.f32 %v1675, %v1677
  %v1680 = vmax.f32 %v1678, %v1679
  %1681 = vst.msk [vmem:[#allocation3 + $0x50] sm:$0xff] %vm23, %v1680
  %s1682 = scalar_lea.vmem [#allocation2], 320
  %v1683 = vld [vmem:[%s1682] ss:$2 sm:$0xff]
  %s1684 = scalar_lea.vmem [#allocation2], 321
  %v1685 = vld [vmem:[%s1684] ss:$2 sm:$0xff]
  %s1686 = scalar_lea.vmem [#allocation2], 336
  %v1687 = vld [vmem:[%s1686] ss:$2 sm:$0xff]
  %s1688 = scalar_lea.vmem [#allocation2], 337
  %v1689 = vld [vmem:[%s1688] ss:$2 sm:$0xff]
  %v1690 = vmax.f32 %v1683, %v1685
  %v1691 = vmax.f32 %v1687, %v1689
  %v1692 = vmax.f32 %v1690, %v1691
  %1693 = vst.msk [vmem:[#allocation3 + $0x58] sm:$0xff] %vm23, %v1692
  %s1694 = scalar_lea.vmem [#allocation2], 352
  %v1695 = vld [vmem:[%s1694] ss:$2 sm:$0xff]
  %s1696 = scalar_lea.vmem [#allocation2], 353
  %v1697 = vld [vmem:[%s1696] ss:$2 sm:$0xff]
  %s1698 = scalar_lea.vmem [#allocation2], 368
  %v1699 = vld [vmem:[%s1698] ss:$2 sm:$0xff]
  %s1700 = scalar_lea.vmem [#allocation2], 369
  %v1701 = vld [vmem:[%s1700] ss:$2 sm:$0xff]
  %v1702 = vmax.f32 %v1695, %v1697
  %v1703 = vmax.f32 %v1699, %v1701
  %v1704 = vmax.f32 %v1702, %v1703
  %1705 = vst.msk [vmem:[#allocation3 + $0x60] sm:$0xff] %vm23, %v1704
  %s1706 = scalar_lea.vmem [#allocation2], 384
  %v1707 = vld [vmem:[%s1706] ss:$2 sm:$0xff]
  %s1708 = scalar_lea.vmem [#allocation2], 385
  %v1709 = vld [vmem:[%s1708] ss:$2 sm:$0xff]
  %s1710 = scalar_lea.vmem [#allocation2], 400
  %v1711 = vld [vmem:[%s1710] ss:$2 sm:$0xff]
  %s1712 = scalar_lea.vmem [#allocation2], 401
  %v1713 = vld [vmem:[%s1712] ss:$2 sm:$0xff]
  %v1714 = vmax.f32 %v1707, %v1709
  %v1715 = vmax.f32 %v1711, %v1713
  %v1716 = vmax.f32 %v1714, %v1715
  %1717 = vst.msk [vmem:[#allocation3 + $0x68] sm:$0xff] %vm23, %v1716
  %s1718 = scalar_lea.vmem [#allocation2], 416
  %v1719 = vld [vmem:[%s1718] ss:$2 sm:$0xff]
  %s1720 = scalar_lea.vmem [#allocation2], 417
  %v1721 = vld [vmem:[%s1720] ss:$2 sm:$0xff]
  %s1722 = scalar_lea.vmem [#allocation2], 432
  %v1723 = vld [vmem:[%s1722] ss:$2 sm:$0xff]
  %s1724 = scalar_lea.vmem [#allocation2], 433
  %v1725 = vld [vmem:[%s1724] ss:$2 sm:$0xff]
  %v1726 = vmax.f32 %v1719, %v1721
  %v1727 = vmax.f32 %v1723, %v1725
  %v1728 = vmax.f32 %v1726, %v1727
  %1729 = vst.msk [vmem:[#allocation3 + $0x70] sm:$0xff] %vm23, %v1728
  %v1730 = vld [vmem:[#allocation3] sm:$0xff]
  %v1731 = vld [vmem:[#allocation3 + $0x8] sm:$0xff]
  %v1732 = vld [vmem:[#allocation3 + $0x10] sm:$0xff]
  %v1733 = vld [vmem:[#allocation3 + $0x18] sm:$0xff]
  %v1734 = vld [vmem:[#allocation3 + $0x20] sm:$0xff]
  %v1735 = vld [vmem:[#allocation3 + $0x28] sm:$0xff]
  %v1736 = vld [vmem:[#allocation3 + $0x30] sm:$0xff]
  %v1737 = vld [vmem:[#allocation3 + $0x38] sm:$0xff]
  %v1738 = vld [vmem:[#allocation3 + $0x40] sm:$0xff]
  %v1739 = vld [vmem:[#allocation3 + $0x48] sm:$0xff]
  %v1740 = vld [vmem:[#allocation3 + $0x50] sm:$0xff]
  %v1741 = vld [vmem:[#allocation3 + $0x58] sm:$0xff]
  %v1742 = vld [vmem:[#allocation3 + $0x60] sm:$0xff]
  %v1743 = vld [vmem:[#allocation3 + $0x68] sm:$0xff]
  %v1744 = vld [vmem:[#allocation3 + $0x70] sm:$0xff]
  %v1745 = vld [vmem:[#allocation3 + $0x78] sm:$0xff]
  %1746 = vst.msk [vmem:[#allocation4] sm:$0xff] %vm23, %v1730
  %1747 = vst.msk [vmem:[#allocation4 + $0x28] sm:$0xff] %vm23, %v1731
  %1748 = vst.msk [vmem:[#allocation4 + $0x50] sm:$0xff] %vm23, %v1732
  %1749 = vst.msk [vmem:[#allocation4 + $0x78] sm:$0xff] %vm23, %v1733
  %1750 = vst.msk [vmem:[#allocation4 + $0xa0] sm:$0xff] %vm23, %v1734
  %1751 = vst.msk [vmem:[#allocation4 + $0xc8] sm:$0xff] %vm23, %v1735
  %1752 = vst.msk [vmem:[#allocation4 + $0xf0] sm:$0xff] %vm23, %v1736
  %1753 = vst.msk [vmem:[#allocation4 + $0x118] sm:$0xff] %vm23, %v1737
  %1754 = vst.msk [vmem:[#allocation4 + $0x140] sm:$0xff] %vm23, %v1738
  %1755 = vst.msk [vmem:[#allocation4 + $0x168] sm:$0xff] %vm23, %v1739
  %1756 = vst.msk [vmem:[#allocation4 + $0x190] sm:$0xff] %vm23, %v1740
  %1757 = vst.msk [vmem:[#allocation4 + $0x1b8] sm:$0xff] %vm23, %v1741
  %1758 = vst.msk [vmem:[#allocation4 + $0x1e0] sm:$0xff] %vm23, %v1742
  %1759 = vst.msk [vmem:[#allocation4 + $0x208] sm:$0xff] %vm23, %v1743
  %1760 = vst.msk [vmem:[#allocation4 + $0x230] sm:$0xff] %vm23, %v1744
  %1761 = vst.msk [vmem:[#allocation4 + $0x258] sm:$0xff] %vm23, %v1745
  %v1762 = vld [vmem:[#allocation3 + $0x1] sm:$0xff]
  %v1763 = vld [vmem:[#allocation3 + $0x9] sm:$0xff]
  %v1764 = vld [vmem:[#allocation3 + $0x11] sm:$0xff]
  %v1765 = vld [vmem:[#allocation3 + $0x19] sm:$0xff]
  %v1766 = vld [vmem:[#allocation3 + $0x21] sm:$0xff]
  %v1767 = vld [vmem:[#allocation3 + $0x29] sm:$0xff]
  %v1768 = vld [vmem:[#allocation3 + $0x31] sm:$0xff]
  %v1769 = vld [vmem:[#allocation3 + $0x39] sm:$0xff]
  %v1770 = vld [vmem:[#allocation3 + $0x41] sm:$0xff]
  %v1771 = vld [vmem:[#allocation3 + $0x49] sm:$0xff]
  %v1772 = vld [vmem:[#allocation3 + $0x51] sm:$0xff]
  %v1773 = vld [vmem:[#allocation3 + $0x59] sm:$0xff]
  %v1774 = vld [vmem:[#allocation3 + $0x61] sm:$0xff]
  %v1775 = vld [vmem:[#allocation3 + $0x69] sm:$0xff]
  %v1776 = vld [vmem:[#allocation3 + $0x71] sm:$0xff]
  %v1777 = vld [vmem:[#allocation3 + $0x79] sm:$0xff]
  %1794 = vrot.lane.b32.xlu0 %v1762, 64
  %v1795 = vpop.permute.xlu0 %1794
  %1796 = vrot.lane.b32.xlu0 %v1763, 64
  %v1797 = vpop.permute.xlu0 %1796
  %1798 = vrot.lane.b32.xlu0 %v1764, 64
  %v1799 = vpop.permute.xlu0 %1798
  %1800 = vrot.lane.b32.xlu0 %v1765, 64
  %v1801 = vpop.permute.xlu0 %1800
  %1802 = vrot.lane.b32.xlu0 %v1766, 64
  %v1803 = vpop.permute.xlu0 %1802
  %1804 = vrot.lane.b32.xlu0 %v1767, 64
  %v1805 = vpop.permute.xlu0 %1804
  %1806 = vrot.lane.b32.xlu0 %v1768, 64
  %v1807 = vpop.permute.xlu0 %1806
  %1808 = vrot.lane.b32.xlu0 %v1769, 64
  %v1809 = vpop.permute.xlu0 %1808
  %1810 = vrot.lane.b32.xlu0 %v1770, 64
  %v1811 = vpop.permute.xlu0 %1810
  %1812 = vrot.lane.b32.xlu0 %v1771, 64
  %v1813 = vpop.permute.xlu0 %1812
  %1814 = vrot.lane.b32.xlu0 %v1772, 64
  %v1815 = vpop.permute.xlu0 %1814
  %1816 = vrot.lane.b32.xlu0 %v1773, 64
  %v1817 = vpop.permute.xlu0 %1816
  %1818 = vrot.lane.b32.xlu0 %v1774, 64
  %v1819 = vpop.permute.xlu0 %1818
  %1820 = vrot.lane.b32.xlu0 %v1775, 64
  %v1821 = vpop.permute.xlu0 %1820
  %1822 = vrot.lane.b32.xlu0 %v1776, 64
  %v1823 = vpop.permute.xlu0 %1822
  %1824 = vrot.lane.b32.xlu0 %v1777, 64
  %v1825 = vpop.permute.xlu0 %1824
  %vm1842 = vcmask 1048064
  %1843 = vst.msk [vmem:[#allocation4] sm:$0xff] %vm1842, %v1795
  %1844 = vst.msk [vmem:[#allocation4 + $0x28] sm:$0xff] %vm1842, %v1797
  %1845 = vst.msk [vmem:[#allocation4 + $0x50] sm:$0xff] %vm1842, %v1799
  %1846 = vst.msk [vmem:[#allocation4 + $0x78] sm:$0xff] %vm1842, %v1801
  %1847 = vst.msk [vmem:[#allocation4 + $0xa0] sm:$0xff] %vm1842, %v1803
  %1848 = vst.msk [vmem:[#allocation4 + $0xc8] sm:$0xff] %vm1842, %v1805
  %1849 = vst.msk [vmem:[#allocation4 + $0xf0] sm:$0xff] %vm1842, %v1807
  %1850 = vst.msk [vmem:[#allocation4 + $0x118] sm:$0xff] %vm1842, %v1809
  %1851 = vst.msk [vmem:[#allocation4 + $0x140] sm:$0xff] %vm1842, %v1811
  %1852 = vst.msk [vmem:[#allocation4 + $0x168] sm:$0xff] %vm1842, %v1813
  %1853 = vst.msk [vmem:[#allocation4 + $0x190] sm:$0xff] %vm1842, %v1815
  %1854 = vst.msk [vmem:[#allocation4 + $0x1b8] sm:$0xff] %vm1842, %v1817
  %1855 = vst.msk [vmem:[#allocation4 + $0x1e0] sm:$0xff] %vm1842, %v1819
  %1856 = vst.msk [vmem:[#allocation4 + $0x208] sm:$0xff] %vm1842, %v1821
  %1857 = vst.msk [vmem:[#allocation4 + $0x230] sm:$0xff] %vm1842, %v1823
  %1858 = vst.msk [vmem:[#allocation4 + $0x258] sm:$0xff] %vm1842, %v1825
  %v1859 = vld [vmem:[#allocation3 + $0x2] sm:$0xff]
  %v1860 = vld [vmem:[#allocation3 + $0xa] sm:$0xff]
  %v1861 = vld [vmem:[#allocation3 + $0x12] sm:$0xff]
  %v1862 = vld [vmem:[#allocation3 + $0x1a] sm:$0xff]
  %v1863 = vld [vmem:[#allocation3 + $0x22] sm:$0xff]
  %v1864 = vld [vmem:[#allocation3 + $0x2a] sm:$0xff]
  %v1865 = vld [vmem:[#allocation3 + $0x32] sm:$0xff]
  %v1866 = vld [vmem:[#allocation3 + $0x3a] sm:$0xff]
  %v1867 = vld [vmem:[#allocation3 + $0x42] sm:$0xff]
  %v1868 = vld [vmem:[#allocation3 + $0x4a] sm:$0xff]
  %v1869 = vld [vmem:[#allocation3 + $0x52] sm:$0xff]
  %v1870 = vld [vmem:[#allocation3 + $0x5a] sm:$0xff]
  %v1871 = vld [vmem:[#allocation3 + $0x62] sm:$0xff]
  %v1872 = vld [vmem:[#allocation3 + $0x6a] sm:$0xff]
  %v1873 = vld [vmem:[#allocation3 + $0x72] sm:$0xff]
  %v1874 = vld [vmem:[#allocation3 + $0x7a] sm:$0xff]
  %1875 = vst.msk [vmem:[#allocation4 + $0x8] sm:$0xff] %vm23, %v1859
  %1876 = vst.msk [vmem:[#allocation4 + $0x30] sm:$0xff] %vm23, %v1860
  %1877 = vst.msk [vmem:[#allocation4 + $0x58] sm:$0xff] %vm23, %v1861
  %1878 = vst.msk [vmem:[#allocation4 + $0x80] sm:$0xff] %vm23, %v1862
  %1879 = vst.msk [vmem:[#allocation4 + $0xa8] sm:$0xff] %vm23, %v1863
  %1880 = vst.msk [vmem:[#allocation4 + $0xd0] sm:$0xff] %vm23, %v1864
  %1881 = vst.msk [vmem:[#allocation4 + $0xf8] sm:$0xff] %vm23, %v1865
  %1882 = vst.msk [vmem:[#allocation4 + $0x120] sm:$0xff] %vm23, %v1866
  %1883 = vst.msk [vmem:[#allocation4 + $0x148] sm:$0xff] %vm23, %v1867
  %1884 = vst.msk [vmem:[#allocation4 + $0x170] sm:$0xff] %vm23, %v1868
  %1885 = vst.msk [vmem:[#allocation4 + $0x198] sm:$0xff] %vm23, %v1869
  %1886 = vst.msk [vmem:[#allocation4 + $0x1c0] sm:$0xff] %vm23, %v1870
  %1887 = vst.msk [vmem:[#allocation4 + $0x1e8] sm:$0xff] %vm23, %v1871
  %1888 = vst.msk [vmem:[#allocation4 + $0x210] sm:$0xff] %vm23, %v1872
  %1889 = vst.msk [vmem:[#allocation4 + $0x238] sm:$0xff] %vm23, %v1873
  %1890 = vst.msk [vmem:[#allocation4 + $0x260] sm:$0xff] %vm23, %v1874
  %v1891 = vld [vmem:[#allocation3 + $0x8] sm:$0xff]
  %v1892 = vld [vmem:[#allocation3 + $0x10] sm:$0xff]
  %v1893 = vld [vmem:[#allocation3 + $0x18] sm:$0xff]
  %v1894 = vld [vmem:[#allocation3 + $0x20] sm:$0xff]
  %v1895 = vld [vmem:[#allocation3 + $0x28] sm:$0xff]
  %v1896 = vld [vmem:[#allocation3 + $0x30] sm:$0xff]
  %v1897 = vld [vmem:[#allocation3 + $0x38] sm:$0xff]
  %v1898 = vld [vmem:[#allocation3 + $0x40] sm:$0xff]
  %v1899 = vld [vmem:[#allocation3 + $0x48] sm:$0xff]
  %v1900 = vld [vmem:[#allocation3 + $0x50] sm:$0xff]
  %v1901 = vld [vmem:[#allocation3 + $0x58] sm:$0xff]
  %v1902 = vld [vmem:[#allocation3 + $0x60] sm:$0xff]
  %v1903 = vld [vmem:[#allocation3 + $0x68] sm:$0xff]
  %v1904 = vld [vmem:[#allocation3 + $0x70] sm:$0xff]
  %v1905 = vld [vmem:[#allocation3 + $0x78] sm:$0xff]
  %v1906 = vld [vmem:[#allocation3 + $0x80] sm:$0xff]
  %1923 = vrot.lane.b32.xlu0 %v1891, 64
  %v1924 = vpop.permute.xlu0 %1923
  %1925 = vrot.lane.b32.xlu0 %v1892, 64
  %v1926 = vpop.permute.xlu0 %1925
  %1927 = vrot.lane.b32.xlu0 %v1893, 64
  %v1928 = vpop.permute.xlu0 %1927
  %1929 = vrot.lane.b32.xlu0 %v1894, 64
  %v1930 = vpop.permute.xlu0 %1929
  %1931 = vrot.lane.b32.xlu0 %v1895, 64
  %v1932 = vpop.permute.xlu0 %1931
  %1933 = vrot.lane.b32.xlu0 %v1896, 64
  %v1934 = vpop.permute.xlu0 %1933
  %1935 = vrot.lane.b32.xlu0 %v1897, 64
  %v1936 = vpop.permute.xlu0 %1935
  %1937 = vrot.lane.b32.xlu0 %v1898, 64
  %v1938 = vpop.permute.xlu0 %1937
  %1939 = vrot.lane.b32.xlu0 %v1899, 64
  %v1940 = vpop.permute.xlu0 %1939
  %1941 = vrot.lane.b32.xlu0 %v1900, 64
  %v1942 = vpop.permute.xlu0 %1941
  %1943 = vrot.lane.b32.xlu0 %v1901, 64
  %v1944 = vpop.permute.xlu0 %1943
  %1945 = vrot.lane.b32.xlu0 %v1902, 64
  %v1946 = vpop.permute.xlu0 %1945
  %1947 = vrot.lane.b32.xlu0 %v1903, 64
  %v1948 = vpop.permute.xlu0 %1947
  %1949 = vrot.lane.b32.xlu0 %v1904, 64
  %v1950 = vpop.permute.xlu0 %1949
  %1951 = vrot.lane.b32.xlu0 %v1905, 64
  %v1952 = vpop.permute.xlu0 %1951
  %1953 = vrot.lane.b32.xlu0 %v1906, 64
  %v1954 = vpop.permute.xlu0 %1953
  %1971 = vst.msk [vmem:[#allocation4 + $0x8] sm:$0xff] %vm1842, %v1924
  %1972 = vst.msk [vmem:[#allocation4 + $0x30] sm:$0xff] %vm1842, %v1926
  %1973 = vst.msk [vmem:[#allocation4 + $0x58] sm:$0xff] %vm1842, %v1928
  %1974 = vst.msk [vmem:[#allocation4 + $0x80] sm:$0xff] %vm1842, %v1930
  %1975 = vst.msk [vmem:[#allocation4 + $0xa8] sm:$0xff] %vm1842, %v1932
  %1976 = vst.msk [vmem:[#allocation4 + $0xd0] sm:$0xff] %vm1842, %v1934
  %1977 = vst.msk [vmem:[#allocation4 + $0xf8] sm:$0xff] %vm1842, %v1936
  %1978 = vst.msk [vmem:[#allocation4 + $0x120] sm:$0xff] %vm1842, %v1938
  %1979 = vst.msk [vmem:[#allocation4 + $0x148] sm:$0xff] %vm1842, %v1940
  %1980 = vst.msk [vmem:[#allocation4 + $0x170] sm:$0xff] %vm1842, %v1942
  %1981 = vst.msk [vmem:[#allocation4 + $0x198] sm:$0xff] %vm1842, %v1944
  %1982 = vst.msk [vmem:[#allocation4 + $0x1c0] sm:$0xff] %vm1842, %v1946
  %1983 = vst.msk [vmem:[#allocation4 + $0x1e8] sm:$0xff] %vm1842, %v1948
  %1984 = vst.msk [vmem:[#allocation4 + $0x210] sm:$0xff] %vm1842, %v1950
  %1985 = vst.msk [vmem:[#allocation4 + $0x238] sm:$0xff] %vm1842, %v1952
  %1986 = vst.msk [vmem:[#allocation4 + $0x260] sm:$0xff] %vm1842, %v1954
  %v1987 = vld [vmem:[#allocation3 + $0x9] sm:$0xff]
  %v1988 = vld [vmem:[#allocation3 + $0x11] sm:$0xff]
  %v1989 = vld [vmem:[#allocation3 + $0x19] sm:$0xff]
  %v1990 = vld [vmem:[#allocation3 + $0x21] sm:$0xff]
  %v1991 = vld [vmem:[#allocation3 + $0x29] sm:$0xff]
  %v1992 = vld [vmem:[#allocation3 + $0x31] sm:$0xff]
  %v1993 = vld [vmem:[#allocation3 + $0x39] sm:$0xff]
  %v1994 = vld [vmem:[#allocation3 + $0x41] sm:$0xff]
  %v1995 = vld [vmem:[#allocation3 + $0x49] sm:$0xff]
  %v1996 = vld [vmem:[#allocation3 + $0x51] sm:$0xff]
  %v1997 = vld [vmem:[#allocation3 + $0x59] sm:$0xff]
  %v1998 = vld [vmem:[#allocation3 + $0x61] sm:$0xff]
  %v1999 = vld [vmem:[#allocation3 + $0x69] sm:$0xff]
  %v2000 = vld [vmem:[#allocation3 + $0x71] sm:$0xff]
  %v2001 = vld [vmem:[#allocation3 + $0x79] sm:$0xff]
  %v2002 = vld [vmem:[#allocation3 + $0x81] sm:$0xff]
  %2003 = vst.msk [vmem:[#allocation4 + $0x10] sm:$0xff] %vm23, %v1987
  %2004 = vst.msk [vmem:[#allocation4 + $0x38] sm:$0xff] %vm23, %v1988
  %2005 = vst.msk [vmem:[#allocation4 + $0x60] sm:$0xff] %vm23, %v1989
  %2006 = vst.msk [vmem:[#allocation4 + $0x88] sm:$0xff] %vm23, %v1990
  %2007 = vst.msk [vmem:[#allocation4 + $0xb0] sm:$0xff] %vm23, %v1991
  %2008 = vst.msk [vmem:[#allocation4 + $0xd8] sm:$0xff] %vm23, %v1992
  %2009 = vst.msk [vmem:[#allocation4 + $0x100] sm:$0xff] %vm23, %v1993
  %2010 = vst.msk [vmem:[#allocation4 + $0x128] sm:$0xff] %vm23, %v1994
  %2011 = vst.msk [vmem:[#allocation4 + $0x150] sm:$0xff] %vm23, %v1995
  %2012 = vst.msk [vmem:[#allocation4 + $0x178] sm:$0xff] %vm23, %v1996
  %2013 = vst.msk [vmem:[#allocation4 + $0x1a0] sm:$0xff] %vm23, %v1997
  %2014 = vst.msk [vmem:[#allocation4 + $0x1c8] sm:$0xff] %vm23, %v1998
  %2015 = vst.msk [vmem:[#allocation4 + $0x1f0] sm:$0xff] %vm23, %v1999
  %2016 = vst.msk [vmem:[#allocation4 + $0x218] sm:$0xff] %vm23, %v2000
  %2017 = vst.msk [vmem:[#allocation4 + $0x240] sm:$0xff] %vm23, %v2001
  %2018 = vst.msk [vmem:[#allocation4 + $0x268] sm:$0xff] %vm23, %v2002
  %v2019 = vld [vmem:[#allocation3 + $0xa] sm:$0xff]
  %v2020 = vld [vmem:[#allocation3 + $0x12] sm:$0xff]
  %v2021 = vld [vmem:[#allocation3 + $0x1a] sm:$0xff]
  %v2022 = vld [vmem:[#allocation3 + $0x22] sm:$0xff]
  %v2023 = vld [vmem:[#allocation3 + $0x2a] sm:$0xff]
  %v2024 = vld [vmem:[#allocation3 + $0x32] sm:$0xff]
  %v2025 = vld [vmem:[#allocation3 + $0x3a] sm:$0xff]
  %v2026 = vld [vmem:[#allocation3 + $0x42] sm:$0xff]
  %v2027 = vld [vmem:[#allocation3 + $0x4a] sm:$0xff]
  %v2028 = vld [vmem:[#allocation3 + $0x52] sm:$0xff]
  %v2029 = vld [vmem:[#allocation3 + $0x5a] sm:$0xff]
  %v2030 = vld [vmem:[#allocation3 + $0x62] sm:$0xff]
  %v2031 = vld [vmem:[#allocation3 + $0x6a] sm:$0xff]
  %v2032 = vld [vmem:[#allocation3 + $0x72] sm:$0xff]
  %v2033 = vld [vmem:[#allocation3 + $0x7a] sm:$0xff]
  %v2034 = vld [vmem:[#allocation3 + $0x82] sm:$0xff]
  %2051 = vrot.lane.b32.xlu0 %v2019, 64
  %v2052 = vpop.permute.xlu0 %2051
  %2053 = vrot.lane.b32.xlu0 %v2020, 64
  %v2054 = vpop.permute.xlu0 %2053
  %2055 = vrot.lane.b32.xlu0 %v2021, 64
  %v2056 = vpop.permute.xlu0 %2055
  %2057 = vrot.lane.b32.xlu0 %v2022, 64
  %v2058 = vpop.permute.xlu0 %2057
  %2059 = vrot.lane.b32.xlu0 %v2023, 64
  %v2060 = vpop.permute.xlu0 %2059
  %2061 = vrot.lane.b32.xlu0 %v2024, 64
  %v2062 = vpop.permute.xlu0 %2061
  %2063 = vrot.lane.b32.xlu0 %v2025, 64
  %v2064 = vpop.permute.xlu0 %2063
  %2065 = vrot.lane.b32.xlu0 %v2026, 64
  %v2066 = vpop.permute.xlu0 %2065
  %2067 = vrot.lane.b32.xlu0 %v2027, 64
  %v2068 = vpop.permute.xlu0 %2067
  %2069 = vrot.lane.b32.xlu0 %v2028, 64
  %v2070 = vpop.permute.xlu0 %2069
  %2071 = vrot.lane.b32.xlu0 %v2029, 64
  %v2072 = vpop.permute.xlu0 %2071
  %2073 = vrot.lane.b32.xlu0 %v2030, 64
  %v2074 = vpop.permute.xlu0 %2073
  %2075 = vrot.lane.b32.xlu0 %v2031, 64
  %v2076 = vpop.permute.xlu0 %2075
  %2077 = vrot.lane.b32.xlu0 %v2032, 64
  %v2078 = vpop.permute.xlu0 %2077
  %2079 = vrot.lane.b32.xlu0 %v2033, 64
  %v2080 = vpop.permute.xlu0 %2079
  %2081 = vrot.lane.b32.xlu0 %v2034, 64
  %v2082 = vpop.permute.xlu0 %2081
  %2099 = vst.msk [vmem:[#allocation4 + $0x10] sm:$0xff] %vm1842, %v2052
  %2100 = vst.msk [vmem:[#allocation4 + $0x38] sm:$0xff] %vm1842, %v2054
  %2101 = vst.msk [vmem:[#allocation4 + $0x60] sm:$0xff] %vm1842, %v2056
  %2102 = vst.msk [vmem:[#allocation4 + $0x88] sm:$0xff] %vm1842, %v2058
  %2103 = vst.msk [vmem:[#allocation4 + $0xb0] sm:$0xff] %vm1842, %v2060
  %2104 = vst.msk [vmem:[#allocation4 + $0xd8] sm:$0xff] %vm1842, %v2062
  %2105 = vst.msk [vmem:[#allocation4 + $0x100] sm:$0xff] %vm1842, %v2064
  %2106 = vst.msk [vmem:[#allocation4 + $0x128] sm:$0xff] %vm1842, %v2066
  %2107 = vst.msk [vmem:[#allocation4 + $0x150] sm:$0xff] %vm1842, %v2068
  %2108 = vst.msk [vmem:[#allocation4 + $0x178] sm:$0xff] %vm1842, %v2070
  %2109 = vst.msk [vmem:[#allocation4 + $0x1a0] sm:$0xff] %vm1842, %v2072
  %2110 = vst.msk [vmem:[#allocation4 + $0x1c8] sm:$0xff] %vm1842, %v2074
  %2111 = vst.msk [vmem:[#allocation4 + $0x1f0] sm:$0xff] %vm1842, %v2076
  %2112 = vst.msk [vmem:[#allocation4 + $0x218] sm:$0xff] %vm1842, %v2078
  %2113 = vst.msk [vmem:[#allocation4 + $0x240] sm:$0xff] %vm1842, %v2080
  %2114 = vst.msk [vmem:[#allocation4 + $0x268] sm:$0xff] %vm1842, %v2082
  %v2115 = vld [vmem:[#allocation3 + $0x10] sm:$0xff]
  %v2116 = vld [vmem:[#allocation3 + $0x18] sm:$0xff]
  %v2117 = vld [vmem:[#allocation3 + $0x20] sm:$0xff]
  %v2118 = vld [vmem:[#allocation3 + $0x28] sm:$0xff]
  %v2119 = vld [vmem:[#allocation3 + $0x30] sm:$0xff]
  %v2120 = vld [vmem:[#allocation3 + $0x38] sm:$0xff]
  %v2121 = vld [vmem:[#allocation3 + $0x40] sm:$0xff]
  %v2122 = vld [vmem:[#allocation3 + $0x48] sm:$0xff]
  %v2123 = vld [vmem:[#allocation3 + $0x50] sm:$0xff]
  %v2124 = vld [vmem:[#allocation3 + $0x58] sm:$0xff]
  %v2125 = vld [vmem:[#allocation3 + $0x60] sm:$0xff]
  %v2126 = vld [vmem:[#allocation3 + $0x68] sm:$0xff]
  %v2127 = vld [vmem:[#allocation3 + $0x70] sm:$0xff]
  %v2128 = vld [vmem:[#allocation3 + $0x78] sm:$0xff]
  %v2129 = vld [vmem:[#allocation3 + $0x80] sm:$0xff]
  %v2130 = vld [vmem:[#allocation3 + $0x88] sm:$0xff]
  %2131 = vst.msk [vmem:[#allocation4 + $0x18] sm:$0xff] %vm23, %v2115
  %2132 = vst.msk [vmem:[#allocation4 + $0x40] sm:$0xff] %vm23, %v2116
  %2133 = vst.msk [vmem:[#allocation4 + $0x68] sm:$0xff] %vm23, %v2117
  %2134 = vst.msk [vmem:[#allocation4 + $0x90] sm:$0xff] %vm23, %v2118
  %2135 = vst.msk [vmem:[#allocation4 + $0xb8] sm:$0xff] %vm23, %v2119
  %2136 = vst.msk [vmem:[#allocation4 + $0xe0] sm:$0xff] %vm23, %v2120
  %2137 = vst.msk [vmem:[#allocation4 + $0x108] sm:$0xff] %vm23, %v2121
  %2138 = vst.msk [vmem:[#allocation4 + $0x130] sm:$0xff] %vm23, %v2122
  %2139 = vst.msk [vmem:[#allocation4 + $0x158] sm:$0xff] %vm23, %v2123
  %2140 = vst.msk [vmem:[#allocation4 + $0x180] sm:$0xff] %vm23, %v2124
  %2141 = vst.msk [vmem:[#allocation4 + $0x1a8] sm:$0xff] %vm23, %v2125
  %2142 = vst.msk [vmem:[#allocation4 + $0x1d0] sm:$0xff] %vm23, %v2126
  %2143 = vst.msk [vmem:[#allocation4 + $0x1f8] sm:$0xff] %vm23, %v2127
  %2144 = vst.msk [vmem:[#allocation4 + $0x220] sm:$0xff] %vm23, %v2128
  %2145 = vst.msk [vmem:[#allocation4 + $0x248] sm:$0xff] %vm23, %v2129
  %2146 = vst.msk [vmem:[#allocation4 + $0x270] sm:$0xff] %vm23, %v2130
  %v2147 = vld [vmem:[#allocation3 + $0x11] sm:$0xff]
  %v2148 = vld [vmem:[#allocation3 + $0x19] sm:$0xff]
  %v2149 = vld [vmem:[#allocation3 + $0x21] sm:$0xff]
  %v2150 = vld [vmem:[#allocation3 + $0x29] sm:$0xff]
  %v2151 = vld [vmem:[#allocation3 + $0x31] sm:$0xff]
  %v2152 = vld [vmem:[#allocation3 + $0x39] sm:$0xff]
  %v2153 = vld [vmem:[#allocation3 + $0x41] sm:$0xff]
  %v2154 = vld [vmem:[#allocation3 + $0x49] sm:$0xff]
  %v2155 = vld [vmem:[#allocation3 + $0x51] sm:$0xff]
  %v2156 = vld [vmem:[#allocation3 + $0x59] sm:$0xff]
  %v2157 = vld [vmem:[#allocation3 + $0x61] sm:$0xff]
  %v2158 = vld [vmem:[#allocation3 + $0x69] sm:$0xff]
  %v2159 = vld [vmem:[#allocation3 + $0x71] sm:$0xff]
  %v2160 = vld [vmem:[#allocation3 + $0x79] sm:$0xff]
  %v2161 = vld [vmem:[#allocation3 + $0x81] sm:$0xff]
  %v2162 = vld [vmem:[#allocation3 + $0x89] sm:$0xff]
  %2179 = vrot.lane.b32.xlu0 %v2147, 64
  %v2180 = vpop.permute.xlu0 %2179
  %2181 = vrot.lane.b32.xlu0 %v2148, 64
  %v2182 = vpop.permute.xlu0 %2181
  %2183 = vrot.lane.b32.xlu0 %v2149, 64
  %v2184 = vpop.permute.xlu0 %2183
  %2185 = vrot.lane.b32.xlu0 %v2150, 64
  %v2186 = vpop.permute.xlu0 %2185
  %2187 = vrot.lane.b32.xlu0 %v2151, 64
  %v2188 = vpop.permute.xlu0 %2187
  %2189 = vrot.lane.b32.xlu0 %v2152, 64
  %v2190 = vpop.permute.xlu0 %2189
  %2191 = vrot.lane.b32.xlu0 %v2153, 64
  %v2192 = vpop.permute.xlu0 %2191
  %2193 = vrot.lane.b32.xlu0 %v2154, 64
  %v2194 = vpop.permute.xlu0 %2193
  %2195 = vrot.lane.b32.xlu0 %v2155, 64
  %v2196 = vpop.permute.xlu0 %2195
  %2197 = vrot.lane.b32.xlu0 %v2156, 64
  %v2198 = vpop.permute.xlu0 %2197
  %2199 = vrot.lane.b32.xlu0 %v2157, 64
  %v2200 = vpop.permute.xlu0 %2199
  %2201 = vrot.lane.b32.xlu0 %v2158, 64
  %v2202 = vpop.permute.xlu0 %2201
  %2203 = vrot.lane.b32.xlu0 %v2159, 64
  %v2204 = vpop.permute.xlu0 %2203
  %2205 = vrot.lane.b32.xlu0 %v2160, 64
  %v2206 = vpop.permute.xlu0 %2205
  %2207 = vrot.lane.b32.xlu0 %v2161, 64
  %v2208 = vpop.permute.xlu0 %2207
  %2209 = vrot.lane.b32.xlu0 %v2162, 64
  %v2210 = vpop.permute.xlu0 %2209
  %2227 = vst.msk [vmem:[#allocation4 + $0x18] sm:$0xff] %vm1842, %v2180
  %2228 = vst.msk [vmem:[#allocation4 + $0x40] sm:$0xff] %vm1842, %v2182
  %2229 = vst.msk [vmem:[#allocation4 + $0x68] sm:$0xff] %vm1842, %v2184
  %2230 = vst.msk [vmem:[#allocation4 + $0x90] sm:$0xff] %vm1842, %v2186
  %2231 = vst.msk [vmem:[#allocation4 + $0xb8] sm:$0xff] %vm1842, %v2188
  %2232 = vst.msk [vmem:[#allocation4 + $0xe0] sm:$0xff] %vm1842, %v2190
  %2233 = vst.msk [vmem:[#allocation4 + $0x108] sm:$0xff] %vm1842, %v2192
  %2234 = vst.msk [vmem:[#allocation4 + $0x130] sm:$0xff] %vm1842, %v2194
  %2235 = vst.msk [vmem:[#allocation4 + $0x158] sm:$0xff] %vm1842, %v2196
  %2236 = vst.msk [vmem:[#allocation4 + $0x180] sm:$0xff] %vm1842, %v2198
  %2237 = vst.msk [vmem:[#allocation4 + $0x1a8] sm:$0xff] %vm1842, %v2200
  %2238 = vst.msk [vmem:[#allocation4 + $0x1d0] sm:$0xff] %vm1842, %v2202
  %2239 = vst.msk [vmem:[#allocation4 + $0x1f8] sm:$0xff] %vm1842, %v2204
  %2240 = vst.msk [vmem:[#allocation4 + $0x220] sm:$0xff] %vm1842, %v2206
  %2241 = vst.msk [vmem:[#allocation4 + $0x248] sm:$0xff] %vm1842, %v2208
  %2242 = vst.msk [vmem:[#allocation4 + $0x270] sm:$0xff] %vm1842, %v2210
  %v2243 = vld [vmem:[#allocation3 + $0x12] sm:$0xff]
  %v2244 = vld [vmem:[#allocation3 + $0x1a] sm:$0xff]
  %v2245 = vld [vmem:[#allocation3 + $0x22] sm:$0xff]
  %v2246 = vld [vmem:[#allocation3 + $0x2a] sm:$0xff]
  %v2247 = vld [vmem:[#allocation3 + $0x32] sm:$0xff]
  %v2248 = vld [vmem:[#allocation3 + $0x3a] sm:$0xff]
  %v2249 = vld [vmem:[#allocation3 + $0x42] sm:$0xff]
  %v2250 = vld [vmem:[#allocation3 + $0x4a] sm:$0xff]
  %v2251 = vld [vmem:[#allocation3 + $0x52] sm:$0xff]
  %v2252 = vld [vmem:[#allocation3 + $0x5a] sm:$0xff]
  %v2253 = vld [vmem:[#allocation3 + $0x62] sm:$0xff]
  %v2254 = vld [vmem:[#allocation3 + $0x6a] sm:$0xff]
  %v2255 = vld [vmem:[#allocation3 + $0x72] sm:$0xff]
  %v2256 = vld [vmem:[#allocation3 + $0x7a] sm:$0xff]
  %v2257 = vld [vmem:[#allocation3 + $0x82] sm:$0xff]
  %v2258 = vld [vmem:[#allocation3 + $0x8a] sm:$0xff]
  %2259 = vst.msk [vmem:[#allocation4 + $0x20] sm:$0xff] %vm23, %v2243
  %2260 = vst.msk [vmem:[#allocation4 + $0x48] sm:$0xff] %vm23, %v2244
  %2261 = vst.msk [vmem:[#allocation4 + $0x70] sm:$0xff] %vm23, %v2245
  %2262 = vst.msk [vmem:[#allocation4 + $0x98] sm:$0xff] %vm23, %v2246
  %2263 = vst.msk [vmem:[#allocation4 + $0xc0] sm:$0xff] %vm23, %v2247
  %2264 = vst.msk [vmem:[#allocation4 + $0xe8] sm:$0xff] %vm23, %v2248
  %2265 = vst.msk [vmem:[#allocation4 + $0x110] sm:$0xff] %vm23, %v2249
  %2266 = vst.msk [vmem:[#allocation4 + $0x138] sm:$0xff] %vm23, %v2250
  %2267 = vst.msk [vmem:[#allocation4 + $0x160] sm:$0xff] %vm23, %v2251
  %2268 = vst.msk [vmem:[#allocation4 + $0x188] sm:$0xff] %vm23, %v2252
  %2269 = vst.msk [vmem:[#allocation4 + $0x1b0] sm:$0xff] %vm23, %v2253
  %2270 = vst.msk [vmem:[#allocation4 + $0x1d8] sm:$0xff] %vm23, %v2254
  %2271 = vst.msk [vmem:[#allocation4 + $0x200] sm:$0xff] %vm23, %v2255
  %2272 = vst.msk [vmem:[#allocation4 + $0x228] sm:$0xff] %vm23, %v2256
  %2273 = vst.msk [vmem:[#allocation4 + $0x250] sm:$0xff] %vm23, %v2257
  %2274 = vst.msk [vmem:[#allocation4 + $0x278] sm:$0xff] %vm23, %v2258
  %v2275 = vld [vmem:[#allocation4] sm:$0xff]
  %v2276 = vld [vmem:[#allocation4 + $0x8] sm:$0xff]
  %v2277 = vld [vmem:[#allocation4 + $0x10] sm:$0xff]
  %v2278 = vld [vmem:[#allocation4 + $0x18] sm:$0xff]
  %v2279 = vld [vmem:[#allocation4 + $0x20] sm:$0xff]
  %v2280 = vld [vmem:[#allocation4 + $0x28] sm:$0xff]
  %v2281 = vld [vmem:[#allocation4 + $0x30] sm:$0xff]
  %v2282 = vld [vmem:[#allocation4 + $0x38] sm:$0xff]
  %v2283 = vld [vmem:[#allocation4 + $0x40] sm:$0xff]
  %v2284 = vld [vmem:[#allocation4 + $0x48] sm:$0xff]
  %v2285 = vld [vmem:[#allocation4 + $0x50] sm:$0xff]
  %v2286 = vld [vmem:[#allocation4 + $0x58] sm:$0xff]
  %v2287 = vld [vmem:[#allocation4 + $0x60] sm:$0xff]
  %v2288 = vld [vmem:[#allocation4 + $0x68] sm:$0xff]
  %v2289 = vld [vmem:[#allocation4 + $0x70] sm:$0xff]
  %v2290 = vld [vmem:[#allocation4 + $0x78] sm:$0xff]
  %v2291 = vld [vmem:[#allocation4 + $0x80] sm:$0xff]
  %v2292 = vld [vmem:[#allocation4 + $0x88] sm:$0xff]
  %v2293 = vld [vmem:[#allocation4 + $0x90] sm:$0xff]
  %v2294 = vld [vmem:[#allocation4 + $0x98] sm:$0xff]
  %v2295 = vld [vmem:[#allocation4 + $0xa0] sm:$0xff]
  %v2296 = vld [vmem:[#allocation4 + $0xa8] sm:$0xff]
  %v2297 = vld [vmem:[#allocation4 + $0xb0] sm:$0xff]
  %v2298 = vld [vmem:[#allocation4 + $0xb8] sm:$0xff]
  %v2299 = vld [vmem:[#allocation4 + $0xc0] sm:$0xff]
  %v2300 = vld [vmem:[#allocation4 + $0xc8] sm:$0xff]
  %v2301 = vld [vmem:[#allocation4 + $0xd0] sm:$0xff]
  %v2302 = vld [vmem:[#allocation4 + $0xd8] sm:$0xff]
  %v2303 = vld [vmem:[#allocation4 + $0xe0] sm:$0xff]
  %v2304 = vld [vmem:[#allocation4 + $0xe8] sm:$0xff]
  %v2305 = vld [vmem:[#allocation4 + $0xf0] sm:$0xff]
  %v2306 = vld [vmem:[#allocation4 + $0xf8] sm:$0xff]
  %v2307 = vld [vmem:[#allocation4 + $0x100] sm:$0xff]
  %v2308 = vld [vmem:[#allocation4 + $0x108] sm:$0xff]
  %v2309 = vld [vmem:[#allocation4 + $0x110] sm:$0xff]
  %v2310 = vld [vmem:[#allocation4 + $0x118] sm:$0xff]
  %v2311 = vld [vmem:[#allocation4 + $0x120] sm:$0xff]
  %v2312 = vld [vmem:[#allocation4 + $0x128] sm:$0xff]
  %v2313 = vld [vmem:[#allocation4 + $0x130] sm:$0xff]
  %v2314 = vld [vmem:[#allocation4 + $0x138] sm:$0xff]
  %v2315 = vld [vmem:[#allocation4 + $0x140] sm:$0xff]
  %v2316 = vld [vmem:[#allocation4 + $0x148] sm:$0xff]
  %v2317 = vld [vmem:[#allocation4 + $0x150] sm:$0xff]
  %v2318 = vld [vmem:[#allocation4 + $0x158] sm:$0xff]
  %v2319 = vld [vmem:[#allocation4 + $0x160] sm:$0xff]
  %v2320 = vld [vmem:[#allocation4 + $0x168] sm:$0xff]
  %v2321 = vld [vmem:[#allocation4 + $0x170] sm:$0xff]
  %v2322 = vld [vmem:[#allocation4 + $0x178] sm:$0xff]
  %v2323 = vld [vmem:[#allocation4 + $0x180] sm:$0xff]
  %v2324 = vld [vmem:[#allocation4 + $0x188] sm:$0xff]
  %v2325 = vld [vmem:[#allocation4 + $0x190] sm:$0xff]
  %v2326 = vld [vmem:[#allocation4 + $0x198] sm:$0xff]
  %v2327 = vld [vmem:[#allocation4 + $0x1a0] sm:$0xff]
  %v2328 = vld [vmem:[#allocation4 + $0x1a8] sm:$0xff]
  %v2329 = vld [vmem:[#allocation4 + $0x1b0] sm:$0xff]
  %v2330 = vld [vmem:[#allocation4 + $0x1b8] sm:$0xff]
  %v2331 = vld [vmem:[#allocation4 + $0x1c0] sm:$0xff]
  %v2332 = vld [vmem:[#allocation4 + $0x1c8] sm:$0xff]
  %v2333 = vld [vmem:[#allocation4 + $0x1d0] sm:$0xff]
  %v2334 = vld [vmem:[#allocation4 + $0x1d8] sm:$0xff]
  %v2335 = vld [vmem:[#allocation4 + $0x1e0] sm:$0xff]
  %v2336 = vld [vmem:[#allocation4 + $0x1e8] sm:$0xff]
  %v2337 = vld [vmem:[#allocation4 + $0x1f0] sm:$0xff]
  %v2338 = vld [vmem:[#allocation4 + $0x1f8] sm:$0xff]
  %v2339 = vld [vmem:[#allocation4 + $0x200] sm:$0xff]
  %v2340 = vld [vmem:[#allocation4 + $0x208] sm:$0xff]
  %v2341 = vld [vmem:[#allocation4 + $0x210] sm:$0xff]
  %v2342 = vld [vmem:[#allocation4 + $0x218] sm:$0xff]
  %v2343 = vld [vmem:[#allocation4 + $0x220] sm:$0xff]
  %v2344 = vld [vmem:[#allocation4 + $0x228] sm:$0xff]
  %v2345 = vld [vmem:[#allocation4 + $0x230] sm:$0xff]
  %v2346 = vld [vmem:[#allocation4 + $0x238] sm:$0xff]
  %v2347 = vld [vmem:[#allocation4 + $0x240] sm:$0xff]
  %v2348 = vld [vmem:[#allocation4 + $0x248] sm:$0xff]
  %v2349 = vld [vmem:[#allocation4 + $0x250] sm:$0xff]
  %v2350 = vld [vmem:[#allocation4 + $0x258] sm:$0xff]
  %v2351 = vld [vmem:[#allocation4 + $0x260] sm:$0xff]
  %v2352 = vld [vmem:[#allocation4 + $0x268] sm:$0xff]
  %v2353 = vld [vmem:[#allocation4 + $0x270] sm:$0xff]
  %v2354 = vld [vmem:[#allocation4 + $0x278] sm:$0xff]
  %v2355 = vld [vmem:[%s2] sm:$0xff]
  %v2356 = vld [vmem:[%s2 + $0x8] sm:$0xff]
  %v2357 = vld [vmem:[%s2 + $0x10] sm:$0xff]
  %v2358 = vld [vmem:[%s2 + $0x18] sm:$0xff]
  %v2359 = vld [vmem:[%s2 + $0x20] sm:$0xff]
  %v2360 = vld [vmem:[%s2 + $0x28] sm:$0xff]
  %v2361 = vld [vmem:[%s2 + $0x30] sm:$0xff]
  %v2362 = vld [vmem:[%s2 + $0x38] sm:$0xff]
  %v2363 = vld [vmem:[%s2 + $0x40] sm:$0xff]
  %v2364 = vld [vmem:[%s2 + $0x48] sm:$0xff]
  %v2365 = vld [vmem:[%s2 + $0x50] sm:$0xff]
  %v2366 = vld [vmem:[%s2 + $0x58] sm:$0xff]
  %v2367 = vld [vmem:[%s2 + $0x60] sm:$0xff]
  %v2368 = vld [vmem:[%s2 + $0x68] sm:$0xff]
  %v2369 = vld [vmem:[%s2 + $0x70] sm:$0xff]
  %v2370 = vld [vmem:[%s2 + $0x78] sm:$0xff]
  %v2371 = vld [vmem:[%s2 + $0x80] sm:$0xff]
  %v2372 = vld [vmem:[%s2 + $0x88] sm:$0xff]
  %v2373 = vld [vmem:[%s2 + $0x90] sm:$0xff]
  %v2374 = vld [vmem:[%s2 + $0x98] sm:$0xff]
  %v2375 = vld [vmem:[%s2 + $0xa0] sm:$0xff]
  %v2376 = vld [vmem:[%s2 + $0xa8] sm:$0xff]
  %v2377 = vld [vmem:[%s2 + $0xb0] sm:$0xff]
  %v2378 = vld [vmem:[%s2 + $0xb8] sm:$0xff]
  %v2379 = vld [vmem:[%s2 + $0xc0] sm:$0xff]
  %v2380 = vld [vmem:[%s2 + $0xc8] sm:$0xff]
  %v2381 = vld [vmem:[%s2 + $0xd0] sm:$0xff]
  %v2382 = vld [vmem:[%s2 + $0xd8] sm:$0xff]
  %v2383 = vld [vmem:[%s2 + $0xe0] sm:$0xff]
  %v2384 = vld [vmem:[%s2 + $0xe8] sm:$0xff]
  %v2385 = vld [vmem:[%s2 + $0xf0] sm:$0xff]
  %v2386 = vld [vmem:[%s2 + $0xf8] sm:$0xff]
  %v2387 = vld [vmem:[%s2 + $0x100] sm:$0xff]
  %v2388 = vld [vmem:[%s2 + $0x108] sm:$0xff]
  %v2389 = vld [vmem:[%s2 + $0x110] sm:$0xff]
  %v2390 = vld [vmem:[%s2 + $0x118] sm:$0xff]
  %v2391 = vld [vmem:[%s2 + $0x120] sm:$0xff]
  %v2392 = vld [vmem:[%s2 + $0x128] sm:$0xff]
  %v2393 = vld [vmem:[%s2 + $0x130] sm:$0xff]
  %v2394 = vld [vmem:[%s2 + $0x138] sm:$0xff]
  %v2395 = vld [vmem:[%s2 + $0x140] sm:$0xff]
  %v2396 = vld [vmem:[%s2 + $0x148] sm:$0xff]
  %v2397 = vld [vmem:[%s2 + $0x150] sm:$0xff]
  %v2398 = vld [vmem:[%s2 + $0x158] sm:$0xff]
  %v2399 = vld [vmem:[%s2 + $0x160] sm:$0xff]
  %v2400 = vld [vmem:[%s2 + $0x168] sm:$0xff]
  %v2401 = vld [vmem:[%s2 + $0x170] sm:$0xff]
  %v2402 = vld [vmem:[%s2 + $0x178] sm:$0xff]
  %v2403 = vld [vmem:[%s2 + $0x180] sm:$0xff]
  %v2404 = vld [vmem:[%s2 + $0x188] sm:$0xff]
  %v2405 = vld [vmem:[%s2 + $0x190] sm:$0xff]
  %v2406 = vld [vmem:[%s2 + $0x198] sm:$0xff]
  %v2407 = vld [vmem:[%s2 + $0x1a0] sm:$0xff]
  %v2408 = vld [vmem:[%s2 + $0x1a8] sm:$0xff]
  %v2409 = vld [vmem:[%s2 + $0x1b0] sm:$0xff]
  %v2410 = vld [vmem:[%s2 + $0x1b8] sm:$0xff]
  %v2411 = vld [vmem:[%s2 + $0x1c0] sm:$0xff]
  %v2412 = vld [vmem:[%s2 + $0x1c8] sm:$0xff]
  %v2413 = vld [vmem:[%s2 + $0x1d0] sm:$0xff]
  %v2414 = vld [vmem:[%s2 + $0x1d8] sm:$0xff]
  %v2415 = vld [vmem:[%s2 + $0x1e0] sm:$0xff]
  %v2416 = vld [vmem:[%s2 + $0x1e8] sm:$0xff]
  %v2417 = vld [vmem:[%s2 + $0x1f0] sm:$0xff]
  %v2418 = vld [vmem:[%s2 + $0x1f8] sm:$0xff]
  %v2419 = vld [vmem:[%s2 + $0x200] sm:$0xff]
  %v2420 = vld [vmem:[%s2 + $0x208] sm:$0xff]
  %v2421 = vld [vmem:[%s2 + $0x210] sm:$0xff]
  %v2422 = vld [vmem:[%s2 + $0x218] sm:$0xff]
  %v2423 = vld [vmem:[%s2 + $0x220] sm:$0xff]
  %v2424 = vld [vmem:[%s2 + $0x228] sm:$0xff]
  %v2425 = vld [vmem:[%s2 + $0x230] sm:$0xff]
  %v2426 = vld [vmem:[%s2 + $0x238] sm:$0xff]
  %v2428 = vsel %vm23, %v2279, 0
  %v2431 = vsel %vm23, %v2284, 0
  %v2434 = vsel %vm23, %v2289, 0
  %v2437 = vsel %vm23, %v2294, 0
  %v2440 = vsel %vm23, %v2299, 0
  %v2443 = vsel %vm23, %v2304, 0
  %v2446 = vsel %vm23, %v2309, 0
  %v2449 = vsel %vm23, %v2314, 0
  %v2452 = vsel %vm23, %v2319, 0
  %v2455 = vsel %vm23, %v2324, 0
  %v2458 = vsel %vm23, %v2329, 0
  %v2461 = vsel %vm23, %v2334, 0
  %v2464 = vsel %vm23, %v2339, 0
  %v2467 = vsel %vm23, %v2344, 0
  %v2470 = vsel %vm23, %v2349, 0
  %v2473 = vsel %vm23, %v2354, 0
  %2475 = vmatprep.subr.mxu0 0.0
  %2476 = vmatpush1.msra.mxu0 %v2370
  %2477 = vmatprep.subr.mxu0 0.0
  %2478 = vmatpush1.msra.mxu0 %v2369
  %2479 = vmatprep.subr.mxu0 0.0
  %2480 = vmatpush1.msra.mxu0 %v2368
  %2481 = vmatprep.subr.mxu0 0.0
  %2482 = vmatpush1.msra.mxu0 %v2367
  %2483 = vmatprep.subr.mxu0 0.0
  %2484 = vmatpush1.msra.mxu0 %v2366
  %2485 = vmatprep.subr.mxu0 0.0
  %2486 = vmatpush1.msra.mxu0 %v2365
  %2487 = vmatprep.subr.mxu0 0.0
  %2488 = vmatpush1.msra.mxu0 %v2364
  %2489 = vmatprep.subr.mxu0 0.0
  %2490 = vmatpush1.msra.mxu0 %v2363
  %2491 = vmatprep.subr.mxu0 0.0
  %2492 = vmatpush1.msra.mxu0 %v2362
  %2493 = vmatprep.subr.mxu0 0.0
  %2494 = vmatpush1.msra.mxu0 %v2361
  %2495 = vmatprep.subr.mxu0 0.0
  %2496 = vmatpush1.msra.mxu0 %v2360
  %2497 = vmatprep.subr.mxu0 0.0
  %2498 = vmatpush1.msra.mxu0 %v2359
  %2499 = vmatprep.subr.mxu0 0.0
  %2500 = vmatpush1.msra.mxu0 %v2358
  %2501 = vmatprep.subr.mxu0 0.0
  %2502 = vmatpush1.msra.mxu0 %v2357
  %2503 = vmatprep.subr.mxu0 0.0
  %2504 = vmatpush1.msra.mxu0 %v2356
  %2505 = vmatprep.subr.mxu0 0.0
  %2506 = vmatpush1.msra.mxu0 %v2355
  %2507 = vmatprep.subr.mxu0 0.0
  %2508 = vmatpush2.msra.mxu0 %v2386
  %2509 = vmatprep.subr.mxu0 0.0
  %2510 = vmatpush2.msra.mxu0 %v2385
  %2511 = vmatprep.subr.mxu0 0.0
  %2512 = vmatpush2.msra.mxu0 %v2384
  %2513 = vmatprep.subr.mxu0 0.0
  %2514 = vmatpush2.msra.mxu0 %v2383
  %2515 = vmatprep.subr.mxu0 0.0
  %2516 = vmatpush2.msra.mxu0 %v2382
  %2517 = vmatprep.subr.mxu0 0.0
  %2518 = vmatpush2.msra.mxu0 %v2381
  %2519 = vmatprep.subr.mxu0 0.0
  %2520 = vmatpush2.msra.mxu0 %v2380
  %2521 = vmatprep.subr.mxu0 0.0
  %2522 = vmatpush2.msra.mxu0 %v2379
  %2523 = vmatprep.subr.mxu0 0.0
  %2524 = vmatpush2.msra.mxu0 %v2378
  %2525 = vmatprep.subr.mxu0 0.0
  %2526 = vmatpush2.msra.mxu0 %v2377
  %2527 = vmatprep.subr.mxu0 0.0
  %2528 = vmatpush2.msra.mxu0 %v2376
  %2529 = vmatprep.subr.mxu0 0.0
  %2530 = vmatpush2.msra.mxu0 %v2375
  %2531 = vmatprep.subr.mxu0 0.0
  %2532 = vmatpush2.msra.mxu0 %v2374
  %2533 = vmatprep.subr.mxu0 0.0
  %2534 = vmatpush2.msra.mxu0 %v2373
  %2535 = vmatprep.subr.mxu0 0.0
  %2536 = vmatpush2.msra.mxu0 %v2372
  %2537 = vmatprep.subr.mxu0 0.0
  %2538 = vmatpush2.msra.mxu0 %v2371
  %2539 = vmatprep.mubr.f32.mxu0 %v2276
  %2540 = vmatmul.mubr.f32.gmra.mxu0 %v2275
  %v2541 = vpop.f32.mrf.mxu0
  %v2542 = vadd.f32 0.0, %v2541
  %v2543 = vpop.f32.mrf.mxu0
  %2544 = vmatprep.mubr.f32.mxu0 %v2281
  %2545 = vmatmul.mubr.f32.gmra.mxu0 %v2280
  %v2546 = vpop.f32.mrf.mxu0
  %v2547 = vadd.f32 0.0, %v2546
  %v2548 = vpop.f32.mrf.mxu0
  %2549 = vmatprep.mubr.f32.mxu0 %v2286
  %2550 = vmatmul.mubr.f32.gmra.mxu0 %v2285
  %v2551 = vpop.f32.mrf.mxu0
  %v2552 = vadd.f32 0.0, %v2551
  %v2553 = vpop.f32.mrf.mxu0
  %2554 = vmatprep.mubr.f32.mxu0 %v2291
  %2555 = vmatmul.mubr.f32.gmra.mxu0 %v2290
  %v2556 = vpop.f32.mrf.mxu0
  %v2557 = vadd.f32 0.0, %v2556
  %v2558 = vpop.f32.mrf.mxu0
  %2559 = vmatprep.mubr.f32.mxu0 %v2296
  %2560 = vmatmul.mubr.f32.gmra.mxu0 %v2295
  %v2561 = vpop.f32.mrf.mxu0
  %v2562 = vadd.f32 0.0, %v2561
  %v2563 = vpop.f32.mrf.mxu0
  %2564 = vmatprep.mubr.f32.mxu0 %v2301
  %2565 = vmatmul.mubr.f32.gmra.mxu0 %v2300
  %v2566 = vpop.f32.mrf.mxu0
  %v2567 = vadd.f32 0.0, %v2566
  %v2568 = vpop.f32.mrf.mxu0
  %2569 = vmatprep.mubr.f32.mxu0 %v2306
  %2570 = vmatmul.mubr.f32.gmra.mxu0 %v2305
  %v2571 = vpop.f32.mrf.mxu0
  %v2572 = vadd.f32 0.0, %v2571
  %v2573 = vpop.f32.mrf.mxu0
  %2574 = vmatprep.mubr.f32.mxu0 %v2311
  %2575 = vmatmul.mubr.f32.gmra.mxu0 %v2310
  %v2576 = vpop.f32.mrf.mxu0
  %v2577 = vadd.f32 0.0, %v2576
  %v2578 = vpop.f32.mrf.mxu0
  %2579 = vmatprep.mubr.f32.mxu0 %v2316
  %2580 = vmatmul.mubr.f32.gmra.mxu0 %v2315
  %v2581 = vpop.f32.mrf.mxu0
  %v2582 = vadd.f32 0.0, %v2581
  %v2583 = vpop.f32.mrf.mxu0
  %2584 = vmatprep.mubr.f32.mxu0 %v2321
  %2585 = vmatmul.mubr.f32.gmra.mxu0 %v2320
  %v2586 = vpop.f32.mrf.mxu0
  %v2587 = vadd.f32 0.0, %v2586
  %v2588 = vpop.f32.mrf.mxu0
  %2589 = vmatprep.mubr.f32.mxu0 %v2326
  %2590 = vmatmul.mubr.f32.gmra.mxu0 %v2325
  %v2591 = vpop.f32.mrf.mxu0
  %v2592 = vadd.f32 0.0, %v2591
  %v2593 = vpop.f32.mrf.mxu0
  %2594 = vmatprep.mubr.f32.mxu0 %v2331
  %2595 = vmatmul.mubr.f32.gmra.mxu0 %v2330
  %v2596 = vpop.f32.mrf.mxu0
  %v2597 = vadd.f32 0.0, %v2596
  %v2598 = vpop.f32.mrf.mxu0
  %2599 = vmatprep.mubr.f32.mxu0 %v2336
  %2600 = vmatmul.mubr.f32.gmra.mxu0 %v2335
  %v2601 = vpop.f32.mrf.mxu0
  %v2602 = vadd.f32 0.0, %v2601
  %v2603 = vpop.f32.mrf.mxu0
  %2604 = vmatprep.mubr.f32.mxu0 %v2341
  %2605 = vmatmul.mubr.f32.gmra.mxu0 %v2340
  %v2606 = vpop.f32.mrf.mxu0
  %v2607 = vadd.f32 0.0, %v2606
  %v2608 = vpop.f32.mrf.mxu0
  %2609 = vmatprep.mubr.f32.mxu0 %v2346
  %2610 = vmatmul.mubr.f32.gmra.mxu0 %v2345
  %v2611 = vpop.f32.mrf.mxu0
  %v2612 = vadd.f32 0.0, %v2611
  %v2613 = vpop.f32.mrf.mxu0
  %2614 = vmatprep.mubr.f32.mxu0 %v2351
  %2615 = vmatmul.mubr.f32.gmra.mxu0 %v2350
  %v2616 = vpop.f32.mrf.mxu0
  %v2617 = vadd.f32 0.0, %v2616
  %v2618 = vpop.f32.mrf.mxu0
  %2619 = vdwg.mxu0
  %2620 = vmatprep.subr.mxu0 0.0
  %2621 = vmatpush1.msra.mxu0 %v2402
  %2622 = vmatprep.subr.mxu0 0.0
  %2623 = vmatpush1.msra.mxu0 %v2401
  %2624 = vmatprep.subr.mxu0 0.0
  %2625 = vmatpush1.msra.mxu0 %v2400
  %2626 = vmatprep.subr.mxu0 0.0
  %2627 = vmatpush1.msra.mxu0 %v2399
  %2628 = vmatprep.subr.mxu0 0.0
  %2629 = vmatpush1.msra.mxu0 %v2398
  %2630 = vmatprep.subr.mxu0 0.0
  %2631 = vmatpush1.msra.mxu0 %v2397
  %2632 = vmatprep.subr.mxu0 0.0
  %2633 = vmatpush1.msra.mxu0 %v2396
  %2634 = vmatprep.subr.mxu0 0.0
  %2635 = vmatpush1.msra.mxu0 %v2395
  %2636 = vmatprep.subr.mxu0 0.0
  %2637 = vmatpush1.msra.mxu0 %v2394
  %2638 = vmatprep.subr.mxu0 0.0
  %2639 = vmatpush1.msra.mxu0 %v2393
  %2640 = vmatprep.subr.mxu0 0.0
  %2641 = vmatpush1.msra.mxu0 %v2392
  %2642 = vmatprep.subr.mxu0 0.0
  %2643 = vmatpush1.msra.mxu0 %v2391
  %2644 = vmatprep.subr.mxu0 0.0
  %2645 = vmatpush1.msra.mxu0 %v2390
  %2646 = vmatprep.subr.mxu0 0.0
  %2647 = vmatpush1.msra.mxu0 %v2389
  %2648 = vmatprep.subr.mxu0 0.0
  %2649 = vmatpush1.msra.mxu0 %v2388
  %2650 = vmatprep.subr.mxu0 0.0
  %2651 = vmatpush1.msra.mxu0 %v2387
  %2652 = vmatprep.subr.mxu0 0.0
  %2653 = vmatpush2.msra.mxu0 %v2418
  %2654 = vmatprep.subr.mxu0 0.0
  %2655 = vmatpush2.msra.mxu0 %v2417
  %2656 = vmatprep.subr.mxu0 0.0
  %2657 = vmatpush2.msra.mxu0 %v2416
  %2658 = vmatprep.subr.mxu0 0.0
  %2659 = vmatpush2.msra.mxu0 %v2415
  %2660 = vmatprep.subr.mxu0 0.0
  %2661 = vmatpush2.msra.mxu0 %v2414
  %2662 = vmatprep.subr.mxu0 0.0
  %2663 = vmatpush2.msra.mxu0 %v2413
  %2664 = vmatprep.subr.mxu0 0.0
  %2665 = vmatpush2.msra.mxu0 %v2412
  %2666 = vmatprep.subr.mxu0 0.0
  %2667 = vmatpush2.msra.mxu0 %v2411
  %2668 = vmatprep.subr.mxu0 0.0
  %2669 = vmatpush2.msra.mxu0 %v2410
  %2670 = vmatprep.subr.mxu0 0.0
  %2671 = vmatpush2.msra.mxu0 %v2409
  %2672 = vmatprep.subr.mxu0 0.0
  %2673 = vmatpush2.msra.mxu0 %v2408
  %2674 = vmatprep.subr.mxu0 0.0
  %2675 = vmatpush2.msra.mxu0 %v2407
  %2676 = vmatprep.subr.mxu0 0.0
  %2677 = vmatpush2.msra.mxu0 %v2406
  %2678 = vmatprep.subr.mxu0 0.0
  %2679 = vmatpush2.msra.mxu0 %v2405
  %2680 = vmatprep.subr.mxu0 0.0
  %2681 = vmatpush2.msra.mxu0 %v2404
  %2682 = vmatprep.subr.mxu0 0.0
  %2683 = vmatpush2.msra.mxu0 %v2403
  %2684 = vmatprep.mubr.f32.mxu0 %v2278
  %2685 = vmatmul.mubr.f32.gmra.mxu0 %v2277
  %v2686 = vpop.f32.mrf.mxu0
  %v2687 = vadd.f32 %v2542, %v2686
  %v2688 = vpop.f32.mrf.mxu0
  %2689 = vmatprep.mubr.f32.mxu0 %v2283
  %2690 = vmatmul.mubr.f32.gmra.mxu0 %v2282
  %v2691 = vpop.f32.mrf.mxu0
  %v2692 = vadd.f32 %v2547, %v2691
  %v2693 = vpop.f32.mrf.mxu0
  %2694 = vmatprep.mubr.f32.mxu0 %v2288
  %2695 = vmatmul.mubr.f32.gmra.mxu0 %v2287
  %v2696 = vpop.f32.mrf.mxu0
  %v2697 = vadd.f32 %v2552, %v2696
  %v2698 = vpop.f32.mrf.mxu0
  %2699 = vmatprep.mubr.f32.mxu0 %v2293
  %2700 = vmatmul.mubr.f32.gmra.mxu0 %v2292
  %v2701 = vpop.f32.mrf.mxu0
  %v2702 = vadd.f32 %v2557, %v2701
  %v2703 = vpop.f32.mrf.mxu0
  %2704 = vmatprep.mubr.f32.mxu0 %v2298
  %2705 = vmatmul.mubr.f32.gmra.mxu0 %v2297
  %v2706 = vpop.f32.mrf.mxu0
  %v2707 = vadd.f32 %v2562, %v2706
  %v2708 = vpop.f32.mrf.mxu0
  %2709 = vmatprep.mubr.f32.mxu0 %v2303
  %2710 = vmatmul.mubr.f32.gmra.mxu0 %v2302
  %v2711 = vpop.f32.mrf.mxu0
  %v2712 = vadd.f32 %v2567, %v2711
  %v2713 = vpop.f32.mrf.mxu0
  %2714 = vmatprep.mubr.f32.mxu0 %v2308
  %2715 = vmatmul.mubr.f32.gmra.mxu0 %v2307
  %v2716 = vpop.f32.mrf.mxu0
  %v2717 = vadd.f32 %v2572, %v2716
  %v2718 = vpop.f32.mrf.mxu0
  %2719 = vmatprep.mubr.f32.mxu0 %v2313
  %2720 = vmatmul.mubr.f32.gmra.mxu0 %v2312
  %v2721 = vpop.f32.mrf.mxu0
  %v2722 = vadd.f32 %v2577, %v2721
  %v2723 = vpop.f32.mrf.mxu0
  %2724 = vmatprep.mubr.f32.mxu0 %v2318
  %2725 = vmatmul.mubr.f32.gmra.mxu0 %v2317
  %v2726 = vpop.f32.mrf.mxu0
  %v2727 = vadd.f32 %v2582, %v2726
  %v2728 = vpop.f32.mrf.mxu0
  %2729 = vmatprep.mubr.f32.mxu0 %v2323
  %2730 = vmatmul.mubr.f32.gmra.mxu0 %v2322
  %v2731 = vpop.f32.mrf.mxu0
  %v2732 = vadd.f32 %v2587, %v2731
  %v2733 = vpop.f32.mrf.mxu0
  %2734 = vmatprep.mubr.f32.mxu0 %v2328
  %2735 = vmatmul.mubr.f32.gmra.mxu0 %v2327
  %v2736 = vpop.f32.mrf.mxu0
  %v2737 = vadd.f32 %v2592, %v2736
  %v2738 = vpop.f32.mrf.mxu0
  %2739 = vmatprep.mubr.f32.mxu0 %v2333
  %2740 = vmatmul.mubr.f32.gmra.mxu0 %v2332
  %v2741 = vpop.f32.mrf.mxu0
  %v2742 = vadd.f32 %v2597, %v2741
  %v2743 = vpop.f32.mrf.mxu0
  %2744 = vmatprep.mubr.f32.mxu0 %v2338
  %2745 = vmatmul.mubr.f32.gmra.mxu0 %v2337
  %v2746 = vpop.f32.mrf.mxu0
  %v2747 = vadd.f32 %v2602, %v2746
  %v2748 = vpop.f32.mrf.mxu0
  %2749 = vmatprep.mubr.f32.mxu0 %v2343
  %2750 = vmatmul.mubr.f32.gmra.mxu0 %v2342
  %v2751 = vpop.f32.mrf.mxu0
  %v2752 = vadd.f32 %v2607, %v2751
  %v2753 = vpop.f32.mrf.mxu0
  %2754 = vmatprep.mubr.f32.mxu0 %v2348
  %2755 = vmatmul.mubr.f32.gmra.mxu0 %v2347
  %v2756 = vpop.f32.mrf.mxu0
  %v2757 = vadd.f32 %v2612, %v2756
  %v2758 = vpop.f32.mrf.mxu0
  %2759 = vmatprep.mubr.f32.mxu0 %v2353
  %2760 = vmatmul.mubr.f32.gmra.mxu0 %v2352
  %v2761 = vpop.f32.mrf.mxu0
  %v2762 = vadd.f32 %v2617, %v2761
  %v2763 = vpop.f32.mrf.mxu0
  %2764 = vdwg.mxu0
  %2765 = vmatprep.subr.mxu0 0.0
  %2766 = vmatpush1.msra.mxu0 0.0
  %2767 = vmatprep.subr.mxu0 0.0
  %2768 = vmatpush1.msra.mxu0 0.0
  %2769 = vmatprep.subr.mxu0 0.0
  %2770 = vmatpush1.msra.mxu0 0.0
  %2771 = vmatprep.subr.mxu0 0.0
  %2772 = vmatpush1.msra.mxu0 0.0
  %2773 = vmatprep.subr.mxu0 0.0
  %2774 = vmatpush1.msra.mxu0 0.0
  %2775 = vmatprep.subr.mxu0 0.0
  %2776 = vmatpush1.msra.mxu0 0.0
  %2777 = vmatprep.subr.mxu0 0.0
  %2778 = vmatpush1.msra.mxu0 0.0
  %2779 = vmatprep.subr.mxu0 0.0
  %2780 = vmatpush1.msra.mxu0 0.0
  %2781 = vmatprep.subr.mxu0 0.0
  %2782 = vmatpush1.msra.mxu0 %v2426
  %2783 = vmatprep.subr.mxu0 0.0
  %2784 = vmatpush1.msra.mxu0 %v2425
  %2785 = vmatprep.subr.mxu0 0.0
  %2786 = vmatpush1.msra.mxu0 %v2424
  %2787 = vmatprep.subr.mxu0 0.0
  %2788 = vmatpush1.msra.mxu0 %v2423
  %2789 = vmatprep.subr.mxu0 0.0
  %2790 = vmatpush1.msra.mxu0 %v2422
  %2791 = vmatprep.subr.mxu0 0.0
  %2792 = vmatpush1.msra.mxu0 %v2421
  %2793 = vmatprep.subr.mxu0 0.0
  %2794 = vmatpush1.msra.mxu0 %v2420
  %2795 = vmatprep.subr.mxu0 0.0
  %2796 = vmatpush1.msra.mxu0 %v2419
  %2797 = vmatprep.subr.mxu0 0.0
  %2798 = vmatpush2.msra.mxu0 0.0
  %2799 = vmatprep.subr.mxu0 0.0
  %2800 = vmatpush2.msra.mxu0 0.0
  %2801 = vmatprep.subr.mxu0 0.0
  %2802 = vmatpush2.msra.mxu0 0.0
  %2803 = vmatprep.subr.mxu0 0.0
  %2804 = vmatpush2.msra.mxu0 0.0
  %2805 = vmatprep.subr.mxu0 0.0
  %2806 = vmatpush2.msra.mxu0 0.0
  %2807 = vmatprep.subr.mxu0 0.0
  %2808 = vmatpush2.msra.mxu0 0.0
  %2809 = vmatprep.subr.mxu0 0.0
  %2810 = vmatpush2.msra.mxu0 0.0
  %2811 = vmatprep.subr.mxu0 0.0
  %2812 = vmatpush2.msra.mxu0 0.0
  %2813 = vmatprep.subr.mxu0 0.0
  %2814 = vmatpush2.msra.mxu0 0.0
  %2815 = vmatprep.subr.mxu0 0.0
  %2816 = vmatpush2.msra.mxu0 0.0
  %2817 = vmatprep.subr.mxu0 0.0
  %2818 = vmatpush2.msra.mxu0 0.0
  %2819 = vmatprep.subr.mxu0 0.0
  %2820 = vmatpush2.msra.mxu0 0.0
  %2821 = vmatprep.subr.mxu0 0.0
  %2822 = vmatpush2.msra.mxu0 0.0
  %2823 = vmatprep.subr.mxu0 0.0
  %2824 = vmatpush2.msra.mxu0 0.0
  %2825 = vmatprep.subr.mxu0 0.0
  %2826 = vmatpush2.msra.mxu0 0.0
  %2827 = vmatprep.subr.mxu0 0.0
  %2828 = vmatpush2.msra.mxu0 0.0
  %2829 = vmatprep.mubr.f32.mxu0 0.0
  %2830 = vmatmul.mubr.f32.gmra.mxu0 %v2428
  %v2831 = vpop.f32.mrf.mxu0
  %v2832 = vadd.f32 %v2687, %v2831
  %v2833 = vpop.f32.mrf.mxu0
  %2834 = vmatprep.mubr.f32.mxu0 0.0
  %2835 = vmatmul.mubr.f32.gmra.mxu0 %v2431
  %v2836 = vpop.f32.mrf.mxu0
  %v2837 = vadd.f32 %v2692, %v2836
  %v2838 = vpop.f32.mrf.mxu0
  %2839 = vmatprep.mubr.f32.mxu0 0.0
  %2840 = vmatmul.mubr.f32.gmra.mxu0 %v2434
  %v2841 = vpop.f32.mrf.mxu0
  %v2842 = vadd.f32 %v2697, %v2841
  %v2843 = vpop.f32.mrf.mxu0
  %2844 = vmatprep.mubr.f32.mxu0 0.0
  %2845 = vmatmul.mubr.f32.gmra.mxu0 %v2437
  %v2846 = vpop.f32.mrf.mxu0
  %v2847 = vadd.f32 %v2702, %v2846
  %v2848 = vpop.f32.mrf.mxu0
  %2849 = vmatprep.mubr.f32.mxu0 0.0
  %2850 = vmatmul.mubr.f32.gmra.mxu0 %v2440
  %v2851 = vpop.f32.mrf.mxu0
  %v2852 = vadd.f32 %v2707, %v2851
  %v2853 = vpop.f32.mrf.mxu0
  %2854 = vmatprep.mubr.f32.mxu0 0.0
  %2855 = vmatmul.mubr.f32.gmra.mxu0 %v2443
  %v2856 = vpop.f32.mrf.mxu0
  %v2857 = vadd.f32 %v2712, %v2856
  %v2858 = vpop.f32.mrf.mxu0
  %2859 = vmatprep.mubr.f32.mxu0 0.0
  %2860 = vmatmul.mubr.f32.gmra.mxu0 %v2446
  %v2861 = vpop.f32.mrf.mxu0
  %v2862 = vadd.f32 %v2717, %v2861
  %v2863 = vpop.f32.mrf.mxu0
  %2864 = vmatprep.mubr.f32.mxu0 0.0
  %2865 = vmatmul.mubr.f32.gmra.mxu0 %v2449
  %v2866 = vpop.f32.mrf.mxu0
  %v2867 = vadd.f32 %v2722, %v2866
  %v2868 = vpop.f32.mrf.mxu0
  %2869 = vmatprep.mubr.f32.mxu0 0.0
  %2870 = vmatmul.mubr.f32.gmra.mxu0 %v2452
  %v2871 = vpop.f32.mrf.mxu0
  %v2872 = vadd.f32 %v2727, %v2871
  %v2873 = vpop.f32.mrf.mxu0
  %2874 = vmatprep.mubr.f32.mxu0 0.0
  %2875 = vmatmul.mubr.f32.gmra.mxu0 %v2455
  %v2876 = vpop.f32.mrf.mxu0
  %v2877 = vadd.f32 %v2732, %v2876
  %v2878 = vpop.f32.mrf.mxu0
  %2879 = vmatprep.mubr.f32.mxu0 0.0
  %2880 = vmatmul.mubr.f32.gmra.mxu0 %v2458
  %v2881 = vpop.f32.mrf.mxu0
  %v2882 = vadd.f32 %v2737, %v2881
  %v2883 = vpop.f32.mrf.mxu0
  %2884 = vmatprep.mubr.f32.mxu0 0.0
  %2885 = vmatmul.mubr.f32.gmra.mxu0 %v2461
  %v2886 = vpop.f32.mrf.mxu0
  %v2887 = vadd.f32 %v2742, %v2886
  %v2888 = vpop.f32.mrf.mxu0
  %2889 = vmatprep.mubr.f32.mxu0 0.0
  %2890 = vmatmul.mubr.f32.gmra.mxu0 %v2464
  %v2891 = vpop.f32.mrf.mxu0
  %v2892 = vadd.f32 %v2747, %v2891
  %v2893 = vpop.f32.mrf.mxu0
  %2894 = vmatprep.mubr.f32.mxu0 0.0
  %2895 = vmatmul.mubr.f32.gmra.mxu0 %v2467
  %v2896 = vpop.f32.mrf.mxu0
  %v2897 = vadd.f32 %v2752, %v2896
  %v2898 = vpop.f32.mrf.mxu0
  %2899 = vmatprep.mubr.f32.mxu0 0.0
  %2900 = vmatmul.mubr.f32.gmra.mxu0 %v2470
  %v2901 = vpop.f32.mrf.mxu0
  %v2902 = vadd.f32 %v2757, %v2901
  %v2903 = vpop.f32.mrf.mxu0
  %2904 = vmatprep.mubr.f32.mxu0 0.0
  %2905 = vmatmul.mubr.f32.gmra.mxu0 %v2473
  %v2906 = vpop.f32.mrf.mxu0
  %v2907 = vadd.f32 %v2762, %v2906
  %v2908 = vpop.f32.mrf.mxu0
  %2909 = vdwg.mxu0
  %2910 = vst.msk [vmem:[#allocation5] sm:$0xff] %vm23, %v2832
  %2911 = vst.msk [vmem:[#allocation5 + $0x8] sm:$0xff] %vm23, %v2837
  %2912 = vst.msk [vmem:[#allocation5 + $0x10] sm:$0xff] %vm23, %v2842
  %2913 = vst.msk [vmem:[#allocation5 + $0x18] sm:$0xff] %vm23, %v2847
  %2914 = vst.msk [vmem:[#allocation5 + $0x20] sm:$0xff] %vm23, %v2852
  %2915 = vst.msk [vmem:[#allocation5 + $0x28] sm:$0xff] %vm23, %v2857
  %2916 = vst.msk [vmem:[#allocation5 + $0x30] sm:$0xff] %vm23, %v2862
  %2917 = vst.msk [vmem:[#allocation5 + $0x38] sm:$0xff] %vm23, %v2867
  %2918 = vst.msk [vmem:[#allocation5 + $0x40] sm:$0xff] %vm23, %v2872
  %2919 = vst.msk [vmem:[#allocation5 + $0x48] sm:$0xff] %vm23, %v2877
  %2920 = vst.msk [vmem:[#allocation5 + $0x50] sm:$0xff] %vm23, %v2882
  %2921 = vst.msk [vmem:[#allocation5 + $0x58] sm:$0xff] %vm23, %v2887
  %2922 = vst.msk [vmem:[#allocation5 + $0x60] sm:$0xff] %vm23, %v2892
  %2923 = vst.msk [vmem:[#allocation5 + $0x68] sm:$0xff] %vm23, %v2897
  %2924 = vst.msk [vmem:[#allocation5 + $0x70] sm:$0xff] %vm23, %v2902
  %2925 = vst.msk [vmem:[#allocation5 + $0x78] sm:$0xff] %vm23, %v2907
  %v2926 = vld [vmem:[#allocation5] sm:$0xff]
  %v2927 = vld [vmem:[#allocation5 + $0x8] sm:$0xff]
  %v2928 = vld [vmem:[#allocation5 + $0x10] sm:$0xff]
  %v2929 = vld [vmem:[#allocation5 + $0x18] sm:$0xff]
  %v2930 = vld [vmem:[#allocation5 + $0x20] sm:$0xff]
  %v2931 = vld [vmem:[#allocation5 + $0x28] sm:$0xff]
  %v2932 = vld [vmem:[#allocation5 + $0x30] sm:$0xff]
  %v2933 = vld [vmem:[#allocation5 + $0x38] sm:$0xff]
  %v2934 = vld [vmem:[#allocation5 + $0x40] sm:$0xff]
  %v2935 = vld [vmem:[#allocation5 + $0x48] sm:$0xff]
  %v2936 = vld [vmem:[#allocation5 + $0x50] sm:$0xff]
  %v2937 = vld [vmem:[#allocation5 + $0x58] sm:$0xff]
  %v2938 = vld [vmem:[#allocation5 + $0x60] sm:$0xff]
  %v2939 = vld [vmem:[#allocation5 + $0x68] sm:$0xff]
  %v2940 = vld [vmem:[#allocation5 + $0x70] sm:$0xff]
  %v2941 = vld [vmem:[#allocation5 + $0x78] sm:$0xff]
  %v2942 = vand.u32 %v752, 7
  %v2943 = vand.u32 %v753, 7
  %v2944 = vand.u32 %v754, 7
  %v2945 = vand.u32 %v755, 7
  %v2946 = vand.u32 %v756, 7
  %v2947 = vand.u32 %v757, 7
  %v2948 = vand.u32 %v758, 7
  %v2949 = vand.u32 %v759, 7
  %v2950 = vand.u32 %v760, 7
  %v2951 = vand.u32 %v761, 7
  %v2952 = vand.u32 %v762, 7
  %v2953 = vand.u32 %v763, 7
  %v2954 = vand.u32 %v764, 7
  %v2955 = vand.u32 %v765, 7
  %v2956 = vand.u32 %v766, 7
  %v2957 = vand.u32 %v767, 7
  %vm2958 = vcmp.lt.s32.totalorder %v2942, 5
  %vm2959 = vcmp.lt.s32.totalorder %v2943, 5
  %vm2960 = vcmp.lt.s32.totalorder %v2944, 5
  %vm2961 = vcmp.lt.s32.totalorder %v2945, 5
  %vm2962 = vcmp.lt.s32.totalorder %v2946, 5
  %vm2963 = vcmp.lt.s32.totalorder %v2947, 5
  %vm2964 = vcmp.lt.s32.totalorder %v2948, 5
  %vm2965 = vcmp.lt.s32.totalorder %v2949, 5
  %vm2966 = vcmp.lt.s32.totalorder %v2950, 5
  %vm2967 = vcmp.lt.s32.totalorder %v2951, 5
  %vm2968 = vcmp.lt.s32.totalorder %v2952, 5
  %vm2969 = vcmp.lt.s32.totalorder %v2953, 5
  %vm2970 = vcmp.lt.s32.totalorder %v2954, 5
  %vm2971 = vcmp.lt.s32.totalorder %v2955, 5
  %vm2972 = vcmp.lt.s32.totalorder %v2956, 5
  %vm2973 = vcmp.lt.s32.totalorder %v2957, 5
  %v2974 = vshra.s32 %v752, 3
  %v2975 = vshra.s32 %v753, 3
  %v2976 = vshra.s32 %v754, 3
  %v2977 = vshra.s32 %v755, 3
  %v2978 = vshra.s32 %v756, 3
  %v2979 = vshra.s32 %v757, 3
  %v2980 = vshra.s32 %v758, 3
  %v2981 = vshra.s32 %v759, 3
  %v2982 = vshra.s32 %v760, 3
  %v2983 = vshra.s32 %v761, 3
  %v2984 = vshra.s32 %v762, 3
  %v2985 = vshra.s32 %v763, 3
  %v2986 = vshra.s32 %v764, 3
  %v2987 = vshra.s32 %v765, 3
  %v2988 = vshra.s32 %v766, 3
  %v2989 = vshra.s32 %v767, 3
  %v2990 = vand.u32 %v2974, 7
  %v2991 = vand.u32 %v2975, 7
  %v2992 = vand.u32 %v2976, 7
  %v2993 = vand.u32 %v2977, 7
  %v2994 = vand.u32 %v2978, 7
  %v2995 = vand.u32 %v2979, 7
  %v2996 = vand.u32 %v2980, 7
  %v2997 = vand.u32 %v2981, 7
  %v2998 = vand.u32 %v2982, 7
  %v2999 = vand.u32 %v2983, 7
  %v3000 = vand.u32 %v2984, 7
  %v3001 = vand.u32 %v2985, 7
  %v3002 = vand.u32 %v2986, 7
  %v3003 = vand.u32 %v2987, 7
  %v3004 = vand.u32 %v2988, 7
  %v3005 = vand.u32 %v2989, 7
  %vm3006 = vcmp.lt.s32.totalorder %v2990, 5
  %vm3007 = vcmp.lt.s32.totalorder %v2991, 5
  %vm3008 = vcmp.lt.s32.totalorder %v2992, 5
  %vm3009 = vcmp.lt.s32.totalorder %v2993, 5
  %vm3010 = vcmp.lt.s32.totalorder %v2994, 5
  %vm3011 = vcmp.lt.s32.totalorder %v2995, 5
  %vm3012 = vcmp.lt.s32.totalorder %v2996, 5
  %vm3013 = vcmp.lt.s32.totalorder %v2997, 5
  %vm3014 = vcmp.lt.s32.totalorder %v2998, 5
  %vm3015 = vcmp.lt.s32.totalorder %v2999, 5
  %vm3016 = vcmp.lt.s32.totalorder %v3000, 5
  %vm3017 = vcmp.lt.s32.totalorder %v3001, 5
  %vm3018 = vcmp.lt.s32.totalorder %v3002, 5
  %vm3019 = vcmp.lt.s32.totalorder %v3003, 5
  %vm3020 = vcmp.lt.s32.totalorder %v3004, 5
  %vm3021 = vcmp.lt.s32.totalorder %v3005, 5
  %vm3022 = vmand %vm2958, %vm3006
  %vm3023 = vmand %vm2959, %vm3007
  %vm3024 = vmand %vm2960, %vm3008
  %vm3025 = vmand %vm2961, %vm3009
  %vm3026 = vmand %vm2962, %vm3010
  %vm3027 = vmand %vm2963, %vm3011
  %vm3028 = vmand %vm2964, %vm3012
  %vm3029 = vmand %vm2965, %vm3013
  %vm3030 = vmand %vm2966, %vm3014
  %vm3031 = vmand %vm2967, %vm3015
  %vm3032 = vmand %vm2968, %vm3016
  %vm3033 = vmand %vm2969, %vm3017
  %vm3034 = vmand %vm2970, %vm3018
  %vm3035 = vmand %vm2971, %vm3019
  %vm3036 = vmand %vm2972, %vm3020
  %vm3037 = vmand %vm2973, %vm3021
  %v3038 = vsel %vm3022, %v2926, 0.0
  %v3039 = vsel %vm3023, %v2927, 0.0
  %v3040 = vsel %vm3024, %v2928, 0.0
  %v3041 = vsel %vm3025, %v2929, 0.0
  %v3042 = vsel %vm3026, %v2930, 0.0
  %v3043 = vsel %vm3027, %v2931, 0.0
  %v3044 = vsel %vm3028, %v2932, 0.0
  %v3045 = vsel %vm3029, %v2933, 0.0
  %v3046 = vsel %vm3030, %v2934, 0.0
  %v3047 = vsel %vm3031, %v2935, 0.0
  %v3048 = vsel %vm3032, %v2936, 0.0
  %v3049 = vsel %vm3033, %v2937, 0.0
  %v3050 = vsel %vm3034, %v2938, 0.0
  %v3051 = vsel %vm3035, %v2939, 0.0
  %v3052 = vsel %vm3036, %v2940, 0.0
  %v3053 = vsel %vm3037, %v2941, 0.0
  %v3054 = vsel %vm23, %v3038, 0.0
  %v3055 = vsel %vm23, %v3039, 0.0
  %v3056 = vadd.f32 %v3054, %v3055
  %v3057 = vsel %vm23, %v3040, 0.0
  %v3058 = vadd.f32 %v3056, %v3057
  %v3059 = vsel %vm23, %v3041, 0.0
  %v3060 = vadd.f32 %v3058, %v3059
  %v3061 = vsel %vm23, %v3042, 0.0
  %v3062 = vadd.f32 %v3060, %v3061
  %v3063 = vsel %vm23, %v3043, 0.0
  %v3064 = vadd.f32 %v3062, %v3063
  %v3065 = vsel %vm23, %v3044, 0.0
  %v3066 = vadd.f32 %v3064, %v3065
  %v3067 = vsel %vm23, %v3045, 0.0
  %v3068 = vadd.f32 %v3066, %v3067
  %v3069 = vsel %vm23, %v3046, 0.0
  %v3070 = vadd.f32 %v3068, %v3069
  %v3071 = vsel %vm23, %v3047, 0.0
  %v3072 = vadd.f32 %v3070, %v3071
  %v3073 = vsel %vm23, %v3048, 0.0
  %v3074 = vadd.f32 %v3072, %v3073
  %v3075 = vsel %vm23, %v3049, 0.0
  %v3076 = vadd.f32 %v3074, %v3075
  %v3077 = vsel %vm23, %v3050, 0.0
  %v3078 = vadd.f32 %v3076, %v3077
  %v3079 = vsel %vm23, %v3051, 0.0
  %v3080 = vadd.f32 %v3078, %v3079
  %v3081 = vsel %vm23, %v3052, 0.0
  %v3082 = vadd.f32 %v3080, %v3081
  %v3083 = vsel %vm23, %v3053, 0.0
  %v3084 = vadd.f32 %v3082, %v3083
  %v3085 = vrot.slane %v3084, 4
  %v3086 = vadd.f32 %v3084, %v3085
  %v3087 = vrot.slane %v3086, 2
  %v3088 = vadd.f32 %v3086, %v3087
  %v3089 = vrot.slane %v3088, 1
  %v3090 = vadd.f32 %v3088, %v3089
  %v3091 = vmul.f32 %v3038, %v2926
  %v3092 = vmul.f32 %v3039, %v2927
  %v3093 = vmul.f32 %v3040, %v2928
  %v3094 = vmul.f32 %v3041, %v2929
  %v3095 = vmul.f32 %v3042, %v2930
  %v3096 = vmul.f32 %v3043, %v2931
  %v3097 = vmul.f32 %v3044, %v2932
  %v3098 = vmul.f32 %v3045, %v2933
  %v3099 = vmul.f32 %v3046, %v2934
  %v3100 = vmul.f32 %v3047, %v2935
  %v3101 = vmul.f32 %v3048, %v2936
  %v3102 = vmul.f32 %v3049, %v2937
  %v3103 = vmul.f32 %v3050, %v2938
  %v3104 = vmul.f32 %v3051, %v2939
  %v3105 = vmul.f32 %v3052, %v2940
  %v3106 = vmul.f32 %v3053, %v2941
  %v3107 = vsel %vm23, %v3091, 0.0
  %v3108 = vsel %vm23, %v3092, 0.0
  %v3109 = vadd.f32 %v3107, %v3108
  %v3110 = vsel %vm23, %v3093, 0.0
  %v3111 = vadd.f32 %v3109, %v3110
  %v3112 = vsel %vm23, %v3094, 0.0
  %v3113 = vadd.f32 %v3111, %v3112
  %v3114 = vsel %vm23, %v3095, 0.0
  %v3115 = vadd.f32 %v3113, %v3114
  %v3116 = vsel %vm23, %v3096, 0.0
  %v3117 = vadd.f32 %v3115, %v3116
  %v3118 = vsel %vm23, %v3097, 0.0
  %v3119 = vadd.f32 %v3117, %v3118
  %v3120 = vsel %vm23, %v3098, 0.0
  %v3121 = vadd.f32 %v3119, %v3120
  %v3122 = vsel %vm23, %v3099, 0.0
  %v3123 = vadd.f32 %v3121, %v3122
  %v3124 = vsel %vm23, %v3100, 0.0
  %v3125 = vadd.f32 %v3123, %v3124
  %v3126 = vsel %vm23, %v3101, 0.0
  %v3127 = vadd.f32 %v3125, %v3126
  %v3128 = vsel %vm23, %v3102, 0.0
  %v3129 = vadd.f32 %v3127, %v3128
  %v3130 = vsel %vm23, %v3103, 0.0
  %v3131 = vadd.f32 %v3129, %v3130
  %v3132 = vsel %vm23, %v3104, 0.0
  %v3133 = vadd.f32 %v3131, %v3132
  %v3134 = vsel %vm23, %v3105, 0.0
  %v3135 = vadd.f32 %v3133, %v3134
  %v3136 = vsel %vm23, %v3106, 0.0
  %v3137 = vadd.f32 %v3135, %v3136
  %v3138 = vrot.slane %v3137, 4
  %v3139 = vadd.f32 %v3137, %v3138
  %v3140 = vrot.slane %v3139, 2
  %v3141 = vadd.f32 %v3139, %v3140
  %v3142 = vrot.slane %v3141, 1
  %v3143 = vadd.f32 %v3141, %v3142
  %v3144 = vmul.f32 %v3090, 0.02
  %v3145 = vmul.f32 %v3143, 0.02
  %v3146 = vmul.f32 %v3144, %v3144
  %v3147 = vsub.f32 %v3145, %v3146
  %v3148 = vld [vmem:[%s5 + $0x2] sm:$0x1]
  %v3149 = vld [vmem:[%s5 + $0x3] sm:$0x1]
  %v3150 = vadd.f32 %v3147, 1e-05
  %v3151 = vrsqrt.pop %v3150
  %v3152 = vmul.f32 %v3148, %v3151
  %v3153 = vsub.f32 %v2926, %v3144
  %v3154 = vsub.f32 %v2927, %v3144
  %v3155 = vsub.f32 %v2928, %v3144
  %v3156 = vsub.f32 %v2929, %v3144
  %v3157 = vsub.f32 %v2930, %v3144
  %v3158 = vsub.f32 %v2931, %v3144
  %v3159 = vsub.f32 %v2932, %v3144
  %v3160 = vsub.f32 %v2933, %v3144
  %v3161 = vsub.f32 %v2934, %v3144
  %v3162 = vsub.f32 %v2935, %v3144
  %v3163 = vsub.f32 %v2936, %v3144
  %v3164 = vsub.f32 %v2937, %v3144
  %v3165 = vsub.f32 %v2938, %v3144
  %v3166 = vsub.f32 %v2939, %v3144
  %v3167 = vsub.f32 %v2940, %v3144
  %v3168 = vsub.f32 %v2941, %v3144
  %v3169 = vlaneseq
  %v3170 = vshrl.u32 %v3169, 7
  %v3171 = vsub.s32 0, %v3170
  %v3172 = vrot.slane %v3152, %v3171
  %v3173 = vmul.f32 %v3153, %v3172
  %v3174 = vmul.f32 %v3154, %v3172
  %v3175 = vmul.f32 %v3155, %v3172
  %v3176 = vmul.f32 %v3156, %v3172
  %v3177 = vmul.f32 %v3157, %v3172
  %v3178 = vmul.f32 %v3158, %v3172
  %v3179 = vmul.f32 %v3159, %v3172
  %v3180 = vmul.f32 %v3160, %v3172
  %v3181 = vmul.f32 %v3161, %v3172
  %v3182 = vmul.f32 %v3162, %v3172
  %v3183 = vmul.f32 %v3163, %v3172
  %v3184 = vmul.f32 %v3164, %v3172
  %v3185 = vmul.f32 %v3165, %v3172
  %v3186 = vmul.f32 %v3166, %v3172
  %v3187 = vmul.f32 %v3167, %v3172
  %v3188 = vmul.f32 %v3168, %v3172
  %v3189 = vlaneseq
  %v3190 = vshrl.u32 %v3189, 7
  %v3191 = vsub.s32 0, %v3190
  %v3192 = vrot.slane %v3149, %v3191
  %v3193 = vadd.f32 %v3173, %v3192
  %v3194 = vadd.f32 %v3174, %v3192
  %v3195 = vadd.f32 %v3175, %v3192
  %v3196 = vadd.f32 %v3176, %v3192
  %v3197 = vadd.f32 %v3177, %v3192
  %v3198 = vadd.f32 %v3178, %v3192
  %v3199 = vadd.f32 %v3179, %v3192
  %v3200 = vadd.f32 %v3180, %v3192
  %v3201 = vadd.f32 %v3181, %v3192
  %v3202 = vadd.f32 %v3182, %v3192
  %v3203 = vadd.f32 %v3183, %v3192
  %v3204 = vadd.f32 %v3184, %v3192
  %v3205 = vadd.f32 %v3185, %v3192
  %v3206 = vadd.f32 %v3186, %v3192
  %v3207 = vadd.f32 %v3187, %v3192
  %v3208 = vadd.f32 %v3188, %v3192
  %v3209 = vmax.f32 %v3193, 0.0
  %v3210 = vmax.f32 %v3194, 0.0
  %v3211 = vmax.f32 %v3195, 0.0
  %v3212 = vmax.f32 %v3196, 0.0
  %v3213 = vmax.f32 %v3197, 0.0
  %v3214 = vmax.f32 %v3198, 0.0
  %v3215 = vmax.f32 %v3199, 0.0
  %v3216 = vmax.f32 %v3200, 0.0
  %v3217 = vmax.f32 %v3201, 0.0
  %v3218 = vmax.f32 %v3202, 0.0
  %v3219 = vmax.f32 %v3203, 0.0
  %v3220 = vmax.f32 %v3204, 0.0
  %v3221 = vmax.f32 %v3205, 0.0
  %v3222 = vmax.f32 %v3206, 0.0
  %v3223 = vmax.f32 %v3207, 0.0
  %v3224 = vmax.f32 %v3208, 0.0
  %3225 = vst.msk [vmem:[#allocation5] sm:$0xff] %vm23, %v3209
  %3226 = vst.msk [vmem:[#allocation5 + $0x8] sm:$0xff] %vm23, %v3210
  %3227 = vst.msk [vmem:[#allocation5 + $0x10] sm:$0xff] %vm23, %v3211
  %3228 = vst.msk [vmem:[#allocation5 + $0x18] sm:$0xff] %vm23, %v3212
  %3229 = vst.msk [vmem:[#allocation5 + $0x20] sm:$0xff] %vm23, %v3213
  %3230 = vst.msk [vmem:[#allocation5 + $0x28] sm:$0xff] %vm23, %v3214
  %3231 = vst.msk [vmem:[#allocation5 + $0x30] sm:$0xff] %vm23, %v3215
  %3232 = vst.msk [vmem:[#allocation5 + $0x38] sm:$0xff] %vm23, %v3216
  %3233 = vst.msk [vmem:[#allocation5 + $0x40] sm:$0xff] %vm23, %v3217
  %3234 = vst.msk [vmem:[#allocation5 + $0x48] sm:$0xff] %vm23, %v3218
  %3235 = vst.msk [vmem:[#allocation5 + $0x50] sm:$0xff] %vm23, %v3219
  %3236 = vst.msk [vmem:[#allocation5 + $0x58] sm:$0xff] %vm23, %v3220
  %3237 = vst.msk [vmem:[#allocation5 + $0x60] sm:$0xff] %vm23, %v3221
  %3238 = vst.msk [vmem:[#allocation5 + $0x68] sm:$0xff] %vm23, %v3222
  %3239 = vst.msk [vmem:[#allocation5 + $0x70] sm:$0xff] %vm23, %v3223
  %3240 = vst.msk [vmem:[#allocation5 + $0x78] sm:$0xff] %vm23, %v3224
  %v3241 = vld [vmem:[#allocation5] ss:$2 sm:$0x3]
  %s3242 = scalar_lea.vmem [#allocation5], 1
  %v3243 = vld [vmem:[%s3242] ss:$2 sm:$0x3]
  %s3244 = scalar_lea.vmem [#allocation5], 8
  %v3245 = vld [vmem:[%s3244] ss:$2 sm:$0x3]
  %s3246 = scalar_lea.vmem [#allocation5], 9
  %v3247 = vld [vmem:[%s3246] ss:$2 sm:$0x3]
  %v3248 = vmax.f32 %v3241, %v3243
  %v3249 = vmax.f32 %v3245, %v3247
  %v3250 = vmax.f32 %v3248, %v3249
  %vm3251 = vcmask 517120
  %3252 = vst.msk [vmem:[#allocation6 + $0x9] sm:$0x3] %vm3251, %v3250
  %s3253 = scalar_lea.vmem [#allocation5], 16
  %v3254 = vld [vmem:[%s3253] ss:$2 sm:$0x3]
  %s3255 = scalar_lea.vmem [#allocation5], 17
  %v3256 = vld [vmem:[%s3255] ss:$2 sm:$0x3]
  %s3257 = scalar_lea.vmem [#allocation5], 24
  %v3258 = vld [vmem:[%s3257] ss:$2 sm:$0x3]
  %s3259 = scalar_lea.vmem [#allocation5], 25
  %v3260 = vld [vmem:[%s3259] ss:$2 sm:$0x3]
  %v3261 = vmax.f32 %v3254, %v3256
  %v3262 = vmax.f32 %v3258, %v3260
  %v3263 = vmax.f32 %v3261, %v3262
  %3264 = vst.msk [vmem:[#allocation6 + $0x11] sm:$0x3] %vm3251, %v3263
  %s3265 = scalar_lea.vmem [#allocation5], 64
  %v3266 = vld [vmem:[%s3265] ss:$2 sm:$0x3]
  %s3267 = scalar_lea.vmem [#allocation5], 65
  %v3268 = vld [vmem:[%s3267] ss:$2 sm:$0x3]
  %s3269 = scalar_lea.vmem [#allocation5], 72
  %v3270 = vld [vmem:[%s3269] ss:$2 sm:$0x3]
  %s3271 = scalar_lea.vmem [#allocation5], 73
  %v3272 = vld [vmem:[%s3271] ss:$2 sm:$0x3]
  %v3273 = vmax.f32 %v3266, %v3268
  %v3274 = vmax.f32 %v3270, %v3272
  %v3275 = vmax.f32 %v3273, %v3274
  %3276 = vst.msk [vmem:[#allocation6 + $0x29] sm:$0x3] %vm3251, %v3275
  %s3277 = scalar_lea.vmem [#allocation5], 80
  %v3278 = vld [vmem:[%s3277] ss:$2 sm:$0x3]
  %s3279 = scalar_lea.vmem [#allocation5], 81
  %v3280 = vld [vmem:[%s3279] ss:$2 sm:$0x3]
  %s3281 = scalar_lea.vmem [#allocation5], 88
  %v3282 = vld [vmem:[%s3281] ss:$2 sm:$0x3]
  %s3283 = scalar_lea.vmem [#allocation5], 89
  %v3284 = vld [vmem:[%s3283] ss:$2 sm:$0x3]
  %v3285 = vmax.f32 %v3278, %v3280
  %v3286 = vmax.f32 %v3282, %v3284
  %v3287 = vmax.f32 %v3285, %v3286
  %3288 = vst.msk [vmem:[#allocation6 + $0x31] sm:$0x3] %vm3251, %v3287
  %v3289 = vld [vmem:[#allocation6] sm:$0xff]
  %v3290 = vld [vmem:[#allocation6 + $0x8] sm:$0xff]
  %v3291 = vld [vmem:[#allocation6 + $0x10] sm:$0xff]
  %v3292 = vld [vmem:[#allocation6 + $0x18] sm:$0xff]
  %v3293 = vld [vmem:[#allocation6 + $0x20] sm:$0xff]
  %v3294 = vld [vmem:[#allocation6 + $0x28] sm:$0xff]
  %v3295 = vld [vmem:[#allocation6 + $0x30] sm:$0xff]
  %v3296 = vld [vmem:[#allocation6 + $0x38] sm:$0xff]
  %3297 = vst.msk [vmem:[#allocation7] sm:$0xff] %vm23, %v3289
  %3298 = vst.msk [vmem:[#allocation7 + $0x28] sm:$0xff] %vm23, %v3290
  %3299 = vst.msk [vmem:[#allocation7 + $0x50] sm:$0xff] %vm23, %v3291
  %3300 = vst.msk [vmem:[#allocation7 + $0x78] sm:$0xff] %vm23, %v3292
  %3301 = vst.msk [vmem:[#allocation7 + $0xa0] sm:$0xff] %vm23, %v3293
  %3302 = vst.msk [vmem:[#allocation7 + $0xc8] sm:$0xff] %vm23, %v3294
  %3303 = vst.msk [vmem:[#allocation7 + $0xf0] sm:$0xff] %vm23, %v3295
  %3304 = vst.msk [vmem:[#allocation7 + $0x118] sm:$0xff] %vm23, %v3296
  %v3305 = vld [vmem:[#allocation6 + $0x1] sm:$0xff]
  %v3306 = vld [vmem:[#allocation6 + $0x9] sm:$0xff]
  %v3307 = vld [vmem:[#allocation6 + $0x11] sm:$0xff]
  %v3308 = vld [vmem:[#allocation6 + $0x19] sm:$0xff]
  %v3309 = vld [vmem:[#allocation6 + $0x21] sm:$0xff]
  %v3310 = vld [vmem:[#allocation6 + $0x29] sm:$0xff]
  %v3311 = vld [vmem:[#allocation6 + $0x31] sm:$0xff]
  %v3312 = vld [vmem:[#allocation6 + $0x39] sm:$0xff]
  %3321 = vrot.lane.b32.xlu0 %v3305, 64
  %v3322 = vpop.permute.xlu0 %3321
  %3323 = vrot.lane.b32.xlu0 %v3306, 64
  %v3324 = vpop.permute.xlu0 %3323
  %3325 = vrot.lane.b32.xlu0 %v3307, 64
  %v3326 = vpop.permute.xlu0 %3325
  %3327 = vrot.lane.b32.xlu0 %v3308, 64
  %v3328 = vpop.permute.xlu0 %3327
  %3329 = vrot.lane.b32.xlu0 %v3309, 64
  %v3330 = vpop.permute.xlu0 %3329
  %3331 = vrot.lane.b32.xlu0 %v3310, 64
  %v3332 = vpop.permute.xlu0 %3331
  %3333 = vrot.lane.b32.xlu0 %v3311, 64
  %v3334 = vpop.permute.xlu0 %3333
  %3335 = vrot.lane.b32.xlu0 %v3312, 64
  %v3336 = vpop.permute.xlu0 %3335
  %3345 = vst.msk [vmem:[#allocation7] sm:$0xff] %vm1842, %v3322
  %3346 = vst.msk [vmem:[#allocation7 + $0x28] sm:$0xff] %vm1842, %v3324
  %3347 = vst.msk [vmem:[#allocation7 + $0x50] sm:$0xff] %vm1842, %v3326
  %3348 = vst.msk [vmem:[#allocation7 + $0x78] sm:$0xff] %vm1842, %v3328
  %3349 = vst.msk [vmem:[#allocation7 + $0xa0] sm:$0xff] %vm1842, %v3330
  %3350 = vst.msk [vmem:[#allocation7 + $0xc8] sm:$0xff] %vm1842, %v3332
  %3351 = vst.msk [vmem:[#allocation7 + $0xf0] sm:$0xff] %vm1842, %v3334
  %3352 = vst.msk [vmem:[#allocation7 + $0x118] sm:$0xff] %vm1842, %v3336
  %v3353 = vld [vmem:[#allocation6 + $0x2] sm:$0xff]
  %v3354 = vld [vmem:[#allocation6 + $0xa] sm:$0xff]
  %v3355 = vld [vmem:[#allocation6 + $0x12] sm:$0xff]
  %v3356 = vld [vmem:[#allocation6 + $0x1a] sm:$0xff]
  %v3357 = vld [vmem:[#allocation6 + $0x22] sm:$0xff]
  %v3358 = vld [vmem:[#allocation6 + $0x2a] sm:$0xff]
  %v3359 = vld [vmem:[#allocation6 + $0x32] sm:$0xff]
  %v3360 = vld [vmem:[#allocation6 + $0x3a] sm:$0xff]
  %3361 = vst.msk [vmem:[#allocation7 + $0x8] sm:$0xff] %vm23, %v3353
  %3362 = vst.msk [vmem:[#allocation7 + $0x30] sm:$0xff] %vm23, %v3354
  %3363 = vst.msk [vmem:[#allocation7 + $0x58] sm:$0xff] %vm23, %v3355
  %3364 = vst.msk [vmem:[#allocation7 + $0x80] sm:$0xff] %vm23, %v3356
  %3365 = vst.msk [vmem:[#allocation7 + $0xa8] sm:$0xff] %vm23, %v3357
  %3366 = vst.msk [vmem:[#allocation7 + $0xd0] sm:$0xff] %vm23, %v3358
  %3367 = vst.msk [vmem:[#allocation7 + $0xf8] sm:$0xff] %vm23, %v3359
  %3368 = vst.msk [vmem:[#allocation7 + $0x120] sm:$0xff] %vm23, %v3360
  %v3369 = vld [vmem:[#allocation6 + $0x8] sm:$0xff]
  %v3370 = vld [vmem:[#allocation6 + $0x10] sm:$0xff]
  %v3371 = vld [vmem:[#allocation6 + $0x18] sm:$0xff]
  %v3372 = vld [vmem:[#allocation6 + $0x20] sm:$0xff]
  %v3373 = vld [vmem:[#allocation6 + $0x28] sm:$0xff]
  %v3374 = vld [vmem:[#allocation6 + $0x30] sm:$0xff]
  %v3375 = vld [vmem:[#allocation6 + $0x38] sm:$0xff]
  %v3376 = vld [vmem:[#allocation6 + $0x40] sm:$0xff]
  %3385 = vrot.lane.b32.xlu0 %v3369, 64
  %v3386 = vpop.permute.xlu0 %3385
  %3387 = vrot.lane.b32.xlu0 %v3370, 64
  %v3388 = vpop.permute.xlu0 %3387
  %3389 = vrot.lane.b32.xlu0 %v3371, 64
  %v3390 = vpop.permute.xlu0 %3389
  %3391 = vrot.lane.b32.xlu0 %v3372, 64
  %v3392 = vpop.permute.xlu0 %3391
  %3393 = vrot.lane.b32.xlu0 %v3373, 64
  %v3394 = vpop.permute.xlu0 %3393
  %3395 = vrot.lane.b32.xlu0 %v3374, 64
  %v3396 = vpop.permute.xlu0 %3395
  %3397 = vrot.lane.b32.xlu0 %v3375, 64
  %v3398 = vpop.permute.xlu0 %3397
  %3399 = vrot.lane.b32.xlu0 %v3376, 64
  %v3400 = vpop.permute.xlu0 %3399
  %3409 = vst.msk [vmem:[#allocation7 + $0x8] sm:$0xff] %vm1842, %v3386
  %3410 = vst.msk [vmem:[#allocation7 + $0x30] sm:$0xff] %vm1842, %v3388
  %3411 = vst.msk [vmem:[#allocation7 + $0x58] sm:$0xff] %vm1842, %v3390
  %3412 = vst.msk [vmem:[#allocation7 + $0x80] sm:$0xff] %vm1842, %v3392
  %3413 = vst.msk [vmem:[#allocation7 + $0xa8] sm:$0xff] %vm1842, %v3394
  %3414 = vst.msk [vmem:[#allocation7 + $0xd0] sm:$0xff] %vm1842, %v3396
  %3415 = vst.msk [vmem:[#allocation7 + $0xf8] sm:$0xff] %vm1842, %v3398
  %3416 = vst.msk [vmem:[#allocation7 + $0x120] sm:$0xff] %vm1842, %v3400
  %v3417 = vld [vmem:[#allocation6 + $0x9] sm:$0xff]
  %v3418 = vld [vmem:[#allocation6 + $0x11] sm:$0xff]
  %v3419 = vld [vmem:[#allocation6 + $0x19] sm:$0xff]
  %v3420 = vld [vmem:[#allocation6 + $0x21] sm:$0xff]
  %v3421 = vld [vmem:[#allocation6 + $0x29] sm:$0xff]
  %v3422 = vld [vmem:[#allocation6 + $0x31] sm:$0xff]
  %v3423 = vld [vmem:[#allocation6 + $0x39] sm:$0xff]
  %v3424 = vld [vmem:[#allocation6 + $0x41] sm:$0xff]
  %3425 = vst.msk [vmem:[#allocation7 + $0x10] sm:$0xff] %vm23, %v3417
  %3426 = vst.msk [vmem:[#allocation7 + $0x38] sm:$0xff] %vm23, %v3418
  %3427 = vst.msk [vmem:[#allocation7 + $0x60] sm:$0xff] %vm23, %v3419
  %3428 = vst.msk [vmem:[#allocation7 + $0x88] sm:$0xff] %vm23, %v3420
  %3429 = vst.msk [vmem:[#allocation7 + $0xb0] sm:$0xff] %vm23, %v3421
  %3430 = vst.msk [vmem:[#allocation7 + $0xd8] sm:$0xff] %vm23, %v3422
  %3431 = vst.msk [vmem:[#allocation7 + $0x100] sm:$0xff] %vm23, %v3423
  %3432 = vst.msk [vmem:[#allocation7 + $0x128] sm:$0xff] %vm23, %v3424
  %v3433 = vld [vmem:[#allocation6 + $0xa] sm:$0xff]
  %v3434 = vld [vmem:[#allocation6 + $0x12] sm:$0xff]
  %v3435 = vld [vmem:[#allocation6 + $0x1a] sm:$0xff]
  %v3436 = vld [vmem:[#allocation6 + $0x22] sm:$0xff]
  %v3437 = vld [vmem:[#allocation6 + $0x2a] sm:$0xff]
  %v3438 = vld [vmem:[#allocation6 + $0x32] sm:$0xff]
  %v3439 = vld [vmem:[#allocation6 + $0x3a] sm:$0xff]
  %v3440 = vld [vmem:[#allocation6 + $0x42] sm:$0xff]
  %3449 = vrot.lane.b32.xlu0 %v3433, 64
  %v3450 = vpop.permute.xlu0 %3449
  %3451 = vrot.lane.b32.xlu0 %v3434, 64
  %v3452 = vpop.permute.xlu0 %3451
  %3453 = vrot.lane.b32.xlu0 %v3435, 64
  %v3454 = vpop.permute.xlu0 %3453
  %3455 = vrot.lane.b32.xlu0 %v3436, 64
  %v3456 = vpop.permute.xlu0 %3455
  %3457 = vrot.lane.b32.xlu0 %v3437, 64
  %v3458 = vpop.permute.xlu0 %3457
  %3459 = vrot.lane.b32.xlu0 %v3438, 64
  %v3460 = vpop.permute.xlu0 %3459
  %3461 = vrot.lane.b32.xlu0 %v3439, 64
  %v3462 = vpop.permute.xlu0 %3461
  %3463 = vrot.lane.b32.xlu0 %v3440, 64
  %v3464 = vpop.permute.xlu0 %3463
  %3473 = vst.msk [vmem:[#allocation7 + $0x10] sm:$0xff] %vm1842, %v3450
  %3474 = vst.msk [vmem:[#allocation7 + $0x38] sm:$0xff] %vm1842, %v3452
  %3475 = vst.msk [vmem:[#allocation7 + $0x60] sm:$0xff] %vm1842, %v3454
  %3476 = vst.msk [vmem:[#allocation7 + $0x88] sm:$0xff] %vm1842, %v3456
  %3477 = vst.msk [vmem:[#allocation7 + $0xb0] sm:$0xff] %vm1842, %v3458
  %3478 = vst.msk [vmem:[#allocation7 + $0xd8] sm:$0xff] %vm1842, %v3460
  %3479 = vst.msk [vmem:[#allocation7 + $0x100] sm:$0xff] %vm1842, %v3462
  %3480 = vst.msk [vmem:[#allocation7 + $0x128] sm:$0xff] %vm1842, %v3464
  %v3481 = vld [vmem:[#allocation6 + $0x10] sm:$0xff]
  %v3482 = vld [vmem:[#allocation6 + $0x18] sm:$0xff]
  %v3483 = vld [vmem:[#allocation6 + $0x20] sm:$0xff]
  %v3484 = vld [vmem:[#allocation6 + $0x28] sm:$0xff]
  %v3485 = vld [vmem:[#allocation6 + $0x30] sm:$0xff]
  %v3486 = vld [vmem:[#allocation6 + $0x38] sm:$0xff]
  %v3487 = vld [vmem:[#allocation6 + $0x40] sm:$0xff]
  %v3488 = vld [vmem:[#allocation6 + $0x48] sm:$0xff]
  %3489 = vst.msk [vmem:[#allocation7 + $0x18] sm:$0xff] %vm23, %v3481
  %3490 = vst.msk [vmem:[#allocation7 + $0x40] sm:$0xff] %vm23, %v3482
  %3491 = vst.msk [vmem:[#allocation7 + $0x68] sm:$0xff] %vm23, %v3483
  %3492 = vst.msk [vmem:[#allocation7 + $0x90] sm:$0xff] %vm23, %v3484
  %3493 = vst.msk [vmem:[#allocation7 + $0xb8] sm:$0xff] %vm23, %v3485
  %3494 = vst.msk [vmem:[#allocation7 + $0xe0] sm:$0xff] %vm23, %v3486
  %3495 = vst.msk [vmem:[#allocation7 + $0x108] sm:$0xff] %vm23, %v3487
  %3496 = vst.msk [vmem:[#allocation7 + $0x130] sm:$0xff] %vm23, %v3488
  %v3497 = vld [vmem:[#allocation6 + $0x11] sm:$0xff]
  %v3498 = vld [vmem:[#allocation6 + $0x19] sm:$0xff]
  %v3499 = vld [vmem:[#allocation6 + $0x21] sm:$0xff]
  %v3500 = vld [vmem:[#allocation6 + $0x29] sm:$0xff]
  %v3501 = vld [vmem:[#allocation6 + $0x31] sm:$0xff]
  %v3502 = vld [vmem:[#allocation6 + $0x39] sm:$0xff]
  %v3503 = vld [vmem:[#allocation6 + $0x41] sm:$0xff]
  %v3504 = vld [vmem:[#allocation6 + $0x49] sm:$0xff]
  %3513 = vrot.lane.b32.xlu0 %v3497, 64
  %v3514 = vpop.permute.xlu0 %3513
  %3515 = vrot.lane.b32.xlu0 %v3498, 64
  %v3516 = vpop.permute.xlu0 %3515
  %3517 = vrot.lane.b32.xlu0 %v3499, 64
  %v3518 = vpop.permute.xlu0 %3517
  %3519 = vrot.lane.b32.xlu0 %v3500, 64
  %v3520 = vpop.permute.xlu0 %3519
  %3521 = vrot.lane.b32.xlu0 %v3501, 64
  %v3522 = vpop.permute.xlu0 %3521
  %3523 = vrot.lane.b32.xlu0 %v3502, 64
  %v3524 = vpop.permute.xlu0 %3523
  %3525 = vrot.lane.b32.xlu0 %v3503, 64
  %v3526 = vpop.permute.xlu0 %3525
  %3527 = vrot.lane.b32.xlu0 %v3504, 64
  %v3528 = vpop.permute.xlu0 %3527
  %3537 = vst.msk [vmem:[#allocation7 + $0x18] sm:$0xff] %vm1842, %v3514
  %3538 = vst.msk [vmem:[#allocation7 + $0x40] sm:$0xff] %vm1842, %v3516
  %3539 = vst.msk [vmem:[#allocation7 + $0x68] sm:$0xff] %vm1842, %v3518
  %3540 = vst.msk [vmem:[#allocation7 + $0x90] sm:$0xff] %vm1842, %v3520
  %3541 = vst.msk [vmem:[#allocation7 + $0xb8] sm:$0xff] %vm1842, %v3522
  %3542 = vst.msk [vmem:[#allocation7 + $0xe0] sm:$0xff] %vm1842, %v3524
  %3543 = vst.msk [vmem:[#allocation7 + $0x108] sm:$0xff] %vm1842, %v3526
  %3544 = vst.msk [vmem:[#allocation7 + $0x130] sm:$0xff] %vm1842, %v3528
  %v3545 = vld [vmem:[#allocation6 + $0x12] sm:$0xff]
  %v3546 = vld [vmem:[#allocation6 + $0x1a] sm:$0xff]
  %v3547 = vld [vmem:[#allocation6 + $0x22] sm:$0xff]
  %v3548 = vld [vmem:[#allocation6 + $0x2a] sm:$0xff]
  %v3549 = vld [vmem:[#allocation6 + $0x32] sm:$0xff]
  %v3550 = vld [vmem:[#allocation6 + $0x3a] sm:$0xff]
  %v3551 = vld [vmem:[#allocation6 + $0x42] sm:$0xff]
  %v3552 = vld [vmem:[#allocation6 + $0x4a] sm:$0xff]
  %3553 = vst.msk [vmem:[#allocation7 + $0x20] sm:$0xff] %vm23, %v3545
  %3554 = vst.msk [vmem:[#allocation7 + $0x48] sm:$0xff] %vm23, %v3546
  %3555 = vst.msk [vmem:[#allocation7 + $0x70] sm:$0xff] %vm23, %v3547
  %3556 = vst.msk [vmem:[#allocation7 + $0x98] sm:$0xff] %vm23, %v3548
  %3557 = vst.msk [vmem:[#allocation7 + $0xc0] sm:$0xff] %vm23, %v3549
  %3558 = vst.msk [vmem:[#allocation7 + $0xe8] sm:$0xff] %vm23, %v3550
  %3559 = vst.msk [vmem:[#allocation7 + $0x110] sm:$0xff] %vm23, %v3551
  %3560 = vst.msk [vmem:[#allocation7 + $0x138] sm:$0xff] %vm23, %v3552
  %v3561 = vld [vmem:[#allocation7] sm:$0xff]
  %v3562 = vld [vmem:[#allocation7 + $0x8] sm:$0xff]
  %v3563 = vld [vmem:[#allocation7 + $0x10] sm:$0xff]
  %v3564 = vld [vmem:[#allocation7 + $0x18] sm:$0xff]
  %v3565 = vld [vmem:[#allocation7 + $0x20] sm:$0xff]
  %v3566 = vld [vmem:[#allocation7 + $0x28] sm:$0xff]
  %v3567 = vld [vmem:[#allocation7 + $0x30] sm:$0xff]
  %v3568 = vld [vmem:[#allocation7 + $0x38] sm:$0xff]
  %v3569 = vld [vmem:[#allocation7 + $0x40] sm:$0xff]
  %v3570 = vld [vmem:[#allocation7 + $0x48] sm:$0xff]
  %v3571 = vld [vmem:[#allocation7 + $0x50] sm:$0xff]
  %v3572 = vld [vmem:[#allocation7 + $0x58] sm:$0xff]
  %v3573 = vld [vmem:[#allocation7 + $0x60] sm:$0xff]
  %v3574 = vld [vmem:[#allocation7 + $0x68] sm:$0xff]
  %v3575 = vld [vmem:[#allocation7 + $0x70] sm:$0xff]
  %v3576 = vld [vmem:[#allocation7 + $0x78] sm:$0xff]
  %v3577 = vld [vmem:[#allocation7 + $0x80] sm:$0xff]
  %v3578 = vld [vmem:[#allocation7 + $0x88] sm:$0xff]
  %v3579 = vld [vmem:[#allocation7 + $0x90] sm:$0xff]
  %v3580 = vld [vmem:[#allocation7 + $0x98] sm:$0xff]
  %v3581 = vld [vmem:[#allocation7 + $0xa0] sm:$0xff]
  %v3582 = vld [vmem:[#allocation7 + $0xa8] sm:$0xff]
  %v3583 = vld [vmem:[#allocation7 + $0xb0] sm:$0xff]
  %v3584 = vld [vmem:[#allocation7 + $0xb8] sm:$0xff]
  %v3585 = vld [vmem:[#allocation7 + $0xc0] sm:$0xff]
  %v3586 = vld [vmem:[#allocation7 + $0xc8] sm:$0xff]
  %v3587 = vld [vmem:[#allocation7 + $0xd0] sm:$0xff]
  %v3588 = vld [vmem:[#allocation7 + $0xd8] sm:$0xff]
  %v3589 = vld [vmem:[#allocation7 + $0xe0] sm:$0xff]
  %v3590 = vld [vmem:[#allocation7 + $0xe8] sm:$0xff]
  %v3591 = vld [vmem:[#allocation7 + $0xf0] sm:$0xff]
  %v3592 = vld [vmem:[#allocation7 + $0xf8] sm:$0xff]
  %v3593 = vld [vmem:[#allocation7 + $0x100] sm:$0xff]
  %v3594 = vld [vmem:[#allocation7 + $0x108] sm:$0xff]
  %v3595 = vld [vmem:[#allocation7 + $0x110] sm:$0xff]
  %v3596 = vld [vmem:[#allocation7 + $0x118] sm:$0xff]
  %v3597 = vld [vmem:[#allocation7 + $0x120] sm:$0xff]
  %v3598 = vld [vmem:[#allocation7 + $0x128] sm:$0xff]
  %v3599 = vld [vmem:[#allocation7 + $0x130] sm:$0xff]
  %v3600 = vld [vmem:[#allocation7 + $0x138] sm:$0xff]
  %v3601 = vld [vmem:[%s3] sm:$0xff]
  %v3602 = vld [vmem:[%s3 + $0x8] sm:$0xff]
  %v3603 = vld [vmem:[%s3 + $0x10] sm:$0xff]
  %v3604 = vld [vmem:[%s3 + $0x18] sm:$0xff]
  %v3605 = vld [vmem:[%s3 + $0x20] sm:$0xff]
  %v3606 = vld [vmem:[%s3 + $0x28] sm:$0xff]
  %v3607 = vld [vmem:[%s3 + $0x30] sm:$0xff]
  %v3608 = vld [vmem:[%s3 + $0x38] sm:$0xff]
  %v3609 = vld [vmem:[%s3 + $0x40] sm:$0xff]
  %v3610 = vld [vmem:[%s3 + $0x48] sm:$0xff]
  %v3611 = vld [vmem:[%s3 + $0x50] sm:$0xff]
  %v3612 = vld [vmem:[%s3 + $0x58] sm:$0xff]
  %v3613 = vld [vmem:[%s3 + $0x60] sm:$0xff]
  %v3614 = vld [vmem:[%s3 + $0x68] sm:$0xff]
  %v3615 = vld [vmem:[%s3 + $0x70] sm:$0xff]
  %v3616 = vld [vmem:[%s3 + $0x78] sm:$0xff]
  %v3617 = vld [vmem:[%s3 + $0x80] sm:$0xff]
  %v3618 = vld [vmem:[%s3 + $0x88] sm:$0xff]
  %v3619 = vld [vmem:[%s3 + $0x90] sm:$0xff]
  %v3620 = vld [vmem:[%s3 + $0x98] sm:$0xff]
  %v3621 = vld [vmem:[%s3 + $0xa0] sm:$0xff]
  %v3622 = vld [vmem:[%s3 + $0xa8] sm:$0xff]
  %v3623 = vld [vmem:[%s3 + $0xb0] sm:$0xff]
  %v3624 = vld [vmem:[%s3 + $0xb8] sm:$0xff]
  %v3625 = vld [vmem:[%s3 + $0xc0] sm:$0xff]
  %v3626 = vld [vmem:[%s3 + $0xc8] sm:$0xff]
  %v3627 = vld [vmem:[%s3 + $0xd0] sm:$0xff]
  %v3628 = vld [vmem:[%s3 + $0xd8] sm:$0xff]
  %v3629 = vld [vmem:[%s3 + $0xe0] sm:$0xff]
  %v3630 = vld [vmem:[%s3 + $0xe8] sm:$0xff]
  %v3631 = vld [vmem:[%s3 + $0xf0] sm:$0xff]
  %v3632 = vld [vmem:[%s3 + $0xf8] sm:$0xff]
  %v3633 = vld [vmem:[%s3 + $0x100] sm:$0xff]
  %v3634 = vld [vmem:[%s3 + $0x108] sm:$0xff]
  %v3635 = vld [vmem:[%s3 + $0x110] sm:$0xff]
  %v3636 = vld [vmem:[%s3 + $0x118] sm:$0xff]
  %v3637 = vld [vmem:[%s3 + $0x120] sm:$0xff]
  %v3638 = vld [vmem:[%s3 + $0x128] sm:$0xff]
  %v3639 = vld [vmem:[%s3 + $0x130] sm:$0xff]
  %v3640 = vld [vmem:[%s3 + $0x138] sm:$0xff]
  %v3641 = vld [vmem:[%s3 + $0x140] sm:$0xff]
  %v3642 = vld [vmem:[%s3 + $0x148] sm:$0xff]
  %v3643 = vld [vmem:[%s3 + $0x150] sm:$0xff]
  %v3644 = vld [vmem:[%s3 + $0x158] sm:$0xff]
  %v3645 = vld [vmem:[%s3 + $0x160] sm:$0xff]
  %v3646 = vld [vmem:[%s3 + $0x168] sm:$0xff]
  %v3647 = vld [vmem:[%s3 + $0x170] sm:$0xff]
  %v3648 = vld [vmem:[%s3 + $0x178] sm:$0xff]
  %v3649 = vld [vmem:[%s3 + $0x180] sm:$0xff]
  %v3650 = vld [vmem:[%s3 + $0x188] sm:$0xff]
  %v3651 = vld [vmem:[%s3 + $0x190] sm:$0xff]
  %v3652 = vld [vmem:[%s3 + $0x198] sm:$0xff]
  %v3653 = vld [vmem:[%s3 + $0x1a0] sm:$0xff]
  %v3654 = vld [vmem:[%s3 + $0x1a8] sm:$0xff]
  %v3655 = vld [vmem:[%s3 + $0x1b0] sm:$0xff]
  %v3656 = vld [vmem:[%s3 + $0x1b8] sm:$0xff]
  %v3657 = vld [vmem:[%s3 + $0x1c0] sm:$0xff]
  %v3658 = vld [vmem:[%s3 + $0x1c8] sm:$0xff]
  %v3659 = vld [vmem:[%s3 + $0x1d0] sm:$0xff]
  %v3660 = vld [vmem:[%s3 + $0x1d8] sm:$0xff]
  %v3661 = vld [vmem:[%s3 + $0x1e0] sm:$0xff]
  %v3662 = vld [vmem:[%s3 + $0x1e8] sm:$0xff]
  %v3663 = vld [vmem:[%s3 + $0x1f0] sm:$0xff]
  %v3664 = vld [vmem:[%s3 + $0x1f8] sm:$0xff]
  %v3665 = vld [vmem:[%s3 + $0x200] sm:$0xff]
  %v3666 = vld [vmem:[%s3 + $0x208] sm:$0xff]
  %v3667 = vld [vmem:[%s3 + $0x210] sm:$0xff]
  %v3668 = vld [vmem:[%s3 + $0x218] sm:$0xff]
  %v3669 = vld [vmem:[%s3 + $0x220] sm:$0xff]
  %v3670 = vld [vmem:[%s3 + $0x228] sm:$0xff]
  %v3671 = vld [vmem:[%s3 + $0x230] sm:$0xff]
  %v3672 = vld [vmem:[%s3 + $0x238] sm:$0xff]
  %v3674 = vsel %vm23, %v3565, 0
  %v3677 = vsel %vm23, %v3570, 0
  %v3680 = vsel %vm23, %v3575, 0
  %v3683 = vsel %vm23, %v3580, 0
  %v3686 = vsel %vm23, %v3585, 0
  %v3689 = vsel %vm23, %v3590, 0
  %v3692 = vsel %vm23, %v3595, 0
  %v3695 = vsel %vm23, %v3600, 0
  %3697 = vmatprep.subr.mxu0 0.0
  %3698 = vmatpush1.msra.mxu0 %v3616
  %3699 = vmatprep.subr.mxu0 0.0
  %3700 = vmatpush1.msra.mxu0 %v3615
  %3701 = vmatprep.subr.mxu0 0.0
  %3702 = vmatpush1.msra.mxu0 %v3614
  %3703 = vmatprep.subr.mxu0 0.0
  %3704 = vmatpush1.msra.mxu0 %v3613
  %3705 = vmatprep.subr.mxu0 0.0
  %3706 = vmatpush1.msra.mxu0 %v3612
  %3707 = vmatprep.subr.mxu0 0.0
  %3708 = vmatpush1.msra.mxu0 %v3611
  %3709 = vmatprep.subr.mxu0 0.0
  %3710 = vmatpush1.msra.mxu0 %v3610
  %3711 = vmatprep.subr.mxu0 0.0
  %3712 = vmatpush1.msra.mxu0 %v3609
  %3713 = vmatprep.subr.mxu0 0.0
  %3714 = vmatpush1.msra.mxu0 %v3608
  %3715 = vmatprep.subr.mxu0 0.0
  %3716 = vmatpush1.msra.mxu0 %v3607
  %3717 = vmatprep.subr.mxu0 0.0
  %3718 = vmatpush1.msra.mxu0 %v3606
  %3719 = vmatprep.subr.mxu0 0.0
  %3720 = vmatpush1.msra.mxu0 %v3605
  %3721 = vmatprep.subr.mxu0 0.0
  %3722 = vmatpush1.msra.mxu0 %v3604
  %3723 = vmatprep.subr.mxu0 0.0
  %3724 = vmatpush1.msra.mxu0 %v3603
  %3725 = vmatprep.subr.mxu0 0.0
  %3726 = vmatpush1.msra.mxu0 %v3602
  %3727 = vmatprep.subr.mxu0 0.0
  %3728 = vmatpush1.msra.mxu0 %v3601
  %3729 = vmatprep.subr.mxu0 0.0
  %3730 = vmatpush2.msra.mxu0 %v3632
  %3731 = vmatprep.subr.mxu0 0.0
  %3732 = vmatpush2.msra.mxu0 %v3631
  %3733 = vmatprep.subr.mxu0 0.0
  %3734 = vmatpush2.msra.mxu0 %v3630
  %3735 = vmatprep.subr.mxu0 0.0
  %3736 = vmatpush2.msra.mxu0 %v3629
  %3737 = vmatprep.subr.mxu0 0.0
  %3738 = vmatpush2.msra.mxu0 %v3628
  %3739 = vmatprep.subr.mxu0 0.0
  %3740 = vmatpush2.msra.mxu0 %v3627
  %3741 = vmatprep.subr.mxu0 0.0
  %3742 = vmatpush2.msra.mxu0 %v3626
  %3743 = vmatprep.subr.mxu0 0.0
  %3744 = vmatpush2.msra.mxu0 %v3625
  %3745 = vmatprep.subr.mxu0 0.0
  %3746 = vmatpush2.msra.mxu0 %v3624
  %3747 = vmatprep.subr.mxu0 0.0
  %3748 = vmatpush2.msra.mxu0 %v3623
  %3749 = vmatprep.subr.mxu0 0.0
  %3750 = vmatpush2.msra.mxu0 %v3622
  %3751 = vmatprep.subr.mxu0 0.0
  %3752 = vmatpush2.msra.mxu0 %v3621
  %3753 = vmatprep.subr.mxu0 0.0
  %3754 = vmatpush2.msra.mxu0 %v3620
  %3755 = vmatprep.subr.mxu0 0.0
  %3756 = vmatpush2.msra.mxu0 %v3619
  %3757 = vmatprep.subr.mxu0 0.0
  %3758 = vmatpush2.msra.mxu0 %v3618
  %3759 = vmatprep.subr.mxu0 0.0
  %3760 = vmatpush2.msra.mxu0 %v3617
  %3761 = vmatprep.mubr.f32.mxu0 %v3562
  %3762 = vmatmul.mubr.f32.gmra.mxu0 %v3561
  %v3763 = vpop.f32.mrf.mxu0
  %v3764 = vadd.f32 0.0, %v3763
  %v3765 = vpop.f32.mrf.mxu0
  %3766 = vmatprep.mubr.f32.mxu0 %v3567
  %3767 = vmatmul.mubr.f32.gmra.mxu0 %v3566
  %v3768 = vpop.f32.mrf.mxu0
  %v3769 = vadd.f32 0.0, %v3768
  %v3770 = vpop.f32.mrf.mxu0
  %3771 = vmatprep.mubr.f32.mxu0 %v3572
  %3772 = vmatmul.mubr.f32.gmra.mxu0 %v3571
  %v3773 = vpop.f32.mrf.mxu0
  %v3774 = vadd.f32 0.0, %v3773
  %v3775 = vpop.f32.mrf.mxu0
  %3776 = vmatprep.mubr.f32.mxu0 %v3577
  %3777 = vmatmul.mubr.f32.gmra.mxu0 %v3576
  %v3778 = vpop.f32.mrf.mxu0
  %v3779 = vadd.f32 0.0, %v3778
  %v3780 = vpop.f32.mrf.mxu0
  %3781 = vmatprep.mubr.f32.mxu0 %v3582
  %3782 = vmatmul.mubr.f32.gmra.mxu0 %v3581
  %v3783 = vpop.f32.mrf.mxu0
  %v3784 = vadd.f32 0.0, %v3783
  %v3785 = vpop.f32.mrf.mxu0
  %3786 = vmatprep.mubr.f32.mxu0 %v3587
  %3787 = vmatmul.mubr.f32.gmra.mxu0 %v3586
  %v3788 = vpop.f32.mrf.mxu0
  %v3789 = vadd.f32 0.0, %v3788
  %v3790 = vpop.f32.mrf.mxu0
  %3791 = vmatprep.mubr.f32.mxu0 %v3592
  %3792 = vmatmul.mubr.f32.gmra.mxu0 %v3591
  %v3793 = vpop.f32.mrf.mxu0
  %v3794 = vadd.f32 0.0, %v3793
  %v3795 = vpop.f32.mrf.mxu0
  %3796 = vmatprep.mubr.f32.mxu0 %v3597
  %3797 = vmatmul.mubr.f32.gmra.mxu0 %v3596
  %v3798 = vpop.f32.mrf.mxu0
  %v3799 = vadd.f32 0.0, %v3798
  %v3800 = vpop.f32.mrf.mxu0
  %3801 = vdwg.mxu0
  %3802 = vmatprep.subr.mxu0 0.0
  %3803 = vmatpush1.msra.mxu0 %v3648
  %3804 = vmatprep.subr.mxu0 0.0
  %3805 = vmatpush1.msra.mxu0 %v3647
  %3806 = vmatprep.subr.mxu0 0.0
  %3807 = vmatpush1.msra.mxu0 %v3646
  %3808 = vmatprep.subr.mxu0 0.0
  %3809 = vmatpush1.msra.mxu0 %v3645
  %3810 = vmatprep.subr.mxu0 0.0
  %3811 = vmatpush1.msra.mxu0 %v3644
  %3812 = vmatprep.subr.mxu0 0.0
  %3813 = vmatpush1.msra.mxu0 %v3643
  %3814 = vmatprep.subr.mxu0 0.0
  %3815 = vmatpush1.msra.mxu0 %v3642
  %3816 = vmatprep.subr.mxu0 0.0
  %3817 = vmatpush1.msra.mxu0 %v3641
  %3818 = vmatprep.subr.mxu0 0.0
  %3819 = vmatpush1.msra.mxu0 %v3640
  %3820 = vmatprep.subr.mxu0 0.0
  %3821 = vmatpush1.msra.mxu0 %v3639
  %3822 = vmatprep.subr.mxu0 0.0
  %3823 = vmatpush1.msra.mxu0 %v3638
  %3824 = vmatprep.subr.mxu0 0.0
  %3825 = vmatpush1.msra.mxu0 %v3637
  %3826 = vmatprep.subr.mxu0 0.0
  %3827 = vmatpush1.msra.mxu0 %v3636
  %3828 = vmatprep.subr.mxu0 0.0
  %3829 = vmatpush1.msra.mxu0 %v3635
  %3830 = vmatprep.subr.mxu0 0.0
  %3831 = vmatpush1.msra.mxu0 %v3634
  %3832 = vmatprep.subr.mxu0 0.0
  %3833 = vmatpush1.msra.mxu0 %v3633
  %3834 = vmatprep.subr.mxu0 0.0
  %3835 = vmatpush2.msra.mxu0 %v3664
  %3836 = vmatprep.subr.mxu0 0.0
  %3837 = vmatpush2.msra.mxu0 %v3663
  %3838 = vmatprep.subr.mxu0 0.0
  %3839 = vmatpush2.msra.mxu0 %v3662
  %3840 = vmatprep.subr.mxu0 0.0
  %3841 = vmatpush2.msra.mxu0 %v3661
  %3842 = vmatprep.subr.mxu0 0.0
  %3843 = vmatpush2.msra.mxu0 %v3660
  %3844 = vmatprep.subr.mxu0 0.0
  %3845 = vmatpush2.msra.mxu0 %v3659
  %3846 = vmatprep.subr.mxu0 0.0
  %3847 = vmatpush2.msra.mxu0 %v3658
  %3848 = vmatprep.subr.mxu0 0.0
  %3849 = vmatpush2.msra.mxu0 %v3657
  %3850 = vmatprep.subr.mxu0 0.0
  %3851 = vmatpush2.msra.mxu0 %v3656
  %3852 = vmatprep.subr.mxu0 0.0
  %3853 = vmatpush2.msra.mxu0 %v3655
  %3854 = vmatprep.subr.mxu0 0.0
  %3855 = vmatpush2.msra.mxu0 %v3654
  %3856 = vmatprep.subr.mxu0 0.0
  %3857 = vmatpush2.msra.mxu0 %v3653
  %3858 = vmatprep.subr.mxu0 0.0
  %3859 = vmatpush2.msra.mxu0 %v3652
  %3860 = vmatprep.subr.mxu0 0.0
  %3861 = vmatpush2.msra.mxu0 %v3651
  %3862 = vmatprep.subr.mxu0 0.0
  %3863 = vmatpush2.msra.mxu0 %v3650
  %3864 = vmatprep.subr.mxu0 0.0
  %3865 = vmatpush2.msra.mxu0 %v3649
  %3866 = vmatprep.mubr.f32.mxu0 %v3564
  %3867 = vmatmul.mubr.f32.gmra.mxu0 %v3563
  %v3868 = vpop.f32.mrf.mxu0
  %v3869 = vadd.f32 %v3764, %v3868
  %v3870 = vpop.f32.mrf.mxu0
  %3871 = vmatprep.mubr.f32.mxu0 %v3569
  %3872 = vmatmul.mubr.f32.gmra.mxu0 %v3568
  %v3873 = vpop.f32.mrf.mxu0
  %v3874 = vadd.f32 %v3769, %v3873
  %v3875 = vpop.f32.mrf.mxu0
  %3876 = vmatprep.mubr.f32.mxu0 %v3574
  %3877 = vmatmul.mubr.f32.gmra.mxu0 %v3573
  %v3878 = vpop.f32.mrf.mxu0
  %v3879 = vadd.f32 %v3774, %v3878
  %v3880 = vpop.f32.mrf.mxu0
  %3881 = vmatprep.mubr.f32.mxu0 %v3579
  %3882 = vmatmul.mubr.f32.gmra.mxu0 %v3578
  %v3883 = vpop.f32.mrf.mxu0
  %v3884 = vadd.f32 %v3779, %v3883
  %v3885 = vpop.f32.mrf.mxu0
  %3886 = vmatprep.mubr.f32.mxu0 %v3584
  %3887 = vmatmul.mubr.f32.gmra.mxu0 %v3583
  %v3888 = vpop.f32.mrf.mxu0
  %v3889 = vadd.f32 %v3784, %v3888
  %v3890 = vpop.f32.mrf.mxu0
  %3891 = vmatprep.mubr.f32.mxu0 %v3589
  %3892 = vmatmul.mubr.f32.gmra.mxu0 %v3588
  %v3893 = vpop.f32.mrf.mxu0
  %v3894 = vadd.f32 %v3789, %v3893
  %v3895 = vpop.f32.mrf.mxu0
  %3896 = vmatprep.mubr.f32.mxu0 %v3594
  %3897 = vmatmul.mubr.f32.gmra.mxu0 %v3593
  %v3898 = vpop.f32.mrf.mxu0
  %v3899 = vadd.f32 %v3794, %v3898
  %v3900 = vpop.f32.mrf.mxu0
  %3901 = vmatprep.mubr.f32.mxu0 %v3599
  %3902 = vmatmul.mubr.f32.gmra.mxu0 %v3598
  %v3903 = vpop.f32.mrf.mxu0
  %v3904 = vadd.f32 %v3799, %v3903
  %v3905 = vpop.f32.mrf.mxu0
  %3906 = vdwg.mxu0
  %3907 = vmatprep.subr.mxu0 0.0
  %3908 = vmatpush1.msra.mxu0 0.0
  %3909 = vmatprep.subr.mxu0 0.0
  %3910 = vmatpush1.msra.mxu0 0.0
  %3911 = vmatprep.subr.mxu0 0.0
  %3912 = vmatpush1.msra.mxu0 0.0
  %3913 = vmatprep.subr.mxu0 0.0
  %3914 = vmatpush1.msra.mxu0 0.0
  %3915 = vmatprep.subr.mxu0 0.0
  %3916 = vmatpush1.msra.mxu0 0.0
  %3917 = vmatprep.subr.mxu0 0.0
  %3918 = vmatpush1.msra.mxu0 0.0
  %3919 = vmatprep.subr.mxu0 0.0
  %3920 = vmatpush1.msra.mxu0 0.0
  %3921 = vmatprep.subr.mxu0 0.0
  %3922 = vmatpush1.msra.mxu0 0.0
  %3923 = vmatprep.subr.mxu0 0.0
  %3924 = vmatpush1.msra.mxu0 %v3672
  %3925 = vmatprep.subr.mxu0 0.0
  %3926 = vmatpush1.msra.mxu0 %v3671
  %3927 = vmatprep.subr.mxu0 0.0
  %3928 = vmatpush1.msra.mxu0 %v3670
  %3929 = vmatprep.subr.mxu0 0.0
  %3930 = vmatpush1.msra.mxu0 %v3669
  %3931 = vmatprep.subr.mxu0 0.0
  %3932 = vmatpush1.msra.mxu0 %v3668
  %3933 = vmatprep.subr.mxu0 0.0
  %3934 = vmatpush1.msra.mxu0 %v3667
  %3935 = vmatprep.subr.mxu0 0.0
  %3936 = vmatpush1.msra.mxu0 %v3666
  %3937 = vmatprep.subr.mxu0 0.0
  %3938 = vmatpush1.msra.mxu0 %v3665
  %3939 = vmatprep.subr.mxu0 0.0
  %3940 = vmatpush2.msra.mxu0 0.0
  %3941 = vmatprep.subr.mxu0 0.0
  %3942 = vmatpush2.msra.mxu0 0.0
  %3943 = vmatprep.subr.mxu0 0.0
  %3944 = vmatpush2.msra.mxu0 0.0
  %3945 = vmatprep.subr.mxu0 0.0
  %3946 = vmatpush2.msra.mxu0 0.0
  %3947 = vmatprep.subr.mxu0 0.0
  %3948 = vmatpush2.msra.mxu0 0.0
  %3949 = vmatprep.subr.mxu0 0.0
  %3950 = vmatpush2.msra.mxu0 0.0
  %3951 = vmatprep.subr.mxu0 0.0
  %3952 = vmatpush2.msra.mxu0 0.0
  %3953 = vmatprep.subr.mxu0 0.0
  %3954 = vmatpush2.msra.mxu0 0.0
  %3955 = vmatprep.subr.mxu0 0.0
  %3956 = vmatpush2.msra.mxu0 0.0
  %3957 = vmatprep.subr.mxu0 0.0
  %3958 = vmatpush2.msra.mxu0 0.0
  %3959 = vmatprep.subr.mxu0 0.0
  %3960 = vmatpush2.msra.mxu0 0.0
  %3961 = vmatprep.subr.mxu0 0.0
  %3962 = vmatpush2.msra.mxu0 0.0
  %3963 = vmatprep.subr.mxu0 0.0
  %3964 = vmatpush2.msra.mxu0 0.0
  %3965 = vmatprep.subr.mxu0 0.0
  %3966 = vmatpush2.msra.mxu0 0.0
  %3967 = vmatprep.subr.mxu0 0.0
  %3968 = vmatpush2.msra.mxu0 0.0
  %3969 = vmatprep.subr.mxu0 0.0
  %3970 = vmatpush2.msra.mxu0 0.0
  %3971 = vmatprep.mubr.f32.mxu0 0.0
  %3972 = vmatmul.mubr.f32.gmra.mxu0 %v3674
  %v3973 = vpop.f32.mrf.mxu0
  %v3974 = vadd.f32 %v3869, %v3973
  %v3975 = vpop.f32.mrf.mxu0
  %3976 = vmatprep.mubr.f32.mxu0 0.0
  %3977 = vmatmul.mubr.f32.gmra.mxu0 %v3677
  %v3978 = vpop.f32.mrf.mxu0
  %v3979 = vadd.f32 %v3874, %v3978
  %v3980 = vpop.f32.mrf.mxu0
  %3981 = vmatprep.mubr.f32.mxu0 0.0
  %3982 = vmatmul.mubr.f32.gmra.mxu0 %v3680
  %v3983 = vpop.f32.mrf.mxu0
  %v3984 = vadd.f32 %v3879, %v3983
  %v3985 = vpop.f32.mrf.mxu0
  %3986 = vmatprep.mubr.f32.mxu0 0.0
  %3987 = vmatmul.mubr.f32.gmra.mxu0 %v3683
  %v3988 = vpop.f32.mrf.mxu0
  %v3989 = vadd.f32 %v3884, %v3988
  %v3990 = vpop.f32.mrf.mxu0
  %3991 = vmatprep.mubr.f32.mxu0 0.0
  %3992 = vmatmul.mubr.f32.gmra.mxu0 %v3686
  %v3993 = vpop.f32.mrf.mxu0
  %v3994 = vadd.f32 %v3889, %v3993
  %v3995 = vpop.f32.mrf.mxu0
  %3996 = vmatprep.mubr.f32.mxu0 0.0
  %3997 = vmatmul.mubr.f32.gmra.mxu0 %v3689
  %v3998 = vpop.f32.mrf.mxu0
  %v3999 = vadd.f32 %v3894, %v3998
  %v4000 = vpop.f32.mrf.mxu0
  %4001 = vmatprep.mubr.f32.mxu0 0.0
  %4002 = vmatmul.mubr.f32.gmra.mxu0 %v3692
  %v4003 = vpop.f32.mrf.mxu0
  %v4004 = vadd.f32 %v3899, %v4003
  %v4005 = vpop.f32.mrf.mxu0
  %4006 = vmatprep.mubr.f32.mxu0 0.0
  %4007 = vmatmul.mubr.f32.gmra.mxu0 %v3695
  %v4008 = vpop.f32.mrf.mxu0
  %v4009 = vadd.f32 %v3904, %v4008
  %v4010 = vpop.f32.mrf.mxu0
  %4011 = vdwg.mxu0
  %4012 = vst.msk [vmem:[#allocation8] sm:$0xff] %vm23, %v3974
  %4013 = vst.msk [vmem:[#allocation8 + $0x8] sm:$0xff] %vm23, %v3979
  %4014 = vst.msk [vmem:[#allocation8 + $0x10] sm:$0xff] %vm23, %v3984
  %4015 = vst.msk [vmem:[#allocation8 + $0x18] sm:$0xff] %vm23, %v3989
  %4016 = vst.msk [vmem:[#allocation8 + $0x20] sm:$0xff] %vm23, %v3994
  %4017 = vst.msk [vmem:[#allocation8 + $0x28] sm:$0xff] %vm23, %v3999
  %4018 = vst.msk [vmem:[#allocation8 + $0x30] sm:$0xff] %vm23, %v4004
  %4019 = vst.msk [vmem:[#allocation8 + $0x38] sm:$0xff] %vm23, %v4009
  %v4020 = vld [vmem:[#allocation8] sm:$0xff]
  %v4021 = vld [vmem:[#allocation8 + $0x8] sm:$0xff]
  %v4022 = vld [vmem:[#allocation8 + $0x10] sm:$0xff]
  %v4023 = vld [vmem:[#allocation8 + $0x18] sm:$0xff]
  %v4024 = vld [vmem:[#allocation8 + $0x20] sm:$0xff]
  %v4025 = vld [vmem:[#allocation8 + $0x28] sm:$0xff]
  %v4026 = vld [vmem:[#allocation8 + $0x30] sm:$0xff]
  %v4027 = vld [vmem:[#allocation8 + $0x38] sm:$0xff]
  %vm4028 = vcmp.lt.s32.totalorder %v2942, 2
  %vm4029 = vcmp.lt.s32.totalorder %v2943, 2
  %vm4030 = vcmp.lt.s32.totalorder %v2944, 2
  %vm4031 = vcmp.lt.s32.totalorder %v2945, 2
  %vm4032 = vcmp.lt.s32.totalorder %v2946, 2
  %vm4033 = vcmp.lt.s32.totalorder %v2947, 2
  %vm4034 = vcmp.lt.s32.totalorder %v2948, 2
  %vm4035 = vcmp.lt.s32.totalorder %v2949, 2
  %v4036 = vand.u32 %v2974, 3
  %v4037 = vand.u32 %v2975, 3
  %v4038 = vand.u32 %v2976, 3
  %v4039 = vand.u32 %v2977, 3
  %v4040 = vand.u32 %v2978, 3
  %v4041 = vand.u32 %v2979, 3
  %v4042 = vand.u32 %v2980, 3
  %v4043 = vand.u32 %v2981, 3
  %vm4044 = vcmp.lt.s32.totalorder %v4036, 2
  %vm4045 = vcmp.lt.s32.totalorder %v4037, 2
  %vm4046 = vcmp.lt.s32.totalorder %v4038, 2
  %vm4047 = vcmp.lt.s32.totalorder %v4039, 2
  %vm4048 = vcmp.lt.s32.totalorder %v4040, 2
  %vm4049 = vcmp.lt.s32.totalorder %v4041, 2
  %vm4050 = vcmp.lt.s32.totalorder %v4042, 2
  %vm4051 = vcmp.lt.s32.totalorder %v4043, 2
  %vm4052 = vmand %vm4028, %vm4044
  %vm4053 = vmand %vm4029, %vm4045
  %vm4054 = vmand %vm4030, %vm4046
  %vm4055 = vmand %vm4031, %vm4047
  %vm4056 = vmand %vm4032, %vm4048
  %vm4057 = vmand %vm4033, %vm4049
  %vm4058 = vmand %vm4034, %vm4050
  %vm4059 = vmand %vm4035, %vm4051
  %v4060 = vsel %vm4052, %v4020, 0.0
  %v4061 = vsel %vm4053, %v4021, 0.0
  %v4062 = vsel %vm4054, %v4022, 0.0
  %v4063 = vsel %vm4055, %v4023, 0.0
  %v4064 = vsel %vm4056, %v4024, 0.0
  %v4065 = vsel %vm4057, %v4025, 0.0
  %v4066 = vsel %vm4058, %v4026, 0.0
  %v4067 = vsel %vm4059, %v4027, 0.0
  %v4068 = vsel %vm23, %v4060, 0.0
  %v4069 = vsel %vm23, %v4061, 0.0
  %v4070 = vadd.f32 %v4068, %v4069
  %v4071 = vsel %vm23, %v4062, 0.0
  %v4072 = vadd.f32 %v4070, %v4071
  %v4073 = vsel %vm23, %v4063, 0.0
  %v4074 = vadd.f32 %v4072, %v4073
  %v4075 = vsel %vm23, %v4064, 0.0
  %v4076 = vadd.f32 %v4074, %v4075
  %v4077 = vsel %vm23, %v4065, 0.0
  %v4078 = vadd.f32 %v4076, %v4077
  %v4079 = vsel %vm23, %v4066, 0.0
  %v4080 = vadd.f32 %v4078, %v4079
  %v4081 = vsel %vm23, %v4067, 0.0
  %v4082 = vadd.f32 %v4080, %v4081
  %v4083 = vrot.slane %v4082, 4
  %v4084 = vadd.f32 %v4082, %v4083
  %v4085 = vrot.slane %v4084, 2
  %v4086 = vadd.f32 %v4084, %v4085
  %v4087 = vrot.slane %v4086, 1
  %v4088 = vadd.f32 %v4086, %v4087
  %v4089 = vmul.f32 %v4060, %v4020
  %v4090 = vmul.f32 %v4061, %v4021
  %v4091 = vmul.f32 %v4062, %v4022
  %v4092 = vmul.f32 %v4063, %v4023
  %v4093 = vmul.f32 %v4064, %v4024
  %v4094 = vmul.f32 %v4065, %v4025
  %v4095 = vmul.f32 %v4066, %v4026
  %v4096 = vmul.f32 %v4067, %v4027
  %v4097 = vsel %vm23, %v4089, 0.0
  %v4098 = vsel %vm23, %v4090, 0.0
  %v4099 = vadd.f32 %v4097, %v4098
  %v4100 = vsel %vm23, %v4091, 0.0
  %v4101 = vadd.f32 %v4099, %v4100
  %v4102 = vsel %vm23, %v4092, 0.0
  %v4103 = vadd.f32 %v4101, %v4102
  %v4104 = vsel %vm23, %v4093, 0.0
  %v4105 = vadd.f32 %v4103, %v4104
  %v4106 = vsel %vm23, %v4094, 0.0
  %v4107 = vadd.f32 %v4105, %v4106
  %v4108 = vsel %vm23, %v4095, 0.0
  %v4109 = vadd.f32 %v4107, %v4108
  %v4110 = vsel %vm23, %v4096, 0.0
  %v4111 = vadd.f32 %v4109, %v4110
  %v4112 = vrot.slane %v4111, 4
  %v4113 = vadd.f32 %v4111, %v4112
  %v4114 = vrot.slane %v4113, 2
  %v4115 = vadd.f32 %v4113, %v4114
  %v4116 = vrot.slane %v4115, 1
  %v4117 = vadd.f32 %v4115, %v4116
  %v4118 = vmul.f32 %v4088, 0.125
  %v4119 = vmul.f32 %v4117, 0.125
  %v4120 = vmul.f32 %v4118, %v4118
  %v4121 = vsub.f32 %v4119, %v4120
  %v4122 = vld [vmem:[%s5 + $0x4] sm:$0x1]
  %v4123 = vld [vmem:[%s5 + $0x5] sm:$0x1]
  %v4124 = vadd.f32 %v4121, 1e-05
  %v4125 = vrsqrt.pop %v4124
  %v4126 = vmul.f32 %v4122, %v4125
  %v4127 = vsub.f32 %v4020, %v4118
  %v4128 = vsub.f32 %v4021, %v4118
  %v4129 = vsub.f32 %v4022, %v4118
  %v4130 = vsub.f32 %v4023, %v4118
  %v4131 = vsub.f32 %v4024, %v4118
  %v4132 = vsub.f32 %v4025, %v4118
  %v4133 = vsub.f32 %v4026, %v4118
  %v4134 = vsub.f32 %v4027, %v4118
  %v4135 = vlaneseq
  %v4136 = vshrl.u32 %v4135, 7
  %v4137 = vsub.s32 0, %v4136
  %v4138 = vrot.slane %v4126, %v4137
  %v4139 = vmul.f32 %v4127, %v4138
  %v4140 = vmul.f32 %v4128, %v4138
  %v4141 = vmul.f32 %v4129, %v4138
  %v4142 = vmul.f32 %v4130, %v4138
  %v4143 = vmul.f32 %v4131, %v4138
  %v4144 = vmul.f32 %v4132, %v4138
  %v4145 = vmul.f32 %v4133, %v4138
  %v4146 = vmul.f32 %v4134, %v4138
  %v4147 = vlaneseq
  %v4148 = vshrl.u32 %v4147, 7
  %v4149 = vsub.s32 0, %v4148
  %v4150 = vrot.slane %v4123, %v4149
  %v4151 = vadd.f32 %v4139, %v4150
  %v4152 = vadd.f32 %v4140, %v4150
  %v4153 = vadd.f32 %v4141, %v4150
  %v4154 = vadd.f32 %v4142, %v4150
  %v4155 = vadd.f32 %v4143, %v4150
  %v4156 = vadd.f32 %v4144, %v4150
  %v4157 = vadd.f32 %v4145, %v4150
  %v4158 = vadd.f32 %v4146, %v4150
  %v4159 = vmax.f32 %v4151, 0.0
  %v4160 = vmax.f32 %v4152, 0.0
  %v4161 = vmax.f32 %v4153, 0.0
  %v4162 = vmax.f32 %v4154, 0.0
  %v4163 = vmax.f32 %v4155, 0.0
  %v4164 = vmax.f32 %v4156, 0.0
  %v4165 = vmax.f32 %v4157, 0.0
  %v4166 = vmax.f32 %v4158, 0.0
  %4167 = vst.msk [vmem:[#allocation8] sm:$0xff] %vm23, %v4159
  %4168 = vst.msk [vmem:[#allocation8 + $0x8] sm:$0xff] %vm23, %v4160
  %4169 = vst.msk [vmem:[#allocation8 + $0x10] sm:$0xff] %vm23, %v4161
  %4170 = vst.msk [vmem:[#allocation8 + $0x18] sm:$0xff] %vm23, %v4162
  %4171 = vst.msk [vmem:[#allocation8 + $0x20] sm:$0xff] %vm23, %v4163
  %4172 = vst.msk [vmem:[#allocation8 + $0x28] sm:$0xff] %vm23, %v4164
  %4173 = vst.msk [vmem:[#allocation8 + $0x30] sm:$0xff] %vm23, %v4165
  %4174 = vst.msk [vmem:[#allocation8 + $0x38] sm:$0xff] %vm23, %v4166
  %v4175 = vld [vmem:[#allocation8] sm:$0x3]
  %4176 = vst.msk [vmem:[#allocation9 + $0x9] sm:$0x3] %vm3251, %v4175
  %v4177 = vld [vmem:[#allocation8 + $0x8] sm:$0x3]
  %4178 = vst.msk [vmem:[#allocation9 + $0x11] sm:$0x3] %vm3251, %v4177
  %v4179 = vld [vmem:[#allocation8 + $0x20] sm:$0x3]
  %4180 = vst.msk [vmem:[#allocation9 + $0x29] sm:$0x3] %vm3251, %v4179
  %v4181 = vld [vmem:[#allocation8 + $0x28] sm:$0x3]
  %4182 = vst.msk [vmem:[#allocation9 + $0x31] sm:$0x3] %vm3251, %v4181
  %v4183 = vld [vmem:[#allocation9] sm:$0xff]
  %v4184 = vld [vmem:[#allocation9 + $0x8] sm:$0xff]
  %v4185 = vld [vmem:[#allocation9 + $0x10] sm:$0xff]
  %v4186 = vld [vmem:[#allocation9 + $0x18] sm:$0xff]
  %v4187 = vld [vmem:[#allocation9 + $0x20] sm:$0xff]
  %v4188 = vld [vmem:[#allocation9 + $0x28] sm:$0xff]
  %v4189 = vld [vmem:[#allocation9 + $0x30] sm:$0xff]
  %v4190 = vld [vmem:[#allocation9 + $0x38] sm:$0xff]
  %4191 = vst.msk [vmem:[#allocation7] sm:$0xff] %vm23, %v4183
  %4192 = vst.msk [vmem:[#allocation7 + $0x28] sm:$0xff] %vm23, %v4184
  %4193 = vst.msk [vmem:[#allocation7 + $0x50] sm:$0xff] %vm23, %v4185
  %4194 = vst.msk [vmem:[#allocation7 + $0x78] sm:$0xff] %vm23, %v4186
  %4195 = vst.msk [vmem:[#allocation7 + $0xa0] sm:$0xff] %vm23, %v4187
  %4196 = vst.msk [vmem:[#allocation7 + $0xc8] sm:$0xff] %vm23, %v4188
  %4197 = vst.msk [vmem:[#allocation7 + $0xf0] sm:$0xff] %vm23, %v4189
  %4198 = vst.msk [vmem:[#allocation7 + $0x118] sm:$0xff] %vm23, %v4190
  %v4199 = vld [vmem:[#allocation9 + $0x1] sm:$0xff]
  %v4200 = vld [vmem:[#allocation9 + $0x9] sm:$0xff]
  %v4201 = vld [vmem:[#allocation9 + $0x11] sm:$0xff]
  %v4202 = vld [vmem:[#allocation9 + $0x19] sm:$0xff]
  %v4203 = vld [vmem:[#allocation9 + $0x21] sm:$0xff]
  %v4204 = vld [vmem:[#allocation9 + $0x29] sm:$0xff]
  %v4205 = vld [vmem:[#allocation9 + $0x31] sm:$0xff]
  %v4206 = vld [vmem:[#allocation9 + $0x39] sm:$0xff]
  %4215 = vrot.lane.b32.xlu0 %v4199, 64
  %v4216 = vpop.permute.xlu0 %4215
  %4217 = vrot.lane.b32.xlu0 %v4200, 64
  %v4218 = vpop.permute.xlu0 %4217
  %4219 = vrot.lane.b32.xlu0 %v4201, 64
  %v4220 = vpop.permute.xlu0 %4219
  %4221 = vrot.lane.b32.xlu0 %v4202, 64
  %v4222 = vpop.permute.xlu0 %4221
  %4223 = vrot.lane.b32.xlu0 %v4203, 64
  %v4224 = vpop.permute.xlu0 %4223
  %4225 = vrot.lane.b32.xlu0 %v4204, 64
  %v4226 = vpop.permute.xlu0 %4225
  %4227 = vrot.lane.b32.xlu0 %v4205, 64
  %v4228 = vpop.permute.xlu0 %4227
  %4229 = vrot.lane.b32.xlu0 %v4206, 64
  %v4230 = vpop.permute.xlu0 %4229
  %4239 = vst.msk [vmem:[#allocation7] sm:$0xff] %vm1842, %v4216
  %4240 = vst.msk [vmem:[#allocation7 + $0x28] sm:$0xff] %vm1842, %v4218
  %4241 = vst.msk [vmem:[#allocation7 + $0x50] sm:$0xff] %vm1842, %v4220
  %4242 = vst.msk [vmem:[#allocation7 + $0x78] sm:$0xff] %vm1842, %v4222
  %4243 = vst.msk [vmem:[#allocation7 + $0xa0] sm:$0xff] %vm1842, %v4224
  %4244 = vst.msk [vmem:[#allocation7 + $0xc8] sm:$0xff] %vm1842, %v4226
  %4245 = vst.msk [vmem:[#allocation7 + $0xf0] sm:$0xff] %vm1842, %v4228
  %4246 = vst.msk [vmem:[#allocation7 + $0x118] sm:$0xff] %vm1842, %v4230
  %v4247 = vld [vmem:[#allocation9 + $0x2] sm:$0xff]
  %v4248 = vld [vmem:[#allocation9 + $0xa] sm:$0xff]
  %v4249 = vld [vmem:[#allocation9 + $0x12] sm:$0xff]
  %v4250 = vld [vmem:[#allocation9 + $0x1a] sm:$0xff]
  %v4251 = vld [vmem:[#allocation9 + $0x22] sm:$0xff]
  %v4252 = vld [vmem:[#allocation9 + $0x2a] sm:$0xff]
  %v4253 = vld [vmem:[#allocation9 + $0x32] sm:$0xff]
  %v4254 = vld [vmem:[#allocation9 + $0x3a] sm:$0xff]
  %4255 = vst.msk [vmem:[#allocation7 + $0x8] sm:$0xff] %vm23, %v4247
  %4256 = vst.msk [vmem:[#allocation7 + $0x30] sm:$0xff] %vm23, %v4248
  %4257 = vst.msk [vmem:[#allocation7 + $0x58] sm:$0xff] %vm23, %v4249
  %4258 = vst.msk [vmem:[#allocation7 + $0x80] sm:$0xff] %vm23, %v4250
  %4259 = vst.msk [vmem:[#allocation7 + $0xa8] sm:$0xff] %vm23, %v4251
  %4260 = vst.msk [vmem:[#allocation7 + $0xd0] sm:$0xff] %vm23, %v4252
  %4261 = vst.msk [vmem:[#allocation7 + $0xf8] sm:$0xff] %vm23, %v4253
  %4262 = vst.msk [vmem:[#allocation7 + $0x120] sm:$0xff] %vm23, %v4254
  %v4263 = vld [vmem:[#allocation9 + $0x8] sm:$0xff]
  %v4264 = vld [vmem:[#allocation9 + $0x10] sm:$0xff]
  %v4265 = vld [vmem:[#allocation9 + $0x18] sm:$0xff]
  %v4266 = vld [vmem:[#allocation9 + $0x20] sm:$0xff]
  %v4267 = vld [vmem:[#allocation9 + $0x28] sm:$0xff]
  %v4268 = vld [vmem:[#allocation9 + $0x30] sm:$0xff]
  %v4269 = vld [vmem:[#allocation9 + $0x38] sm:$0xff]
  %v4270 = vld [vmem:[#allocation9 + $0x40] sm:$0xff]
  %4279 = vrot.lane.b32.xlu0 %v4263, 64
  %v4280 = vpop.permute.xlu0 %4279
  %4281 = vrot.lane.b32.xlu0 %v4264, 64
  %v4282 = vpop.permute.xlu0 %4281
  %4283 = vrot.lane.b32.xlu0 %v4265, 64
  %v4284 = vpop.permute.xlu0 %4283
  %4285 = vrot.lane.b32.xlu0 %v4266, 64
  %v4286 = vpop.permute.xlu0 %4285
  %4287 = vrot.lane.b32.xlu0 %v4267, 64
  %v4288 = vpop.permute.xlu0 %4287
  %4289 = vrot.lane.b32.xlu0 %v4268, 64
  %v4290 = vpop.permute.xlu0 %4289
  %4291 = vrot.lane.b32.xlu0 %v4269, 64
  %v4292 = vpop.permute.xlu0 %4291
  %4293 = vrot.lane.b32.xlu0 %v4270, 64
  %v4294 = vpop.permute.xlu0 %4293
  %4303 = vst.msk [vmem:[#allocation7 + $0x8] sm:$0xff] %vm1842, %v4280
  %4304 = vst.msk [vmem:[#allocation7 + $0x30] sm:$0xff] %vm1842, %v4282
  %4305 = vst.msk [vmem:[#allocation7 + $0x58] sm:$0xff] %vm1842, %v4284
  %4306 = vst.msk [vmem:[#allocation7 + $0x80] sm:$0xff] %vm1842, %v4286
  %4307 = vst.msk [vmem:[#allocation7 + $0xa8] sm:$0xff] %vm1842, %v4288
  %4308 = vst.msk [vmem:[#allocation7 + $0xd0] sm:$0xff] %vm1842, %v4290
  %4309 = vst.msk [vmem:[#allocation7 + $0xf8] sm:$0xff] %vm1842, %v4292
  %4310 = vst.msk [vmem:[#allocation7 + $0x120] sm:$0xff] %vm1842, %v4294
  %v4311 = vld [vmem:[#allocation9 + $0x9] sm:$0xff]
  %v4312 = vld [vmem:[#allocation9 + $0x11] sm:$0xff]
  %v4313 = vld [vmem:[#allocation9 + $0x19] sm:$0xff]
  %v4314 = vld [vmem:[#allocation9 + $0x21] sm:$0xff]
  %v4315 = vld [vmem:[#allocation9 + $0x29] sm:$0xff]
  %v4316 = vld [vmem:[#allocation9 + $0x31] sm:$0xff]
  %v4317 = vld [vmem:[#allocation9 + $0x39] sm:$0xff]
  %v4318 = vld [vmem:[#allocation9 + $0x41] sm:$0xff]
  %4319 = vst.msk [vmem:[#allocation7 + $0x10] sm:$0xff] %vm23, %v4311
  %4320 = vst.msk [vmem:[#allocation7 + $0x38] sm:$0xff] %vm23, %v4312
  %4321 = vst.msk [vmem:[#allocation7 + $0x60] sm:$0xff] %vm23, %v4313
  %4322 = vst.msk [vmem:[#allocation7 + $0x88] sm:$0xff] %vm23, %v4314
  %4323 = vst.msk [vmem:[#allocation7 + $0xb0] sm:$0xff] %vm23, %v4315
  %4324 = vst.msk [vmem:[#allocation7 + $0xd8] sm:$0xff] %vm23, %v4316
  %4325 = vst.msk [vmem:[#allocation7 + $0x100] sm:$0xff] %vm23, %v4317
  %4326 = vst.msk [vmem:[#allocation7 + $0x128] sm:$0xff] %vm23, %v4318
  %v4327 = vld [vmem:[#allocation9 + $0xa] sm:$0xff]
  %v4328 = vld [vmem:[#allocation9 + $0x12] sm:$0xff]
  %v4329 = vld [vmem:[#allocation9 + $0x1a] sm:$0xff]
  %v4330 = vld [vmem:[#allocation9 + $0x22] sm:$0xff]
  %v4331 = vld [vmem:[#allocation9 + $0x2a] sm:$0xff]
  %v4332 = vld [vmem:[#allocation9 + $0x32] sm:$0xff]
  %v4333 = vld [vmem:[#allocation9 + $0x3a] sm:$0xff]
  %v4334 = vld [vmem:[#allocation9 + $0x42] sm:$0xff]
  %4343 = vrot.lane.b32.xlu0 %v4327, 64
  %v4344 = vpop.permute.xlu0 %4343
  %4345 = vrot.lane.b32.xlu0 %v4328, 64
  %v4346 = vpop.permute.xlu0 %4345
  %4347 = vrot.lane.b32.xlu0 %v4329, 64
  %v4348 = vpop.permute.xlu0 %4347
  %4349 = vrot.lane.b32.xlu0 %v4330, 64
  %v4350 = vpop.permute.xlu0 %4349
  %4351 = vrot.lane.b32.xlu0 %v4331, 64
  %v4352 = vpop.permute.xlu0 %4351
  %4353 = vrot.lane.b32.xlu0 %v4332, 64
  %v4354 = vpop.permute.xlu0 %4353
  %4355 = vrot.lane.b32.xlu0 %v4333, 64
  %v4356 = vpop.permute.xlu0 %4355
  %4357 = vrot.lane.b32.xlu0 %v4334, 64
  %v4358 = vpop.permute.xlu0 %4357
  %4367 = vst.msk [vmem:[#allocation7 + $0x10] sm:$0xff] %vm1842, %v4344
  %4368 = vst.msk [vmem:[#allocation7 + $0x38] sm:$0xff] %vm1842, %v4346
  %4369 = vst.msk [vmem:[#allocation7 + $0x60] sm:$0xff] %vm1842, %v4348
  %4370 = vst.msk [vmem:[#allocation7 + $0x88] sm:$0xff] %vm1842, %v4350
  %4371 = vst.msk [vmem:[#allocation7 + $0xb0] sm:$0xff] %vm1842, %v4352
  %4372 = vst.msk [vmem:[#allocation7 + $0xd8] sm:$0xff] %vm1842, %v4354
  %4373 = vst.msk [vmem:[#allocation7 + $0x100] sm:$0xff] %vm1842, %v4356
  %4374 = vst.msk [vmem:[#allocation7 + $0x128] sm:$0xff] %vm1842, %v4358
  %v4375 = vld [vmem:[#allocation9 + $0x10] sm:$0xff]
  %v4376 = vld [vmem:[#allocation9 + $0x18] sm:$0xff]
  %v4377 = vld [vmem:[#allocation9 + $0x20] sm:$0xff]
  %v4378 = vld [vmem:[#allocation9 + $0x28] sm:$0xff]
  %v4379 = vld [vmem:[#allocation9 + $0x30] sm:$0xff]
  %v4380 = vld [vmem:[#allocation9 + $0x38] sm:$0xff]
  %v4381 = vld [vmem:[#allocation9 + $0x40] sm:$0xff]
  %v4382 = vld [vmem:[#allocation9 + $0x48] sm:$0xff]
  %4383 = vst.msk [vmem:[#allocation7 + $0x18] sm:$0xff] %vm23, %v4375
  %4384 = vst.msk [vmem:[#allocation7 + $0x40] sm:$0xff] %vm23, %v4376
  %4385 = vst.msk [vmem:[#allocation7 + $0x68] sm:$0xff] %vm23, %v4377
  %4386 = vst.msk [vmem:[#allocation7 + $0x90] sm:$0xff] %vm23, %v4378
  %4387 = vst.msk [vmem:[#allocation7 + $0xb8] sm:$0xff] %vm23, %v4379
  %4388 = vst.msk [vmem:[#allocation7 + $0xe0] sm:$0xff] %vm23, %v4380
  %4389 = vst.msk [vmem:[#allocation7 + $0x108] sm:$0xff] %vm23, %v4381
  %4390 = vst.msk [vmem:[#allocation7 + $0x130] sm:$0xff] %vm23, %v4382
  %v4391 = vld [vmem:[#allocation9 + $0x11] sm:$0xff]
  %v4392 = vld [vmem:[#allocation9 + $0x19] sm:$0xff]
  %v4393 = vld [vmem:[#allocation9 + $0x21] sm:$0xff]
  %v4394 = vld [vmem:[#allocation9 + $0x29] sm:$0xff]
  %v4395 = vld [vmem:[#allocation9 + $0x31] sm:$0xff]
  %v4396 = vld [vmem:[#allocation9 + $0x39] sm:$0xff]
  %v4397 = vld [vmem:[#allocation9 + $0x41] sm:$0xff]
  %v4398 = vld [vmem:[#allocation9 + $0x49] sm:$0xff]
  %4407 = vrot.lane.b32.xlu0 %v4391, 64
  %v4408 = vpop.permute.xlu0 %4407
  %4409 = vrot.lane.b32.xlu0 %v4392, 64
  %v4410 = vpop.permute.xlu0 %4409
  %4411 = vrot.lane.b32.xlu0 %v4393, 64
  %v4412 = vpop.permute.xlu0 %4411
  %4413 = vrot.lane.b32.xlu0 %v4394, 64
  %v4414 = vpop.permute.xlu0 %4413
  %4415 = vrot.lane.b32.xlu0 %v4395, 64
  %v4416 = vpop.permute.xlu0 %4415
  %4417 = vrot.lane.b32.xlu0 %v4396, 64
  %v4418 = vpop.permute.xlu0 %4417
  %4419 = vrot.lane.b32.xlu0 %v4397, 64
  %v4420 = vpop.permute.xlu0 %4419
  %4421 = vrot.lane.b32.xlu0 %v4398, 64
  %v4422 = vpop.permute.xlu0 %4421
  %4431 = vst.msk [vmem:[#allocation7 + $0x18] sm:$0xff] %vm1842, %v4408
  %4432 = vst.msk [vmem:[#allocation7 + $0x40] sm:$0xff] %vm1842, %v4410
  %4433 = vst.msk [vmem:[#allocation7 + $0x68] sm:$0xff] %vm1842, %v4412
  %4434 = vst.msk [vmem:[#allocation7 + $0x90] sm:$0xff] %vm1842, %v4414
  %4435 = vst.msk [vmem:[#allocation7 + $0xb8] sm:$0xff] %vm1842, %v4416
  %4436 = vst.msk [vmem:[#allocation7 + $0xe0] sm:$0xff] %vm1842, %v4418
  %4437 = vst.msk [vmem:[#allocation7 + $0x108] sm:$0xff] %vm1842, %v4420
  %4438 = vst.msk [vmem:[#allocation7 + $0x130] sm:$0xff] %vm1842, %v4422
  %v4439 = vld [vmem:[#allocation9 + $0x12] sm:$0xff]
  %v4440 = vld [vmem:[#allocation9 + $0x1a] sm:$0xff]
  %v4441 = vld [vmem:[#allocation9 + $0x22] sm:$0xff]
  %v4442 = vld [vmem:[#allocation9 + $0x2a] sm:$0xff]
  %v4443 = vld [vmem:[#allocation9 + $0x32] sm:$0xff]
  %v4444 = vld [vmem:[#allocation9 + $0x3a] sm:$0xff]
  %v4445 = vld [vmem:[#allocation9 + $0x42] sm:$0xff]
  %v4446 = vld [vmem:[#allocation9 + $0x4a] sm:$0xff]
  %4447 = vst.msk [vmem:[#allocation7 + $0x20] sm:$0xff] %vm23, %v4439
  %4448 = vst.msk [vmem:[#allocation7 + $0x48] sm:$0xff] %vm23, %v4440
  %4449 = vst.msk [vmem:[#allocation7 + $0x70] sm:$0xff] %vm23, %v4441
  %4450 = vst.msk [vmem:[#allocation7 + $0x98] sm:$0xff] %vm23, %v4442
  %4451 = vst.msk [vmem:[#allocation7 + $0xc0] sm:$0xff] %vm23, %v4443
  %4452 = vst.msk [vmem:[#allocation7 + $0xe8] sm:$0xff] %vm23, %v4444
  %4453 = vst.msk [vmem:[#allocation7 + $0x110] sm:$0xff] %vm23, %v4445
  %4454 = vst.msk [vmem:[#allocation7 + $0x138] sm:$0xff] %vm23, %v4446
  %v4455 = vld [vmem:[#allocation7] sm:$0xff]
  %v4456 = vld [vmem:[#allocation7 + $0x8] sm:$0xff]
  %v4457 = vld [vmem:[#allocation7 + $0x10] sm:$0xff]
  %v4458 = vld [vmem:[#allocation7 + $0x18] sm:$0xff]
  %v4459 = vld [vmem:[#allocation7 + $0x20] sm:$0xff]
  %v4460 = vld [vmem:[#allocation7 + $0x28] sm:$0xff]
  %v4461 = vld [vmem:[#allocation7 + $0x30] sm:$0xff]
  %v4462 = vld [vmem:[#allocation7 + $0x38] sm:$0xff]
  %v4463 = vld [vmem:[#allocation7 + $0x40] sm:$0xff]
  %v4464 = vld [vmem:[#allocation7 + $0x48] sm:$0xff]
  %v4465 = vld [vmem:[#allocation7 + $0x50] sm:$0xff]
  %v4466 = vld [vmem:[#allocation7 + $0x58] sm:$0xff]
  %v4467 = vld [vmem:[#allocation7 + $0x60] sm:$0xff]
  %v4468 = vld [vmem:[#allocation7 + $0x68] sm:$0xff]
  %v4469 = vld [vmem:[#allocation7 + $0x70] sm:$0xff]
  %v4470 = vld [vmem:[#allocation7 + $0x78] sm:$0xff]
  %v4471 = vld [vmem:[#allocation7 + $0x80] sm:$0xff]
  %v4472 = vld [vmem:[#allocation7 + $0x88] sm:$0xff]
  %v4473 = vld [vmem:[#allocation7 + $0x90] sm:$0xff]
  %v4474 = vld [vmem:[#allocation7 + $0x98] sm:$0xff]
  %v4475 = vld [vmem:[#allocation7 + $0xa0] sm:$0xff]
  %v4476 = vld [vmem:[#allocation7 + $0xa8] sm:$0xff]
  %v4477 = vld [vmem:[#allocation7 + $0xb0] sm:$0xff]
  %v4478 = vld [vmem:[#allocation7 + $0xb8] sm:$0xff]
  %v4479 = vld [vmem:[#allocation7 + $0xc0] sm:$0xff]
  %v4480 = vld [vmem:[#allocation7 + $0xc8] sm:$0xff]
  %v4481 = vld [vmem:[#allocation7 + $0xd0] sm:$0xff]
  %v4482 = vld [vmem:[#allocation7 + $0xd8] sm:$0xff]
  %v4483 = vld [vmem:[#allocation7 + $0xe0] sm:$0xff]
  %v4484 = vld [vmem:[#allocation7 + $0xe8] sm:$0xff]
  %v4485 = vld [vmem:[#allocation7 + $0xf0] sm:$0xff]
  %v4486 = vld [vmem:[#allocation7 + $0xf8] sm:$0xff]
  %v4487 = vld [vmem:[#allocation7 + $0x100] sm:$0xff]
  %v4488 = vld [vmem:[#allocation7 + $0x108] sm:$0xff]
  %v4489 = vld [vmem:[#allocation7 + $0x110] sm:$0xff]
  %v4490 = vld [vmem:[#allocation7 + $0x118] sm:$0xff]
  %v4491 = vld [vmem:[#allocation7 + $0x120] sm:$0xff]
  %v4492 = vld [vmem:[#allocation7 + $0x128] sm:$0xff]
  %v4493 = vld [vmem:[#allocation7 + $0x130] sm:$0xff]
  %v4494 = vld [vmem:[#allocation7 + $0x138] sm:$0xff]
  %v4495 = vld [vmem:[%s4] sm:$0xff]
  %v4496 = vld [vmem:[%s4 + $0x8] sm:$0xff]
  %v4497 = vld [vmem:[%s4 + $0x10] sm:$0xff]
  %v4498 = vld [vmem:[%s4 + $0x18] sm:$0xff]
  %v4499 = vld [vmem:[%s4 + $0x20] sm:$0xff]
  %v4500 = vld [vmem:[%s4 + $0x28] sm:$0xff]
  %v4501 = vld [vmem:[%s4 + $0x30] sm:$0xff]
  %v4502 = vld [vmem:[%s4 + $0x38] sm:$0xff]
  %v4503 = vld [vmem:[%s4 + $0x40] sm:$0xff]
  %v4504 = vld [vmem:[%s4 + $0x48] sm:$0xff]
  %v4505 = vld [vmem:[%s4 + $0x50] sm:$0xff]
  %v4506 = vld [vmem:[%s4 + $0x58] sm:$0xff]
  %v4507 = vld [vmem:[%s4 + $0x60] sm:$0xff]
  %v4508 = vld [vmem:[%s4 + $0x68] sm:$0xff]
  %v4509 = vld [vmem:[%s4 + $0x70] sm:$0xff]
  %v4510 = vld [vmem:[%s4 + $0x78] sm:$0xff]
  %v4511 = vld [vmem:[%s4 + $0x80] sm:$0xff]
  %v4512 = vld [vmem:[%s4 + $0x88] sm:$0xff]
  %v4513 = vld [vmem:[%s4 + $0x90] sm:$0xff]
  %v4514 = vld [vmem:[%s4 + $0x98] sm:$0xff]
  %v4515 = vld [vmem:[%s4 + $0xa0] sm:$0xff]
  %v4516 = vld [vmem:[%s4 + $0xa8] sm:$0xff]
  %v4517 = vld [vmem:[%s4 + $0xb0] sm:$0xff]
  %v4518 = vld [vmem:[%s4 + $0xb8] sm:$0xff]
  %v4519 = vld [vmem:[%s4 + $0xc0] sm:$0xff]
  %v4520 = vld [vmem:[%s4 + $0xc8] sm:$0xff]
  %v4521 = vld [vmem:[%s4 + $0xd0] sm:$0xff]
  %v4522 = vld [vmem:[%s4 + $0xd8] sm:$0xff]
  %v4523 = vld [vmem:[%s4 + $0xe0] sm:$0xff]
  %v4524 = vld [vmem:[%s4 + $0xe8] sm:$0xff]
  %v4525 = vld [vmem:[%s4 + $0xf0] sm:$0xff]
  %v4526 = vld [vmem:[%s4 + $0xf8] sm:$0xff]
  %v4527 = vld [vmem:[%s4 + $0x100] sm:$0xff]
  %v4528 = vld [vmem:[%s4 + $0x108] sm:$0xff]
  %v4529 = vld [vmem:[%s4 + $0x110] sm:$0xff]
  %v4530 = vld [vmem:[%s4 + $0x118] sm:$0xff]
  %v4531 = vld [vmem:[%s4 + $0x120] sm:$0xff]
  %v4532 = vld [vmem:[%s4 + $0x128] sm:$0xff]
  %v4533 = vld [vmem:[%s4 + $0x130] sm:$0xff]
  %v4534 = vld [vmem:[%s4 + $0x138] sm:$0xff]
  %v4535 = vld [vmem:[%s4 + $0x140] sm:$0xff]
  %v4536 = vld [vmem:[%s4 + $0x148] sm:$0xff]
  %v4537 = vld [vmem:[%s4 + $0x150] sm:$0xff]
  %v4538 = vld [vmem:[%s4 + $0x158] sm:$0xff]
  %v4539 = vld [vmem:[%s4 + $0x160] sm:$0xff]
  %v4540 = vld [vmem:[%s4 + $0x168] sm:$0xff]
  %v4541 = vld [vmem:[%s4 + $0x170] sm:$0xff]
  %v4542 = vld [vmem:[%s4 + $0x178] sm:$0xff]
  %v4543 = vld [vmem:[%s4 + $0x180] sm:$0xff]
  %v4544 = vld [vmem:[%s4 + $0x188] sm:$0xff]
  %v4545 = vld [vmem:[%s4 + $0x190] sm:$0xff]
  %v4546 = vld [vmem:[%s4 + $0x198] sm:$0xff]
  %v4547 = vld [vmem:[%s4 + $0x1a0] sm:$0xff]
  %v4548 = vld [vmem:[%s4 + $0x1a8] sm:$0xff]
  %v4549 = vld [vmem:[%s4 + $0x1b0] sm:$0xff]
  %v4550 = vld [vmem:[%s4 + $0x1b8] sm:$0xff]
  %v4551 = vld [vmem:[%s4 + $0x1c0] sm:$0xff]
  %v4552 = vld [vmem:[%s4 + $0x1c8] sm:$0xff]
  %v4553 = vld [vmem:[%s4 + $0x1d0] sm:$0xff]
  %v4554 = vld [vmem:[%s4 + $0x1d8] sm:$0xff]
  %v4555 = vld [vmem:[%s4 + $0x1e0] sm:$0xff]
  %v4556 = vld [vmem:[%s4 + $0x1e8] sm:$0xff]
  %v4557 = vld [vmem:[%s4 + $0x1f0] sm:$0xff]
  %v4558 = vld [vmem:[%s4 + $0x1f8] sm:$0xff]
  %v4559 = vld [vmem:[%s4 + $0x200] sm:$0xff]
  %v4560 = vld [vmem:[%s4 + $0x208] sm:$0xff]
  %v4561 = vld [vmem:[%s4 + $0x210] sm:$0xff]
  %v4562 = vld [vmem:[%s4 + $0x218] sm:$0xff]
  %v4563 = vld [vmem:[%s4 + $0x220] sm:$0xff]
  %v4564 = vld [vmem:[%s4 + $0x228] sm:$0xff]
  %v4565 = vld [vmem:[%s4 + $0x230] sm:$0xff]
  %v4566 = vld [vmem:[%s4 + $0x238] sm:$0xff]
  %v4568 = vsel %vm23, %v4459, 0
  %v4571 = vsel %vm23, %v4464, 0
  %v4574 = vsel %vm23, %v4469, 0
  %v4577 = vsel %vm23, %v4474, 0
  %v4580 = vsel %vm23, %v4479, 0
  %v4583 = vsel %vm23, %v4484, 0
  %v4586 = vsel %vm23, %v4489, 0
  %v4589 = vsel %vm23, %v4494, 0
  %4591 = vmatprep.subr.mxu0 0.0
  %4592 = vmatpush1.msra.mxu0 %v4510
  %4593 = vmatprep.subr.mxu0 0.0
  %4594 = vmatpush1.msra.mxu0 %v4509
  %4595 = vmatprep.subr.mxu0 0.0
  %4596 = vmatpush1.msra.mxu0 %v4508
  %4597 = vmatprep.subr.mxu0 0.0
  %4598 = vmatpush1.msra.mxu0 %v4507
  %4599 = vmatprep.subr.mxu0 0.0
  %4600 = vmatpush1.msra.mxu0 %v4506
  %4601 = vmatprep.subr.mxu0 0.0
  %4602 = vmatpush1.msra.mxu0 %v4505
  %4603 = vmatprep.subr.mxu0 0.0
  %4604 = vmatpush1.msra.mxu0 %v4504
  %4605 = vmatprep.subr.mxu0 0.0
  %4606 = vmatpush1.msra.mxu0 %v4503
  %4607 = vmatprep.subr.mxu0 0.0
  %4608 = vmatpush1.msra.mxu0 %v4502
  %4609 = vmatprep.subr.mxu0 0.0
  %4610 = vmatpush1.msra.mxu0 %v4501
  %4611 = vmatprep.subr.mxu0 0.0
  %4612 = vmatpush1.msra.mxu0 %v4500
  %4613 = vmatprep.subr.mxu0 0.0
  %4614 = vmatpush1.msra.mxu0 %v4499
  %4615 = vmatprep.subr.mxu0 0.0
  %4616 = vmatpush1.msra.mxu0 %v4498
  %4617 = vmatprep.subr.mxu0 0.0
  %4618 = vmatpush1.msra.mxu0 %v4497
  %4619 = vmatprep.subr.mxu0 0.0
  %4620 = vmatpush1.msra.mxu0 %v4496
  %4621 = vmatprep.subr.mxu0 0.0
  %4622 = vmatpush1.msra.mxu0 %v4495
  %4623 = vmatprep.subr.mxu0 0.0
  %4624 = vmatpush2.msra.mxu0 %v4526
  %4625 = vmatprep.subr.mxu0 0.0
  %4626 = vmatpush2.msra.mxu0 %v4525
  %4627 = vmatprep.subr.mxu0 0.0
  %4628 = vmatpush2.msra.mxu0 %v4524
  %4629 = vmatprep.subr.mxu0 0.0
  %4630 = vmatpush2.msra.mxu0 %v4523
  %4631 = vmatprep.subr.mxu0 0.0
  %4632 = vmatpush2.msra.mxu0 %v4522
  %4633 = vmatprep.subr.mxu0 0.0
  %4634 = vmatpush2.msra.mxu0 %v4521
  %4635 = vmatprep.subr.mxu0 0.0
  %4636 = vmatpush2.msra.mxu0 %v4520
  %4637 = vmatprep.subr.mxu0 0.0
  %4638 = vmatpush2.msra.mxu0 %v4519
  %4639 = vmatprep.subr.mxu0 0.0
  %4640 = vmatpush2.msra.mxu0 %v4518
  %4641 = vmatprep.subr.mxu0 0.0
  %4642 = vmatpush2.msra.mxu0 %v4517
  %4643 = vmatprep.subr.mxu0 0.0
  %4644 = vmatpush2.msra.mxu0 %v4516
  %4645 = vmatprep.subr.mxu0 0.0
  %4646 = vmatpush2.msra.mxu0 %v4515
  %4647 = vmatprep.subr.mxu0 0.0
  %4648 = vmatpush2.msra.mxu0 %v4514
  %4649 = vmatprep.subr.mxu0 0.0
  %4650 = vmatpush2.msra.mxu0 %v4513
  %4651 = vmatprep.subr.mxu0 0.0
  %4652 = vmatpush2.msra.mxu0 %v4512
  %4653 = vmatprep.subr.mxu0 0.0
  %4654 = vmatpush2.msra.mxu0 %v4511
  %4655 = vmatprep.mubr.f32.mxu0 %v4456
  %4656 = vmatmul.mubr.f32.gmra.mxu0 %v4455
  %v4657 = vpop.f32.mrf.mxu0
  %v4658 = vadd.f32 0.0, %v4657
  %v4659 = vpop.f32.mrf.mxu0
  %4660 = vmatprep.mubr.f32.mxu0 %v4461
  %4661 = vmatmul.mubr.f32.gmra.mxu0 %v4460
  %v4662 = vpop.f32.mrf.mxu0
  %v4663 = vadd.f32 0.0, %v4662
  %v4664 = vpop.f32.mrf.mxu0
  %4665 = vmatprep.mubr.f32.mxu0 %v4466
  %4666 = vmatmul.mubr.f32.gmra.mxu0 %v4465
  %v4667 = vpop.f32.mrf.mxu0
  %v4668 = vadd.f32 0.0, %v4667
  %v4669 = vpop.f32.mrf.mxu0
  %4670 = vmatprep.mubr.f32.mxu0 %v4471
  %4671 = vmatmul.mubr.f32.gmra.mxu0 %v4470
  %v4672 = vpop.f32.mrf.mxu0
  %v4673 = vadd.f32 0.0, %v4672
  %v4674 = vpop.f32.mrf.mxu0
  %4675 = vmatprep.mubr.f32.mxu0 %v4476
  %4676 = vmatmul.mubr.f32.gmra.mxu0 %v4475
  %v4677 = vpop.f32.mrf.mxu0
  %v4678 = vadd.f32 0.0, %v4677
  %v4679 = vpop.f32.mrf.mxu0
  %4680 = vmatprep.mubr.f32.mxu0 %v4481
  %4681 = vmatmul.mubr.f32.gmra.mxu0 %v4480
  %v4682 = vpop.f32.mrf.mxu0
  %v4683 = vadd.f32 0.0, %v4682
  %v4684 = vpop.f32.mrf.mxu0
  %4685 = vmatprep.mubr.f32.mxu0 %v4486
  %4686 = vmatmul.mubr.f32.gmra.mxu0 %v4485
  %v4687 = vpop.f32.mrf.mxu0
  %v4688 = vadd.f32 0.0, %v4687
  %v4689 = vpop.f32.mrf.mxu0
  %4690 = vmatprep.mubr.f32.mxu0 %v4491
  %4691 = vmatmul.mubr.f32.gmra.mxu0 %v4490
  %v4692 = vpop.f32.mrf.mxu0
  %v4693 = vadd.f32 0.0, %v4692
  %v4694 = vpop.f32.mrf.mxu0
  %4695 = vdwg.mxu0
  %4696 = vmatprep.subr.mxu0 0.0
  %4697 = vmatpush1.msra.mxu0 %v4542
  %4698 = vmatprep.subr.mxu0 0.0
  %4699 = vmatpush1.msra.mxu0 %v4541
  %4700 = vmatprep.subr.mxu0 0.0
  %4701 = vmatpush1.msra.mxu0 %v4540
  %4702 = vmatprep.subr.mxu0 0.0
  %4703 = vmatpush1.msra.mxu0 %v4539
  %4704 = vmatprep.subr.mxu0 0.0
  %4705 = vmatpush1.msra.mxu0 %v4538
  %4706 = vmatprep.subr.mxu0 0.0
  %4707 = vmatpush1.msra.mxu0 %v4537
  %4708 = vmatprep.subr.mxu0 0.0
  %4709 = vmatpush1.msra.mxu0 %v4536
  %4710 = vmatprep.subr.mxu0 0.0
  %4711 = vmatpush1.msra.mxu0 %v4535
  %4712 = vmatprep.subr.mxu0 0.0
  %4713 = vmatpush1.msra.mxu0 %v4534
  %4714 = vmatprep.subr.mxu0 0.0
  %4715 = vmatpush1.msra.mxu0 %v4533
  %4716 = vmatprep.subr.mxu0 0.0
  %4717 = vmatpush1.msra.mxu0 %v4532
  %4718 = vmatprep.subr.mxu0 0.0
  %4719 = vmatpush1.msra.mxu0 %v4531
  %4720 = vmatprep.subr.mxu0 0.0
  %4721 = vmatpush1.msra.mxu0 %v4530
  %4722 = vmatprep.subr.mxu0 0.0
  %4723 = vmatpush1.msra.mxu0 %v4529
  %4724 = vmatprep.subr.mxu0 0.0
  %4725 = vmatpush1.msra.mxu0 %v4528
  %4726 = vmatprep.subr.mxu0 0.0
  %4727 = vmatpush1.msra.mxu0 %v4527
  %4728 = vmatprep.subr.mxu0 0.0
  %4729 = vmatpush2.msra.mxu0 %v4558
  %4730 = vmatprep.subr.mxu0 0.0
  %4731 = vmatpush2.msra.mxu0 %v4557
  %4732 = vmatprep.subr.mxu0 0.0
  %4733 = vmatpush2.msra.mxu0 %v4556
  %4734 = vmatprep.subr.mxu0 0.0
  %4735 = vmatpush2.msra.mxu0 %v4555
  %4736 = vmatprep.subr.mxu0 0.0
  %4737 = vmatpush2.msra.mxu0 %v4554
  %4738 = vmatprep.subr.mxu0 0.0
  %4739 = vmatpush2.msra.mxu0 %v4553
  %4740 = vmatprep.subr.mxu0 0.0
  %4741 = vmatpush2.msra.mxu0 %v4552
  %4742 = vmatprep.subr.mxu0 0.0
  %4743 = vmatpush2.msra.mxu0 %v4551
  %4744 = vmatprep.subr.mxu0 0.0
  %4745 = vmatpush2.msra.mxu0 %v4550
  %4746 = vmatprep.subr.mxu0 0.0
  %4747 = vmatpush2.msra.mxu0 %v4549
  %4748 = vmatprep.subr.mxu0 0.0
  %4749 = vmatpush2.msra.mxu0 %v4548
  %4750 = vmatprep.subr.mxu0 0.0
  %4751 = vmatpush2.msra.mxu0 %v4547
  %4752 = vmatprep.subr.mxu0 0.0
  %4753 = vmatpush2.msra.mxu0 %v4546
  %4754 = vmatprep.subr.mxu0 0.0
  %4755 = vmatpush2.msra.mxu0 %v4545
  %4756 = vmatprep.subr.mxu0 0.0
  %4757 = vmatpush2.msra.mxu0 %v4544
  %4758 = vmatprep.subr.mxu0 0.0
  %4759 = vmatpush2.msra.mxu0 %v4543
  %4760 = vmatprep.mubr.f32.mxu0 %v4458
  %4761 = vmatmul.mubr.f32.gmra.mxu0 %v4457
  %v4762 = vpop.f32.mrf.mxu0
  %v4763 = vadd.f32 %v4658, %v4762
  %v4764 = vpop.f32.mrf.mxu0
  %4765 = vmatprep.mubr.f32.mxu0 %v4463
  %4766 = vmatmul.mubr.f32.gmra.mxu0 %v4462
  %v4767 = vpop.f32.mrf.mxu0
  %v4768 = vadd.f32 %v4663, %v4767
  %v4769 = vpop.f32.mrf.mxu0
  %4770 = vmatprep.mubr.f32.mxu0 %v4468
  %4771 = vmatmul.mubr.f32.gmra.mxu0 %v4467
  %v4772 = vpop.f32.mrf.mxu0
  %v4773 = vadd.f32 %v4668, %v4772
  %v4774 = vpop.f32.mrf.mxu0
  %4775 = vmatprep.mubr.f32.mxu0 %v4473
  %4776 = vmatmul.mubr.f32.gmra.mxu0 %v4472
  %v4777 = vpop.f32.mrf.mxu0
  %v4778 = vadd.f32 %v4673, %v4777
  %v4779 = vpop.f32.mrf.mxu0
  %4780 = vmatprep.mubr.f32.mxu0 %v4478
  %4781 = vmatmul.mubr.f32.gmra.mxu0 %v4477
  %v4782 = vpop.f32.mrf.mxu0
  %v4783 = vadd.f32 %v4678, %v4782
  %v4784 = vpop.f32.mrf.mxu0
  %4785 = vmatprep.mubr.f32.mxu0 %v4483
  %4786 = vmatmul.mubr.f32.gmra.mxu0 %v4482
  %v4787 = vpop.f32.mrf.mxu0
  %v4788 = vadd.f32 %v4683, %v4787
  %v4789 = vpop.f32.mrf.mxu0
  %4790 = vmatprep.mubr.f32.mxu0 %v4488
  %4791 = vmatmul.mubr.f32.gmra.mxu0 %v4487
  %v4792 = vpop.f32.mrf.mxu0
  %v4793 = vadd.f32 %v4688, %v4792
  %v4794 = vpop.f32.mrf.mxu0
  %4795 = vmatprep.mubr.f32.mxu0 %v4493
  %4796 = vmatmul.mubr.f32.gmra.mxu0 %v4492
  %v4797 = vpop.f32.mrf.mxu0
  %v4798 = vadd.f32 %v4693, %v4797
  %v4799 = vpop.f32.mrf.mxu0
  %4800 = vdwg.mxu0
  %4801 = vmatprep.subr.mxu0 0.0
  %4802 = vmatpush1.msra.mxu0 0.0
  %4803 = vmatprep.subr.mxu0 0.0
  %4804 = vmatpush1.msra.mxu0 0.0
  %4805 = vmatprep.subr.mxu0 0.0
  %4806 = vmatpush1.msra.mxu0 0.0
  %4807 = vmatprep.subr.mxu0 0.0
  %4808 = vmatpush1.msra.mxu0 0.0
  %4809 = vmatprep.subr.mxu0 0.0
  %4810 = vmatpush1.msra.mxu0 0.0
  %4811 = vmatprep.subr.mxu0 0.0
  %4812 = vmatpush1.msra.mxu0 0.0
  %4813 = vmatprep.subr.mxu0 0.0
  %4814 = vmatpush1.msra.mxu0 0.0
  %4815 = vmatprep.subr.mxu0 0.0
  %4816 = vmatpush1.msra.mxu0 0.0
  %4817 = vmatprep.subr.mxu0 0.0
  %4818 = vmatpush1.msra.mxu0 %v4566
  %4819 = vmatprep.subr.mxu0 0.0
  %4820 = vmatpush1.msra.mxu0 %v4565
  %4821 = vmatprep.subr.mxu0 0.0
  %4822 = vmatpush1.msra.mxu0 %v4564
  %4823 = vmatprep.subr.mxu0 0.0
  %4824 = vmatpush1.msra.mxu0 %v4563
  %4825 = vmatprep.subr.mxu0 0.0
  %4826 = vmatpush1.msra.mxu0 %v4562
  %4827 = vmatprep.subr.mxu0 0.0
  %4828 = vmatpush1.msra.mxu0 %v4561
  %4829 = vmatprep.subr.mxu0 0.0
  %4830 = vmatpush1.msra.mxu0 %v4560
  %4831 = vmatprep.subr.mxu0 0.0
  %4832 = vmatpush1.msra.mxu0 %v4559
  %4833 = vmatprep.subr.mxu0 0.0
  %4834 = vmatpush2.msra.mxu0 0.0
  %4835 = vmatprep.subr.mxu0 0.0
  %4836 = vmatpush2.msra.mxu0 0.0
  %4837 = vmatprep.subr.mxu0 0.0
  %4838 = vmatpush2.msra.mxu0 0.0
  %4839 = vmatprep.subr.mxu0 0.0
  %4840 = vmatpush2.msra.mxu0 0.0
  %4841 = vmatprep.subr.mxu0 0.0
  %4842 = vmatpush2.msra.mxu0 0.0
  %4843 = vmatprep.subr.mxu0 0.0
  %4844 = vmatpush2.msra.mxu0 0.0
  %4845 = vmatprep.subr.mxu0 0.0
  %4846 = vmatpush2.msra.mxu0 0.0
  %4847 = vmatprep.subr.mxu0 0.0
  %4848 = vmatpush2.msra.mxu0 0.0
  %4849 = vmatprep.subr.mxu0 0.0
  %4850 = vmatpush2.msra.mxu0 0.0
  %4851 = vmatprep.subr.mxu0 0.0
  %4852 = vmatpush2.msra.mxu0 0.0
  %4853 = vmatprep.subr.mxu0 0.0
  %4854 = vmatpush2.msra.mxu0 0.0
  %4855 = vmatprep.subr.mxu0 0.0
  %4856 = vmatpush2.msra.mxu0 0.0
  %4857 = vmatprep.subr.mxu0 0.0
  %4858 = vmatpush2.msra.mxu0 0.0
  %4859 = vmatprep.subr.mxu0 0.0
  %4860 = vmatpush2.msra.mxu0 0.0
  %4861 = vmatprep.subr.mxu0 0.0
  %4862 = vmatpush2.msra.mxu0 0.0
  %4863 = vmatprep.subr.mxu0 0.0
  %4864 = vmatpush2.msra.mxu0 0.0
  %4865 = vmatprep.mubr.f32.mxu0 0.0
  %4866 = vmatmul.mubr.f32.gmra.mxu0 %v4568
  %v4867 = vpop.f32.mrf.mxu0
  %v4868 = vadd.f32 %v4763, %v4867
  %v4869 = vpop.f32.mrf.mxu0
  %4870 = vmatprep.mubr.f32.mxu0 0.0
  %4871 = vmatmul.mubr.f32.gmra.mxu0 %v4571
  %v4872 = vpop.f32.mrf.mxu0
  %v4873 = vadd.f32 %v4768, %v4872
  %v4874 = vpop.f32.mrf.mxu0
  %4875 = vmatprep.mubr.f32.mxu0 0.0
  %4876 = vmatmul.mubr.f32.gmra.mxu0 %v4574
  %v4877 = vpop.f32.mrf.mxu0
  %v4878 = vadd.f32 %v4773, %v4877
  %v4879 = vpop.f32.mrf.mxu0
  %4880 = vmatprep.mubr.f32.mxu0 0.0
  %4881 = vmatmul.mubr.f32.gmra.mxu0 %v4577
  %v4882 = vpop.f32.mrf.mxu0
  %v4883 = vadd.f32 %v4778, %v4882
  %v4884 = vpop.f32.mrf.mxu0
  %4885 = vmatprep.mubr.f32.mxu0 0.0
  %4886 = vmatmul.mubr.f32.gmra.mxu0 %v4580
  %v4887 = vpop.f32.mrf.mxu0
  %v4888 = vadd.f32 %v4783, %v4887
  %v4889 = vpop.f32.mrf.mxu0
  %4890 = vmatprep.mubr.f32.mxu0 0.0
  %4891 = vmatmul.mubr.f32.gmra.mxu0 %v4583
  %v4892 = vpop.f32.mrf.mxu0
  %v4893 = vadd.f32 %v4788, %v4892
  %v4894 = vpop.f32.mrf.mxu0
  %4895 = vmatprep.mubr.f32.mxu0 0.0
  %4896 = vmatmul.mubr.f32.gmra.mxu0 %v4586
  %v4897 = vpop.f32.mrf.mxu0
  %v4898 = vadd.f32 %v4793, %v4897
  %v4899 = vpop.f32.mrf.mxu0
  %4900 = vmatprep.mubr.f32.mxu0 0.0
  %4901 = vmatmul.mubr.f32.gmra.mxu0 %v4589
  %v4902 = vpop.f32.mrf.mxu0
  %v4903 = vadd.f32 %v4798, %v4902
  %v4904 = vpop.f32.mrf.mxu0
  %4905 = vdwg.mxu0
  %4906 = vst.msk [vmem:[%s6] sm:$0xff] %vm23, %v4868
  %4907 = vst.msk [vmem:[%s6 + $0x8] sm:$0xff] %vm23, %v4873
  %4908 = vst.msk [vmem:[%s6 + $0x10] sm:$0xff] %vm23, %v4878
  %4909 = vst.msk [vmem:[%s6 + $0x18] sm:$0xff] %vm23, %v4883
  %4910 = vst.msk [vmem:[%s6 + $0x20] sm:$0xff] %vm23, %v4888
  %4911 = vst.msk [vmem:[%s6 + $0x28] sm:$0xff] %vm23, %v4893
  %4912 = vst.msk [vmem:[%s6 + $0x30] sm:$0xff] %vm23, %v4898
  %4913 = vst.msk [vmem:[%s6 + $0x38] sm:$0xff] %vm23, %v4903
  %v4914 = vld [vmem:[%s6] sm:$0xff]
  %v4915 = vld [vmem:[%s6 + $0x8] sm:$0xff]
  %v4916 = vld [vmem:[%s6 + $0x10] sm:$0xff]
  %v4917 = vld [vmem:[%s6 + $0x18] sm:$0xff]
  %v4918 = vld [vmem:[%s6 + $0x20] sm:$0xff]
  %v4919 = vld [vmem:[%s6 + $0x28] sm:$0xff]
  %v4920 = vld [vmem:[%s6 + $0x30] sm:$0xff]
  %v4921 = vld [vmem:[%s6 + $0x38] sm:$0xff]
  %v4922 = vsel %vm4052, %v4914, 0.0
  %v4923 = vsel %vm4053, %v4915, 0.0
  %v4924 = vsel %vm4054, %v4916, 0.0
  %v4925 = vsel %vm4055, %v4917, 0.0
  %v4926 = vsel %vm4056, %v4918, 0.0
  %v4927 = vsel %vm4057, %v4919, 0.0
  %v4928 = vsel %vm4058, %v4920, 0.0
  %v4929 = vsel %vm4059, %v4921, 0.0
  %v4930 = vsel %vm23, %v4922, 0.0
  %v4931 = vsel %vm23, %v4923, 0.0
  %v4932 = vadd.f32 %v4930, %v4931
  %v4933 = vsel %vm23, %v4924, 0.0
  %v4934 = vadd.f32 %v4932, %v4933
  %v4935 = vsel %vm23, %v4925, 0.0
  %v4936 = vadd.f32 %v4934, %v4935
  %v4937 = vsel %vm23, %v4926, 0.0
  %v4938 = vadd.f32 %v4936, %v4937
  %v4939 = vsel %vm23, %v4927, 0.0
  %v4940 = vadd.f32 %v4938, %v4939
  %v4941 = vsel %vm23, %v4928, 0.0
  %v4942 = vadd.f32 %v4940, %v4941
  %v4943 = vsel %vm23, %v4929, 0.0
  %v4944 = vadd.f32 %v4942, %v4943
  %v4945 = vrot.slane %v4944, 4
  %v4946 = vadd.f32 %v4944, %v4945
  %v4947 = vrot.slane %v4946, 2
  %v4948 = vadd.f32 %v4946, %v4947
  %v4949 = vrot.slane %v4948, 1
  %v4950 = vadd.f32 %v4948, %v4949
  %v4951 = vmul.f32 %v4922, %v4914
  %v4952 = vmul.f32 %v4923, %v4915
  %v4953 = vmul.f32 %v4924, %v4916
  %v4954 = vmul.f32 %v4925, %v4917
  %v4955 = vmul.f32 %v4926, %v4918
  %v4956 = vmul.f32 %v4927, %v4919
  %v4957 = vmul.f32 %v4928, %v4920
  %v4958 = vmul.f32 %v4929, %v4921
  %v4959 = vsel %vm23, %v4951, 0.0
  %v4960 = vsel %vm23, %v4952, 0.0
  %v4961 = vadd.f32 %v4959, %v4960
  %v4962 = vsel %vm23, %v4953, 0.0
  %v4963 = vadd.f32 %v4961, %v4962
  %v4964 = vsel %vm23, %v4954, 0.0
  %v4965 = vadd.f32 %v4963, %v4964
  %v4966 = vsel %vm23, %v4955, 0.0
  %v4967 = vadd.f32 %v4965, %v4966
  %v4968 = vsel %vm23, %v4956, 0.0
  %v4969 = vadd.f32 %v4967, %v4968
  %v4970 = vsel %vm23, %v4957, 0.0
  %v4971 = vadd.f32 %v4969, %v4970
  %v4972 = vsel %vm23, %v4958, 0.0
  %v4973 = vadd.f32 %v4971, %v4972
  %v4974 = vrot.slane %v4973, 4
  %v4975 = vadd.f32 %v4973, %v4974
  %v4976 = vrot.slane %v4975, 2
  %v4977 = vadd.f32 %v4975, %v4976
  %v4978 = vrot.slane %v4977, 1
  %v4979 = vadd.f32 %v4977, %v4978
  %v4980 = vmul.f32 %v4950, 0.125
  %v4981 = vmul.f32 %v4979, 0.125
  %v4982 = vmul.f32 %v4980, %v4980
  %v4983 = vsub.f32 %v4981, %v4982
  %v4984 = vld [vmem:[%s5 + $0x6] sm:$0x1]
  %v4985 = vld [vmem:[%s5 + $0x7] sm:$0x1]
  %v4986 = vadd.f32 %v4983, 1e-05
  %v4987 = vrsqrt.pop %v4986
  %v4988 = vmul.f32 %v4984, %v4987
  %v4989 = vsub.f32 %v4914, %v4980
  %v4990 = vsub.f32 %v4915, %v4980
  %v4991 = vsub.f32 %v4916, %v4980
  %v4992 = vsub.f32 %v4917, %v4980
  %v4993 = vsub.f32 %v4918, %v4980
  %v4994 = vsub.f32 %v4919, %v4980
  %v4995 = vsub.f32 %v4920, %v4980
  %v4996 = vsub.f32 %v4921, %v4980
  %v4997 = vlaneseq
  %v4998 = vshrl.u32 %v4997, 7
  %v4999 = vsub.s32 0, %v4998
  %v5000 = vrot.slane %v4988, %v4999
  %v5001 = vmul.f32 %v4989, %v5000
  %v5002 = vmul.f32 %v4990, %v5000
  %v5003 = vmul.f32 %v4991, %v5000
  %v5004 = vmul.f32 %v4992, %v5000
  %v5005 = vmul.f32 %v4993, %v5000
  %v5006 = vmul.f32 %v4994, %v5000
  %v5007 = vmul.f32 %v4995, %v5000
  %v5008 = vmul.f32 %v4996, %v5000
  %v5009 = vlaneseq
  %v5010 = vshrl.u32 %v5009, 7
  %v5011 = vsub.s32 0, %v5010
  %v5012 = vrot.slane %v4985, %v5011
  %v5013 = vadd.f32 %v5001, %v5012
  %v5014 = vadd.f32 %v5002, %v5012
  %v5015 = vadd.f32 %v5003, %v5012
  %v5016 = vadd.f32 %v5004, %v5012
  %v5017 = vadd.f32 %v5005, %v5012
  %v5018 = vadd.f32 %v5006, %v5012
  %v5019 = vadd.f32 %v5007, %v5012
  %v5020 = vadd.f32 %v5008, %v5012
  %v5021 = vmax.f32 %v5013, 0.0
  %v5022 = vmax.f32 %v5014, 0.0
  %v5023 = vmax.f32 %v5015, 0.0
  %v5024 = vmax.f32 %v5016, 0.0
  %v5025 = vmax.f32 %v5017, 0.0
  %v5026 = vmax.f32 %v5018, 0.0
  %v5027 = vmax.f32 %v5019, 0.0
  %v5028 = vmax.f32 %v5020, 0.0
  %5029 = vst.msk [vmem:[%s6] sm:$0xff] %vm23, %v5021
  %5030 = vst.msk [vmem:[%s6 + $0x8] sm:$0xff] %vm23, %v5022
  %5031 = vst.msk [vmem:[%s6 + $0x10] sm:$0xff] %vm23, %v5023
  %5032 = vst.msk [vmem:[%s6 + $0x18] sm:$0xff] %vm23, %v5024
  %5033 = vst.msk [vmem:[%s6 + $0x20] sm:$0xff] %vm23, %v5025
  %5034 = vst.msk [vmem:[%s6 + $0x28] sm:$0xff] %vm23, %v5026
  %5035 = vst.msk [vmem:[%s6 + $0x30] sm:$0xff] %vm23, %v5027
  %5036 = vst.msk [vmem:[%s6 + $0x38] sm:$0xff] %vm23, %v5028
  // Predicated region
  $region26: #{cnnencoder_forward.1} parent=0 // pred_check
    _
  $region27: #{cnnencoder_forward.1} parent=0 // pred_check_branch
    %5038 = sbr.rel (0) target = $region29
  $region28: #{cnnencoder_forward.1} parent=0 // pred_region
    _
  $region29: #{cnnencoder_forward.1} parent=0 // pred_fallthru
    _
  // Predicated region
  $region30: #{cnnencoder_forward.1} parent=0 // pred_check
    _
  $region31: #{cnnencoder_forward.1} parent=0 // pred_check_branch
    %5040 = sbr.rel (0) target = $region33
  $region32: #{cnnencoder_forward.1} parent=0 // pred_region
    _
  $region33: #{cnnencoder_forward.1} parent=0 // pred_fallthru
    _

</llo_original>
